<compile_context>
chip_gen: v6e
topology: v6e:2x2x1
jax: 0.10.0
libtpu: 0.0.40
codegen_flags: <defaults>
</compile_context>

<pallas_src>
import math

import numpy as np
import jax
import jax.numpy as jnp
from jax.experimental import pallas as pl
from jax.experimental.pallas import tpu as pltpu


# ---------------------------------------------------------------------------
# Fixed linear maps: Upsample(x2, linear, align_corners=False) and reflect pad.
# ---------------------------------------------------------------------------
def upsample_matrix(L):
    """Matches nn.Upsample(scale_factor=2, mode='linear', align_corners=False)."""
    U = np.zeros((2 * L, L), dtype=np.float32)
    for t in range(2 * L):
        src = (t + 0.5) / 2.0 - 0.5
        src = max(src, 0.0)
        i0 = int(math.floor(src))
        i1 = min(i0 + 1, L - 1)
        lam = src - i0
        U[t, i0] += 1.0 - lam
        U[t, i1] += lam
    return U


def reflect_pad_matrix(M, p):
    """Matches F.pad(x, (p, p), mode='reflect') on the last axis (length M)."""
    P = np.zeros((M + 2 * p, M), dtype=np.float32)
    for s in range(M + 2 * p):
        r = s - p
        if r < 0:
            r = -r
        if r >= M:
            r = 2 * M - 2 - r
        P[s, r] = 1.0
    return P


# ---------------------------------------------------------------------------
# Fused per-batch kernel: all 6 TCN layers, activations stay in vregs.
# ---------------------------------------------------------------------------
def make_kernel(layer_ks, C, T, input_feats):
    """layer_ks: static list of kernel sizes K per layer."""
    num_layers = len(layer_ks)
    inv_sqrt2 = 1.0 / math.sqrt(2.0)

    def kernel(zt_ref, mask_ref, a_ref, w_ref, b_ref, out_ref):
        # h: (C, T) canvas. Column 0 holds z + actionBiases[y]; the rest is 0.
        h = zt_ref[0]
        off = 0
        for i, K in enumerate(layer_ks):
            # Stacked conv taps: Wstack = [W_0; W_1; ...; W_{K-1}], (K*C, C).
            wst = w_ref[off * C:(off + K) * C, :]
            g = jnp.dot(wst, h, preferred_element_type=jnp.float32)   # (K*C, T)
            # out = sum_k W_k @ h @ A_shift_k^T  (A pad rows/cols are zero).
            s = jnp.dot(g[0:C, :], a_ref[off],
                        preferred_element_type=jnp.float32)           # (C, T)
            for k in range(1, K):
                s = s + jnp.dot(g[k * C:(k + 1) * C, :], a_ref[off + k],
                                preferred_element_type=jnp.float32)
            h = s + b_ref[i]                                          # (C, T)
            if i != num_layers - 1:
                # exact GELU (PyTorch nn.GELU default)
                h = 0.5 * h * (1.0 + jax.lax.erf(h * inv_sqrt2))
            off += K
        # Zero masked frames; emit the (input_feats, T) slab for this batch.
        out_ref[0] = h[:input_feats, :] * mask_ref[0]

    return kernel


# ---------------------------------------------------------------------------
# Parameter construction (deterministic, mirrors module __init__ shapes).
# ---------------------------------------------------------------------------
def build_params(key, njoints, nfeats, latent_dim, num_classes, num_layers=6):
    input_feats = njoints * nfeats
    k_ab, key = jax.random.split(key)
    actionBiases = jax.random.normal(k_ab, (num_classes, latent_dim), jnp.float32)

    layers = []
    Lin = 1
    for i in range(num_layers):
        if i < 2:
            ksz = 1
        elif i < 4:
            ksz = 7
        else:
            ksz = 15
        pad = (ksz - 1) // 2
        Cin = latent_dim
        Cout = input_feats if i == num_layers - 1 else latent_dim

        # kaiming_uniform_(a=sqrt(5)) -> bound = 1/sqrt(fan_in); same for bias
        fan_in = Cin * ksz
        bound = 1.0 / math.sqrt(fan_in)
        kw, kb, key = jax.random.split(key, 3)
        w = jax.random.uniform(kw, (Cout, Cin, ksz), jnp.float32, -bound, bound)
        b = jax.random.uniform(kb, (Cout,), jnp.float32, -bound, bound)

        A = reflect_pad_matrix(2 * Lin, pad) @ upsample_matrix(Lin)  # (Lpad, Lin)
        layers.append(dict(A=A, w=w, b=b,
                           K=ksz, Lin=Lin, Lpad=A.shape[0], Lout=2 * Lin,
                           Cout=Cout))
        Lin *= 2
    return dict(actionBiases=actionBiases, layers=layers), key


# ---------------------------------------------------------------------------
# Forward pass (single fused Pallas call) and a pure-JAX reference.
# ---------------------------------------------------------------------------
def decoder_forward(params, z, y, mask, njoints, nfeats):
    bs, C = z.shape                      # C = latent_dim
    nframes = mask.shape[1]
    layers = params['layers']
    num_layers = len(layers)
    input_feats = njoints * nfeats
    T = nframes
    assert nframes == layers[-1]['Lout'], "nframes must equal 2**num_layers"
    assert input_feats <= C and C % 8 == 0

    # --- pack per-layer constants into 3 zero-padded arrays (host side) ---
    A_list, W_list, b_list, layer_ks = [], [], [], []
    for layer in layers:
        K, Lin, Lout = layer['K'], layer['Lin'], layer['Lout']
        A = np.asarray(layer['A'], dtype=np.float32)     # (Lpad, Lin)
        w = np.asarray(layer['w'], dtype=np.float32)     # (Cout, C, K)
        b = np.asarray(layer['b'], dtype=np.float32)     # (Cout,)
        Cout = w.shape[0]
        for k in range(K):
            # A_shift_k^T padded to (T, T); rows>=Lin and cols>=Lout are zero.
            A_T = np.zeros((T, T), np.float32)
            A_T[:Lin, :Lout] = A[k:k + Lout, :].T
            A_list.append(A_T)
            # W_k = w[:, :, k] padded to (C, C) rows (last layer Cout < C).
            Wk = np.zeros((C, C), np.float32)
            Wk[:Cout, :] = w[:, :, k]
            W_list.append(Wk)
        bp = np.zeros((C, 1), np.float32)
        bp[:Cout, 0] = b
        b_list.append(bp)
        layer_ks.append(K)

    S = len(A_list)                                   # total shift count (46)
    A_all = jnp.asarray(np.stack(A_list))             # (S, T, T)
    W_all = jnp.asarray(np.concatenate(W_list, 0))    # (S*C, C)
    b_all = jnp.asarray(np.stack(b_list))             # (num_layers, C, 1)

    # z + actionBiases[y], placed in column 0 of a zero (C, T) canvas.
    zt = z + params['actionBiases'][y]                               # (bs, C)
    zt_pad = jnp.zeros((bs, C, T), jnp.float32).at[:, :, 0].set(zt)  # (bs,C,T)
    mask_f = mask.astype(jnp.float32).reshape(bs, 1, T)

    kernel = make_kernel(layer_ks, C, T, input_feats)

    out = pl.pallas_call(
        kernel,
        out_shape=jax.ShapeDtypeStruct((bs, input_feats, T), jnp.float32),
        grid=(bs,),
        in_specs=[
            pl.BlockSpec((1, C, T), lambda b: (b, 0, 0)),       # zt canvas
            pl.BlockSpec((1, 1, T), lambda b: (b, 0, 0)),       # mask row
            pl.BlockSpec((S, T, T), lambda b: (0, 0, 0)),       # A_all (shared)
            pl.BlockSpec((S * C, C), lambda b: (0, 0)),         # W_all (shared)
            pl.BlockSpec((num_layers, C, 1), lambda b: (0, 0, 0)),  # b_all
        ],
        out_specs=pl.BlockSpec((1, input_feats, T), lambda b: (b, 0, 0)),
        compiler_params=pltpu.CompilerParams(
            dimension_semantics=("parallel",)),
    )(zt_pad, mask_f, A_all, W_all, b_all)

    # channels are already (njoints*nfeats)-major with time last -> free reshape
    return out.reshape(bs, njoints, nfeats, nframes)


def reference_forward(params, z, y, mask, njoints, nfeats):
    h = (z + params['actionBiases'][y])[:, None, :]              # (bs, 1, C)
    n = len(params['layers'])
    for i, layer in enumerate(params['layers']):
        A = jnp.asarray(layer['A'])                              # (Lpad, Lin)
        w = layer['w']                                           # (Cout, Cin, K)
        b = layer['b']                                           # (Cout,)
        xp = jnp.einsum('pl,blc->bpc', A, h)
        K = w.shape[2]
        Lout = xp.shape[1] - K + 1
        acc = jnp.zeros((h.shape[0], Lout, w.shape[0]), jnp.float32)
        for k in range(K):
            acc = acc + jnp.einsum('blc,oc->blo', xp[:, k:k + Lout], w[:, :, k])
        acc = acc + b[None, None, :]
        if i != n - 1:
            acc = 0.5 * acc * (1.0 + jax.lax.erf(acc / jnp.sqrt(2.0)))
        h = acc
    h = h * mask.astype(h.dtype)[:, :, None]
    bs, nframes, _ = h.shape
    return jnp.transpose(h, (0, 2, 1)).reshape(bs, njoints, nfeats, nframes)


if __name__ == "__main__":
    njoints, nfeats = 4, 3
    latent_dim = 32
    num_classes = 5
    num_layers = 6
    bs = 2
    nframes = 2 ** num_layers   # 64: forced by the x2 upsampling chain from L=1

    key = jax.random.PRNGKey(0)
    params, key = build_params(key, njoints, nfeats, latent_dim,
                               num_classes, num_layers)

    kz, ky = jax.random.split(key)
    z = jax.random.normal(kz, (bs, latent_dim), jnp.float32)
    y = jax.random.randint(ky, (bs,), 0, num_classes)
    lengths = jnp.array([nframes, nframes - 10], dtype=jnp.int32)
    mask = jnp.arange(nframes)[None, :] < lengths[:, None]   # (bs, nframes) bool

    out = decoder_forward(params, z, y, mask, njoints, nfeats)
    out = jax.block_until_ready(out)
    assert out.shape == (bs, njoints, nfeats, nframes)

    ref = jax.block_until_ready(
        reference_forward(params, z, y, mask, njoints, nfeats))
    np.testing.assert_allclose(np.asarray(out), np.asarray(ref),
                               rtol=1e-4, atol=1e-4)
    print("KERNEL_OK")
</pallas_src>

<mosaic_0001>
module attributes {stable_mosaic.version = 11 : i64} {
  func.func @kernel(%arg0: i32, %arg1: memref<1x32x64xf32, #tpu.memory_space<vmem>>, %arg2: memref<1x1x64xf32, #tpu.memory_space<vmem>>, %arg3: memref<46x64x64xf32, #tpu.memory_space<vmem>>, %arg4: memref<1472x32xf32, #tpu.memory_space<vmem>>, %arg5: memref<6x32x1xf32, #tpu.memory_space<vmem>>, %arg6: memref<1x12x64xf32, #tpu.memory_space<vmem>>) attributes {dimension_semantics = [#tpu.dimension_semantics<parallel>], iteration_bounds = array<i64: 2>, scalar_prefetch = 0 : i64, scratch_operands = 0 : i64, tpu.core_type = #tpu.core_type<tc>, window_params = [{transform_indices = @transform_0, window_bounds = array<i64: 1, 32, 64>}, {transform_indices = @transform_1, window_bounds = array<i64: 1, 1, 64>}, {pipeline_mode = #tpu.pipeline_mode<synchronous>, transform_indices = @transform_2, window_bounds = array<i64: 46, 64, 64>}, {pipeline_mode = #tpu.pipeline_mode<synchronous>, transform_indices = @transform_3, window_bounds = array<i64: 1472, 32>}, {pipeline_mode = #tpu.pipeline_mode<synchronous>, transform_indices = @transform_4, window_bounds = array<i64: 6, 32, 1>}, {transform_indices = @transform_5, window_bounds = array<i64: 1, 12, 64>}]} {
    %c0 = arith.constant 0 : index
    %c0_0 = arith.constant 0 : index
    %c0_1 = arith.constant 0 : index
    %0 = vector.load %arg1[%c0, %c0_0, %c0_1] : memref<1x32x64xf32, #tpu.memory_space<vmem>>, vector<1x32x64xf32>
    %1 = vector.shape_cast %0 : vector<1x32x64xf32> to vector<32x64xf32>
    %c0_2 = arith.constant 0 : index
    %c0_3 = arith.constant 0 : index
    %2 = vector.load %arg4[%c0_2, %c0_3] : memref<1472x32xf32, #tpu.memory_space<vmem>>, vector<32x32xf32>
    %cst = arith.constant dense<0.000000e+00> : vector<32x64xf32>
    %3 = tpu.matmul %2, %1, %cst {dimension_numbers = #tpu.dot_dimension_numbers<[1], [0], [0], [1], [0, 0, 1, 1], [], []>} : vector<32x32xf32>, vector<32x64xf32>, vector<32x64xf32> -> vector<32x64xf32>
    %c0_4 = arith.constant 0 : index
    %c0_5 = arith.constant 0 : index
    %c0_6 = arith.constant 0 : index
    %4 = vector.load %arg3[%c0_4, %c0_5, %c0_6] : memref<46x64x64xf32, #tpu.memory_space<vmem>>, vector<1x64x64xf32>
    %5 = vector.shape_cast %4 : vector<1x64x64xf32> to vector<64x64xf32>
    %cst_7 = arith.constant dense<0.000000e+00> : vector<32x64xf32>
    %6 = tpu.matmul %3, %5, %cst_7 {dimension_numbers = #tpu.dot_dimension_numbers<[1], [0], [0], [1], [0, 0, 1, 1], [], []>} : vector<32x64xf32>, vector<64x64xf32>, vector<32x64xf32> -> vector<32x64xf32>
    %c0_8 = arith.constant 0 : index
    %c0_9 = arith.constant 0 : index
    %c0_10 = arith.constant 0 : index
    %7 = vector.load %arg5[%c0_8, %c0_9, %c0_10] : memref<6x32x1xf32, #tpu.memory_space<vmem>>, vector<1x32x1xf32>
    %8 = vector.shape_cast %7 : vector<1x32x1xf32> to vector<32x1xf32>
    %9 = vector.broadcast %8 : vector<32x1xf32> to vector<32x64xf32>
    %10 = arith.addf %6, %9 : vector<32x64xf32>
    %cst_11 = arith.constant 5.000000e-01 : f32
    %11 = vector.broadcast %cst_11 : f32 to vector<32x64xf32>
    %12 = arith.mulf %11, %10 : vector<32x64xf32>
    %cst_12 = arith.constant 0.707106769 : f32
    %13 = vector.broadcast %cst_12 : f32 to vector<32x64xf32>
    %14 = arith.mulf %10, %13 : vector<32x64xf32>
    %15 = math.erf %14 : vector<32x64xf32>
    %cst_13 = arith.constant 1.000000e+00 : f32
    %16 = vector.broadcast %cst_13 : f32 to vector<32x64xf32>
    %17 = arith.addf %16, %15 : vector<32x64xf32>
    %18 = arith.mulf %12, %17 : vector<32x64xf32>
    %c32 = arith.constant 32 : index
    %c0_14 = arith.constant 0 : index
    %19 = vector.load %arg4[%c32, %c0_14] : memref<1472x32xf32, #tpu.memory_space<vmem>>, vector<32x32xf32>
    %cst_15 = arith.constant dense<0.000000e+00> : vector<32x64xf32>
    %20 = tpu.matmul %19, %18, %cst_15 {dimension_numbers = #tpu.dot_dimension_numbers<[1], [0], [0], [1], [0, 0, 1, 1], [], []>} : vector<32x32xf32>, vector<32x64xf32>, vector<32x64xf32> -> vector<32x64xf32>
    %c1 = arith.constant 1 : index
    %c0_16 = arith.constant 0 : index
    %c0_17 = arith.constant 0 : index
    %21 = vector.load %arg3[%c1, %c0_16, %c0_17] : memref<46x64x64xf32, #tpu.memory_space<vmem>>, vector<1x64x64xf32>
    %22 = vector.shape_cast %21 : vector<1x64x64xf32> to vector<64x64xf32>
    %cst_18 = arith.constant dense<0.000000e+00> : vector<32x64xf32>
    %23 = tpu.matmul %20, %22, %cst_18 {dimension_numbers = #tpu.dot_dimension_numbers<[1], [0], [0], [1], [0, 0, 1, 1], [], []>} : vector<32x64xf32>, vector<64x64xf32>, vector<32x64xf32> -> vector<32x64xf32>
    %c1_19 = arith.constant 1 : index
    %c0_20 = arith.constant 0 : index
    %c0_21 = arith.constant 0 : index
    %24 = vector.load %arg5[%c1_19, %c0_20, %c0_21] : memref<6x32x1xf32, #tpu.memory_space<vmem>>, vector<1x32x1xf32>
    %25 = vector.shape_cast %24 : vector<1x32x1xf32> to vector<32x1xf32>
    %26 = vector.broadcast %25 : vector<32x1xf32> to vector<32x64xf32>
    %27 = arith.addf %23, %26 : vector<32x64xf32>
    %cst_22 = arith.constant 5.000000e-01 : f32
    %28 = vector.broadcast %cst_22 : f32 to vector<32x64xf32>
    %29 = arith.mulf %28, %27 : vector<32x64xf32>
    %cst_23 = arith.constant 0.707106769 : f32
    %30 = vector.broadcast %cst_23 : f32 to vector<32x64xf32>
    %31 = arith.mulf %27, %30 : vector<32x64xf32>
    %32 = math.erf %31 : vector<32x64xf32>
    %cst_24 = arith.constant 1.000000e+00 : f32
    %33 = vector.broadcast %cst_24 : f32 to vector<32x64xf32>
    %34 = arith.addf %33, %32 : vector<32x64xf32>
    %35 = arith.mulf %29, %34 : vector<32x64xf32>
    %c64 = arith.constant 64 : index
    %c0_25 = arith.constant 0 : index
    %36 = vector.load %arg4[%c64, %c0_25] : memref<1472x32xf32, #tpu.memory_space<vmem>>, vector<224x32xf32>
    %cst_26 = arith.constant dense<0.000000e+00> : vector<224x64xf32>
    %37 = tpu.matmul %36, %35, %cst_26 {dimension_numbers = #tpu.dot_dimension_numbers<[1], [0], [0], [1], [0, 0, 1, 1], [], []>} : vector<224x32xf32>, vector<32x64xf32>, vector<224x64xf32> -> vector<224x64xf32>
    %38 = vector.extract_strided_slice %37 {offsets = [0, 0], sizes = [32, 64], strides = [1, 1]} : vector<224x64xf32> to vector<32x64xf32>
    %c2 = arith.constant 2 : index
    %c0_27 = arith.constant 0 : index
    %c0_28 = arith.constant 0 : index
    %39 = vector.load %arg3[%c2, %c0_27, %c0_28] : memref<46x64x64xf32, #tpu.memory_space<vmem>>, vector<1x64x64xf32>
    %40 = vector.shape_cast %39 : vector<1x64x64xf32> to vector<64x64xf32>
    %cst_29 = arith.constant dense<0.000000e+00> : vector<32x64xf32>
    %41 = tpu.matmul %38, %40, %cst_29 {dimension_numbers = #tpu.dot_dimension_numbers<[1], [0], [0], [1], [0, 0, 1, 1], [], []>} : vector<32x64xf32>, vector<64x64xf32>, vector<32x64xf32> -> vector<32x64xf32>
    %42 = vector.extract_strided_slice %37 {offsets = [32, 0], sizes = [32, 64], strides = [1, 1]} : vector<224x64xf32> to vector<32x64xf32>
    %c3 = arith.constant 3 : index
    %c0_30 = arith.constant 0 : index
    %c0_31 = arith.constant 0 : index
    %43 = vector.load %arg3[%c3, %c0_30, %c0_31] : memref<46x64x64xf32, #tpu.memory_space<vmem>>, vector<1x64x64xf32>
    %44 = vector.shape_cast %43 : vector<1x64x64xf32> to vector<64x64xf32>
    %cst_32 = arith.constant dense<0.000000e+00> : vector<32x64xf32>
    %45 = tpu.matmul %42, %44, %cst_32 {dimension_numbers = #tpu.dot_dimension_numbers<[1], [0], [0], [1], [0, 0, 1, 1], [], []>} : vector<32x64xf32>, vector<64x64xf32>, vector<32x64xf32> -> vector<32x64xf32>
    %46 = arith.addf %41, %45 : vector<32x64xf32>
    %47 = vector.extract_strided_slice %37 {offsets = [64, 0], sizes = [32, 64], strides = [1, 1]} : vector<224x64xf32> to vector<32x64xf32>
    %c4 = arith.constant 4 : index
    %c0_33 = arith.constant 0 : index
    %c0_34 = arith.constant 0 : index
    %48 = vector.load %arg3[%c4, %c0_33, %c0_34] : memref<46x64x64xf32, #tpu.memory_space<vmem>>, vector<1x64x64xf32>
    %49 = vector.shape_cast %48 : vector<1x64x64xf32> to vector<64x64xf32>
    %cst_35 = arith.constant dense<0.000000e+00> : vector<32x64xf32>
    %50 = tpu.matmul %47, %49, %cst_35 {dimension_numbers = #tpu.dot_dimension_numbers<[1], [0], [0], [1], [0, 0, 1, 1], [], []>} : vector<32x64xf32>, vector<64x64xf32>, vector<32x64xf32> -> vector<32x64xf32>
    %51 = arith.addf %46, %50 : vector<32x64xf32>
    %52 = vector.extract_strided_slice %37 {offsets = [96, 0], sizes = [32, 64], strides = [1, 1]} : vector<224x64xf32> to vector<32x64xf32>
    %c5 = arith.constant 5 : index
    %c0_36 = arith.constant 0 : index
    %c0_37 = arith.constant 0 : index
    %53 = vector.load %arg3[%c5, %c0_36, %c0_37] : memref<46x64x64xf32, #tpu.memory_space<vmem>>, vector<1x64x64xf32>
    %54 = vector.shape_cast %53 : vector<1x64x64xf32> to vector<64x64xf32>
    %cst_38 = arith.constant dense<0.000000e+00> : vector<32x64xf32>
    %55 = tpu.matmul %52, %54, %cst_38 {dimension_numbers = #tpu.dot_dimension_numbers<[1], [0], [0], [1], [0, 0, 1, 1], [], []>} : vector<32x64xf32>, vector<64x64xf32>, vector<32x64xf32> -> vector<32x64xf32>
    %56 = arith.addf %51, %55 : vector<32x64xf32>
    %57 = vector.extract_strided_slice %37 {offsets = [128, 0], sizes = [32, 64], strides = [1, 1]} : vector<224x64xf32> to vector<32x64xf32>
    %c6 = arith.constant 6 : index
    %c0_39 = arith.constant 0 : index
    %c0_40 = arith.constant 0 : index
    %58 = vector.load %arg3[%c6, %c0_39, %c0_40] : memref<46x64x64xf32, #tpu.memory_space<vmem>>, vector<1x64x64xf32>
    %59 = vector.shape_cast %58 : vector<1x64x64xf32> to vector<64x64xf32>
    %cst_41 = arith.constant dense<0.000000e+00> : vector<32x64xf32>
    %60 = tpu.matmul %57, %59, %cst_41 {dimension_numbers = #tpu.dot_dimension_numbers<[1], [0], [0], [1], [0, 0, 1, 1], [], []>} : vector<32x64xf32>, vector<64x64xf32>, vector<32x64xf32> -> vector<32x64xf32>
    %61 = arith.addf %56, %60 : vector<32x64xf32>
    %62 = vector.extract_strided_slice %37 {offsets = [160, 0], sizes = [32, 64], strides = [1, 1]} : vector<224x64xf32> to vector<32x64xf32>
    %c7 = arith.constant 7 : index
    %c0_42 = arith.constant 0 : index
    %c0_43 = arith.constant 0 : index
    %63 = vector.load %arg3[%c7, %c0_42, %c0_43] : memref<46x64x64xf32, #tpu.memory_space<vmem>>, vector<1x64x64xf32>
    %64 = vector.shape_cast %63 : vector<1x64x64xf32> to vector<64x64xf32>
    %cst_44 = arith.constant dense<0.000000e+00> : vector<32x64xf32>
    %65 = tpu.matmul %62, %64, %cst_44 {dimension_numbers = #tpu.dot_dimension_numbers<[1], [0], [0], [1], [0, 0, 1, 1], [], []>} : vector<32x64xf32>, vector<64x64xf32>, vector<32x64xf32> -> vector<32x64xf32>
    %66 = arith.addf %61, %65 : vector<32x64xf32>
    %67 = vector.extract_strided_slice %37 {offsets = [192, 0], sizes = [32, 64], strides = [1, 1]} : vector<224x64xf32> to vector<32x64xf32>
    %c8 = arith.constant 8 : index
    %c0_45 = arith.constant 0 : index
    %c0_46 = arith.constant 0 : index
    %68 = vector.load %arg3[%c8, %c0_45, %c0_46] : memref<46x64x64xf32, #tpu.memory_space<vmem>>, vector<1x64x64xf32>
    %69 = vector.shape_cast %68 : vector<1x64x64xf32> to vector<64x64xf32>
    %cst_47 = arith.constant dense<0.000000e+00> : vector<32x64xf32>
    %70 = tpu.matmul %67, %69, %cst_47 {dimension_numbers = #tpu.dot_dimension_numbers<[1], [0], [0], [1], [0, 0, 1, 1], [], []>} : vector<32x64xf32>, vector<64x64xf32>, vector<32x64xf32> -> vector<32x64xf32>
    %71 = arith.addf %66, %70 : vector<32x64xf32>
    %c2_48 = arith.constant 2 : index
    %c0_49 = arith.constant 0 : index
    %c0_50 = arith.constant 0 : index
    %72 = vector.load %arg5[%c2_48, %c0_49, %c0_50] : memref<6x32x1xf32, #tpu.memory_space<vmem>>, vector<1x32x1xf32>
    %73 = vector.shape_cast %72 : vector<1x32x1xf32> to vector<32x1xf32>
    %74 = vector.broadcast %73 : vector<32x1xf32> to vector<32x64xf32>
    %75 = arith.addf %71, %74 : vector<32x64xf32>
    %cst_51 = arith.constant 5.000000e-01 : f32
    %76 = vector.broadcast %cst_51 : f32 to vector<32x64xf32>
    %77 = arith.mulf %76, %75 : vector<32x64xf32>
    %cst_52 = arith.constant 0.707106769 : f32
    %78 = vector.broadcast %cst_52 : f32 to vector<32x64xf32>
    %79 = arith.mulf %75, %78 : vector<32x64xf32>
    %80 = math.erf %79 : vector<32x64xf32>
    %cst_53 = arith.constant 1.000000e+00 : f32
    %81 = vector.broadcast %cst_53 : f32 to vector<32x64xf32>
    %82 = arith.addf %81, %80 : vector<32x64xf32>
    %83 = arith.mulf %77, %82 : vector<32x64xf32>
    %c288 = arith.constant 288 : index
    %c0_54 = arith.constant 0 : index
    %84 = vector.load %arg4[%c288, %c0_54] : memref<1472x32xf32, #tpu.memory_space<vmem>>, vector<224x32xf32>
    %cst_55 = arith.constant dense<0.000000e+00> : vector<224x64xf32>
    %85 = tpu.matmul %84, %83, %cst_55 {dimension_numbers = #tpu.dot_dimension_numbers<[1], [0], [0], [1], [0, 0, 1, 1], [], []>} : vector<224x32xf32>, vector<32x64xf32>, vector<224x64xf32> -> vector<224x64xf32>
    %86 = vector.extract_strided_slice %85 {offsets = [0, 0], sizes = [32, 64], strides = [1, 1]} : vector<224x64xf32> to vector<32x64xf32>
    %c9 = arith.constant 9 : index
    %c0_56 = arith.constant 0 : index
    %c0_57 = arith.constant 0 : index
    %87 = vector.load %arg3[%c9, %c0_56, %c0_57] : memref<46x64x64xf32, #tpu.memory_space<vmem>>, vector<1x64x64xf32>
    %88 = vector.shape_cast %87 : vector<1x64x64xf32> to vector<64x64xf32>
    %cst_58 = arith.constant dense<0.000000e+00> : vector<32x64xf32>
    %89 = tpu.matmul %86, %88, %cst_58 {dimension_numbers = #tpu.dot_dimension_numbers<[1], [0], [0], [1], [0, 0, 1, 1], [], []>} : vector<32x64xf32>, vector<64x64xf32>, vector<32x64xf32> -> vector<32x64xf32>
    %90 = vector.extract_strided_slice %85 {offsets = [32, 0], sizes = [32, 64], strides = [1, 1]} : vector<224x64xf32> to vector<32x64xf32>
    %c10 = arith.constant 10 : index
    %c0_59 = arith.constant 0 : index
    %c0_60 = arith.constant 0 : index
    %91 = vector.load %arg3[%c10, %c0_59, %c0_60] : memref<46x64x64xf32, #tpu.memory_space<vmem>>, vector<1x64x64xf32>
    %92 = vector.shape_cast %91 : vector<1x64x64xf32> to vector<64x64xf32>
    %cst_61 = arith.constant dense<0.000000e+00> : vector<32x64xf32>
    %93 = tpu.matmul %90, %92, %cst_61 {dimension_numbers = #tpu.dot_dimension_numbers<[1], [0], [0], [1], [0, 0, 1, 1], [], []>} : vector<32x64xf32>, vector<64x64xf32>, vector<32x64xf32> -> vector<32x64xf32>
    %94 = arith.addf %89, %93 : vector<32x64xf32>
    %95 = vector.extract_strided_slice %85 {offsets = [64, 0], sizes = [32, 64], strides = [1, 1]} : vector<224x64xf32> to vector<32x64xf32>
    %c11 = arith.constant 11 : index
    %c0_62 = arith.constant 0 : index
    %c0_63 = arith.constant 0 : index
    %96 = vector.load %arg3[%c11, %c0_62, %c0_63] : memref<46x64x64xf32, #tpu.memory_space<vmem>>, vector<1x64x64xf32>
    %97 = vector.shape_cast %96 : vector<1x64x64xf32> to vector<64x64xf32>
    %cst_64 = arith.constant dense<0.000000e+00> : vector<32x64xf32>
    %98 = tpu.matmul %95, %97, %cst_64 {dimension_numbers = #tpu.dot_dimension_numbers<[1], [0], [0], [1], [0, 0, 1, 1], [], []>} : vector<32x64xf32>, vector<64x64xf32>, vector<32x64xf32> -> vector<32x64xf32>
    %99 = arith.addf %94, %98 : vector<32x64xf32>
    %100 = vector.extract_strided_slice %85 {offsets = [96, 0], sizes = [32, 64], strides = [1, 1]} : vector<224x64xf32> to vector<32x64xf32>
    %c12 = arith.constant 12 : index
    %c0_65 = arith.constant 0 : index
    %c0_66 = arith.constant 0 : index
    %101 = vector.load %arg3[%c12, %c0_65, %c0_66] : memref<46x64x64xf32, #tpu.memory_space<vmem>>, vector<1x64x64xf32>
    %102 = vector.shape_cast %101 : vector<1x64x64xf32> to vector<64x64xf32>
    %cst_67 = arith.constant dense<0.000000e+00> : vector<32x64xf32>
    %103 = tpu.matmul %100, %102, %cst_67 {dimension_numbers = #tpu.dot_dimension_numbers<[1], [0], [0], [1], [0, 0, 1, 1], [], []>} : vector<32x64xf32>, vector<64x64xf32>, vector<32x64xf32> -> vector<32x64xf32>
    %104 = arith.addf %99, %103 : vector<32x64xf32>
    %105 = vector.extract_strided_slice %85 {offsets = [128, 0], sizes = [32, 64], strides = [1, 1]} : vector<224x64xf32> to vector<32x64xf32>
    %c13 = arith.constant 13 : index
    %c0_68 = arith.constant 0 : index
    %c0_69 = arith.constant 0 : index
    %106 = vector.load %arg3[%c13, %c0_68, %c0_69] : memref<46x64x64xf32, #tpu.memory_space<vmem>>, vector<1x64x64xf32>
    %107 = vector.shape_cast %106 : vector<1x64x64xf32> to vector<64x64xf32>
    %cst_70 = arith.constant dense<0.000000e+00> : vector<32x64xf32>
    %108 = tpu.matmul %105, %107, %cst_70 {dimension_numbers = #tpu.dot_dimension_numbers<[1], [0], [0], [1], [0, 0, 1, 1], [], []>} : vector<32x64xf32>, vector<64x64xf32>, vector<32x64xf32> -> vector<32x64xf32>
    %109 = arith.addf %104, %108 : vector<32x64xf32>
    %110 = vector.extract_strided_slice %85 {offsets = [160, 0], sizes = [32, 64], strides = [1, 1]} : vector<224x64xf32> to vector<32x64xf32>
    %c14 = arith.constant 14 : index
    %c0_71 = arith.constant 0 : index
    %c0_72 = arith.constant 0 : index
    %111 = vector.load %arg3[%c14, %c0_71, %c0_72] : memref<46x64x64xf32, #tpu.memory_space<vmem>>, vector<1x64x64xf32>
    %112 = vector.shape_cast %111 : vector<1x64x64xf32> to vector<64x64xf32>
    %cst_73 = arith.constant dense<0.000000e+00> : vector<32x64xf32>
    %113 = tpu.matmul %110, %112, %cst_73 {dimension_numbers = #tpu.dot_dimension_numbers<[1], [0], [0], [1], [0, 0, 1, 1], [], []>} : vector<32x64xf32>, vector<64x64xf32>, vector<32x64xf32> -> vector<32x64xf32>
    %114 = arith.addf %109, %113 : vector<32x64xf32>
    %115 = vector.extract_strided_slice %85 {offsets = [192, 0], sizes = [32, 64], strides = [1, 1]} : vector<224x64xf32> to vector<32x64xf32>
    %c15 = arith.constant 15 : index
    %c0_74 = arith.constant 0 : index
    %c0_75 = arith.constant 0 : index
    %116 = vector.load %arg3[%c15, %c0_74, %c0_75] : memref<46x64x64xf32, #tpu.memory_space<vmem>>, vector<1x64x64xf32>
    %117 = vector.shape_cast %116 : vector<1x64x64xf32> to vector<64x64xf32>
    %cst_76 = arith.constant dense<0.000000e+00> : vector<32x64xf32>
    %118 = tpu.matmul %115, %117, %cst_76 {dimension_numbers = #tpu.dot_dimension_numbers<[1], [0], [0], [1], [0, 0, 1, 1], [], []>} : vector<32x64xf32>, vector<64x64xf32>, vector<32x64xf32> -> vector<32x64xf32>
    %119 = arith.addf %114, %118 : vector<32x64xf32>
    %c3_77 = arith.constant 3 : index
    %c0_78 = arith.constant 0 : index
    %c0_79 = arith.constant 0 : index
    %120 = vector.load %arg5[%c3_77, %c0_78, %c0_79] : memref<6x32x1xf32, #tpu.memory_space<vmem>>, vector<1x32x1xf32>
    %121 = vector.shape_cast %120 : vector<1x32x1xf32> to vector<32x1xf32>
    %122 = vector.broadcast %121 : vector<32x1xf32> to vector<32x64xf32>
    %123 = arith.addf %119, %122 : vector<32x64xf32>
    %cst_80 = arith.constant 5.000000e-01 : f32
    %124 = vector.broadcast %cst_80 : f32 to vector<32x64xf32>
    %125 = arith.mulf %124, %123 : vector<32x64xf32>
    %cst_81 = arith.constant 0.707106769 : f32
    %126 = vector.broadcast %cst_81 : f32 to vector<32x64xf32>
    %127 = arith.mulf %123, %126 : vector<32x64xf32>
    %128 = math.erf %127 : vector<32x64xf32>
    %cst_82 = arith.constant 1.000000e+00 : f32
    %129 = vector.broadcast %cst_82 : f32 to vector<32x64xf32>
    %130 = arith.addf %129, %128 : vector<32x64xf32>
    %131 = arith.mulf %125, %130 : vector<32x64xf32>
    %c512 = arith.constant 512 : index
    %c0_83 = arith.constant 0 : index
    %132 = vector.load %arg4[%c512, %c0_83] : memref<1472x32xf32, #tpu.memory_space<vmem>>, vector<480x32xf32>
    %cst_84 = arith.constant dense<0.000000e+00> : vector<480x64xf32>
    %133 = tpu.matmul %132, %131, %cst_84 {dimension_numbers = #tpu.dot_dimension_numbers<[1], [0], [0], [1], [0, 0, 1, 1], [], []>} : vector<480x32xf32>, vector<32x64xf32>, vector<480x64xf32> -> vector<480x64xf32>
    %134 = vector.extract_strided_slice %133 {offsets = [0, 0], sizes = [32, 64], strides = [1, 1]} : vector<480x64xf32> to vector<32x64xf32>
    %c16 = arith.constant 16 : index
    %c0_85 = arith.constant 0 : index
    %c0_86 = arith.constant 0 : index
    %135 = vector.load %arg3[%c16, %c0_85, %c0_86] : memref<46x64x64xf32, #tpu.memory_space<vmem>>, vector<1x64x64xf32>
    %136 = vector.shape_cast %135 : vector<1x64x64xf32> to vector<64x64xf32>
    %cst_87 = arith.constant dense<0.000000e+00> : vector<32x64xf32>
    %137 = tpu.matmul %134, %136, %cst_87 {dimension_numbers = #tpu.dot_dimension_numbers<[1], [0], [0], [1], [0, 0, 1, 1], [], []>} : vector<32x64xf32>, vector<64x64xf32>, vector<32x64xf32> -> vector<32x64xf32>
    %138 = vector.extract_strided_slice %133 {offsets = [32, 0], sizes = [32, 64], strides = [1, 1]} : vector<480x64xf32> to vector<32x64xf32>
    %c17 = arith.constant 17 : index
    %c0_88 = arith.constant 0 : index
    %c0_89 = arith.constant 0 : index
    %139 = vector.load %arg3[%c17, %c0_88, %c0_89] : memref<46x64x64xf32, #tpu.memory_space<vmem>>, vector<1x64x64xf32>
    %140 = vector.shape_cast %139 : vector<1x64x64xf32> to vector<64x64xf32>
    %cst_90 = arith.constant dense<0.000000e+00> : vector<32x64xf32>
    %141 = tpu.matmul %138, %140, %cst_90 {dimension_numbers = #tpu.dot_dimension_numbers<[1], [0], [0], [1], [0, 0, 1, 1], [], []>} : vector<32x64xf32>, vector<64x64xf32>, vector<32x64xf32> -> vector<32x64xf32>
    %142 = arith.addf %137, %141 : vector<32x64xf32>
    %143 = vector.extract_strided_slice %133 {offsets = [64, 0], sizes = [32, 64], strides = [1, 1]} : vector<480x64xf32> to vector<32x64xf32>
    %c18 = arith.constant 18 : index
    %c0_91 = arith.constant 0 : index
    %c0_92 = arith.constant 0 : index
    %144 = vector.load %arg3[%c18, %c0_91, %c0_92] : memref<46x64x64xf32, #tpu.memory_space<vmem>>, vector<1x64x64xf32>
    %145 = vector.shape_cast %144 : vector<1x64x64xf32> to vector<64x64xf32>
    %cst_93 = arith.constant dense<0.000000e+00> : vector<32x64xf32>
    %146 = tpu.matmul %143, %145, %cst_93 {dimension_numbers = #tpu.dot_dimension_numbers<[1], [0], [0], [1], [0, 0, 1, 1], [], []>} : vector<32x64xf32>, vector<64x64xf32>, vector<32x64xf32> -> vector<32x64xf32>
    %147 = arith.addf %142, %146 : vector<32x64xf32>
    %148 = vector.extract_strided_slice %133 {offsets = [96, 0], sizes = [32, 64], strides = [1, 1]} : vector<480x64xf32> to vector<32x64xf32>
    %c19 = arith.constant 19 : index
    %c0_94 = arith.constant 0 : index
    %c0_95 = arith.constant 0 : index
    %149 = vector.load %arg3[%c19, %c0_94, %c0_95] : memref<46x64x64xf32, #tpu.memory_space<vmem>>, vector<1x64x64xf32>
    %150 = vector.shape_cast %149 : vector<1x64x64xf32> to vector<64x64xf32>
    %cst_96 = arith.constant dense<0.000000e+00> : vector<32x64xf32>
    %151 = tpu.matmul %148, %150, %cst_96 {dimension_numbers = #tpu.dot_dimension_numbers<[1], [0], [0], [1], [0, 0, 1, 1], [], []>} : vector<32x64xf32>, vector<64x64xf32>, vector<32x64xf32> -> vector<32x64xf32>
    %152 = arith.addf %147, %151 : vector<32x64xf32>
    %153 = vector.extract_strided_slice %133 {offsets = [128, 0], sizes = [32, 64], strides = [1, 1]} : vector<480x64xf32> to vector<32x64xf32>
    %c20 = arith.constant 20 : index
    %c0_97 = arith.constant 0 : index
    %c0_98 = arith.constant 0 : index
    %154 = vector.load %arg3[%c20, %c0_97, %c0_98] : memref<46x64x64xf32, #tpu.memory_space<vmem>>, vector<1x64x64xf32>
    %155 = vector.shape_cast %154 : vector<1x64x64xf32> to vector<64x64xf32>
    %cst_99 = arith.constant dense<0.000000e+00> : vector<32x64xf32>
    %156 = tpu.matmul %153, %155, %cst_99 {dimension_numbers = #tpu.dot_dimension_numbers<[1], [0], [0], [1], [0, 0, 1, 1], [], []>} : vector<32x64xf32>, vector<64x64xf32>, vector<32x64xf32> -> vector<32x64xf32>
    %157 = arith.addf %152, %156 : vector<32x64xf32>
    %158 = vector.extract_strided_slice %133 {offsets = [160, 0], sizes = [32, 64], strides = [1, 1]} : vector<480x64xf32> to vector<32x64xf32>
    %c21 = arith.constant 21 : index
    %c0_100 = arith.constant 0 : index
    %c0_101 = arith.constant 0 : index
    %159 = vector.load %arg3[%c21, %c0_100, %c0_101] : memref<46x64x64xf32, #tpu.memory_space<vmem>>, vector<1x64x64xf32>
    %160 = vector.shape_cast %159 : vector<1x64x64xf32> to vector<64x64xf32>
    %cst_102 = arith.constant dense<0.000000e+00> : vector<32x64xf32>
    %161 = tpu.matmul %158, %160, %cst_102 {dimension_numbers = #tpu.dot_dimension_numbers<[1], [0], [0], [1], [0, 0, 1, 1], [], []>} : vector<32x64xf32>, vector<64x64xf32>, vector<32x64xf32> -> vector<32x64xf32>
    %162 = arith.addf %157, %161 : vector<32x64xf32>
    %163 = vector.extract_strided_slice %133 {offsets = [192, 0], sizes = [32, 64], strides = [1, 1]} : vector<480x64xf32> to vector<32x64xf32>
    %c22 = arith.constant 22 : index
    %c0_103 = arith.constant 0 : index
    %c0_104 = arith.constant 0 : index
    %164 = vector.load %arg3[%c22, %c0_103, %c0_104] : memref<46x64x64xf32, #tpu.memory_space<vmem>>, vector<1x64x64xf32>
    %165 = vector.shape_cast %164 : vector<1x64x64xf32> to vector<64x64xf32>
    %cst_105 = arith.constant dense<0.000000e+00> : vector<32x64xf32>
    %166 = tpu.matmul %163, %165, %cst_105 {dimension_numbers = #tpu.dot_dimension_numbers<[1], [0], [0], [1], [0, 0, 1, 1], [], []>} : vector<32x64xf32>, vector<64x64xf32>, vector<32x64xf32> -> vector<32x64xf32>
    %167 = arith.addf %162, %166 : vector<32x64xf32>
    %168 = vector.extract_strided_slice %133 {offsets = [224, 0], sizes = [32, 64], strides = [1, 1]} : vector<480x64xf32> to vector<32x64xf32>
    %c23 = arith.constant 23 : index
    %c0_106 = arith.constant 0 : index
    %c0_107 = arith.constant 0 : index
    %169 = vector.load %arg3[%c23, %c0_106, %c0_107] : memref<46x64x64xf32, #tpu.memory_space<vmem>>, vector<1x64x64xf32>
    %170 = vector.shape_cast %169 : vector<1x64x64xf32> to vector<64x64xf32>
    %cst_108 = arith.constant dense<0.000000e+00> : vector<32x64xf32>
    %171 = tpu.matmul %168, %170, %cst_108 {dimension_numbers = #tpu.dot_dimension_numbers<[1], [0], [0], [1], [0, 0, 1, 1], [], []>} : vector<32x64xf32>, vector<64x64xf32>, vector<32x64xf32> -> vector<32x64xf32>
    %172 = arith.addf %167, %171 : vector<32x64xf32>
    %173 = vector.extract_strided_slice %133 {offsets = [256, 0], sizes = [32, 64], strides = [1, 1]} : vector<480x64xf32> to vector<32x64xf32>
    %c24 = arith.constant 24 : index
    %c0_109 = arith.constant 0 : index
    %c0_110 = arith.constant 0 : index
    %174 = vector.load %arg3[%c24, %c0_109, %c0_110] : memref<46x64x64xf32, #tpu.memory_space<vmem>>, vector<1x64x64xf32>
    %175 = vector.shape_cast %174 : vector<1x64x64xf32> to vector<64x64xf32>
    %cst_111 = arith.constant dense<0.000000e+00> : vector<32x64xf32>
    %176 = tpu.matmul %173, %175, %cst_111 {dimension_numbers = #tpu.dot_dimension_numbers<[1], [0], [0], [1], [0, 0, 1, 1], [], []>} : vector<32x64xf32>, vector<64x64xf32>, vector<32x64xf32> -> vector<32x64xf32>
    %177 = arith.addf %172, %176 : vector<32x64xf32>
    %178 = vector.extract_strided_slice %133 {offsets = [288, 0], sizes = [32, 64], strides = [1, 1]} : vector<480x64xf32> to vector<32x64xf32>
    %c25 = arith.constant 25 : index
    %c0_112 = arith.constant 0 : index
    %c0_113 = arith.constant 0 : index
    %179 = vector.load %arg3[%c25, %c0_112, %c0_113] : memref<46x64x64xf32, #tpu.memory_space<vmem>>, vector<1x64x64xf32>
    %180 = vector.shape_cast %179 : vector<1x64x64xf32> to vector<64x64xf32>
    %cst_114 = arith.constant dense<0.000000e+00> : vector<32x64xf32>
    %181 = tpu.matmul %178, %180, %cst_114 {dimension_numbers = #tpu.dot_dimension_numbers<[1], [0], [0], [1], [0, 0, 1, 1], [], []>} : vector<32x64xf32>, vector<64x64xf32>, vector<32x64xf32> -> vector<32x64xf32>
    %182 = arith.addf %177, %181 : vector<32x64xf32>
    %183 = vector.extract_strided_slice %133 {offsets = [320, 0], sizes = [32, 64], strides = [1, 1]} : vector<480x64xf32> to vector<32x64xf32>
    %c26 = arith.constant 26 : index
    %c0_115 = arith.constant 0 : index
    %c0_116 = arith.constant 0 : index
    %184 = vector.load %arg3[%c26, %c0_115, %c0_116] : memref<46x64x64xf32, #tpu.memory_space<vmem>>, vector<1x64x64xf32>
    %185 = vector.shape_cast %184 : vector<1x64x64xf32> to vector<64x64xf32>
    %cst_117 = arith.constant dense<0.000000e+00> : vector<32x64xf32>
    %186 = tpu.matmul %183, %185, %cst_117 {dimension_numbers = #tpu.dot_dimension_numbers<[1], [0], [0], [1], [0, 0, 1, 1], [], []>} : vector<32x64xf32>, vector<64x64xf32>, vector<32x64xf32> -> vector<32x64xf32>
    %187 = arith.addf %182, %186 : vector<32x64xf32>
    %188 = vector.extract_strided_slice %133 {offsets = [352, 0], sizes = [32, 64], strides = [1, 1]} : vector<480x64xf32> to vector<32x64xf32>
    %c27 = arith.constant 27 : index
    %c0_118 = arith.constant 0 : index
    %c0_119 = arith.constant 0 : index
    %189 = vector.load %arg3[%c27, %c0_118, %c0_119] : memref<46x64x64xf32, #tpu.memory_space<vmem>>, vector<1x64x64xf32>
    %190 = vector.shape_cast %189 : vector<1x64x64xf32> to vector<64x64xf32>
    %cst_120 = arith.constant dense<0.000000e+00> : vector<32x64xf32>
    %191 = tpu.matmul %188, %190, %cst_120 {dimension_numbers = #tpu.dot_dimension_numbers<[1], [0], [0], [1], [0, 0, 1, 1], [], []>} : vector<32x64xf32>, vector<64x64xf32>, vector<32x64xf32> -> vector<32x64xf32>
    %192 = arith.addf %187, %191 : vector<32x64xf32>
    %193 = vector.extract_strided_slice %133 {offsets = [384, 0], sizes = [32, 64], strides = [1, 1]} : vector<480x64xf32> to vector<32x64xf32>
    %c28 = arith.constant 28 : index
    %c0_121 = arith.constant 0 : index
    %c0_122 = arith.constant 0 : index
    %194 = vector.load %arg3[%c28, %c0_121, %c0_122] : memref<46x64x64xf32, #tpu.memory_space<vmem>>, vector<1x64x64xf32>
    %195 = vector.shape_cast %194 : vector<1x64x64xf32> to vector<64x64xf32>
    %cst_123 = arith.constant dense<0.000000e+00> : vector<32x64xf32>
    %196 = tpu.matmul %193, %195, %cst_123 {dimension_numbers = #tpu.dot_dimension_numbers<[1], [0], [0], [1], [0, 0, 1, 1], [], []>} : vector<32x64xf32>, vector<64x64xf32>, vector<32x64xf32> -> vector<32x64xf32>
    %197 = arith.addf %192, %196 : vector<32x64xf32>
    %198 = vector.extract_strided_slice %133 {offsets = [416, 0], sizes = [32, 64], strides = [1, 1]} : vector<480x64xf32> to vector<32x64xf32>
    %c29 = arith.constant 29 : index
    %c0_124 = arith.constant 0 : index
    %c0_125 = arith.constant 0 : index
    %199 = vector.load %arg3[%c29, %c0_124, %c0_125] : memref<46x64x64xf32, #tpu.memory_space<vmem>>, vector<1x64x64xf32>
    %200 = vector.shape_cast %199 : vector<1x64x64xf32> to vector<64x64xf32>
    %cst_126 = arith.constant dense<0.000000e+00> : vector<32x64xf32>
    %201 = tpu.matmul %198, %200, %cst_126 {dimension_numbers = #tpu.dot_dimension_numbers<[1], [0], [0], [1], [0, 0, 1, 1], [], []>} : vector<32x64xf32>, vector<64x64xf32>, vector<32x64xf32> -> vector<32x64xf32>
    %202 = arith.addf %197, %201 : vector<32x64xf32>
    %203 = vector.extract_strided_slice %133 {offsets = [448, 0], sizes = [32, 64], strides = [1, 1]} : vector<480x64xf32> to vector<32x64xf32>
    %c30 = arith.constant 30 : index
    %c0_127 = arith.constant 0 : index
    %c0_128 = arith.constant 0 : index
    %204 = vector.load %arg3[%c30, %c0_127, %c0_128] : memref<46x64x64xf32, #tpu.memory_space<vmem>>, vector<1x64x64xf32>
    %205 = vector.shape_cast %204 : vector<1x64x64xf32> to vector<64x64xf32>
    %cst_129 = arith.constant dense<0.000000e+00> : vector<32x64xf32>
    %206 = tpu.matmul %203, %205, %cst_129 {dimension_numbers = #tpu.dot_dimension_numbers<[1], [0], [0], [1], [0, 0, 1, 1], [], []>} : vector<32x64xf32>, vector<64x64xf32>, vector<32x64xf32> -> vector<32x64xf32>
    %207 = arith.addf %202, %206 : vector<32x64xf32>
    %c4_130 = arith.constant 4 : index
    %c0_131 = arith.constant 0 : index
    %c0_132 = arith.constant 0 : index
    %208 = vector.load %arg5[%c4_130, %c0_131, %c0_132] : memref<6x32x1xf32, #tpu.memory_space<vmem>>, vector<1x32x1xf32>
    %209 = vector.shape_cast %208 : vector<1x32x1xf32> to vector<32x1xf32>
    %210 = vector.broadcast %209 : vector<32x1xf32> to vector<32x64xf32>
    %211 = arith.addf %207, %210 : vector<32x64xf32>
    %cst_133 = arith.constant 5.000000e-01 : f32
    %212 = vector.broadcast %cst_133 : f32 to vector<32x64xf32>
    %213 = arith.mulf %212, %211 : vector<32x64xf32>
    %cst_134 = arith.constant 0.707106769 : f32
    %214 = vector.broadcast %cst_134 : f32 to vector<32x64xf32>
    %215 = arith.mulf %211, %214 : vector<32x64xf32>
    %216 = math.erf %215 : vector<32x64xf32>
    %cst_135 = arith.constant 1.000000e+00 : f32
    %217 = vector.broadcast %cst_135 : f32 to vector<32x64xf32>
    %218 = arith.addf %217, %216 : vector<32x64xf32>
    %219 = arith.mulf %213, %218 : vector<32x64xf32>
    %c992 = arith.constant 992 : index
    %c0_136 = arith.constant 0 : index
    %220 = vector.load %arg4[%c992, %c0_136] : memref<1472x32xf32, #tpu.memory_space<vmem>>, vector<480x32xf32>
    %cst_137 = arith.constant dense<0.000000e+00> : vector<480x64xf32>
    %221 = tpu.matmul %220, %219, %cst_137 {dimension_numbers = #tpu.dot_dimension_numbers<[1], [0], [0], [1], [0, 0, 1, 1], [], []>} : vector<480x32xf32>, vector<32x64xf32>, vector<480x64xf32> -> vector<480x64xf32>
    %222 = vector.extract_strided_slice %221 {offsets = [0, 0], sizes = [32, 64], strides = [1, 1]} : vector<480x64xf32> to vector<32x64xf32>
    %c31 = arith.constant 31 : index
    %c0_138 = arith.constant 0 : index
    %c0_139 = arith.constant 0 : index
    %223 = vector.load %arg3[%c31, %c0_138, %c0_139] : memref<46x64x64xf32, #tpu.memory_space<vmem>>, vector<1x64x64xf32>
    %224 = vector.shape_cast %223 : vector<1x64x64xf32> to vector<64x64xf32>
    %cst_140 = arith.constant dense<0.000000e+00> : vector<32x64xf32>
    %225 = tpu.matmul %222, %224, %cst_140 {dimension_numbers = #tpu.dot_dimension_numbers<[1], [0], [0], [1], [0, 0, 1, 1], [], []>} : vector<32x64xf32>, vector<64x64xf32>, vector<32x64xf32> -> vector<32x64xf32>
    %226 = vector.extract_strided_slice %221 {offsets = [32, 0], sizes = [32, 64], strides = [1, 1]} : vector<480x64xf32> to vector<32x64xf32>
    %c32_141 = arith.constant 32 : index
    %c0_142 = arith.constant 0 : index
    %c0_143 = arith.constant 0 : index
    %227 = vector.load %arg3[%c32_141, %c0_142, %c0_143] : memref<46x64x64xf32, #tpu.memory_space<vmem>>, vector<1x64x64xf32>
    %228 = vector.shape_cast %227 : vector<1x64x64xf32> to vector<64x64xf32>
    %cst_144 = arith.constant dense<0.000000e+00> : vector<32x64xf32>
    %229 = tpu.matmul %226, %228, %cst_144 {dimension_numbers = #tpu.dot_dimension_numbers<[1], [0], [0], [1], [0, 0, 1, 1], [], []>} : vector<32x64xf32>, vector<64x64xf32>, vector<32x64xf32> -> vector<32x64xf32>
    %230 = arith.addf %225, %229 : vector<32x64xf32>
    %231 = vector.extract_strided_slice %221 {offsets = [64, 0], sizes = [32, 64], strides = [1, 1]} : vector<480x64xf32> to vector<32x64xf32>
    %c33 = arith.constant 33 : index
    %c0_145 = arith.constant 0 : index
    %c0_146 = arith.constant 0 : index
    %232 = vector.load %arg3[%c33, %c0_145, %c0_146] : memref<46x64x64xf32, #tpu.memory_space<vmem>>, vector<1x64x64xf32>
    %233 = vector.shape_cast %232 : vector<1x64x64xf32> to vector<64x64xf32>
    %cst_147 = arith.constant dense<0.000000e+00> : vector<32x64xf32>
    %234 = tpu.matmul %231, %233, %cst_147 {dimension_numbers = #tpu.dot_dimension_numbers<[1], [0], [0], [1], [0, 0, 1, 1], [], []>} : vector<32x64xf32>, vector<64x64xf32>, vector<32x64xf32> -> vector<32x64xf32>
    %235 = arith.addf %230, %234 : vector<32x64xf32>
    %236 = vector.extract_strided_slice %221 {offsets = [96, 0], sizes = [32, 64], strides = [1, 1]} : vector<480x64xf32> to vector<32x64xf32>
    %c34 = arith.constant 34 : index
    %c0_148 = arith.constant 0 : index
    %c0_149 = arith.constant 0 : index
    %237 = vector.load %arg3[%c34, %c0_148, %c0_149] : memref<46x64x64xf32, #tpu.memory_space<vmem>>, vector<1x64x64xf32>
    %238 = vector.shape_cast %237 : vector<1x64x64xf32> to vector<64x64xf32>
    %cst_150 = arith.constant dense<0.000000e+00> : vector<32x64xf32>
    %239 = tpu.matmul %236, %238, %cst_150 {dimension_numbers = #tpu.dot_dimension_numbers<[1], [0], [0], [1], [0, 0, 1, 1], [], []>} : vector<32x64xf32>, vector<64x64xf32>, vector<32x64xf32> -> vector<32x64xf32>
    %240 = arith.addf %235, %239 : vector<32x64xf32>
    %241 = vector.extract_strided_slice %221 {offsets = [128, 0], sizes = [32, 64], strides = [1, 1]} : vector<480x64xf32> to vector<32x64xf32>
    %c35 = arith.constant 35 : index
    %c0_151 = arith.constant 0 : index
    %c0_152 = arith.constant 0 : index
    %242 = vector.load %arg3[%c35, %c0_151, %c0_152] : memref<46x64x64xf32, #tpu.memory_space<vmem>>, vector<1x64x64xf32>
    %243 = vector.shape_cast %242 : vector<1x64x64xf32> to vector<64x64xf32>
    %cst_153 = arith.constant dense<0.000000e+00> : vector<32x64xf32>
    %244 = tpu.matmul %241, %243, %cst_153 {dimension_numbers = #tpu.dot_dimension_numbers<[1], [0], [0], [1], [0, 0, 1, 1], [], []>} : vector<32x64xf32>, vector<64x64xf32>, vector<32x64xf32> -> vector<32x64xf32>
    %245 = arith.addf %240, %244 : vector<32x64xf32>
    %246 = vector.extract_strided_slice %221 {offsets = [160, 0], sizes = [32, 64], strides = [1, 1]} : vector<480x64xf32> to vector<32x64xf32>
    %c36 = arith.constant 36 : index
    %c0_154 = arith.constant 0 : index
    %c0_155 = arith.constant 0 : index
    %247 = vector.load %arg3[%c36, %c0_154, %c0_155] : memref<46x64x64xf32, #tpu.memory_space<vmem>>, vector<1x64x64xf32>
    %248 = vector.shape_cast %247 : vector<1x64x64xf32> to vector<64x64xf32>
    %cst_156 = arith.constant dense<0.000000e+00> : vector<32x64xf32>
    %249 = tpu.matmul %246, %248, %cst_156 {dimension_numbers = #tpu.dot_dimension_numbers<[1], [0], [0], [1], [0, 0, 1, 1], [], []>} : vector<32x64xf32>, vector<64x64xf32>, vector<32x64xf32> -> vector<32x64xf32>
    %250 = arith.addf %245, %249 : vector<32x64xf32>
    %251 = vector.extract_strided_slice %221 {offsets = [192, 0], sizes = [32, 64], strides = [1, 1]} : vector<480x64xf32> to vector<32x64xf32>
    %c37 = arith.constant 37 : index
    %c0_157 = arith.constant 0 : index
    %c0_158 = arith.constant 0 : index
    %252 = vector.load %arg3[%c37, %c0_157, %c0_158] : memref<46x64x64xf32, #tpu.memory_space<vmem>>, vector<1x64x64xf32>
    %253 = vector.shape_cast %252 : vector<1x64x64xf32> to vector<64x64xf32>
    %cst_159 = arith.constant dense<0.000000e+00> : vector<32x64xf32>
    %254 = tpu.matmul %251, %253, %cst_159 {dimension_numbers = #tpu.dot_dimension_numbers<[1], [0], [0], [1], [0, 0, 1, 1], [], []>} : vector<32x64xf32>, vector<64x64xf32>, vector<32x64xf32> -> vector<32x64xf32>
    %255 = arith.addf %250, %254 : vector<32x64xf32>
    %256 = vector.extract_strided_slice %221 {offsets = [224, 0], sizes = [32, 64], strides = [1, 1]} : vector<480x64xf32> to vector<32x64xf32>
    %c38 = arith.constant 38 : index
    %c0_160 = arith.constant 0 : index
    %c0_161 = arith.constant 0 : index
    %257 = vector.load %arg3[%c38, %c0_160, %c0_161] : memref<46x64x64xf32, #tpu.memory_space<vmem>>, vector<1x64x64xf32>
    %258 = vector.shape_cast %257 : vector<1x64x64xf32> to vector<64x64xf32>
    %cst_162 = arith.constant dense<0.000000e+00> : vector<32x64xf32>
    %259 = tpu.matmul %256, %258, %cst_162 {dimension_numbers = #tpu.dot_dimension_numbers<[1], [0], [0], [1], [0, 0, 1, 1], [], []>} : vector<32x64xf32>, vector<64x64xf32>, vector<32x64xf32> -> vector<32x64xf32>
    %260 = arith.addf %255, %259 : vector<32x64xf32>
    %261 = vector.extract_strided_slice %221 {offsets = [256, 0], sizes = [32, 64], strides = [1, 1]} : vector<480x64xf32> to vector<32x64xf32>
    %c39 = arith.constant 39 : index
    %c0_163 = arith.constant 0 : index
    %c0_164 = arith.constant 0 : index
    %262 = vector.load %arg3[%c39, %c0_163, %c0_164] : memref<46x64x64xf32, #tpu.memory_space<vmem>>, vector<1x64x64xf32>
    %263 = vector.shape_cast %262 : vector<1x64x64xf32> to vector<64x64xf32>
    %cst_165 = arith.constant dense<0.000000e+00> : vector<32x64xf32>
    %264 = tpu.matmul %261, %263, %cst_165 {dimension_numbers = #tpu.dot_dimension_numbers<[1], [0], [0], [1], [0, 0, 1, 1], [], []>} : vector<32x64xf32>, vector<64x64xf32>, vector<32x64xf32> -> vector<32x64xf32>
    %265 = arith.addf %260, %264 : vector<32x64xf32>
    %266 = vector.extract_strided_slice %221 {offsets = [288, 0], sizes = [32, 64], strides = [1, 1]} : vector<480x64xf32> to vector<32x64xf32>
    %c40 = arith.constant 40 : index
    %c0_166 = arith.constant 0 : index
    %c0_167 = arith.constant 0 : index
    %267 = vector.load %arg3[%c40, %c0_166, %c0_167] : memref<46x64x64xf32, #tpu.memory_space<vmem>>, vector<1x64x64xf32>
    %268 = vector.shape_cast %267 : vector<1x64x64xf32> to vector<64x64xf32>
    %cst_168 = arith.constant dense<0.000000e+00> : vector<32x64xf32>
    %269 = tpu.matmul %266, %268, %cst_168 {dimension_numbers = #tpu.dot_dimension_numbers<[1], [0], [0], [1], [0, 0, 1, 1], [], []>} : vector<32x64xf32>, vector<64x64xf32>, vector<32x64xf32> -> vector<32x64xf32>
    %270 = arith.addf %265, %269 : vector<32x64xf32>
    %271 = vector.extract_strided_slice %221 {offsets = [320, 0], sizes = [32, 64], strides = [1, 1]} : vector<480x64xf32> to vector<32x64xf32>
    %c41 = arith.constant 41 : index
    %c0_169 = arith.constant 0 : index
    %c0_170 = arith.constant 0 : index
    %272 = vector.load %arg3[%c41, %c0_169, %c0_170] : memref<46x64x64xf32, #tpu.memory_space<vmem>>, vector<1x64x64xf32>
    %273 = vector.shape_cast %272 : vector<1x64x64xf32> to vector<64x64xf32>
    %cst_171 = arith.constant dense<0.000000e+00> : vector<32x64xf32>
    %274 = tpu.matmul %271, %273, %cst_171 {dimension_numbers = #tpu.dot_dimension_numbers<[1], [0], [0], [1], [0, 0, 1, 1], [], []>} : vector<32x64xf32>, vector<64x64xf32>, vector<32x64xf32> -> vector<32x64xf32>
    %275 = arith.addf %270, %274 : vector<32x64xf32>
    %276 = vector.extract_strided_slice %221 {offsets = [352, 0], sizes = [32, 64], strides = [1, 1]} : vector<480x64xf32> to vector<32x64xf32>
    %c42 = arith.constant 42 : index
    %c0_172 = arith.constant 0 : index
    %c0_173 = arith.constant 0 : index
    %277 = vector.load %arg3[%c42, %c0_172, %c0_173] : memref<46x64x64xf32, #tpu.memory_space<vmem>>, vector<1x64x64xf32>
    %278 = vector.shape_cast %277 : vector<1x64x64xf32> to vector<64x64xf32>
    %cst_174 = arith.constant dense<0.000000e+00> : vector<32x64xf32>
    %279 = tpu.matmul %276, %278, %cst_174 {dimension_numbers = #tpu.dot_dimension_numbers<[1], [0], [0], [1], [0, 0, 1, 1], [], []>} : vector<32x64xf32>, vector<64x64xf32>, vector<32x64xf32> -> vector<32x64xf32>
    %280 = arith.addf %275, %279 : vector<32x64xf32>
    %281 = vector.extract_strided_slice %221 {offsets = [384, 0], sizes = [32, 64], strides = [1, 1]} : vector<480x64xf32> to vector<32x64xf32>
    %c43 = arith.constant 43 : index
    %c0_175 = arith.constant 0 : index
    %c0_176 = arith.constant 0 : index
    %282 = vector.load %arg3[%c43, %c0_175, %c0_176] : memref<46x64x64xf32, #tpu.memory_space<vmem>>, vector<1x64x64xf32>
    %283 = vector.shape_cast %282 : vector<1x64x64xf32> to vector<64x64xf32>
    %cst_177 = arith.constant dense<0.000000e+00> : vector<32x64xf32>
    %284 = tpu.matmul %281, %283, %cst_177 {dimension_numbers = #tpu.dot_dimension_numbers<[1], [0], [0], [1], [0, 0, 1, 1], [], []>} : vector<32x64xf32>, vector<64x64xf32>, vector<32x64xf32> -> vector<32x64xf32>
    %285 = arith.addf %280, %284 : vector<32x64xf32>
    %286 = vector.extract_strided_slice %221 {offsets = [416, 0], sizes = [32, 64], strides = [1, 1]} : vector<480x64xf32> to vector<32x64xf32>
    %c44 = arith.constant 44 : index
    %c0_178 = arith.constant 0 : index
    %c0_179 = arith.constant 0 : index
    %287 = vector.load %arg3[%c44, %c0_178, %c0_179] : memref<46x64x64xf32, #tpu.memory_space<vmem>>, vector<1x64x64xf32>
    %288 = vector.shape_cast %287 : vector<1x64x64xf32> to vector<64x64xf32>
    %cst_180 = arith.constant dense<0.000000e+00> : vector<32x64xf32>
    %289 = tpu.matmul %286, %288, %cst_180 {dimension_numbers = #tpu.dot_dimension_numbers<[1], [0], [0], [1], [0, 0, 1, 1], [], []>} : vector<32x64xf32>, vector<64x64xf32>, vector<32x64xf32> -> vector<32x64xf32>
    %290 = arith.addf %285, %289 : vector<32x64xf32>
    %291 = vector.extract_strided_slice %221 {offsets = [448, 0], sizes = [32, 64], strides = [1, 1]} : vector<480x64xf32> to vector<32x64xf32>
    %c45 = arith.constant 45 : index
    %c0_181 = arith.constant 0 : index
    %c0_182 = arith.constant 0 : index
    %292 = vector.load %arg3[%c45, %c0_181, %c0_182] : memref<46x64x64xf32, #tpu.memory_space<vmem>>, vector<1x64x64xf32>
    %293 = vector.shape_cast %292 : vector<1x64x64xf32> to vector<64x64xf32>
    %cst_183 = arith.constant dense<0.000000e+00> : vector<32x64xf32>
    %294 = tpu.matmul %291, %293, %cst_183 {dimension_numbers = #tpu.dot_dimension_numbers<[1], [0], [0], [1], [0, 0, 1, 1], [], []>} : vector<32x64xf32>, vector<64x64xf32>, vector<32x64xf32> -> vector<32x64xf32>
    %295 = arith.addf %290, %294 : vector<32x64xf32>
    %c5_184 = arith.constant 5 : index
    %c0_185 = arith.constant 0 : index
    %c0_186 = arith.constant 0 : index
    %296 = vector.load %arg5[%c5_184, %c0_185, %c0_186] : memref<6x32x1xf32, #tpu.memory_space<vmem>>, vector<1x32x1xf32>
    %297 = vector.shape_cast %296 : vector<1x32x1xf32> to vector<32x1xf32>
    %298 = vector.broadcast %297 : vector<32x1xf32> to vector<32x64xf32>
    %299 = arith.addf %295, %298 : vector<32x64xf32>
    %300 = vector.extract_strided_slice %299 {offsets = [0, 0], sizes = [12, 64], strides = [1, 1]} : vector<32x64xf32> to vector<12x64xf32>
    %c0_187 = arith.constant 0 : index
    %c0_188 = arith.constant 0 : index
    %c0_189 = arith.constant 0 : index
    %301 = vector.load %arg2[%c0_187, %c0_188, %c0_189] : memref<1x1x64xf32, #tpu.memory_space<vmem>>, vector<1x1x64xf32>
    %302 = vector.shape_cast %301 : vector<1x1x64xf32> to vector<1x64xf32>
    %303 = vector.broadcast %302 : vector<1x64xf32> to vector<12x64xf32>
    %304 = arith.mulf %300, %303 : vector<12x64xf32>
    %c0_190 = arith.constant 0 : index
    %c0_191 = arith.constant 0 : index
    %c0_192 = arith.constant 0 : index
    %305 = vector.load %arg6[%c0_190, %c0_191, %c0_192] : memref<1x12x64xf32, #tpu.memory_space<vmem>>, vector<1x12x64xf32>
    %306 = vector.shape_cast %305 : vector<1x12x64xf32> to vector<12x64xf32>
    %307 = vector.shape_cast %304 : vector<12x64xf32> to vector<1x12x64xf32>
    tpu.vector_store %arg6[%c0_190, %c0_191, %c0_192], %307 {strides = array<i32>} : memref<1x12x64xf32, #tpu.memory_space<vmem>>, vector<1x12x64xf32>,
    return
  }
  func.func @transform_0(%arg0: i32) -> (i32, i32, i32) {
    %c0_i32 = arith.constant 0 : i32
    %c0_i32_0 = arith.constant 0 : i32
    %c0_i32_1 = arith.constant 0 : i32
    return %arg0, %c0_i32, %c0_i32_0 : i32, i32, i32
  }
  func.func @transform_1(%arg0: i32) -> (i32, i32, i32) {
    %c0_i32 = arith.constant 0 : i32
    %c0_i32_0 = arith.constant 0 : i32
    %c0_i32_1 = arith.constant 0 : i32
    return %arg0, %c0_i32, %c0_i32_0 : i32, i32, i32
  }
  func.func @transform_2(%arg0: i32) -> (i32, i32, i32) {
    %c0_i32 = arith.constant 0 : i32
    %c0_i32_0 = arith.constant 0 : i32
    %c0_i32_1 = arith.constant 0 : i32
    %c0_i32_2 = arith.constant 0 : i32
    return %c0_i32, %c0_i32_0, %c0_i32_1 : i32, i32, i32
  }
  func.func @transform_3(%arg0: i32) -> (i32, i32) {
    %c0_i32 = arith.constant 0 : i32
    %c0_i32_0 = arith.constant 0 : i32
    %c0_i32_1 = arith.constant 0 : i32
    return %c0_i32, %c0_i32_0 : i32, i32
  }
  func.func @transform_4(%arg0: i32) -> (i32, i32, i32) {
    %c0_i32 = arith.constant 0 : i32
    %c0_i32_0 = arith.constant 0 : i32
    %c0_i32_1 = arith.constant 0 : i32
    %c0_i32_2 = arith.constant 0 : i32
    return %c0_i32, %c0_i32_0, %c0_i32_1 : i32, i32, i32
  }
  func.func @transform_5(%arg0: i32) -> (i32, i32, i32) {
    %c0_i32 = arith.constant 0 : i32
    %c0_i32_0 = arith.constant 0 : i32
    %c0_i32_1 = arith.constant 0 : i32
    return %arg0, %c0_i32, %c0_i32_0 : i32, i32, i32
  }
}

</mosaic_0001>

<llo_original>
// kernel: tpu_custom_call.1
$region0: #{tpu_custom_call.1}
  #allocation0 [shape = 'u32[]', space=smem, size = 0x4, offset = 0x4, fixed_abs, tag = 'smem constant byte address 0x4 - core index']
  #allocation1 [shape = 'u32[144,128]{1,0:T(1,128)}', space=vmem, size = 0x12000, scoped, tag = 'internal scratch']
  %s0 = inlined_call_operand.hbm [shape: f32[2,32,64], index: 0, kind: input, shape index: {}]
  %s1 = inlined_call_operand.hbm [shape: f32[2,1,64], index: 1, kind: input, shape index: {}]
  %s2 = inlined_call_operand.hbm [shape: f32[46,64,64], index: 2, kind: input, shape index: {}]
  %s3 = inlined_call_operand.vmem [shape: f32[1472,32], index: 3, kind: input, shape index: {}]
  %s4 = inlined_call_operand.vmem [shape: f32[6,32,1], index: 4, kind: input, shape index: {}]
  %s5 = inlined_call_operand.vmem [shape: f32[2,12,64], index: 5, kind: output, shape index: {}]
  %s6 = sld [smem:[#allocation0]]
  $region65: #{tpu_custom_call.1} parent=0
    _
  %s8 = ssub.s32 1, %s6
  %s9 = scalar_select 0, %s8, %s6
  $region1: #{tpu_custom_call.1} parent=0
    #allocation2 [shape = 'u8[32768]{0}', space=vmem, size = 0x8000, scoped, tag = 'input window, operand 0']
    #allocation3 [shape = 's32[2]{0}', space=sflag, size = 0x8, scoped, tag = 'scoped memory for tpu_custom_call.1']
    #allocation4 [shape = 'u8[1024]{0}', space=vmem, size = 0x400, scoped, tag = 'input window, operand 1']
    #allocation5 [shape = 's32[2]{0}', space=sflag, size = 0x8, scoped, tag = 'scoped memory for tpu_custom_call.1']
    #allocation6 [shape = 'u8[1507328]{0}', space=vmem, size = 0x170000, scoped, tag = 'input window, operand 2, single buffered']
    %10 = vsyncpa [#allocation3], 0
    %s11 = scalar_lea.sflag [#allocation3], 1
    %12 = vsyncpa %s11, 0
    %13 = vsyncpa [#allocation5], 0
    %s14 = scalar_lea.sflag [#allocation5], 1
    %15 = vsyncpa %s14, 0
    loop: start=0, step=1, limit=4
    $region2: #{tpu_custom_call.1} parent=1 // loop_pre_header
      _
    $region3: #{tpu_custom_call.1} parent=1 // loop_header
      %s17 = sphi 0, %s21
      %p18 = scmp.ge.s32.totalorder %s17, 4
      %s27 = sphi 0, %s29
      %s30 = sphi 0, %s27
      %s31 = sphi 0, %s30
      %s47 = sphi 0, %s31
      %s53 = sphi 0, %s55
      %s56 = sphi 0, %s53
      %s57 = sphi 0, %s56
      %s73 = sphi 0, %s57
      %s77 = sphi 0, %s77
      %s79 = sphi 0, %s77
      %s80 = sphi 0, %s79
      %s94 = sphi 0, %s80
      %s98 = sphi 0, %s98
      %s100 = sphi 0, %s98
      %s101 = sphi 0, %s100
      %s115 = sphi 0, %s101
      %s119 = sphi 0, %s119
      %s121 = sphi 0, %s119
      %s122 = sphi 0, %s121
      %s136 = sphi 0, %s122
      %s142 = sphi 0, %s144
      %s145 = sphi 0, %s142
      %s146 = sphi 0, %s145
      %s162 = sphi 0, %s146
    $region4: #{tpu_custom_call.1} parent=1 // loop_header_branch
      %20 = sbr.rel (%p18) target = $region8
    $region5: #{tpu_custom_call.1} parent=1 // loop_body
      %s22 = ssub.s32 %s17, 1
      %s23 = ssub.s32 %s17, 2
      %s24 = sadd.s32 %s17, 1
      %s25 = ssub.s32 %s17, %s24
      %p26 = scmp.eq.s32.totalorder %s25, 0
      %s28 = sadd.s32 %s27, 1
      %s29 = scalar_select %p26, %s27, %s28
      %p32 = pneg %p26
      %p33 = scmp.eq.s32.totalorder %s17, 1
      %p34 = por %p32, %p33
      %p35 = scmp.ne.s32.totalorder %s27, %s30
      %p36 = scmp.eq.s32.totalorder %s17, 0
      %p37 = por %p35, %p36
      %p38 = scmp.ne.s32.totalorder %s27, %s30
      %p39 = scmp.eq.s32.totalorder %s22, 1
      %p40 = por %p38, %p39
      %p41 = scmp.ne.s32.totalorder %s30, %s31
      %p42 = scmp.eq.s32.totalorder %s22, 0
      %p43 = por %p41, %p42
      %p44 = scmp.ne.s32.totalorder %s30, %s31
      %p45 = scmp.eq.s32.totalorder %s23, 1
      %p46 = por %p44, %p45
      %p48 = scmp.ne.s32.totalorder %s31, %s47
      %p49 = scmp.eq.s32.totalorder %s23, 0
      %p50 = por %p48, %p49
      %s51 = ssub.s32 %s17, %s24
      %p52 = scmp.eq.s32.totalorder %s51, 0
      %s54 = sadd.s32 %s53, 1
      %s55 = scalar_select %p52, %s53, %s54
      %p58 = pneg %p52
      %p59 = scmp.eq.s32.totalorder %s17, 1
      %p60 = por %p58, %p59
      %p61 = scmp.ne.s32.totalorder %s53, %s56
      %p62 = scmp.eq.s32.totalorder %s17, 0
      %p63 = por %p61, %p62
      %p64 = scmp.ne.s32.totalorder %s53, %s56
      %p65 = scmp.eq.s32.totalorder %s22, 1
      %p66 = por %p64, %p65
      %p67 = scmp.ne.s32.totalorder %s56, %s57
      %p68 = scmp.eq.s32.totalorder %s22, 0
      %p69 = por %p67, %p68
      %p70 = scmp.ne.s32.totalorder %s56, %s57
      %p71 = scmp.eq.s32.totalorder %s23, 1
      %p72 = por %p70, %p71
      %p74 = scmp.ne.s32.totalorder %s57, %s73
      %p75 = scmp.eq.s32.totalorder %s23, 0
      %p76 = por %p74, %p75
      %s78 = sadd.s32 %s77, 1
      %p81 = scmp.eq.s32.totalorder %s17, 1
      %p82 = scmp.ne.s32.totalorder %s77, %s79
      %p83 = scmp.eq.s32.totalorder %s17, 0
      %p84 = por %p82, %p83
      %p85 = scmp.ne.s32.totalorder %s77, %s79
      %p86 = scmp.eq.s32.totalorder %s22, 1
      %p87 = por %p85, %p86
      %p88 = scmp.ne.s32.totalorder %s79, %s80
      %p89 = scmp.eq.s32.totalorder %s22, 0
      %p90 = por %p88, %p89
      %p91 = scmp.ne.s32.totalorder %s79, %s80
      %p92 = scmp.eq.s32.totalorder %s23, 1
      %p93 = por %p91, %p92
      %p95 = scmp.ne.s32.totalorder %s80, %s94
      %p96 = scmp.eq.s32.totalorder %s23, 0
      %p97 = por %p95, %p96
      %s99 = sadd.s32 %s98, 1
      %p102 = scmp.eq.s32.totalorder %s17, 1
      %p103 = scmp.ne.s32.totalorder %s98, %s100
      %p104 = scmp.eq.s32.totalorder %s17, 0
      %p105 = por %p103, %p104
      %p106 = scmp.ne.s32.totalorder %s98, %s100
      %p107 = scmp.eq.s32.totalorder %s22, 1
      %p108 = por %p106, %p107
      %p109 = scmp.ne.s32.totalorder %s100, %s101
      %p110 = scmp.eq.s32.totalorder %s22, 0
      %p111 = por %p109, %p110
      %p112 = scmp.ne.s32.totalorder %s100, %s101
      %p113 = scmp.eq.s32.totalorder %s23, 1
      %p114 = por %p112, %p113
      %p116 = scmp.ne.s32.totalorder %s101, %s115
      %p117 = scmp.eq.s32.totalorder %s23, 0
      %p118 = por %p116, %p117
      %s120 = sadd.s32 %s119, 1
      %p123 = scmp.eq.s32.totalorder %s17, 1
      %p124 = scmp.ne.s32.totalorder %s119, %s121
      %p125 = scmp.eq.s32.totalorder %s17, 0
      %p126 = por %p124, %p125
      %p127 = scmp.ne.s32.totalorder %s119, %s121
      %p128 = scmp.eq.s32.totalorder %s22, 1
      %p129 = por %p127, %p128
      %p130 = scmp.ne.s32.totalorder %s121, %s122
      %p131 = scmp.eq.s32.totalorder %s22, 0
      %p132 = por %p130, %p131
      %p133 = scmp.ne.s32.totalorder %s121, %s122
      %p134 = scmp.eq.s32.totalorder %s23, 1
      %p135 = por %p133, %p134
      %p137 = scmp.ne.s32.totalorder %s122, %s136
      %p138 = scmp.eq.s32.totalorder %s23, 0
      %p139 = por %p137, %p138
      %s140 = ssub.s32 %s17, %s24
      %p141 = scmp.eq.s32.totalorder %s140, 0
      %s143 = sadd.s32 %s142, 1
      %s144 = scalar_select %p141, %s142, %s143
      %p147 = pneg %p141
      %p148 = scmp.eq.s32.totalorder %s17, 1
      %p149 = por %p147, %p148
      %p150 = scmp.ne.s32.totalorder %s142, %s145
      %p151 = scmp.eq.s32.totalorder %s17, 0
      %p152 = por %p150, %p151
      %p153 = scmp.ne.s32.totalorder %s142, %s145
      %p154 = scmp.eq.s32.totalorder %s22, 1
      %p155 = por %p153, %p154
      %p156 = scmp.ne.s32.totalorder %s145, %s146
      %p157 = scmp.eq.s32.totalorder %s22, 0
      %p158 = por %p156, %p157
      %p159 = scmp.ne.s32.totalorder %s145, %s146
      %p160 = scmp.eq.s32.totalorder %s23, 1
      %p161 = por %p159, %p160
      %p163 = scmp.ne.s32.totalorder %s146, %s162
      %p164 = scmp.eq.s32.totalorder %s23, 0
      %p165 = por %p163, %p164
      %p166 = scmp.le.s32.totalorder 1, %s17
      %p167 = scmp.lt.s32.totalorder %s17, 3
      %p168 = pnand %p166, %p167
      %p169 = pneg %p168
      // Predicated region
      $region9: #{tpu_custom_call.1} parent=5 // pred_check
        _
      $region10: #{tpu_custom_call.1} parent=5 // pred_check_branch
        %171 = sbr.rel (%p168) target = $region12
      $region11: #{tpu_custom_call.1} parent=5 // pred_region
        %s172 = ssub.s32 %s17, 1
        // Predicated region
        $region13: #{tpu_custom_call.1} parent=11 // pred_check
          %p173 = pneg %p90
        $region14: #{tpu_custom_call.1} parent=11 // pred_check_branch
          %175 = sbr.rel (%p173) target = $region16
        $region15: #{tpu_custom_call.1} parent=11 // pred_region
          %s177 = ssub.s32 47104, 47104
          %178 = vsyncadd [#allocation5], %s177
          %s179 = sshll.u32 [#allocation6], 4
          %s180 = int_to_ptr.vmem [resolvable:$true] %s179
          %185 = dma.hbm_to_vmem [thread:$0]  %s2, 47104, %s180, [#allocation5], 128, 128, 8
        $region16: #{tpu_custom_call.1} parent=11 // pred_fallthru
          _
        // Predicated region
        $region17: #{tpu_custom_call.1} parent=11 // pred_check
          %p186 = pneg %p111
        $region18: #{tpu_custom_call.1} parent=11 // pred_check_branch
          %188 = sbr.rel (%p186) target = $region20
        $region19: #{tpu_custom_call.1} parent=11 // pred_region
          _
        $region20: #{tpu_custom_call.1} parent=11 // pred_fallthru
          _
        // Predicated region
        $region21: #{tpu_custom_call.1} parent=11 // pred_check
          %p189 = pneg %p132
        $region22: #{tpu_custom_call.1} parent=11 // pred_check_branch
          %191 = sbr.rel (%p189) target = $region24
        $region23: #{tpu_custom_call.1} parent=11 // pred_region
          _
        $region24: #{tpu_custom_call.1} parent=11 // pred_fallthru
          _
      $region12: #{tpu_custom_call.1} parent=5 // pred_fallthru
        _
      %p192 = scmp.lt.s32.totalorder %s17, 2
      // Predicated region
      $region25: #{tpu_custom_call.1} parent=5 // pred_check
        %p193 = pneg %p192
      $region26: #{tpu_custom_call.1} parent=5 // pred_check_branch
        %195 = sbr.rel (%p193) target = $region28
      $region27: #{tpu_custom_call.1} parent=5 // pred_region
        // Predicated region
        $region29: #{tpu_custom_call.1} parent=27 // pred_check
          %p196 = pneg %p37
        $region30: #{tpu_custom_call.1} parent=27 // pred_check_branch
          %198 = sbr.rel (%p196) target = $region32
        $region31: #{tpu_custom_call.1} parent=27 // pred_region
          %s199 = sand.u32 %s27, 1
          %s200 = scalar_lea.sflag [#allocation3], %s199
          %s201 = sand.u32 %s27, 1
          %s202 = smul.addr %s201, 32
          %s203 = scalar_lea.vmem [#allocation2], %s202
          %s205 = ssub.s32 512, 512
          %206 = vsyncadd %s200, %s205
          %s207 = smul.addr %s17, 4
          %s208 = smul.addr %s207, 128
          %s209 = scalar_lea.hbm %s0, %s208
          %s210 = sshll.u32 %s203, 4
          %s211 = int_to_ptr.vmem [resolvable:$true] %s210
          %216 = dma.hbm_to_vmem [thread:$0]  %s209, 512, %s211, %s200, 128, 128, 8
        $region32: #{tpu_custom_call.1} parent=27 // pred_fallthru
          _
        // Predicated region
        $region33: #{tpu_custom_call.1} parent=27 // pred_check
          %p217 = pneg %p63
        $region34: #{tpu_custom_call.1} parent=27 // pred_check_branch
          %219 = sbr.rel (%p217) target = $region36
        $region35: #{tpu_custom_call.1} parent=27 // pred_region
          %s220 = sand.u32 %s17, 1
          %s221 = scalar_lea.sflag [#allocation5], %s220
          %s222 = sand.u32 %s53, 1
          %s223 = scalar_lea.vmem [#allocation4], %s222
          %s225 = ssub.s32 16, 16
          %226 = vsyncadd %s221, %s225
          %s227 = smul.addr %s17, 16
          %s228 = scalar_lea.hbm %s1, %s227
          %s230 = sshll.u32 %s223, 4
          %s231 = int_to_ptr.vmem [resolvable:$true] %s230
          %233 = dma.hbm_to_vmem [thread:$0]  %s228, 16, %s231, %s221
        $region36: #{tpu_custom_call.1} parent=27 // pred_fallthru
          _
      $region28: #{tpu_custom_call.1} parent=5 // pred_fallthru
        _
      %p234 = scmp.le.s32.totalorder 1, %s17
      %p235 = scmp.lt.s32.totalorder %s17, 3
      %p236 = pnand %p234, %p235
      %p237 = pneg %p236
      // Predicated region
      $region37: #{tpu_custom_call.1} parent=5 // pred_check
        _
      $region38: #{tpu_custom_call.1} parent=5 // pred_check_branch
        %239 = sbr.rel (%p236) target = $region40
      $region39: #{tpu_custom_call.1} parent=5 // pred_region
        %s240 = ssub.s32 %s17, 1
        %s241 = sand.u32 %s30, 1
        %s242 = scalar_lea.sflag [#allocation3], %s241
        %s243 = sand.u32 %s30, 1
        %s244 = smul.addr %s243, 32
        %s245 = scalar_lea.vmem [#allocation2], %s244
        // Predicated region
        $region41: #{tpu_custom_call.1} parent=39 // pred_check
          %p246 = pneg %p43
        $region42: #{tpu_custom_call.1} parent=39 // pred_check_branch
          %248 = sbr.rel (%p246) target = $region44
        $region43: #{tpu_custom_call.1} parent=39 // pred_region
          %249 = dma.done %s242, 512
        $region44: #{tpu_custom_call.1} parent=39 // pred_fallthru
          _
        %s250 = sand.u32 %s22, 1
        %s251 = scalar_lea.sflag [#allocation5], %s250
        %s252 = sand.u32 %s56, 1
        %s253 = scalar_lea.vmem [#allocation4], %s252
        // Predicated region
        $region45: #{tpu_custom_call.1} parent=39 // pred_check
          %p254 = pneg %p69
        $region46: #{tpu_custom_call.1} parent=39 // pred_check_branch
          %256 = sbr.rel (%p254) target = $region48
        $region47: #{tpu_custom_call.1} parent=39 // pred_region
          %257 = dma.done %s251, 16
        $region48: #{tpu_custom_call.1} parent=39 // pred_fallthru
          _
        // Predicated region
        $region49: #{tpu_custom_call.1} parent=39 // pred_check
          %p258 = pneg %p90
        $region50: #{tpu_custom_call.1} parent=39 // pred_check_branch
          %260 = sbr.rel (%p258) target = $region52
        $region51: #{tpu_custom_call.1} parent=39 // pred_region
          %261 = dma.done [#allocation5], 47104
        $region52: #{tpu_custom_call.1} parent=39 // pred_fallthru
          _
        %s262 = sand.u32 %s30, 1
        %s263 = scalar_lea.sflag [#allocation3], %s262
        %s264 = sand.u32 %s30, 1
        %s265 = smul.addr %s264, 32
        %s266 = scalar_lea.vmem [#allocation2], %s265
        %p267 = pneg %p43
        %p268 = pneg %p40
        %s269 = sand.u32 %s22, 1
        %s270 = scalar_lea.sflag [#allocation5], %s269
        %s271 = sand.u32 %s56, 1
        %s272 = scalar_lea.vmem [#allocation4], %s271
        %p273 = pneg %p69
        %p274 = pneg %p66
        %p275 = pneg %p90
        %p276 = pneg %p87
        %p277 = pneg %p111
        %p278 = pneg %p108
        %p279 = pneg %p132
        %p280 = pneg %p129
        %p281 = pneg %p158
        %p282 = pneg %p155
        %p283 = scmp.lt.s32.totalorder %s22, 1
        %s284 = scalar_select %p283, %s22, 1
        %s285 = smul.addr %s284, 2
        %s286 = smul.addr %s285, 8
        %s287 = scalar_lea.vmem %s5, %s286
        %p288 = scmp.lt.s32.totalorder %s22, 1
        %s289 = scalar_select %p288, %s22, 1
        %s290 = smul.addr %s289, 2
        %s291 = smul.addr %s290, 8
        %s292 = scalar_lea.vmem %s5, %s291
        %v293 = vld [vmem:[%s245] sm:$0xff]
        %v294 = vld [vmem:[%s245 + $0x8] sm:$0xff]
        %v295 = vld [vmem:[%s245 + $0x10] sm:$0xff]
        %v296 = vld [vmem:[%s245 + $0x18] sm:$0xff]
        %v297 = vld [vmem:[%s3] sm:$0xff]
        %v298 = vld [vmem:[%s3 + $0x8] sm:$0xff]
        %v299 = vld [vmem:[%s3 + $0x10] sm:$0xff]
        %v300 = vld [vmem:[%s3 + $0x18] sm:$0xff]
        %vm301 = vcmask 261120
        %v303 = vsel %vm301, %v297, 0
        %v306 = vsel %vm301, %v298, 0
        %v309 = vsel %vm301, %v299, 0
        %v312 = vsel %vm301, %v300, 0
        %314 = vmatprep.subr.mxu0 0.0
        %315 = vmatpush1.msra.mxu0 0.0
        %316 = vmatprep.subr.mxu0 0.0
        %317 = vmatpush1.msra.mxu0 0.0
        %318 = vmatprep.subr.mxu0 0.0
        %319 = vmatpush1.msra.mxu0 0.0
        %320 = vmatprep.subr.mxu0 0.0
        %321 = vmatpush1.msra.mxu0 0.0
        %322 = vmatprep.subr.mxu0 0.0
        %323 = vmatpush1.msra.mxu0 0.0
        %324 = vmatprep.subr.mxu0 0.0
        %325 = vmatpush1.msra.mxu0 0.0
        %326 = vmatprep.subr.mxu0 0.0
        %327 = vmatpush1.msra.mxu0 0.0
        %328 = vmatprep.subr.mxu0 0.0
        %329 = vmatpush1.msra.mxu0 0.0
        %330 = vmatprep.subr.mxu0 0.0
        %331 = vmatpush1.msra.mxu0 0.0
        %332 = vmatprep.subr.mxu0 0.0
        %333 = vmatpush1.msra.mxu0 0.0
        %334 = vmatprep.subr.mxu0 0.0
        %335 = vmatpush1.msra.mxu0 0.0
        %336 = vmatprep.subr.mxu0 0.0
        %337 = vmatpush1.msra.mxu0 0.0
        %338 = vmatprep.subr.mxu0 0.0
        %339 = vmatpush1.msra.mxu0 %v296
        %340 = vmatprep.subr.mxu0 0.0
        %341 = vmatpush1.msra.mxu0 %v295
        %342 = vmatprep.subr.mxu0 0.0
        %343 = vmatpush1.msra.mxu0 %v294
        %344 = vmatprep.subr.mxu0 0.0
        %345 = vmatpush1.msra.mxu0 %v293
        %346 = vmatprep.subr.mxu0 0.0
        %347 = vmatpush2.msra.mxu0 0.0
        %348 = vmatprep.subr.mxu0 0.0
        %349 = vmatpush2.msra.mxu0 0.0
        %350 = vmatprep.subr.mxu0 0.0
        %351 = vmatpush2.msra.mxu0 0.0
        %352 = vmatprep.subr.mxu0 0.0
        %353 = vmatpush2.msra.mxu0 0.0
        %354 = vmatprep.subr.mxu0 0.0
        %355 = vmatpush2.msra.mxu0 0.0
        %356 = vmatprep.subr.mxu0 0.0
        %357 = vmatpush2.msra.mxu0 0.0
        %358 = vmatprep.subr.mxu0 0.0
        %359 = vmatpush2.msra.mxu0 0.0
        %360 = vmatprep.subr.mxu0 0.0
        %361 = vmatpush2.msra.mxu0 0.0
        %362 = vmatprep.subr.mxu0 0.0
        %363 = vmatpush2.msra.mxu0 0.0
        %364 = vmatprep.subr.mxu0 0.0
        %365 = vmatpush2.msra.mxu0 0.0
        %366 = vmatprep.subr.mxu0 0.0
        %367 = vmatpush2.msra.mxu0 0.0
        %368 = vmatprep.subr.mxu0 0.0
        %369 = vmatpush2.msra.mxu0 0.0
        %370 = vmatprep.subr.mxu0 0.0
        %371 = vmatpush2.msra.mxu0 0.0
        %372 = vmatprep.subr.mxu0 0.0
        %373 = vmatpush2.msra.mxu0 0.0
        %374 = vmatprep.subr.mxu0 0.0
        %375 = vmatpush2.msra.mxu0 0.0
        %376 = vmatprep.subr.mxu0 0.0
        %377 = vmatpush2.msra.mxu0 0.0
        %378 = vmatprep.mubr.f32.mxu0 0.0
        %379 = vmatmul.mubr.f32.gmra.mxu0 %v303
        %v380 = vpop.f32.mrf.mxu0
        %v381 = vadd.f32 0.0, %v380
        %v382 = vpop.f32.mrf.mxu0
        %383 = vmatprep.mubr.f32.mxu0 0.0
        %384 = vmatmul.mubr.f32.gmra.mxu0 %v306
        %v385 = vpop.f32.mrf.mxu0
        %v386 = vadd.f32 0.0, %v385
        %v387 = vpop.f32.mrf.mxu0
        %388 = vmatprep.mubr.f32.mxu0 0.0
        %389 = vmatmul.mubr.f32.gmra.mxu0 %v309
        %v390 = vpop.f32.mrf.mxu0
        %v391 = vadd.f32 0.0, %v390
        %v392 = vpop.f32.mrf.mxu0
        %393 = vmatprep.mubr.f32.mxu0 0.0
        %394 = vmatmul.mubr.f32.gmra.mxu0 %v312
        %v395 = vpop.f32.mrf.mxu0
        %v396 = vadd.f32 0.0, %v395
        %v397 = vpop.f32.mrf.mxu0
        %398 = vdwg.mxu0
        %v399 = vld [vmem:[#allocation6] sm:$0xff]
        %v400 = vld [vmem:[#allocation6 + $0x8] sm:$0xff]
        %v401 = vld [vmem:[#allocation6 + $0x10] sm:$0xff]
        %v402 = vld [vmem:[#allocation6 + $0x18] sm:$0xff]
        %v403 = vld [vmem:[#allocation6 + $0x20] sm:$0xff]
        %v404 = vld [vmem:[#allocation6 + $0x28] sm:$0xff]
        %v405 = vld [vmem:[#allocation6 + $0x30] sm:$0xff]
        %v406 = vld [vmem:[#allocation6 + $0x38] sm:$0xff]
        %v407 = vld [vmem:[%s4] sm:$0xff]
        %v408 = vld [vmem:[%s4 + $0x8] sm:$0xff]
        %v409 = vld [vmem:[%s4 + $0x10] sm:$0xff]
        %v410 = vld [vmem:[%s4 + $0x18] sm:$0xff]
        %412 = vset.pattern.permute.xlu0 0
        %413 = vperm.xlu0 %412, %v407
        %v414 = vpop.permute.xlu0 %413
        %417 = vset.pattern.permute.xlu0 0
        %418 = vperm.xlu0 %417, %v408
        %v419 = vpop.permute.xlu0 %418
        %422 = vset.pattern.permute.xlu0 0
        %423 = vperm.xlu0 %422, %v409
        %v424 = vpop.permute.xlu0 %423
        %427 = vset.pattern.permute.xlu0 0
        %428 = vperm.xlu0 %427, %v410
        %v429 = vpop.permute.xlu0 %428
        %vm431 = vcmask 523264
        %v433 = vsel %vm431, %v381, 0
        %v436 = vsel %vm431, %v386, 0
        %v439 = vsel %vm431, %v391, 0
        %v442 = vsel %vm431, %v396, 0
        %444 = vmatprep.subr.mxu0 0.0
        %445 = vmatpush1.msra.mxu0 0.0
        %446 = vmatprep.subr.mxu0 0.0
        %447 = vmatpush1.msra.mxu0 0.0
        %448 = vmatprep.subr.mxu0 0.0
        %449 = vmatpush1.msra.mxu0 0.0
        %450 = vmatprep.subr.mxu0 0.0
        %451 = vmatpush1.msra.mxu0 0.0
        %452 = vmatprep.subr.mxu0 0.0
        %453 = vmatpush1.msra.mxu0 0.0
        %454 = vmatprep.subr.mxu0 0.0
        %455 = vmatpush1.msra.mxu0 0.0
        %456 = vmatprep.subr.mxu0 0.0
        %457 = vmatpush1.msra.mxu0 0.0
        %458 = vmatprep.subr.mxu0 0.0
        %459 = vmatpush1.msra.mxu0 0.0
        %460 = vmatprep.subr.mxu0 0.0
        %461 = vmatpush1.msra.mxu0 %v406
        %462 = vmatprep.subr.mxu0 0.0
        %463 = vmatpush1.msra.mxu0 %v405
        %464 = vmatprep.subr.mxu0 0.0
        %465 = vmatpush1.msra.mxu0 %v404
        %466 = vmatprep.subr.mxu0 0.0
        %467 = vmatpush1.msra.mxu0 %v403
        %468 = vmatprep.subr.mxu0 0.0
        %469 = vmatpush1.msra.mxu0 %v402
        %470 = vmatprep.subr.mxu0 0.0
        %471 = vmatpush1.msra.mxu0 %v401
        %472 = vmatprep.subr.mxu0 0.0
        %473 = vmatpush1.msra.mxu0 %v400
        %474 = vmatprep.subr.mxu0 0.0
        %475 = vmatpush1.msra.mxu0 %v399
        %476 = vmatprep.subr.mxu0 0.0
        %477 = vmatpush2.msra.mxu0 0.0
        %478 = vmatprep.subr.mxu0 0.0
        %479 = vmatpush2.msra.mxu0 0.0
        %480 = vmatprep.subr.mxu0 0.0
        %481 = vmatpush2.msra.mxu0 0.0
        %482 = vmatprep.subr.mxu0 0.0
        %483 = vmatpush2.msra.mxu0 0.0
        %484 = vmatprep.subr.mxu0 0.0
        %485 = vmatpush2.msra.mxu0 0.0
        %486 = vmatprep.subr.mxu0 0.0
        %487 = vmatpush2.msra.mxu0 0.0
        %488 = vmatprep.subr.mxu0 0.0
        %489 = vmatpush2.msra.mxu0 0.0
        %490 = vmatprep.subr.mxu0 0.0
        %491 = vmatpush2.msra.mxu0 0.0
        %492 = vmatprep.subr.mxu0 0.0
        %493 = vmatpush2.msra.mxu0 0.0
        %494 = vmatprep.subr.mxu0 0.0
        %495 = vmatpush2.msra.mxu0 0.0
        %496 = vmatprep.subr.mxu0 0.0
        %497 = vmatpush2.msra.mxu0 0.0
        %498 = vmatprep.subr.mxu0 0.0
        %499 = vmatpush2.msra.mxu0 0.0
        %500 = vmatprep.subr.mxu0 0.0
        %501 = vmatpush2.msra.mxu0 0.0
        %502 = vmatprep.subr.mxu0 0.0
        %503 = vmatpush2.msra.mxu0 0.0
        %504 = vmatprep.subr.mxu0 0.0
        %505 = vmatpush2.msra.mxu0 0.0
        %506 = vmatprep.subr.mxu0 0.0
        %507 = vmatpush2.msra.mxu0 0.0
        %508 = vmatprep.mubr.f32.mxu0 0.0
        %509 = vmatmul.mubr.f32.gmra.mxu0 %v433
        %v510 = vpop.f32.mrf.mxu0
        %v511 = vadd.f32 %v414, %v510
        %v512 = vpop.f32.mrf.mxu0
        %513 = vmatprep.mubr.f32.mxu0 0.0
        %514 = vmatmul.mubr.f32.gmra.mxu0 %v436
        %v515 = vpop.f32.mrf.mxu0
        %v516 = vadd.f32 %v419, %v515
        %v517 = vpop.f32.mrf.mxu0
        %518 = vmatprep.mubr.f32.mxu0 0.0
        %519 = vmatmul.mubr.f32.gmra.mxu0 %v439
        %v520 = vpop.f32.mrf.mxu0
        %v521 = vadd.f32 %v424, %v520
        %v522 = vpop.f32.mrf.mxu0
        %523 = vmatprep.mubr.f32.mxu0 0.0
        %524 = vmatmul.mubr.f32.gmra.mxu0 %v442
        %v525 = vpop.f32.mrf.mxu0
        %v526 = vadd.f32 %v429, %v525
        %v527 = vpop.f32.mrf.mxu0
        %528 = vdwg.mxu0
        %v529 = vmul.f32 %v511, 0.5
        %v530 = vmul.f32 %v516, 0.5
        %v531 = vmul.f32 %v521, 0.5
        %v532 = vmul.f32 %v526, 0.5
        %v533 = vmul.f32 %v511, 0.70710677
        %v534 = vmul.f32 %v516, 0.70710677
        %v535 = vmul.f32 %v521, 0.70710677
        %v536 = vmul.f32 %v526, 0.70710677
        %v537 = verf.f32.pop %v533
        %v538 = verf.f32.pop %v534
        %v539 = verf.f32.pop %v535
        %v540 = verf.f32.pop %v536
        %v541 = vadd.f32 %v537, 1.0
        %v542 = vadd.f32 %v538, 1.0
        %v543 = vadd.f32 %v539, 1.0
        %v544 = vadd.f32 %v540, 1.0
        %v545 = vmul.f32 %v529, %v541
        %v546 = vmul.f32 %v530, %v542
        %v547 = vmul.f32 %v531, %v543
        %v548 = vmul.f32 %v532, %v544
        %v549 = vld [vmem:[%s3 + $0x20] sm:$0xff]
        %v550 = vld [vmem:[%s3 + $0x28] sm:$0xff]
        %v551 = vld [vmem:[%s3 + $0x30] sm:$0xff]
        %v552 = vld [vmem:[%s3 + $0x38] sm:$0xff]
        %v554 = vsel %vm301, %v549, 0
        %v557 = vsel %vm301, %v550, 0
        %v560 = vsel %vm301, %v551, 0
        %v563 = vsel %vm301, %v552, 0
        %565 = vmatprep.subr.mxu0 0.0
        %566 = vmatpush1.msra.mxu0 0.0
        %567 = vmatprep.subr.mxu0 0.0
        %568 = vmatpush1.msra.mxu0 0.0
        %569 = vmatprep.subr.mxu0 0.0
        %570 = vmatpush1.msra.mxu0 0.0
        %571 = vmatprep.subr.mxu0 0.0
        %572 = vmatpush1.msra.mxu0 0.0
        %573 = vmatprep.subr.mxu0 0.0
        %574 = vmatpush1.msra.mxu0 0.0
        %575 = vmatprep.subr.mxu0 0.0
        %576 = vmatpush1.msra.mxu0 0.0
        %577 = vmatprep.subr.mxu0 0.0
        %578 = vmatpush1.msra.mxu0 0.0
        %579 = vmatprep.subr.mxu0 0.0
        %580 = vmatpush1.msra.mxu0 0.0
        %581 = vmatprep.subr.mxu0 0.0
        %582 = vmatpush1.msra.mxu0 0.0
        %583 = vmatprep.subr.mxu0 0.0
        %584 = vmatpush1.msra.mxu0 0.0
        %585 = vmatprep.subr.mxu0 0.0
        %586 = vmatpush1.msra.mxu0 0.0
        %587 = vmatprep.subr.mxu0 0.0
        %588 = vmatpush1.msra.mxu0 0.0
        %589 = vmatprep.subr.mxu0 0.0
        %590 = vmatpush1.msra.mxu0 %v548
        %591 = vmatprep.subr.mxu0 0.0
        %592 = vmatpush1.msra.mxu0 %v547
        %593 = vmatprep.subr.mxu0 0.0
        %594 = vmatpush1.msra.mxu0 %v546
        %595 = vmatprep.subr.mxu0 0.0
        %596 = vmatpush1.msra.mxu0 %v545
        %597 = vmatprep.subr.mxu0 0.0
        %598 = vmatpush2.msra.mxu0 0.0
        %599 = vmatprep.subr.mxu0 0.0
        %600 = vmatpush2.msra.mxu0 0.0
        %601 = vmatprep.subr.mxu0 0.0
        %602 = vmatpush2.msra.mxu0 0.0
        %603 = vmatprep.subr.mxu0 0.0
        %604 = vmatpush2.msra.mxu0 0.0
        %605 = vmatprep.subr.mxu0 0.0
        %606 = vmatpush2.msra.mxu0 0.0
        %607 = vmatprep.subr.mxu0 0.0
        %608 = vmatpush2.msra.mxu0 0.0
        %609 = vmatprep.subr.mxu0 0.0
        %610 = vmatpush2.msra.mxu0 0.0
        %611 = vmatprep.subr.mxu0 0.0
        %612 = vmatpush2.msra.mxu0 0.0
        %613 = vmatprep.subr.mxu0 0.0
        %614 = vmatpush2.msra.mxu0 0.0
        %615 = vmatprep.subr.mxu0 0.0
        %616 = vmatpush2.msra.mxu0 0.0
        %617 = vmatprep.subr.mxu0 0.0
        %618 = vmatpush2.msra.mxu0 0.0
        %619 = vmatprep.subr.mxu0 0.0
        %620 = vmatpush2.msra.mxu0 0.0
        %621 = vmatprep.subr.mxu0 0.0
        %622 = vmatpush2.msra.mxu0 0.0
        %623 = vmatprep.subr.mxu0 0.0
        %624 = vmatpush2.msra.mxu0 0.0
        %625 = vmatprep.subr.mxu0 0.0
        %626 = vmatpush2.msra.mxu0 0.0
        %627 = vmatprep.subr.mxu0 0.0
        %628 = vmatpush2.msra.mxu0 0.0
        %629 = vmatprep.mubr.f32.mxu0 0.0
        %630 = vmatmul.mubr.f32.gmra.mxu0 %v554
        %v631 = vpop.f32.mrf.mxu0
        %v632 = vadd.f32 0.0, %v631
        %v633 = vpop.f32.mrf.mxu0
        %634 = vmatprep.mubr.f32.mxu0 0.0
        %635 = vmatmul.mubr.f32.gmra.mxu0 %v557
        %v636 = vpop.f32.mrf.mxu0
        %v637 = vadd.f32 0.0, %v636
        %v638 = vpop.f32.mrf.mxu0
        %639 = vmatprep.mubr.f32.mxu0 0.0
        %640 = vmatmul.mubr.f32.gmra.mxu0 %v560
        %v641 = vpop.f32.mrf.mxu0
        %v642 = vadd.f32 0.0, %v641
        %v643 = vpop.f32.mrf.mxu0
        %644 = vmatprep.mubr.f32.mxu0 0.0
        %645 = vmatmul.mubr.f32.gmra.mxu0 %v563
        %v646 = vpop.f32.mrf.mxu0
        %v647 = vadd.f32 0.0, %v646
        %v648 = vpop.f32.mrf.mxu0
        %649 = vdwg.mxu0
        %s650 = scalar_lea.vmem [#allocation6], 64
        %v651 = vld [vmem:[%s650] sm:$0xff]
        %v652 = vld [vmem:[%s650 + $0x8] sm:$0xff]
        %v653 = vld [vmem:[%s650 + $0x10] sm:$0xff]
        %v654 = vld [vmem:[%s650 + $0x18] sm:$0xff]
        %v655 = vld [vmem:[%s650 + $0x20] sm:$0xff]
        %v656 = vld [vmem:[%s650 + $0x28] sm:$0xff]
        %v657 = vld [vmem:[%s650 + $0x30] sm:$0xff]
        %v658 = vld [vmem:[%s650 + $0x38] sm:$0xff]
        %s659 = scalar_lea.vmem %s4, 32
        %v660 = vld [vmem:[%s659] sm:$0xff]
        %v661 = vld [vmem:[%s659 + $0x8] sm:$0xff]
        %v662 = vld [vmem:[%s659 + $0x10] sm:$0xff]
        %v663 = vld [vmem:[%s659 + $0x18] sm:$0xff]
        %665 = vset.pattern.permute.xlu0 0
        %666 = vperm.xlu0 %665, %v660
        %v667 = vpop.permute.xlu0 %666
        %670 = vset.pattern.permute.xlu0 0
        %671 = vperm.xlu0 %670, %v661
        %v672 = vpop.permute.xlu0 %671
        %675 = vset.pattern.permute.xlu0 0
        %676 = vperm.xlu0 %675, %v662
        %v677 = vpop.permute.xlu0 %676
        %680 = vset.pattern.permute.xlu0 0
        %681 = vperm.xlu0 %680, %v663
        %v682 = vpop.permute.xlu0 %681
        %v685 = vsel %vm431, %v632, 0
        %v688 = vsel %vm431, %v637, 0
        %v691 = vsel %vm431, %v642, 0
        %v694 = vsel %vm431, %v647, 0
        %696 = vmatprep.subr.mxu0 0.0
        %697 = vmatpush1.msra.mxu0 0.0
        %698 = vmatprep.subr.mxu0 0.0
        %699 = vmatpush1.msra.mxu0 0.0
        %700 = vmatprep.subr.mxu0 0.0
        %701 = vmatpush1.msra.mxu0 0.0
        %702 = vmatprep.subr.mxu0 0.0
        %703 = vmatpush1.msra.mxu0 0.0
        %704 = vmatprep.subr.mxu0 0.0
        %705 = vmatpush1.msra.mxu0 0.0
        %706 = vmatprep.subr.mxu0 0.0
        %707 = vmatpush1.msra.mxu0 0.0
        %708 = vmatprep.subr.mxu0 0.0
        %709 = vmatpush1.msra.mxu0 0.0
        %710 = vmatprep.subr.mxu0 0.0
        %711 = vmatpush1.msra.mxu0 0.0
        %712 = vmatprep.subr.mxu0 0.0
        %713 = vmatpush1.msra.mxu0 %v658
        %714 = vmatprep.subr.mxu0 0.0
        %715 = vmatpush1.msra.mxu0 %v657
        %716 = vmatprep.subr.mxu0 0.0
        %717 = vmatpush1.msra.mxu0 %v656
        %718 = vmatprep.subr.mxu0 0.0
        %719 = vmatpush1.msra.mxu0 %v655
        %720 = vmatprep.subr.mxu0 0.0
        %721 = vmatpush1.msra.mxu0 %v654
        %722 = vmatprep.subr.mxu0 0.0
        %723 = vmatpush1.msra.mxu0 %v653
        %724 = vmatprep.subr.mxu0 0.0
        %725 = vmatpush1.msra.mxu0 %v652
        %726 = vmatprep.subr.mxu0 0.0
        %727 = vmatpush1.msra.mxu0 %v651
        %728 = vmatprep.subr.mxu0 0.0
        %729 = vmatpush2.msra.mxu0 0.0
        %730 = vmatprep.subr.mxu0 0.0
        %731 = vmatpush2.msra.mxu0 0.0
        %732 = vmatprep.subr.mxu0 0.0
        %733 = vmatpush2.msra.mxu0 0.0
        %734 = vmatprep.subr.mxu0 0.0
        %735 = vmatpush2.msra.mxu0 0.0
        %736 = vmatprep.subr.mxu0 0.0
        %737 = vmatpush2.msra.mxu0 0.0
        %738 = vmatprep.subr.mxu0 0.0
        %739 = vmatpush2.msra.mxu0 0.0
        %740 = vmatprep.subr.mxu0 0.0
        %741 = vmatpush2.msra.mxu0 0.0
        %742 = vmatprep.subr.mxu0 0.0
        %743 = vmatpush2.msra.mxu0 0.0
        %744 = vmatprep.subr.mxu0 0.0
        %745 = vmatpush2.msra.mxu0 0.0
        %746 = vmatprep.subr.mxu0 0.0
        %747 = vmatpush2.msra.mxu0 0.0
        %748 = vmatprep.subr.mxu0 0.0
        %749 = vmatpush2.msra.mxu0 0.0
        %750 = vmatprep.subr.mxu0 0.0
        %751 = vmatpush2.msra.mxu0 0.0
        %752 = vmatprep.subr.mxu0 0.0
        %753 = vmatpush2.msra.mxu0 0.0
        %754 = vmatprep.subr.mxu0 0.0
        %755 = vmatpush2.msra.mxu0 0.0
        %756 = vmatprep.subr.mxu0 0.0
        %757 = vmatpush2.msra.mxu0 0.0
        %758 = vmatprep.subr.mxu0 0.0
        %759 = vmatpush2.msra.mxu0 0.0
        %760 = vmatprep.mubr.f32.mxu0 0.0
        %761 = vmatmul.mubr.f32.gmra.mxu0 %v685
        %v762 = vpop.f32.mrf.mxu0
        %v763 = vadd.f32 %v667, %v762
        %v764 = vpop.f32.mrf.mxu0
        %765 = vmatprep.mubr.f32.mxu0 0.0
        %766 = vmatmul.mubr.f32.gmra.mxu0 %v688
        %v767 = vpop.f32.mrf.mxu0
        %v768 = vadd.f32 %v672, %v767
        %v769 = vpop.f32.mrf.mxu0
        %770 = vmatprep.mubr.f32.mxu0 0.0
        %771 = vmatmul.mubr.f32.gmra.mxu0 %v691
        %v772 = vpop.f32.mrf.mxu0
        %v773 = vadd.f32 %v677, %v772
        %v774 = vpop.f32.mrf.mxu0
        %775 = vmatprep.mubr.f32.mxu0 0.0
        %776 = vmatmul.mubr.f32.gmra.mxu0 %v694
        %v777 = vpop.f32.mrf.mxu0
        %v778 = vadd.f32 %v682, %v777
        %v779 = vpop.f32.mrf.mxu0
        %780 = vdwg.mxu0
        %v781 = vmul.f32 %v763, 0.5
        %v782 = vmul.f32 %v768, 0.5
        %v783 = vmul.f32 %v773, 0.5
        %v784 = vmul.f32 %v778, 0.5
        %v785 = vmul.f32 %v763, 0.70710677
        %v786 = vmul.f32 %v768, 0.70710677
        %v787 = vmul.f32 %v773, 0.70710677
        %v788 = vmul.f32 %v778, 0.70710677
        %v789 = verf.f32.pop %v785
        %v790 = verf.f32.pop %v786
        %v791 = verf.f32.pop %v787
        %v792 = verf.f32.pop %v788
        %v793 = vadd.f32 %v789, 1.0
        %v794 = vadd.f32 %v790, 1.0
        %v795 = vadd.f32 %v791, 1.0
        %v796 = vadd.f32 %v792, 1.0
        %v797 = vmul.f32 %v781, %v793
        %v798 = vmul.f32 %v782, %v794
        %v799 = vmul.f32 %v783, %v795
        %v800 = vmul.f32 %v784, %v796
        %v801 = vld [vmem:[%s3 + $0x40] sm:$0xff]
        %v802 = vld [vmem:[%s3 + $0x48] sm:$0xff]
        %v803 = vld [vmem:[%s3 + $0x50] sm:$0xff]
        %v804 = vld [vmem:[%s3 + $0x58] sm:$0xff]
        %v805 = vld [vmem:[%s3 + $0x60] sm:$0xff]
        %v806 = vld [vmem:[%s3 + $0x68] sm:$0xff]
        %v807 = vld [vmem:[%s3 + $0x70] sm:$0xff]
        %v808 = vld [vmem:[%s3 + $0x78] sm:$0xff]
        %v809 = vld [vmem:[%s3 + $0x80] sm:$0xff]
        %v810 = vld [vmem:[%s3 + $0x88] sm:$0xff]
        %v811 = vld [vmem:[%s3 + $0x90] sm:$0xff]
        %v812 = vld [vmem:[%s3 + $0x98] sm:$0xff]
        %v813 = vld [vmem:[%s3 + $0xa0] sm:$0xff]
        %v814 = vld [vmem:[%s3 + $0xa8] sm:$0xff]
        %v815 = vld [vmem:[%s3 + $0xb0] sm:$0xff]
        %v816 = vld [vmem:[%s3 + $0xb8] sm:$0xff]
        %v817 = vld [vmem:[%s3 + $0xc0] sm:$0xff]
        %v818 = vld [vmem:[%s3 + $0xc8] sm:$0xff]
        %v819 = vld [vmem:[%s3 + $0xd0] sm:$0xff]
        %v820 = vld [vmem:[%s3 + $0xd8] sm:$0xff]
        %v821 = vld [vmem:[%s3 + $0xe0] sm:$0xff]
        %v822 = vld [vmem:[%s3 + $0xe8] sm:$0xff]
        %v823 = vld [vmem:[%s3 + $0xf0] sm:$0xff]
        %v824 = vld [vmem:[%s3 + $0xf8] sm:$0xff]
        %v825 = vld [vmem:[%s3 + $0x100] sm:$0xff]
        %v826 = vld [vmem:[%s3 + $0x108] sm:$0xff]
        %v827 = vld [vmem:[%s3 + $0x110] sm:$0xff]
        %v828 = vld [vmem:[%s3 + $0x118] sm:$0xff]
        %v830 = vsel %vm301, %v801, 0
        %v833 = vsel %vm301, %v802, 0
        %v836 = vsel %vm301, %v803, 0
        %v839 = vsel %vm301, %v804, 0
        %v842 = vsel %vm301, %v805, 0
        %v845 = vsel %vm301, %v806, 0
        %v848 = vsel %vm301, %v807, 0
        %v851 = vsel %vm301, %v808, 0
        %v854 = vsel %vm301, %v809, 0
        %v857 = vsel %vm301, %v810, 0
        %v860 = vsel %vm301, %v811, 0
        %v863 = vsel %vm301, %v812, 0
        %v866 = vsel %vm301, %v813, 0
        %v869 = vsel %vm301, %v814, 0
        %v872 = vsel %vm301, %v815, 0
        %v875 = vsel %vm301, %v816, 0
        %v878 = vsel %vm301, %v817, 0
        %v881 = vsel %vm301, %v818, 0
        %v884 = vsel %vm301, %v819, 0
        %v887 = vsel %vm301, %v820, 0
        %v890 = vsel %vm301, %v821, 0
        %v893 = vsel %vm301, %v822, 0
        %v896 = vsel %vm301, %v823, 0
        %v899 = vsel %vm301, %v824, 0
        %v902 = vsel %vm301, %v825, 0
        %v905 = vsel %vm301, %v826, 0
        %v908 = vsel %vm301, %v827, 0
        %v911 = vsel %vm301, %v828, 0
        %913 = vmatprep.subr.mxu0 0.0
        %914 = vmatpush1.msra.mxu0 0.0
        %915 = vmatprep.subr.mxu0 0.0
        %916 = vmatpush1.msra.mxu0 0.0
        %917 = vmatprep.subr.mxu0 0.0
        %918 = vmatpush1.msra.mxu0 0.0
        %919 = vmatprep.subr.mxu0 0.0
        %920 = vmatpush1.msra.mxu0 0.0
        %921 = vmatprep.subr.mxu0 0.0
        %922 = vmatpush1.msra.mxu0 0.0
        %923 = vmatprep.subr.mxu0 0.0
        %924 = vmatpush1.msra.mxu0 0.0
        %925 = vmatprep.subr.mxu0 0.0
        %926 = vmatpush1.msra.mxu0 0.0
        %927 = vmatprep.subr.mxu0 0.0
        %928 = vmatpush1.msra.mxu0 0.0
        %929 = vmatprep.subr.mxu0 0.0
        %930 = vmatpush1.msra.mxu0 0.0
        %931 = vmatprep.subr.mxu0 0.0
        %932 = vmatpush1.msra.mxu0 0.0
        %933 = vmatprep.subr.mxu0 0.0
        %934 = vmatpush1.msra.mxu0 0.0
        %935 = vmatprep.subr.mxu0 0.0
        %936 = vmatpush1.msra.mxu0 0.0
        %937 = vmatprep.subr.mxu0 0.0
        %938 = vmatpush1.msra.mxu0 %v800
        %939 = vmatprep.subr.mxu0 0.0
        %940 = vmatpush1.msra.mxu0 %v799
        %941 = vmatprep.subr.mxu0 0.0
        %942 = vmatpush1.msra.mxu0 %v798
        %943 = vmatprep.subr.mxu0 0.0
        %944 = vmatpush1.msra.mxu0 %v797
        %945 = vmatprep.subr.mxu0 0.0
        %946 = vmatpush2.msra.mxu0 0.0
        %947 = vmatprep.subr.mxu0 0.0
        %948 = vmatpush2.msra.mxu0 0.0
        %949 = vmatprep.subr.mxu0 0.0
        %950 = vmatpush2.msra.mxu0 0.0
        %951 = vmatprep.subr.mxu0 0.0
        %952 = vmatpush2.msra.mxu0 0.0
        %953 = vmatprep.subr.mxu0 0.0
        %954 = vmatpush2.msra.mxu0 0.0
        %955 = vmatprep.subr.mxu0 0.0
        %956 = vmatpush2.msra.mxu0 0.0
        %957 = vmatprep.subr.mxu0 0.0
        %958 = vmatpush2.msra.mxu0 0.0
        %959 = vmatprep.subr.mxu0 0.0
        %960 = vmatpush2.msra.mxu0 0.0
        %961 = vmatprep.subr.mxu0 0.0
        %962 = vmatpush2.msra.mxu0 0.0
        %963 = vmatprep.subr.mxu0 0.0
        %964 = vmatpush2.msra.mxu0 0.0
        %965 = vmatprep.subr.mxu0 0.0
        %966 = vmatpush2.msra.mxu0 0.0
        %967 = vmatprep.subr.mxu0 0.0
        %968 = vmatpush2.msra.mxu0 0.0
        %969 = vmatprep.subr.mxu0 0.0
        %970 = vmatpush2.msra.mxu0 0.0
        %971 = vmatprep.subr.mxu0 0.0
        %972 = vmatpush2.msra.mxu0 0.0
        %973 = vmatprep.subr.mxu0 0.0
        %974 = vmatpush2.msra.mxu0 0.0
        %975 = vmatprep.subr.mxu0 0.0
        %976 = vmatpush2.msra.mxu0 0.0
        %977 = vmatprep.mubr.f32.mxu0 0.0
        %978 = vmatmul.mubr.f32.gmra.mxu0 %v830
        %v979 = vpop.f32.mrf.mxu0
        %v980 = vadd.f32 0.0, %v979
        %v981 = vpop.f32.mrf.mxu0
        %982 = vmatprep.mubr.f32.mxu0 0.0
        %983 = vmatmul.mubr.f32.gmra.mxu0 %v833
        %v984 = vpop.f32.mrf.mxu0
        %v985 = vadd.f32 0.0, %v984
        %v986 = vpop.f32.mrf.mxu0
        %987 = vmatprep.mubr.f32.mxu0 0.0
        %988 = vmatmul.mubr.f32.gmra.mxu0 %v836
        %v989 = vpop.f32.mrf.mxu0
        %v990 = vadd.f32 0.0, %v989
        %v991 = vpop.f32.mrf.mxu0
        %992 = vmatprep.mubr.f32.mxu0 0.0
        %993 = vmatmul.mubr.f32.gmra.mxu0 %v839
        %v994 = vpop.f32.mrf.mxu0
        %v995 = vadd.f32 0.0, %v994
        %v996 = vpop.f32.mrf.mxu0
        %997 = vmatprep.mubr.f32.mxu0 0.0
        %998 = vmatmul.mubr.f32.gmra.mxu0 %v842
        %v999 = vpop.f32.mrf.mxu0
        %v1000 = vadd.f32 0.0, %v999
        %v1001 = vpop.f32.mrf.mxu0
        %1002 = vmatprep.mubr.f32.mxu0 0.0
        %1003 = vmatmul.mubr.f32.gmra.mxu0 %v845
        %v1004 = vpop.f32.mrf.mxu0
        %v1005 = vadd.f32 0.0, %v1004
        %v1006 = vpop.f32.mrf.mxu0
        %1007 = vmatprep.mubr.f32.mxu0 0.0
        %1008 = vmatmul.mubr.f32.gmra.mxu0 %v848
        %v1009 = vpop.f32.mrf.mxu0
        %v1010 = vadd.f32 0.0, %v1009
        %v1011 = vpop.f32.mrf.mxu0
        %1012 = vmatprep.mubr.f32.mxu0 0.0
        %1013 = vmatmul.mubr.f32.gmra.mxu0 %v851
        %v1014 = vpop.f32.mrf.mxu0
        %v1015 = vadd.f32 0.0, %v1014
        %v1016 = vpop.f32.mrf.mxu0
        %1017 = vmatprep.mubr.f32.mxu0 0.0
        %1018 = vmatmul.mubr.f32.gmra.mxu0 %v854
        %v1019 = vpop.f32.mrf.mxu0
        %v1020 = vadd.f32 0.0, %v1019
        %v1021 = vpop.f32.mrf.mxu0
        %1022 = vmatprep.mubr.f32.mxu0 0.0
        %1023 = vmatmul.mubr.f32.gmra.mxu0 %v857
        %v1024 = vpop.f32.mrf.mxu0
        %v1025 = vadd.f32 0.0, %v1024
        %v1026 = vpop.f32.mrf.mxu0
        %1027 = vmatprep.mubr.f32.mxu0 0.0
        %1028 = vmatmul.mubr.f32.gmra.mxu0 %v860
        %v1029 = vpop.f32.mrf.mxu0
        %v1030 = vadd.f32 0.0, %v1029
        %v1031 = vpop.f32.mrf.mxu0
        %1032 = vmatprep.mubr.f32.mxu0 0.0
        %1033 = vmatmul.mubr.f32.gmra.mxu0 %v863
        %v1034 = vpop.f32.mrf.mxu0
        %v1035 = vadd.f32 0.0, %v1034
        %v1036 = vpop.f32.mrf.mxu0
        %1037 = vmatprep.mubr.f32.mxu0 0.0
        %1038 = vmatmul.mubr.f32.gmra.mxu0 %v866
        %v1039 = vpop.f32.mrf.mxu0
        %v1040 = vadd.f32 0.0, %v1039
        %v1041 = vpop.f32.mrf.mxu0
        %1042 = vmatprep.mubr.f32.mxu0 0.0
        %1043 = vmatmul.mubr.f32.gmra.mxu0 %v869
        %v1044 = vpop.f32.mrf.mxu0
        %v1045 = vadd.f32 0.0, %v1044
        %v1046 = vpop.f32.mrf.mxu0
        %1047 = vmatprep.mubr.f32.mxu0 0.0
        %1048 = vmatmul.mubr.f32.gmra.mxu0 %v872
        %v1049 = vpop.f32.mrf.mxu0
        %v1050 = vadd.f32 0.0, %v1049
        %v1051 = vpop.f32.mrf.mxu0
        %1052 = vmatprep.mubr.f32.mxu0 0.0
        %1053 = vmatmul.mubr.f32.gmra.mxu0 %v875
        %v1054 = vpop.f32.mrf.mxu0
        %v1055 = vadd.f32 0.0, %v1054
        %v1056 = vpop.f32.mrf.mxu0
        %1057 = vmatprep.mubr.f32.mxu0 0.0
        %1058 = vmatmul.mubr.f32.gmra.mxu0 %v878
        %v1059 = vpop.f32.mrf.mxu0
        %v1060 = vadd.f32 0.0, %v1059
        %v1061 = vpop.f32.mrf.mxu0
        %1062 = vmatprep.mubr.f32.mxu0 0.0
        %1063 = vmatmul.mubr.f32.gmra.mxu0 %v881
        %v1064 = vpop.f32.mrf.mxu0
        %v1065 = vadd.f32 0.0, %v1064
        %v1066 = vpop.f32.mrf.mxu0
        %1067 = vmatprep.mubr.f32.mxu0 0.0
        %1068 = vmatmul.mubr.f32.gmra.mxu0 %v884
        %v1069 = vpop.f32.mrf.mxu0
        %v1070 = vadd.f32 0.0, %v1069
        %v1071 = vpop.f32.mrf.mxu0
        %1072 = vmatprep.mubr.f32.mxu0 0.0
        %1073 = vmatmul.mubr.f32.gmra.mxu0 %v887
        %v1074 = vpop.f32.mrf.mxu0
        %v1075 = vadd.f32 0.0, %v1074
        %v1076 = vpop.f32.mrf.mxu0
        %1077 = vmatprep.mubr.f32.mxu0 0.0
        %1078 = vmatmul.mubr.f32.gmra.mxu0 %v890
        %v1079 = vpop.f32.mrf.mxu0
        %v1080 = vadd.f32 0.0, %v1079
        %v1081 = vpop.f32.mrf.mxu0
        %1082 = vmatprep.mubr.f32.mxu0 0.0
        %1083 = vmatmul.mubr.f32.gmra.mxu0 %v893
        %v1084 = vpop.f32.mrf.mxu0
        %v1085 = vadd.f32 0.0, %v1084
        %v1086 = vpop.f32.mrf.mxu0
        %1087 = vmatprep.mubr.f32.mxu0 0.0
        %1088 = vmatmul.mubr.f32.gmra.mxu0 %v896
        %v1089 = vpop.f32.mrf.mxu0
        %v1090 = vadd.f32 0.0, %v1089
        %v1091 = vpop.f32.mrf.mxu0
        %1092 = vmatprep.mubr.f32.mxu0 0.0
        %1093 = vmatmul.mubr.f32.gmra.mxu0 %v899
        %v1094 = vpop.f32.mrf.mxu0
        %v1095 = vadd.f32 0.0, %v1094
        %v1096 = vpop.f32.mrf.mxu0
        %1097 = vmatprep.mubr.f32.mxu0 0.0
        %1098 = vmatmul.mubr.f32.gmra.mxu0 %v902
        %v1099 = vpop.f32.mrf.mxu0
        %v1100 = vadd.f32 0.0, %v1099
        %v1101 = vpop.f32.mrf.mxu0
        %1102 = vmatprep.mubr.f32.mxu0 0.0
        %1103 = vmatmul.mubr.f32.gmra.mxu0 %v905
        %v1104 = vpop.f32.mrf.mxu0
        %v1105 = vadd.f32 0.0, %v1104
        %v1106 = vpop.f32.mrf.mxu0
        %1107 = vmatprep.mubr.f32.mxu0 0.0
        %1108 = vmatmul.mubr.f32.gmra.mxu0 %v908
        %v1109 = vpop.f32.mrf.mxu0
        %v1110 = vadd.f32 0.0, %v1109
        %v1111 = vpop.f32.mrf.mxu0
        %1112 = vmatprep.mubr.f32.mxu0 0.0
        %1113 = vmatmul.mubr.f32.gmra.mxu0 %v911
        %v1114 = vpop.f32.mrf.mxu0
        %v1115 = vadd.f32 0.0, %v1114
        %v1116 = vpop.f32.mrf.mxu0
        %1117 = vdwg.mxu0
        %s1118 = scalar_lea.vmem [#allocation6], 128
        %v1119 = vld [vmem:[%s1118] sm:$0xff]
        %v1120 = vld [vmem:[%s1118 + $0x8] sm:$0xff]
        %v1121 = vld [vmem:[%s1118 + $0x10] sm:$0xff]
        %v1122 = vld [vmem:[%s1118 + $0x18] sm:$0xff]
        %v1123 = vld [vmem:[%s1118 + $0x20] sm:$0xff]
        %v1124 = vld [vmem:[%s1118 + $0x28] sm:$0xff]
        %v1125 = vld [vmem:[%s1118 + $0x30] sm:$0xff]
        %v1126 = vld [vmem:[%s1118 + $0x38] sm:$0xff]
        %s1127 = scalar_lea.vmem [#allocation6], 192
        %v1128 = vld [vmem:[%s1127] sm:$0xff]
        %v1129 = vld [vmem:[%s1127 + $0x8] sm:$0xff]
        %v1130 = vld [vmem:[%s1127 + $0x10] sm:$0xff]
        %v1131 = vld [vmem:[%s1127 + $0x18] sm:$0xff]
        %v1132 = vld [vmem:[%s1127 + $0x20] sm:$0xff]
        %v1133 = vld [vmem:[%s1127 + $0x28] sm:$0xff]
        %v1134 = vld [vmem:[%s1127 + $0x30] sm:$0xff]
        %v1135 = vld [vmem:[%s1127 + $0x38] sm:$0xff]
        %v1137 = vsel %vm431, %v1000, 0
        %v1140 = vsel %vm431, %v1005, 0
        %v1143 = vsel %vm431, %v1010, 0
        %v1146 = vsel %vm431, %v1015, 0
        %1148 = vmatprep.subr.mxu0 0.0
        %1149 = vmatpush1.msra.mxu0 0.0
        %1150 = vmatprep.subr.mxu0 0.0
        %1151 = vmatpush1.msra.mxu0 0.0
        %1152 = vmatprep.subr.mxu0 0.0
        %1153 = vmatpush1.msra.mxu0 0.0
        %1154 = vmatprep.subr.mxu0 0.0
        %1155 = vmatpush1.msra.mxu0 0.0
        %1156 = vmatprep.subr.mxu0 0.0
        %1157 = vmatpush1.msra.mxu0 0.0
        %1158 = vmatprep.subr.mxu0 0.0
        %1159 = vmatpush1.msra.mxu0 0.0
        %1160 = vmatprep.subr.mxu0 0.0
        %1161 = vmatpush1.msra.mxu0 0.0
        %1162 = vmatprep.subr.mxu0 0.0
        %1163 = vmatpush1.msra.mxu0 0.0
        %1164 = vmatprep.subr.mxu0 0.0
        %1165 = vmatpush1.msra.mxu0 %v1135
        %1166 = vmatprep.subr.mxu0 0.0
        %1167 = vmatpush1.msra.mxu0 %v1134
        %1168 = vmatprep.subr.mxu0 0.0
        %1169 = vmatpush1.msra.mxu0 %v1133
        %1170 = vmatprep.subr.mxu0 0.0
        %1171 = vmatpush1.msra.mxu0 %v1132
        %1172 = vmatprep.subr.mxu0 0.0
        %1173 = vmatpush1.msra.mxu0 %v1131
        %1174 = vmatprep.subr.mxu0 0.0
        %1175 = vmatpush1.msra.mxu0 %v1130
        %1176 = vmatprep.subr.mxu0 0.0
        %1177 = vmatpush1.msra.mxu0 %v1129
        %1178 = vmatprep.subr.mxu0 0.0
        %1179 = vmatpush1.msra.mxu0 %v1128
        %1180 = vmatprep.subr.mxu0 0.0
        %1181 = vmatpush2.msra.mxu0 0.0
        %1182 = vmatprep.subr.mxu0 0.0
        %1183 = vmatpush2.msra.mxu0 0.0
        %1184 = vmatprep.subr.mxu0 0.0
        %1185 = vmatpush2.msra.mxu0 0.0
        %1186 = vmatprep.subr.mxu0 0.0
        %1187 = vmatpush2.msra.mxu0 0.0
        %1188 = vmatprep.subr.mxu0 0.0
        %1189 = vmatpush2.msra.mxu0 0.0
        %1190 = vmatprep.subr.mxu0 0.0
        %1191 = vmatpush2.msra.mxu0 0.0
        %1192 = vmatprep.subr.mxu0 0.0
        %1193 = vmatpush2.msra.mxu0 0.0
        %1194 = vmatprep.subr.mxu0 0.0
        %1195 = vmatpush2.msra.mxu0 0.0
        %1196 = vmatprep.subr.mxu0 0.0
        %1197 = vmatpush2.msra.mxu0 0.0
        %1198 = vmatprep.subr.mxu0 0.0
        %1199 = vmatpush2.msra.mxu0 0.0
        %1200 = vmatprep.subr.mxu0 0.0
        %1201 = vmatpush2.msra.mxu0 0.0
        %1202 = vmatprep.subr.mxu0 0.0
        %1203 = vmatpush2.msra.mxu0 0.0
        %1204 = vmatprep.subr.mxu0 0.0
        %1205 = vmatpush2.msra.mxu0 0.0
        %1206 = vmatprep.subr.mxu0 0.0
        %1207 = vmatpush2.msra.mxu0 0.0
        %1208 = vmatprep.subr.mxu0 0.0
        %1209 = vmatpush2.msra.mxu0 0.0
        %1210 = vmatprep.subr.mxu0 0.0
        %1211 = vmatpush2.msra.mxu0 0.0
        %1212 = vmatprep.mubr.f32.mxu0 0.0
        %1213 = vmatmul.mubr.f32.gmra.mxu0 %v1137
        %v1214 = vpop.f32.mrf.mxu0
        %v1215 = vadd.f32 0.0, %v1214
        %v1216 = vpop.f32.mrf.mxu0
        %1217 = vmatprep.mubr.f32.mxu0 0.0
        %1218 = vmatmul.mubr.f32.gmra.mxu0 %v1140
        %v1219 = vpop.f32.mrf.mxu0
        %v1220 = vadd.f32 0.0, %v1219
        %v1221 = vpop.f32.mrf.mxu0
        %1222 = vmatprep.mubr.f32.mxu0 0.0
        %1223 = vmatmul.mubr.f32.gmra.mxu0 %v1143
        %v1224 = vpop.f32.mrf.mxu0
        %v1225 = vadd.f32 0.0, %v1224
        %v1226 = vpop.f32.mrf.mxu0
        %1227 = vmatprep.mubr.f32.mxu0 0.0
        %1228 = vmatmul.mubr.f32.gmra.mxu0 %v1146
        %v1229 = vpop.f32.mrf.mxu0
        %v1230 = vadd.f32 0.0, %v1229
        %v1231 = vpop.f32.mrf.mxu0
        %1232 = vdwg.mxu0
        %v1234 = vsel %vm431, %v980, 0
        %v1237 = vsel %vm431, %v985, 0
        %v1240 = vsel %vm431, %v990, 0
        %v1243 = vsel %vm431, %v995, 0
        %1245 = vmatprep.subr.mxu0 0.0
        %1246 = vmatpush1.msra.mxu0 0.0
        %1247 = vmatprep.subr.mxu0 0.0
        %1248 = vmatpush1.msra.mxu0 0.0
        %1249 = vmatprep.subr.mxu0 0.0
        %1250 = vmatpush1.msra.mxu0 0.0
        %1251 = vmatprep.subr.mxu0 0.0
        %1252 = vmatpush1.msra.mxu0 0.0
        %1253 = vmatprep.subr.mxu0 0.0
        %1254 = vmatpush1.msra.mxu0 0.0
        %1255 = vmatprep.subr.mxu0 0.0
        %1256 = vmatpush1.msra.mxu0 0.0
        %1257 = vmatprep.subr.mxu0 0.0
        %1258 = vmatpush1.msra.mxu0 0.0
        %1259 = vmatprep.subr.mxu0 0.0
        %1260 = vmatpush1.msra.mxu0 0.0
        %1261 = vmatprep.subr.mxu0 0.0
        %1262 = vmatpush1.msra.mxu0 %v1126
        %1263 = vmatprep.subr.mxu0 0.0
        %1264 = vmatpush1.msra.mxu0 %v1125
        %1265 = vmatprep.subr.mxu0 0.0
        %1266 = vmatpush1.msra.mxu0 %v1124
        %1267 = vmatprep.subr.mxu0 0.0
        %1268 = vmatpush1.msra.mxu0 %v1123
        %1269 = vmatprep.subr.mxu0 0.0
        %1270 = vmatpush1.msra.mxu0 %v1122
        %1271 = vmatprep.subr.mxu0 0.0
        %1272 = vmatpush1.msra.mxu0 %v1121
        %1273 = vmatprep.subr.mxu0 0.0
        %1274 = vmatpush1.msra.mxu0 %v1120
        %1275 = vmatprep.subr.mxu0 0.0
        %1276 = vmatpush1.msra.mxu0 %v1119
        %1277 = vmatprep.subr.mxu0 0.0
        %1278 = vmatpush2.msra.mxu0 0.0
        %1279 = vmatprep.subr.mxu0 0.0
        %1280 = vmatpush2.msra.mxu0 0.0
        %1281 = vmatprep.subr.mxu0 0.0
        %1282 = vmatpush2.msra.mxu0 0.0
        %1283 = vmatprep.subr.mxu0 0.0
        %1284 = vmatpush2.msra.mxu0 0.0
        %1285 = vmatprep.subr.mxu0 0.0
        %1286 = vmatpush2.msra.mxu0 0.0
        %1287 = vmatprep.subr.mxu0 0.0
        %1288 = vmatpush2.msra.mxu0 0.0
        %1289 = vmatprep.subr.mxu0 0.0
        %1290 = vmatpush2.msra.mxu0 0.0
        %1291 = vmatprep.subr.mxu0 0.0
        %1292 = vmatpush2.msra.mxu0 0.0
        %1293 = vmatprep.subr.mxu0 0.0
        %1294 = vmatpush2.msra.mxu0 0.0
        %1295 = vmatprep.subr.mxu0 0.0
        %1296 = vmatpush2.msra.mxu0 0.0
        %1297 = vmatprep.subr.mxu0 0.0
        %1298 = vmatpush2.msra.mxu0 0.0
        %1299 = vmatprep.subr.mxu0 0.0
        %1300 = vmatpush2.msra.mxu0 0.0
        %1301 = vmatprep.subr.mxu0 0.0
        %1302 = vmatpush2.msra.mxu0 0.0
        %1303 = vmatprep.subr.mxu0 0.0
        %1304 = vmatpush2.msra.mxu0 0.0
        %1305 = vmatprep.subr.mxu0 0.0
        %1306 = vmatpush2.msra.mxu0 0.0
        %1307 = vmatprep.subr.mxu0 0.0
        %1308 = vmatpush2.msra.mxu0 0.0
        %1309 = vmatprep.mubr.f32.mxu0 0.0
        %1310 = vmatmul.mubr.f32.gmra.mxu0 %v1234
        %v1311 = vpop.f32.mrf.mxu0
        %v1312 = vadd.f32 %v1215, %v1311
        %v1313 = vpop.f32.mrf.mxu0
        %1314 = vmatprep.mubr.f32.mxu0 0.0
        %1315 = vmatmul.mubr.f32.gmra.mxu0 %v1237
        %v1316 = vpop.f32.mrf.mxu0
        %v1317 = vadd.f32 %v1220, %v1316
        %v1318 = vpop.f32.mrf.mxu0
        %1319 = vmatprep.mubr.f32.mxu0 0.0
        %1320 = vmatmul.mubr.f32.gmra.mxu0 %v1240
        %v1321 = vpop.f32.mrf.mxu0
        %v1322 = vadd.f32 %v1225, %v1321
        %v1323 = vpop.f32.mrf.mxu0
        %1324 = vmatprep.mubr.f32.mxu0 0.0
        %1325 = vmatmul.mubr.f32.gmra.mxu0 %v1243
        %v1326 = vpop.f32.mrf.mxu0
        %v1327 = vadd.f32 %v1230, %v1326
        %v1328 = vpop.f32.mrf.mxu0
        %1329 = vdwg.mxu0
        %s1330 = scalar_lea.vmem [#allocation6], 256
        %v1331 = vld [vmem:[%s1330] sm:$0xff]
        %v1332 = vld [vmem:[%s1330 + $0x8] sm:$0xff]
        %v1333 = vld [vmem:[%s1330 + $0x10] sm:$0xff]
        %v1334 = vld [vmem:[%s1330 + $0x18] sm:$0xff]
        %v1335 = vld [vmem:[%s1330 + $0x20] sm:$0xff]
        %v1336 = vld [vmem:[%s1330 + $0x28] sm:$0xff]
        %v1337 = vld [vmem:[%s1330 + $0x30] sm:$0xff]
        %v1338 = vld [vmem:[%s1330 + $0x38] sm:$0xff]
        %v1340 = vsel %vm431, %v1020, 0
        %v1343 = vsel %vm431, %v1025, 0
        %v1346 = vsel %vm431, %v1030, 0
        %v1349 = vsel %vm431, %v1035, 0
        %1351 = vmatprep.subr.mxu0 0.0
        %1352 = vmatpush1.msra.mxu0 0.0
        %1353 = vmatprep.subr.mxu0 0.0
        %1354 = vmatpush1.msra.mxu0 0.0
        %1355 = vmatprep.subr.mxu0 0.0
        %1356 = vmatpush1.msra.mxu0 0.0
        %1357 = vmatprep.subr.mxu0 0.0
        %1358 = vmatpush1.msra.mxu0 0.0
        %1359 = vmatprep.subr.mxu0 0.0
        %1360 = vmatpush1.msra.mxu0 0.0
        %1361 = vmatprep.subr.mxu0 0.0
        %1362 = vmatpush1.msra.mxu0 0.0
        %1363 = vmatprep.subr.mxu0 0.0
        %1364 = vmatpush1.msra.mxu0 0.0
        %1365 = vmatprep.subr.mxu0 0.0
        %1366 = vmatpush1.msra.mxu0 0.0
        %1367 = vmatprep.subr.mxu0 0.0
        %1368 = vmatpush1.msra.mxu0 %v1338
        %1369 = vmatprep.subr.mxu0 0.0
        %1370 = vmatpush1.msra.mxu0 %v1337
        %1371 = vmatprep.subr.mxu0 0.0
        %1372 = vmatpush1.msra.mxu0 %v1336
        %1373 = vmatprep.subr.mxu0 0.0
        %1374 = vmatpush1.msra.mxu0 %v1335
        %1375 = vmatprep.subr.mxu0 0.0
        %1376 = vmatpush1.msra.mxu0 %v1334
        %1377 = vmatprep.subr.mxu0 0.0
        %1378 = vmatpush1.msra.mxu0 %v1333
        %1379 = vmatprep.subr.mxu0 0.0
        %1380 = vmatpush1.msra.mxu0 %v1332
        %1381 = vmatprep.subr.mxu0 0.0
        %1382 = vmatpush1.msra.mxu0 %v1331
        %1383 = vmatprep.subr.mxu0 0.0
        %1384 = vmatpush2.msra.mxu0 0.0
        %1385 = vmatprep.subr.mxu0 0.0
        %1386 = vmatpush2.msra.mxu0 0.0
        %1387 = vmatprep.subr.mxu0 0.0
        %1388 = vmatpush2.msra.mxu0 0.0
        %1389 = vmatprep.subr.mxu0 0.0
        %1390 = vmatpush2.msra.mxu0 0.0
        %1391 = vmatprep.subr.mxu0 0.0
        %1392 = vmatpush2.msra.mxu0 0.0
        %1393 = vmatprep.subr.mxu0 0.0
        %1394 = vmatpush2.msra.mxu0 0.0
        %1395 = vmatprep.subr.mxu0 0.0
        %1396 = vmatpush2.msra.mxu0 0.0
        %1397 = vmatprep.subr.mxu0 0.0
        %1398 = vmatpush2.msra.mxu0 0.0
        %1399 = vmatprep.subr.mxu0 0.0
        %1400 = vmatpush2.msra.mxu0 0.0
        %1401 = vmatprep.subr.mxu0 0.0
        %1402 = vmatpush2.msra.mxu0 0.0
        %1403 = vmatprep.subr.mxu0 0.0
        %1404 = vmatpush2.msra.mxu0 0.0
        %1405 = vmatprep.subr.mxu0 0.0
        %1406 = vmatpush2.msra.mxu0 0.0
        %1407 = vmatprep.subr.mxu0 0.0
        %1408 = vmatpush2.msra.mxu0 0.0
        %1409 = vmatprep.subr.mxu0 0.0
        %1410 = vmatpush2.msra.mxu0 0.0
        %1411 = vmatprep.subr.mxu0 0.0
        %1412 = vmatpush2.msra.mxu0 0.0
        %1413 = vmatprep.subr.mxu0 0.0
        %1414 = vmatpush2.msra.mxu0 0.0
        %1415 = vmatprep.mubr.f32.mxu0 0.0
        %1416 = vmatmul.mubr.f32.gmra.mxu0 %v1340
        %v1417 = vpop.f32.mrf.mxu0
        %v1418 = vadd.f32 0.0, %v1417
        %v1419 = vpop.f32.mrf.mxu0
        %1420 = vmatprep.mubr.f32.mxu0 0.0
        %1421 = vmatmul.mubr.f32.gmra.mxu0 %v1343
        %v1422 = vpop.f32.mrf.mxu0
        %v1423 = vadd.f32 0.0, %v1422
        %v1424 = vpop.f32.mrf.mxu0
        %1425 = vmatprep.mubr.f32.mxu0 0.0
        %1426 = vmatmul.mubr.f32.gmra.mxu0 %v1346
        %v1427 = vpop.f32.mrf.mxu0
        %v1428 = vadd.f32 0.0, %v1427
        %v1429 = vpop.f32.mrf.mxu0
        %1430 = vmatprep.mubr.f32.mxu0 0.0
        %1431 = vmatmul.mubr.f32.gmra.mxu0 %v1349
        %v1432 = vpop.f32.mrf.mxu0
        %v1433 = vadd.f32 0.0, %v1432
        %v1434 = vpop.f32.mrf.mxu0
        %1435 = vdwg.mxu0
        %v1436 = vadd.f32 %v1312, %v1418
        %v1437 = vadd.f32 %v1317, %v1423
        %v1438 = vadd.f32 %v1322, %v1428
        %v1439 = vadd.f32 %v1327, %v1433
        %s1440 = scalar_lea.vmem [#allocation6], 320
        %v1441 = vld [vmem:[%s1440] sm:$0xff]
        %v1442 = vld [vmem:[%s1440 + $0x8] sm:$0xff]
        %v1443 = vld [vmem:[%s1440 + $0x10] sm:$0xff]
        %v1444 = vld [vmem:[%s1440 + $0x18] sm:$0xff]
        %v1445 = vld [vmem:[%s1440 + $0x20] sm:$0xff]
        %v1446 = vld [vmem:[%s1440 + $0x28] sm:$0xff]
        %v1447 = vld [vmem:[%s1440 + $0x30] sm:$0xff]
        %v1448 = vld [vmem:[%s1440 + $0x38] sm:$0xff]
        %v1450 = vsel %vm431, %v1040, 0
        %v1453 = vsel %vm431, %v1045, 0
        %v1456 = vsel %vm431, %v1050, 0
        %v1459 = vsel %vm431, %v1055, 0
        %1461 = vmatprep.subr.mxu0 0.0
        %1462 = vmatpush1.msra.mxu0 0.0
        %1463 = vmatprep.subr.mxu0 0.0
        %1464 = vmatpush1.msra.mxu0 0.0
        %1465 = vmatprep.subr.mxu0 0.0
        %1466 = vmatpush1.msra.mxu0 0.0
        %1467 = vmatprep.subr.mxu0 0.0
        %1468 = vmatpush1.msra.mxu0 0.0
        %1469 = vmatprep.subr.mxu0 0.0
        %1470 = vmatpush1.msra.mxu0 0.0
        %1471 = vmatprep.subr.mxu0 0.0
        %1472 = vmatpush1.msra.mxu0 0.0
        %1473 = vmatprep.subr.mxu0 0.0
        %1474 = vmatpush1.msra.mxu0 0.0
        %1475 = vmatprep.subr.mxu0 0.0
        %1476 = vmatpush1.msra.mxu0 0.0
        %1477 = vmatprep.subr.mxu0 0.0
        %1478 = vmatpush1.msra.mxu0 %v1448
        %1479 = vmatprep.subr.mxu0 0.0
        %1480 = vmatpush1.msra.mxu0 %v1447
        %1481 = vmatprep.subr.mxu0 0.0
        %1482 = vmatpush1.msra.mxu0 %v1446
        %1483 = vmatprep.subr.mxu0 0.0
        %1484 = vmatpush1.msra.mxu0 %v1445
        %1485 = vmatprep.subr.mxu0 0.0
        %1486 = vmatpush1.msra.mxu0 %v1444
        %1487 = vmatprep.subr.mxu0 0.0
        %1488 = vmatpush1.msra.mxu0 %v1443
        %1489 = vmatprep.subr.mxu0 0.0
        %1490 = vmatpush1.msra.mxu0 %v1442
        %1491 = vmatprep.subr.mxu0 0.0
        %1492 = vmatpush1.msra.mxu0 %v1441
        %1493 = vmatprep.subr.mxu0 0.0
        %1494 = vmatpush2.msra.mxu0 0.0
        %1495 = vmatprep.subr.mxu0 0.0
        %1496 = vmatpush2.msra.mxu0 0.0
        %1497 = vmatprep.subr.mxu0 0.0
        %1498 = vmatpush2.msra.mxu0 0.0
        %1499 = vmatprep.subr.mxu0 0.0
        %1500 = vmatpush2.msra.mxu0 0.0
        %1501 = vmatprep.subr.mxu0 0.0
        %1502 = vmatpush2.msra.mxu0 0.0
        %1503 = vmatprep.subr.mxu0 0.0
        %1504 = vmatpush2.msra.mxu0 0.0
        %1505 = vmatprep.subr.mxu0 0.0
        %1506 = vmatpush2.msra.mxu0 0.0
        %1507 = vmatprep.subr.mxu0 0.0
        %1508 = vmatpush2.msra.mxu0 0.0
        %1509 = vmatprep.subr.mxu0 0.0
        %1510 = vmatpush2.msra.mxu0 0.0
        %1511 = vmatprep.subr.mxu0 0.0
        %1512 = vmatpush2.msra.mxu0 0.0
        %1513 = vmatprep.subr.mxu0 0.0
        %1514 = vmatpush2.msra.mxu0 0.0
        %1515 = vmatprep.subr.mxu0 0.0
        %1516 = vmatpush2.msra.mxu0 0.0
        %1517 = vmatprep.subr.mxu0 0.0
        %1518 = vmatpush2.msra.mxu0 0.0
        %1519 = vmatprep.subr.mxu0 0.0
        %1520 = vmatpush2.msra.mxu0 0.0
        %1521 = vmatprep.subr.mxu0 0.0
        %1522 = vmatpush2.msra.mxu0 0.0
        %1523 = vmatprep.subr.mxu0 0.0
        %1524 = vmatpush2.msra.mxu0 0.0
        %1525 = vmatprep.mubr.f32.mxu0 0.0
        %1526 = vmatmul.mubr.f32.gmra.mxu0 %v1450
        %v1527 = vpop.f32.mrf.mxu0
        %v1528 = vadd.f32 0.0, %v1527
        %v1529 = vpop.f32.mrf.mxu0
        %1530 = vmatprep.mubr.f32.mxu0 0.0
        %1531 = vmatmul.mubr.f32.gmra.mxu0 %v1453
        %v1532 = vpop.f32.mrf.mxu0
        %v1533 = vadd.f32 0.0, %v1532
        %v1534 = vpop.f32.mrf.mxu0
        %1535 = vmatprep.mubr.f32.mxu0 0.0
        %1536 = vmatmul.mubr.f32.gmra.mxu0 %v1456
        %v1537 = vpop.f32.mrf.mxu0
        %v1538 = vadd.f32 0.0, %v1537
        %v1539 = vpop.f32.mrf.mxu0
        %1540 = vmatprep.mubr.f32.mxu0 0.0
        %1541 = vmatmul.mubr.f32.gmra.mxu0 %v1459
        %v1542 = vpop.f32.mrf.mxu0
        %v1543 = vadd.f32 0.0, %v1542
        %v1544 = vpop.f32.mrf.mxu0
        %1545 = vdwg.mxu0
        %v1546 = vadd.f32 %v1436, %v1528
        %v1547 = vadd.f32 %v1437, %v1533
        %v1548 = vadd.f32 %v1438, %v1538
        %v1549 = vadd.f32 %v1439, %v1543
        %s1550 = scalar_lea.vmem [#allocation6], 384
        %v1551 = vld [vmem:[%s1550] sm:$0xff]
        %v1552 = vld [vmem:[%s1550 + $0x8] sm:$0xff]
        %v1553 = vld [vmem:[%s1550 + $0x10] sm:$0xff]
        %v1554 = vld [vmem:[%s1550 + $0x18] sm:$0xff]
        %v1555 = vld [vmem:[%s1550 + $0x20] sm:$0xff]
        %v1556 = vld [vmem:[%s1550 + $0x28] sm:$0xff]
        %v1557 = vld [vmem:[%s1550 + $0x30] sm:$0xff]
        %v1558 = vld [vmem:[%s1550 + $0x38] sm:$0xff]
        %v1560 = vsel %vm431, %v1060, 0
        %v1563 = vsel %vm431, %v1065, 0
        %v1566 = vsel %vm431, %v1070, 0
        %v1569 = vsel %vm431, %v1075, 0
        %1571 = vmatprep.subr.mxu0 0.0
        %1572 = vmatpush1.msra.mxu0 0.0
        %1573 = vmatprep.subr.mxu0 0.0
        %1574 = vmatpush1.msra.mxu0 0.0
        %1575 = vmatprep.subr.mxu0 0.0
        %1576 = vmatpush1.msra.mxu0 0.0
        %1577 = vmatprep.subr.mxu0 0.0
        %1578 = vmatpush1.msra.mxu0 0.0
        %1579 = vmatprep.subr.mxu0 0.0
        %1580 = vmatpush1.msra.mxu0 0.0
        %1581 = vmatprep.subr.mxu0 0.0
        %1582 = vmatpush1.msra.mxu0 0.0
        %1583 = vmatprep.subr.mxu0 0.0
        %1584 = vmatpush1.msra.mxu0 0.0
        %1585 = vmatprep.subr.mxu0 0.0
        %1586 = vmatpush1.msra.mxu0 0.0
        %1587 = vmatprep.subr.mxu0 0.0
        %1588 = vmatpush1.msra.mxu0 %v1558
        %1589 = vmatprep.subr.mxu0 0.0
        %1590 = vmatpush1.msra.mxu0 %v1557
        %1591 = vmatprep.subr.mxu0 0.0
        %1592 = vmatpush1.msra.mxu0 %v1556
        %1593 = vmatprep.subr.mxu0 0.0
        %1594 = vmatpush1.msra.mxu0 %v1555
        %1595 = vmatprep.subr.mxu0 0.0
        %1596 = vmatpush1.msra.mxu0 %v1554
        %1597 = vmatprep.subr.mxu0 0.0
        %1598 = vmatpush1.msra.mxu0 %v1553
        %1599 = vmatprep.subr.mxu0 0.0
        %1600 = vmatpush1.msra.mxu0 %v1552
        %1601 = vmatprep.subr.mxu0 0.0
        %1602 = vmatpush1.msra.mxu0 %v1551
        %1603 = vmatprep.subr.mxu0 0.0
        %1604 = vmatpush2.msra.mxu0 0.0
        %1605 = vmatprep.subr.mxu0 0.0
        %1606 = vmatpush2.msra.mxu0 0.0
        %1607 = vmatprep.subr.mxu0 0.0
        %1608 = vmatpush2.msra.mxu0 0.0
        %1609 = vmatprep.subr.mxu0 0.0
        %1610 = vmatpush2.msra.mxu0 0.0
        %1611 = vmatprep.subr.mxu0 0.0
        %1612 = vmatpush2.msra.mxu0 0.0
        %1613 = vmatprep.subr.mxu0 0.0
        %1614 = vmatpush2.msra.mxu0 0.0
        %1615 = vmatprep.subr.mxu0 0.0
        %1616 = vmatpush2.msra.mxu0 0.0
        %1617 = vmatprep.subr.mxu0 0.0
        %1618 = vmatpush2.msra.mxu0 0.0
        %1619 = vmatprep.subr.mxu0 0.0
        %1620 = vmatpush2.msra.mxu0 0.0
        %1621 = vmatprep.subr.mxu0 0.0
        %1622 = vmatpush2.msra.mxu0 0.0
        %1623 = vmatprep.subr.mxu0 0.0
        %1624 = vmatpush2.msra.mxu0 0.0
        %1625 = vmatprep.subr.mxu0 0.0
        %1626 = vmatpush2.msra.mxu0 0.0
        %1627 = vmatprep.subr.mxu0 0.0
        %1628 = vmatpush2.msra.mxu0 0.0
        %1629 = vmatprep.subr.mxu0 0.0
        %1630 = vmatpush2.msra.mxu0 0.0
        %1631 = vmatprep.subr.mxu0 0.0
        %1632 = vmatpush2.msra.mxu0 0.0
        %1633 = vmatprep.subr.mxu0 0.0
        %1634 = vmatpush2.msra.mxu0 0.0
        %1635 = vmatprep.mubr.f32.mxu0 0.0
        %1636 = vmatmul.mubr.f32.gmra.mxu0 %v1560
        %v1637 = vpop.f32.mrf.mxu0
        %v1638 = vadd.f32 0.0, %v1637
        %v1639 = vpop.f32.mrf.mxu0
        %1640 = vmatprep.mubr.f32.mxu0 0.0
        %1641 = vmatmul.mubr.f32.gmra.mxu0 %v1563
        %v1642 = vpop.f32.mrf.mxu0
        %v1643 = vadd.f32 0.0, %v1642
        %v1644 = vpop.f32.mrf.mxu0
        %1645 = vmatprep.mubr.f32.mxu0 0.0
        %1646 = vmatmul.mubr.f32.gmra.mxu0 %v1566
        %v1647 = vpop.f32.mrf.mxu0
        %v1648 = vadd.f32 0.0, %v1647
        %v1649 = vpop.f32.mrf.mxu0
        %1650 = vmatprep.mubr.f32.mxu0 0.0
        %1651 = vmatmul.mubr.f32.gmra.mxu0 %v1569
        %v1652 = vpop.f32.mrf.mxu0
        %v1653 = vadd.f32 0.0, %v1652
        %v1654 = vpop.f32.mrf.mxu0
        %1655 = vdwg.mxu0
        %v1656 = vadd.f32 %v1546, %v1638
        %v1657 = vadd.f32 %v1547, %v1643
        %v1658 = vadd.f32 %v1548, %v1648
        %v1659 = vadd.f32 %v1549, %v1653
        %s1660 = scalar_lea.vmem [#allocation6], 448
        %v1661 = vld [vmem:[%s1660] sm:$0xff]
        %v1662 = vld [vmem:[%s1660 + $0x8] sm:$0xff]
        %v1663 = vld [vmem:[%s1660 + $0x10] sm:$0xff]
        %v1664 = vld [vmem:[%s1660 + $0x18] sm:$0xff]
        %v1665 = vld [vmem:[%s1660 + $0x20] sm:$0xff]
        %v1666 = vld [vmem:[%s1660 + $0x28] sm:$0xff]
        %v1667 = vld [vmem:[%s1660 + $0x30] sm:$0xff]
        %v1668 = vld [vmem:[%s1660 + $0x38] sm:$0xff]
        %v1670 = vsel %vm431, %v1080, 0
        %v1673 = vsel %vm431, %v1085, 0
        %v1676 = vsel %vm431, %v1090, 0
        %v1679 = vsel %vm431, %v1095, 0
        %1681 = vmatprep.subr.mxu0 0.0
        %1682 = vmatpush1.msra.mxu0 0.0
        %1683 = vmatprep.subr.mxu0 0.0
        %1684 = vmatpush1.msra.mxu0 0.0
        %1685 = vmatprep.subr.mxu0 0.0
        %1686 = vmatpush1.msra.mxu0 0.0
        %1687 = vmatprep.subr.mxu0 0.0
        %1688 = vmatpush1.msra.mxu0 0.0
        %1689 = vmatprep.subr.mxu0 0.0
        %1690 = vmatpush1.msra.mxu0 0.0
        %1691 = vmatprep.subr.mxu0 0.0
        %1692 = vmatpush1.msra.mxu0 0.0
        %1693 = vmatprep.subr.mxu0 0.0
        %1694 = vmatpush1.msra.mxu0 0.0
        %1695 = vmatprep.subr.mxu0 0.0
        %1696 = vmatpush1.msra.mxu0 0.0
        %1697 = vmatprep.subr.mxu0 0.0
        %1698 = vmatpush1.msra.mxu0 %v1668
        %1699 = vmatprep.subr.mxu0 0.0
        %1700 = vmatpush1.msra.mxu0 %v1667
        %1701 = vmatprep.subr.mxu0 0.0
        %1702 = vmatpush1.msra.mxu0 %v1666
        %1703 = vmatprep.subr.mxu0 0.0
        %1704 = vmatpush1.msra.mxu0 %v1665
        %1705 = vmatprep.subr.mxu0 0.0
        %1706 = vmatpush1.msra.mxu0 %v1664
        %1707 = vmatprep.subr.mxu0 0.0
        %1708 = vmatpush1.msra.mxu0 %v1663
        %1709 = vmatprep.subr.mxu0 0.0
        %1710 = vmatpush1.msra.mxu0 %v1662
        %1711 = vmatprep.subr.mxu0 0.0
        %1712 = vmatpush1.msra.mxu0 %v1661
        %1713 = vmatprep.subr.mxu0 0.0
        %1714 = vmatpush2.msra.mxu0 0.0
        %1715 = vmatprep.subr.mxu0 0.0
        %1716 = vmatpush2.msra.mxu0 0.0
        %1717 = vmatprep.subr.mxu0 0.0
        %1718 = vmatpush2.msra.mxu0 0.0
        %1719 = vmatprep.subr.mxu0 0.0
        %1720 = vmatpush2.msra.mxu0 0.0
        %1721 = vmatprep.subr.mxu0 0.0
        %1722 = vmatpush2.msra.mxu0 0.0
        %1723 = vmatprep.subr.mxu0 0.0
        %1724 = vmatpush2.msra.mxu0 0.0
        %1725 = vmatprep.subr.mxu0 0.0
        %1726 = vmatpush2.msra.mxu0 0.0
        %1727 = vmatprep.subr.mxu0 0.0
        %1728 = vmatpush2.msra.mxu0 0.0
        %1729 = vmatprep.subr.mxu0 0.0
        %1730 = vmatpush2.msra.mxu0 0.0
        %1731 = vmatprep.subr.mxu0 0.0
        %1732 = vmatpush2.msra.mxu0 0.0
        %1733 = vmatprep.subr.mxu0 0.0
        %1734 = vmatpush2.msra.mxu0 0.0
        %1735 = vmatprep.subr.mxu0 0.0
        %1736 = vmatpush2.msra.mxu0 0.0
        %1737 = vmatprep.subr.mxu0 0.0
        %1738 = vmatpush2.msra.mxu0 0.0
        %1739 = vmatprep.subr.mxu0 0.0
        %1740 = vmatpush2.msra.mxu0 0.0
        %1741 = vmatprep.subr.mxu0 0.0
        %1742 = vmatpush2.msra.mxu0 0.0
        %1743 = vmatprep.subr.mxu0 0.0
        %1744 = vmatpush2.msra.mxu0 0.0
        %1745 = vmatprep.mubr.f32.mxu0 0.0
        %1746 = vmatmul.mubr.f32.gmra.mxu0 %v1670
        %v1747 = vpop.f32.mrf.mxu0
        %v1748 = vadd.f32 0.0, %v1747
        %v1749 = vpop.f32.mrf.mxu0
        %1750 = vmatprep.mubr.f32.mxu0 0.0
        %1751 = vmatmul.mubr.f32.gmra.mxu0 %v1673
        %v1752 = vpop.f32.mrf.mxu0
        %v1753 = vadd.f32 0.0, %v1752
        %v1754 = vpop.f32.mrf.mxu0
        %1755 = vmatprep.mubr.f32.mxu0 0.0
        %1756 = vmatmul.mubr.f32.gmra.mxu0 %v1676
        %v1757 = vpop.f32.mrf.mxu0
        %v1758 = vadd.f32 0.0, %v1757
        %v1759 = vpop.f32.mrf.mxu0
        %1760 = vmatprep.mubr.f32.mxu0 0.0
        %1761 = vmatmul.mubr.f32.gmra.mxu0 %v1679
        %v1762 = vpop.f32.mrf.mxu0
        %v1763 = vadd.f32 0.0, %v1762
        %v1764 = vpop.f32.mrf.mxu0
        %1765 = vdwg.mxu0
        %v1766 = vadd.f32 %v1656, %v1748
        %v1767 = vadd.f32 %v1657, %v1753
        %v1768 = vadd.f32 %v1658, %v1758
        %v1769 = vadd.f32 %v1659, %v1763
        %s1770 = scalar_lea.vmem [#allocation6], 512
        %v1771 = vld [vmem:[%s1770] sm:$0xff]
        %v1772 = vld [vmem:[%s1770 + $0x8] sm:$0xff]
        %v1773 = vld [vmem:[%s1770 + $0x10] sm:$0xff]
        %v1774 = vld [vmem:[%s1770 + $0x18] sm:$0xff]
        %v1775 = vld [vmem:[%s1770 + $0x20] sm:$0xff]
        %v1776 = vld [vmem:[%s1770 + $0x28] sm:$0xff]
        %v1777 = vld [vmem:[%s1770 + $0x30] sm:$0xff]
        %v1778 = vld [vmem:[%s1770 + $0x38] sm:$0xff]
        %v1780 = vsel %vm431, %v1100, 0
        %v1783 = vsel %vm431, %v1105, 0
        %v1786 = vsel %vm431, %v1110, 0
        %v1789 = vsel %vm431, %v1115, 0
        %1791 = vmatprep.subr.mxu0 0.0
        %1792 = vmatpush1.msra.mxu0 0.0
        %1793 = vmatprep.subr.mxu0 0.0
        %1794 = vmatpush1.msra.mxu0 0.0
        %1795 = vmatprep.subr.mxu0 0.0
        %1796 = vmatpush1.msra.mxu0 0.0
        %1797 = vmatprep.subr.mxu0 0.0
        %1798 = vmatpush1.msra.mxu0 0.0
        %1799 = vmatprep.subr.mxu0 0.0
        %1800 = vmatpush1.msra.mxu0 0.0
        %1801 = vmatprep.subr.mxu0 0.0
        %1802 = vmatpush1.msra.mxu0 0.0
        %1803 = vmatprep.subr.mxu0 0.0
        %1804 = vmatpush1.msra.mxu0 0.0
        %1805 = vmatprep.subr.mxu0 0.0
        %1806 = vmatpush1.msra.mxu0 0.0
        %1807 = vmatprep.subr.mxu0 0.0
        %1808 = vmatpush1.msra.mxu0 %v1778
        %1809 = vmatprep.subr.mxu0 0.0
        %1810 = vmatpush1.msra.mxu0 %v1777
        %1811 = vmatprep.subr.mxu0 0.0
        %1812 = vmatpush1.msra.mxu0 %v1776
        %1813 = vmatprep.subr.mxu0 0.0
        %1814 = vmatpush1.msra.mxu0 %v1775
        %1815 = vmatprep.subr.mxu0 0.0
        %1816 = vmatpush1.msra.mxu0 %v1774
        %1817 = vmatprep.subr.mxu0 0.0
        %1818 = vmatpush1.msra.mxu0 %v1773
        %1819 = vmatprep.subr.mxu0 0.0
        %1820 = vmatpush1.msra.mxu0 %v1772
        %1821 = vmatprep.subr.mxu0 0.0
        %1822 = vmatpush1.msra.mxu0 %v1771
        %1823 = vmatprep.subr.mxu0 0.0
        %1824 = vmatpush2.msra.mxu0 0.0
        %1825 = vmatprep.subr.mxu0 0.0
        %1826 = vmatpush2.msra.mxu0 0.0
        %1827 = vmatprep.subr.mxu0 0.0
        %1828 = vmatpush2.msra.mxu0 0.0
        %1829 = vmatprep.subr.mxu0 0.0
        %1830 = vmatpush2.msra.mxu0 0.0
        %1831 = vmatprep.subr.mxu0 0.0
        %1832 = vmatpush2.msra.mxu0 0.0
        %1833 = vmatprep.subr.mxu0 0.0
        %1834 = vmatpush2.msra.mxu0 0.0
        %1835 = vmatprep.subr.mxu0 0.0
        %1836 = vmatpush2.msra.mxu0 0.0
        %1837 = vmatprep.subr.mxu0 0.0
        %1838 = vmatpush2.msra.mxu0 0.0
        %1839 = vmatprep.subr.mxu0 0.0
        %1840 = vmatpush2.msra.mxu0 0.0
        %1841 = vmatprep.subr.mxu0 0.0
        %1842 = vmatpush2.msra.mxu0 0.0
        %1843 = vmatprep.subr.mxu0 0.0
        %1844 = vmatpush2.msra.mxu0 0.0
        %1845 = vmatprep.subr.mxu0 0.0
        %1846 = vmatpush2.msra.mxu0 0.0
        %1847 = vmatprep.subr.mxu0 0.0
        %1848 = vmatpush2.msra.mxu0 0.0
        %1849 = vmatprep.subr.mxu0 0.0
        %1850 = vmatpush2.msra.mxu0 0.0
        %1851 = vmatprep.subr.mxu0 0.0
        %1852 = vmatpush2.msra.mxu0 0.0
        %1853 = vmatprep.subr.mxu0 0.0
        %1854 = vmatpush2.msra.mxu0 0.0
        %1855 = vmatprep.mubr.f32.mxu0 0.0
        %1856 = vmatmul.mubr.f32.gmra.mxu0 %v1780
        %v1857 = vpop.f32.mrf.mxu0
        %v1858 = vadd.f32 0.0, %v1857
        %v1859 = vpop.f32.mrf.mxu0
        %1860 = vmatprep.mubr.f32.mxu0 0.0
        %1861 = vmatmul.mubr.f32.gmra.mxu0 %v1783
        %v1862 = vpop.f32.mrf.mxu0
        %v1863 = vadd.f32 0.0, %v1862
        %v1864 = vpop.f32.mrf.mxu0
        %1865 = vmatprep.mubr.f32.mxu0 0.0
        %1866 = vmatmul.mubr.f32.gmra.mxu0 %v1786
        %v1867 = vpop.f32.mrf.mxu0
        %v1868 = vadd.f32 0.0, %v1867
        %v1869 = vpop.f32.mrf.mxu0
        %1870 = vmatprep.mubr.f32.mxu0 0.0
        %1871 = vmatmul.mubr.f32.gmra.mxu0 %v1789
        %v1872 = vpop.f32.mrf.mxu0
        %v1873 = vadd.f32 0.0, %v1872
        %v1874 = vpop.f32.mrf.mxu0
        %1875 = vdwg.mxu0
        %v1876 = vadd.f32 %v1766, %v1858
        %v1877 = vadd.f32 %v1767, %v1863
        %v1878 = vadd.f32 %v1768, %v1868
        %v1879 = vadd.f32 %v1769, %v1873
        %s1880 = scalar_lea.vmem %s4, 64
        %v1881 = vld [vmem:[%s1880] sm:$0xff]
        %v1882 = vld [vmem:[%s1880 + $0x8] sm:$0xff]
        %v1883 = vld [vmem:[%s1880 + $0x10] sm:$0xff]
        %v1884 = vld [vmem:[%s1880 + $0x18] sm:$0xff]
        %1886 = vset.pattern.permute.xlu0 0
        %1887 = vperm.xlu0 %1886, %v1881
        %v1888 = vpop.permute.xlu0 %1887
        %1891 = vset.pattern.permute.xlu0 0
        %1892 = vperm.xlu0 %1891, %v1882
        %v1893 = vpop.permute.xlu0 %1892
        %1896 = vset.pattern.permute.xlu0 0
        %1897 = vperm.xlu0 %1896, %v1883
        %v1898 = vpop.permute.xlu0 %1897
        %1901 = vset.pattern.permute.xlu0 0
        %1902 = vperm.xlu0 %1901, %v1884
        %v1903 = vpop.permute.xlu0 %1902
        %v1905 = vadd.f32 %v1876, %v1888
        %v1906 = vadd.f32 %v1877, %v1893
        %v1907 = vadd.f32 %v1878, %v1898
        %v1908 = vadd.f32 %v1879, %v1903
        %v1909 = vmul.f32 %v1905, 0.5
        %v1910 = vmul.f32 %v1906, 0.5
        %v1911 = vmul.f32 %v1907, 0.5
        %v1912 = vmul.f32 %v1908, 0.5
        %v1913 = vmul.f32 %v1905, 0.70710677
        %v1914 = vmul.f32 %v1906, 0.70710677
        %v1915 = vmul.f32 %v1907, 0.70710677
        %v1916 = vmul.f32 %v1908, 0.70710677
        %v1917 = verf.f32.pop %v1913
        %v1918 = verf.f32.pop %v1914
        %v1919 = verf.f32.pop %v1915
        %v1920 = verf.f32.pop %v1916
        %v1921 = vadd.f32 %v1917, 1.0
        %v1922 = vadd.f32 %v1918, 1.0
        %v1923 = vadd.f32 %v1919, 1.0
        %v1924 = vadd.f32 %v1920, 1.0
        %v1925 = vmul.f32 %v1909, %v1921
        %v1926 = vmul.f32 %v1910, %v1922
        %v1927 = vmul.f32 %v1911, %v1923
        %v1928 = vmul.f32 %v1912, %v1924
        %v1929 = vld [vmem:[%s3 + $0x120] sm:$0xff]
        %v1930 = vld [vmem:[%s3 + $0x128] sm:$0xff]
        %v1931 = vld [vmem:[%s3 + $0x130] sm:$0xff]
        %v1932 = vld [vmem:[%s3 + $0x138] sm:$0xff]
        %v1933 = vld [vmem:[%s3 + $0x140] sm:$0xff]
        %v1934 = vld [vmem:[%s3 + $0x148] sm:$0xff]
        %v1935 = vld [vmem:[%s3 + $0x150] sm:$0xff]
        %v1936 = vld [vmem:[%s3 + $0x158] sm:$0xff]
        %v1937 = vld [vmem:[%s3 + $0x160] sm:$0xff]
        %v1938 = vld [vmem:[%s3 + $0x168] sm:$0xff]
        %v1939 = vld [vmem:[%s3 + $0x170] sm:$0xff]
        %v1940 = vld [vmem:[%s3 + $0x178] sm:$0xff]
        %v1941 = vld [vmem:[%s3 + $0x180] sm:$0xff]
        %v1942 = vld [vmem:[%s3 + $0x188] sm:$0xff]
        %v1943 = vld [vmem:[%s3 + $0x190] sm:$0xff]
        %v1944 = vld [vmem:[%s3 + $0x198] sm:$0xff]
        %v1945 = vld [vmem:[%s3 + $0x1a0] sm:$0xff]
        %v1946 = vld [vmem:[%s3 + $0x1a8] sm:$0xff]
        %v1947 = vld [vmem:[%s3 + $0x1b0] sm:$0xff]
        %v1948 = vld [vmem:[%s3 + $0x1b8] sm:$0xff]
        %v1949 = vld [vmem:[%s3 + $0x1c0] sm:$0xff]
        %v1950 = vld [vmem:[%s3 + $0x1c8] sm:$0xff]
        %v1951 = vld [vmem:[%s3 + $0x1d0] sm:$0xff]
        %v1952 = vld [vmem:[%s3 + $0x1d8] sm:$0xff]
        %v1953 = vld [vmem:[%s3 + $0x1e0] sm:$0xff]
        %v1954 = vld [vmem:[%s3 + $0x1e8] sm:$0xff]
        %v1955 = vld [vmem:[%s3 + $0x1f0] sm:$0xff]
        %v1956 = vld [vmem:[%s3 + $0x1f8] sm:$0xff]
        %v1958 = vsel %vm301, %v1929, 0
        %v1961 = vsel %vm301, %v1930, 0
        %v1964 = vsel %vm301, %v1931, 0
        %v1967 = vsel %vm301, %v1932, 0
        %v1970 = vsel %vm301, %v1933, 0
        %v1973 = vsel %vm301, %v1934, 0
        %v1976 = vsel %vm301, %v1935, 0
        %v1979 = vsel %vm301, %v1936, 0
        %v1982 = vsel %vm301, %v1937, 0
        %v1985 = vsel %vm301, %v1938, 0
        %v1988 = vsel %vm301, %v1939, 0
        %v1991 = vsel %vm301, %v1940, 0
        %v1994 = vsel %vm301, %v1941, 0
        %v1997 = vsel %vm301, %v1942, 0
        %v2000 = vsel %vm301, %v1943, 0
        %v2003 = vsel %vm301, %v1944, 0
        %v2006 = vsel %vm301, %v1945, 0
        %v2009 = vsel %vm301, %v1946, 0
        %v2012 = vsel %vm301, %v1947, 0
        %v2015 = vsel %vm301, %v1948, 0
        %v2018 = vsel %vm301, %v1949, 0
        %v2021 = vsel %vm301, %v1950, 0
        %v2024 = vsel %vm301, %v1951, 0
        %v2027 = vsel %vm301, %v1952, 0
        %v2030 = vsel %vm301, %v1953, 0
        %v2033 = vsel %vm301, %v1954, 0
        %v2036 = vsel %vm301, %v1955, 0
        %v2039 = vsel %vm301, %v1956, 0
        %2041 = vmatprep.subr.mxu0 0.0
        %2042 = vmatpush1.msra.mxu0 0.0
        %2043 = vmatprep.subr.mxu0 0.0
        %2044 = vmatpush1.msra.mxu0 0.0
        %2045 = vmatprep.subr.mxu0 0.0
        %2046 = vmatpush1.msra.mxu0 0.0
        %2047 = vmatprep.subr.mxu0 0.0
        %2048 = vmatpush1.msra.mxu0 0.0
        %2049 = vmatprep.subr.mxu0 0.0
        %2050 = vmatpush1.msra.mxu0 0.0
        %2051 = vmatprep.subr.mxu0 0.0
        %2052 = vmatpush1.msra.mxu0 0.0
        %2053 = vmatprep.subr.mxu0 0.0
        %2054 = vmatpush1.msra.mxu0 0.0
        %2055 = vmatprep.subr.mxu0 0.0
        %2056 = vmatpush1.msra.mxu0 0.0
        %2057 = vmatprep.subr.mxu0 0.0
        %2058 = vmatpush1.msra.mxu0 0.0
        %2059 = vmatprep.subr.mxu0 0.0
        %2060 = vmatpush1.msra.mxu0 0.0
        %2061 = vmatprep.subr.mxu0 0.0
        %2062 = vmatpush1.msra.mxu0 0.0
        %2063 = vmatprep.subr.mxu0 0.0
        %2064 = vmatpush1.msra.mxu0 0.0
        %2065 = vmatprep.subr.mxu0 0.0
        %2066 = vmatpush1.msra.mxu0 %v1928
        %2067 = vmatprep.subr.mxu0 0.0
        %2068 = vmatpush1.msra.mxu0 %v1927
        %2069 = vmatprep.subr.mxu0 0.0
        %2070 = vmatpush1.msra.mxu0 %v1926
        %2071 = vmatprep.subr.mxu0 0.0
        %2072 = vmatpush1.msra.mxu0 %v1925
        %2073 = vmatprep.subr.mxu0 0.0
        %2074 = vmatpush2.msra.mxu0 0.0
        %2075 = vmatprep.subr.mxu0 0.0
        %2076 = vmatpush2.msra.mxu0 0.0
        %2077 = vmatprep.subr.mxu0 0.0
        %2078 = vmatpush2.msra.mxu0 0.0
        %2079 = vmatprep.subr.mxu0 0.0
        %2080 = vmatpush2.msra.mxu0 0.0
        %2081 = vmatprep.subr.mxu0 0.0
        %2082 = vmatpush2.msra.mxu0 0.0
        %2083 = vmatprep.subr.mxu0 0.0
        %2084 = vmatpush2.msra.mxu0 0.0
        %2085 = vmatprep.subr.mxu0 0.0
        %2086 = vmatpush2.msra.mxu0 0.0
        %2087 = vmatprep.subr.mxu0 0.0
        %2088 = vmatpush2.msra.mxu0 0.0
        %2089 = vmatprep.subr.mxu0 0.0
        %2090 = vmatpush2.msra.mxu0 0.0
        %2091 = vmatprep.subr.mxu0 0.0
        %2092 = vmatpush2.msra.mxu0 0.0
        %2093 = vmatprep.subr.mxu0 0.0
        %2094 = vmatpush2.msra.mxu0 0.0
        %2095 = vmatprep.subr.mxu0 0.0
        %2096 = vmatpush2.msra.mxu0 0.0
        %2097 = vmatprep.subr.mxu0 0.0
        %2098 = vmatpush2.msra.mxu0 0.0
        %2099 = vmatprep.subr.mxu0 0.0
        %2100 = vmatpush2.msra.mxu0 0.0
        %2101 = vmatprep.subr.mxu0 0.0
        %2102 = vmatpush2.msra.mxu0 0.0
        %2103 = vmatprep.subr.mxu0 0.0
        %2104 = vmatpush2.msra.mxu0 0.0
        %2105 = vmatprep.mubr.f32.mxu0 0.0
        %2106 = vmatmul.mubr.f32.gmra.mxu0 %v1958
        %v2107 = vpop.f32.mrf.mxu0
        %v2108 = vadd.f32 0.0, %v2107
        %v2109 = vpop.f32.mrf.mxu0
        %2110 = vmatprep.mubr.f32.mxu0 0.0
        %2111 = vmatmul.mubr.f32.gmra.mxu0 %v1961
        %v2112 = vpop.f32.mrf.mxu0
        %v2113 = vadd.f32 0.0, %v2112
        %v2114 = vpop.f32.mrf.mxu0
        %2115 = vmatprep.mubr.f32.mxu0 0.0
        %2116 = vmatmul.mubr.f32.gmra.mxu0 %v1964
        %v2117 = vpop.f32.mrf.mxu0
        %v2118 = vadd.f32 0.0, %v2117
        %v2119 = vpop.f32.mrf.mxu0
        %2120 = vmatprep.mubr.f32.mxu0 0.0
        %2121 = vmatmul.mubr.f32.gmra.mxu0 %v1967
        %v2122 = vpop.f32.mrf.mxu0
        %v2123 = vadd.f32 0.0, %v2122
        %v2124 = vpop.f32.mrf.mxu0
        %2125 = vmatprep.mubr.f32.mxu0 0.0
        %2126 = vmatmul.mubr.f32.gmra.mxu0 %v1970
        %v2127 = vpop.f32.mrf.mxu0
        %v2128 = vadd.f32 0.0, %v2127
        %v2129 = vpop.f32.mrf.mxu0
        %2130 = vmatprep.mubr.f32.mxu0 0.0
        %2131 = vmatmul.mubr.f32.gmra.mxu0 %v1973
        %v2132 = vpop.f32.mrf.mxu0
        %v2133 = vadd.f32 0.0, %v2132
        %v2134 = vpop.f32.mrf.mxu0
        %2135 = vmatprep.mubr.f32.mxu0 0.0
        %2136 = vmatmul.mubr.f32.gmra.mxu0 %v1976
        %v2137 = vpop.f32.mrf.mxu0
        %v2138 = vadd.f32 0.0, %v2137
        %v2139 = vpop.f32.mrf.mxu0
        %2140 = vmatprep.mubr.f32.mxu0 0.0
        %2141 = vmatmul.mubr.f32.gmra.mxu0 %v1979
        %v2142 = vpop.f32.mrf.mxu0
        %v2143 = vadd.f32 0.0, %v2142
        %v2144 = vpop.f32.mrf.mxu0
        %2145 = vmatprep.mubr.f32.mxu0 0.0
        %2146 = vmatmul.mubr.f32.gmra.mxu0 %v1982
        %v2147 = vpop.f32.mrf.mxu0
        %v2148 = vadd.f32 0.0, %v2147
        %v2149 = vpop.f32.mrf.mxu0
        %2150 = vmatprep.mubr.f32.mxu0 0.0
        %2151 = vmatmul.mubr.f32.gmra.mxu0 %v1985
        %v2152 = vpop.f32.mrf.mxu0
        %v2153 = vadd.f32 0.0, %v2152
        %v2154 = vpop.f32.mrf.mxu0
        %2155 = vmatprep.mubr.f32.mxu0 0.0
        %2156 = vmatmul.mubr.f32.gmra.mxu0 %v1988
        %v2157 = vpop.f32.mrf.mxu0
        %v2158 = vadd.f32 0.0, %v2157
        %v2159 = vpop.f32.mrf.mxu0
        %2160 = vmatprep.mubr.f32.mxu0 0.0
        %2161 = vmatmul.mubr.f32.gmra.mxu0 %v1991
        %v2162 = vpop.f32.mrf.mxu0
        %v2163 = vadd.f32 0.0, %v2162
        %v2164 = vpop.f32.mrf.mxu0
        %2165 = vmatprep.mubr.f32.mxu0 0.0
        %2166 = vmatmul.mubr.f32.gmra.mxu0 %v1994
        %v2167 = vpop.f32.mrf.mxu0
        %v2168 = vadd.f32 0.0, %v2167
        %v2169 = vpop.f32.mrf.mxu0
        %2170 = vmatprep.mubr.f32.mxu0 0.0
        %2171 = vmatmul.mubr.f32.gmra.mxu0 %v1997
        %v2172 = vpop.f32.mrf.mxu0
        %v2173 = vadd.f32 0.0, %v2172
        %v2174 = vpop.f32.mrf.mxu0
        %2175 = vmatprep.mubr.f32.mxu0 0.0
        %2176 = vmatmul.mubr.f32.gmra.mxu0 %v2000
        %v2177 = vpop.f32.mrf.mxu0
        %v2178 = vadd.f32 0.0, %v2177
        %v2179 = vpop.f32.mrf.mxu0
        %2180 = vmatprep.mubr.f32.mxu0 0.0
        %2181 = vmatmul.mubr.f32.gmra.mxu0 %v2003
        %v2182 = vpop.f32.mrf.mxu0
        %v2183 = vadd.f32 0.0, %v2182
        %v2184 = vpop.f32.mrf.mxu0
        %2185 = vmatprep.mubr.f32.mxu0 0.0
        %2186 = vmatmul.mubr.f32.gmra.mxu0 %v2006
        %v2187 = vpop.f32.mrf.mxu0
        %v2188 = vadd.f32 0.0, %v2187
        %v2189 = vpop.f32.mrf.mxu0
        %2190 = vmatprep.mubr.f32.mxu0 0.0
        %2191 = vmatmul.mubr.f32.gmra.mxu0 %v2009
        %v2192 = vpop.f32.mrf.mxu0
        %v2193 = vadd.f32 0.0, %v2192
        %v2194 = vpop.f32.mrf.mxu0
        %2195 = vmatprep.mubr.f32.mxu0 0.0
        %2196 = vmatmul.mubr.f32.gmra.mxu0 %v2012
        %v2197 = vpop.f32.mrf.mxu0
        %v2198 = vadd.f32 0.0, %v2197
        %v2199 = vpop.f32.mrf.mxu0
        %2200 = vmatprep.mubr.f32.mxu0 0.0
        %2201 = vmatmul.mubr.f32.gmra.mxu0 %v2015
        %v2202 = vpop.f32.mrf.mxu0
        %v2203 = vadd.f32 0.0, %v2202
        %v2204 = vpop.f32.mrf.mxu0
        %2205 = vmatprep.mubr.f32.mxu0 0.0
        %2206 = vmatmul.mubr.f32.gmra.mxu0 %v2018
        %v2207 = vpop.f32.mrf.mxu0
        %v2208 = vadd.f32 0.0, %v2207
        %v2209 = vpop.f32.mrf.mxu0
        %2210 = vmatprep.mubr.f32.mxu0 0.0
        %2211 = vmatmul.mubr.f32.gmra.mxu0 %v2021
        %v2212 = vpop.f32.mrf.mxu0
        %v2213 = vadd.f32 0.0, %v2212
        %v2214 = vpop.f32.mrf.mxu0
        %2215 = vmatprep.mubr.f32.mxu0 0.0
        %2216 = vmatmul.mubr.f32.gmra.mxu0 %v2024
        %v2217 = vpop.f32.mrf.mxu0
        %v2218 = vadd.f32 0.0, %v2217
        %v2219 = vpop.f32.mrf.mxu0
        %2220 = vmatprep.mubr.f32.mxu0 0.0
        %2221 = vmatmul.mubr.f32.gmra.mxu0 %v2027
        %v2222 = vpop.f32.mrf.mxu0
        %v2223 = vadd.f32 0.0, %v2222
        %v2224 = vpop.f32.mrf.mxu0
        %2225 = vmatprep.mubr.f32.mxu0 0.0
        %2226 = vmatmul.mubr.f32.gmra.mxu0 %v2030
        %v2227 = vpop.f32.mrf.mxu0
        %v2228 = vadd.f32 0.0, %v2227
        %v2229 = vpop.f32.mrf.mxu0
        %2230 = vmatprep.mubr.f32.mxu0 0.0
        %2231 = vmatmul.mubr.f32.gmra.mxu0 %v2033
        %v2232 = vpop.f32.mrf.mxu0
        %v2233 = vadd.f32 0.0, %v2232
        %v2234 = vpop.f32.mrf.mxu0
        %2235 = vmatprep.mubr.f32.mxu0 0.0
        %2236 = vmatmul.mubr.f32.gmra.mxu0 %v2036
        %v2237 = vpop.f32.mrf.mxu0
        %v2238 = vadd.f32 0.0, %v2237
        %v2239 = vpop.f32.mrf.mxu0
        %2240 = vmatprep.mubr.f32.mxu0 0.0
        %2241 = vmatmul.mubr.f32.gmra.mxu0 %v2039
        %v2242 = vpop.f32.mrf.mxu0
        %v2243 = vadd.f32 0.0, %v2242
        %v2244 = vpop.f32.mrf.mxu0
        %2245 = vdwg.mxu0
        %s2246 = scalar_lea.vmem [#allocation6], 576
        %v2247 = vld [vmem:[%s2246] sm:$0xff]
        %v2248 = vld [vmem:[%s2246 + $0x8] sm:$0xff]
        %v2249 = vld [vmem:[%s2246 + $0x10] sm:$0xff]
        %v2250 = vld [vmem:[%s2246 + $0x18] sm:$0xff]
        %v2251 = vld [vmem:[%s2246 + $0x20] sm:$0xff]
        %v2252 = vld [vmem:[%s2246 + $0x28] sm:$0xff]
        %v2253 = vld [vmem:[%s2246 + $0x30] sm:$0xff]
        %v2254 = vld [vmem:[%s2246 + $0x38] sm:$0xff]
        %s2255 = scalar_lea.vmem [#allocation6], 640
        %v2256 = vld [vmem:[%s2255] sm:$0xff]
        %v2257 = vld [vmem:[%s2255 + $0x8] sm:$0xff]
        %v2258 = vld [vmem:[%s2255 + $0x10] sm:$0xff]
        %v2259 = vld [vmem:[%s2255 + $0x18] sm:$0xff]
        %v2260 = vld [vmem:[%s2255 + $0x20] sm:$0xff]
        %v2261 = vld [vmem:[%s2255 + $0x28] sm:$0xff]
        %v2262 = vld [vmem:[%s2255 + $0x30] sm:$0xff]
        %v2263 = vld [vmem:[%s2255 + $0x38] sm:$0xff]
        %v2265 = vsel %vm431, %v2128, 0
        %v2268 = vsel %vm431, %v2133, 0
        %v2271 = vsel %vm431, %v2138, 0
        %v2274 = vsel %vm431, %v2143, 0
        %2276 = vmatprep.subr.mxu0 0.0
        %2277 = vmatpush1.msra.mxu0 0.0
        %2278 = vmatprep.subr.mxu0 0.0
        %2279 = vmatpush1.msra.mxu0 0.0
        %2280 = vmatprep.subr.mxu0 0.0
        %2281 = vmatpush1.msra.mxu0 0.0
        %2282 = vmatprep.subr.mxu0 0.0
        %2283 = vmatpush1.msra.mxu0 0.0
        %2284 = vmatprep.subr.mxu0 0.0
        %2285 = vmatpush1.msra.mxu0 0.0
        %2286 = vmatprep.subr.mxu0 0.0
        %2287 = vmatpush1.msra.mxu0 0.0
        %2288 = vmatprep.subr.mxu0 0.0
        %2289 = vmatpush1.msra.mxu0 0.0
        %2290 = vmatprep.subr.mxu0 0.0
        %2291 = vmatpush1.msra.mxu0 0.0
        %2292 = vmatprep.subr.mxu0 0.0
        %2293 = vmatpush1.msra.mxu0 %v2263
        %2294 = vmatprep.subr.mxu0 0.0
        %2295 = vmatpush1.msra.mxu0 %v2262
        %2296 = vmatprep.subr.mxu0 0.0
        %2297 = vmatpush1.msra.mxu0 %v2261
        %2298 = vmatprep.subr.mxu0 0.0
        %2299 = vmatpush1.msra.mxu0 %v2260
        %2300 = vmatprep.subr.mxu0 0.0
        %2301 = vmatpush1.msra.mxu0 %v2259
        %2302 = vmatprep.subr.mxu0 0.0
        %2303 = vmatpush1.msra.mxu0 %v2258
        %2304 = vmatprep.subr.mxu0 0.0
        %2305 = vmatpush1.msra.mxu0 %v2257
        %2306 = vmatprep.subr.mxu0 0.0
        %2307 = vmatpush1.msra.mxu0 %v2256
        %2308 = vmatprep.subr.mxu0 0.0
        %2309 = vmatpush2.msra.mxu0 0.0
        %2310 = vmatprep.subr.mxu0 0.0
        %2311 = vmatpush2.msra.mxu0 0.0
        %2312 = vmatprep.subr.mxu0 0.0
        %2313 = vmatpush2.msra.mxu0 0.0
        %2314 = vmatprep.subr.mxu0 0.0
        %2315 = vmatpush2.msra.mxu0 0.0
        %2316 = vmatprep.subr.mxu0 0.0
        %2317 = vmatpush2.msra.mxu0 0.0
        %2318 = vmatprep.subr.mxu0 0.0
        %2319 = vmatpush2.msra.mxu0 0.0
        %2320 = vmatprep.subr.mxu0 0.0
        %2321 = vmatpush2.msra.mxu0 0.0
        %2322 = vmatprep.subr.mxu0 0.0
        %2323 = vmatpush2.msra.mxu0 0.0
        %2324 = vmatprep.subr.mxu0 0.0
        %2325 = vmatpush2.msra.mxu0 0.0
        %2326 = vmatprep.subr.mxu0 0.0
        %2327 = vmatpush2.msra.mxu0 0.0
        %2328 = vmatprep.subr.mxu0 0.0
        %2329 = vmatpush2.msra.mxu0 0.0
        %2330 = vmatprep.subr.mxu0 0.0
        %2331 = vmatpush2.msra.mxu0 0.0
        %2332 = vmatprep.subr.mxu0 0.0
        %2333 = vmatpush2.msra.mxu0 0.0
        %2334 = vmatprep.subr.mxu0 0.0
        %2335 = vmatpush2.msra.mxu0 0.0
        %2336 = vmatprep.subr.mxu0 0.0
        %2337 = vmatpush2.msra.mxu0 0.0
        %2338 = vmatprep.subr.mxu0 0.0
        %2339 = vmatpush2.msra.mxu0 0.0
        %2340 = vmatprep.mubr.f32.mxu0 0.0
        %2341 = vmatmul.mubr.f32.gmra.mxu0 %v2265
        %v2342 = vpop.f32.mrf.mxu0
        %v2343 = vadd.f32 0.0, %v2342
        %v2344 = vpop.f32.mrf.mxu0
        %2345 = vmatprep.mubr.f32.mxu0 0.0
        %2346 = vmatmul.mubr.f32.gmra.mxu0 %v2268
        %v2347 = vpop.f32.mrf.mxu0
        %v2348 = vadd.f32 0.0, %v2347
        %v2349 = vpop.f32.mrf.mxu0
        %2350 = vmatprep.mubr.f32.mxu0 0.0
        %2351 = vmatmul.mubr.f32.gmra.mxu0 %v2271
        %v2352 = vpop.f32.mrf.mxu0
        %v2353 = vadd.f32 0.0, %v2352
        %v2354 = vpop.f32.mrf.mxu0
        %2355 = vmatprep.mubr.f32.mxu0 0.0
        %2356 = vmatmul.mubr.f32.gmra.mxu0 %v2274
        %v2357 = vpop.f32.mrf.mxu0
        %v2358 = vadd.f32 0.0, %v2357
        %v2359 = vpop.f32.mrf.mxu0
        %2360 = vdwg.mxu0
        %v2362 = vsel %vm431, %v2108, 0
        %v2365 = vsel %vm431, %v2113, 0
        %v2368 = vsel %vm431, %v2118, 0
        %v2371 = vsel %vm431, %v2123, 0
        %2373 = vmatprep.subr.mxu0 0.0
        %2374 = vmatpush1.msra.mxu0 0.0
        %2375 = vmatprep.subr.mxu0 0.0
        %2376 = vmatpush1.msra.mxu0 0.0
        %2377 = vmatprep.subr.mxu0 0.0
        %2378 = vmatpush1.msra.mxu0 0.0
        %2379 = vmatprep.subr.mxu0 0.0
        %2380 = vmatpush1.msra.mxu0 0.0
        %2381 = vmatprep.subr.mxu0 0.0
        %2382 = vmatpush1.msra.mxu0 0.0
        %2383 = vmatprep.subr.mxu0 0.0
        %2384 = vmatpush1.msra.mxu0 0.0
        %2385 = vmatprep.subr.mxu0 0.0
        %2386 = vmatpush1.msra.mxu0 0.0
        %2387 = vmatprep.subr.mxu0 0.0
        %2388 = vmatpush1.msra.mxu0 0.0
        %2389 = vmatprep.subr.mxu0 0.0
        %2390 = vmatpush1.msra.mxu0 %v2254
        %2391 = vmatprep.subr.mxu0 0.0
        %2392 = vmatpush1.msra.mxu0 %v2253
        %2393 = vmatprep.subr.mxu0 0.0
        %2394 = vmatpush1.msra.mxu0 %v2252
        %2395 = vmatprep.subr.mxu0 0.0
        %2396 = vmatpush1.msra.mxu0 %v2251
        %2397 = vmatprep.subr.mxu0 0.0
        %2398 = vmatpush1.msra.mxu0 %v2250
        %2399 = vmatprep.subr.mxu0 0.0
        %2400 = vmatpush1.msra.mxu0 %v2249
        %2401 = vmatprep.subr.mxu0 0.0
        %2402 = vmatpush1.msra.mxu0 %v2248
        %2403 = vmatprep.subr.mxu0 0.0
        %2404 = vmatpush1.msra.mxu0 %v2247
        %2405 = vmatprep.subr.mxu0 0.0
        %2406 = vmatpush2.msra.mxu0 0.0
        %2407 = vmatprep.subr.mxu0 0.0
        %2408 = vmatpush2.msra.mxu0 0.0
        %2409 = vmatprep.subr.mxu0 0.0
        %2410 = vmatpush2.msra.mxu0 0.0
        %2411 = vmatprep.subr.mxu0 0.0
        %2412 = vmatpush2.msra.mxu0 0.0
        %2413 = vmatprep.subr.mxu0 0.0
        %2414 = vmatpush2.msra.mxu0 0.0
        %2415 = vmatprep.subr.mxu0 0.0
        %2416 = vmatpush2.msra.mxu0 0.0
        %2417 = vmatprep.subr.mxu0 0.0
        %2418 = vmatpush2.msra.mxu0 0.0
        %2419 = vmatprep.subr.mxu0 0.0
        %2420 = vmatpush2.msra.mxu0 0.0
        %2421 = vmatprep.subr.mxu0 0.0
        %2422 = vmatpush2.msra.mxu0 0.0
        %2423 = vmatprep.subr.mxu0 0.0
        %2424 = vmatpush2.msra.mxu0 0.0
        %2425 = vmatprep.subr.mxu0 0.0
        %2426 = vmatpush2.msra.mxu0 0.0
        %2427 = vmatprep.subr.mxu0 0.0
        %2428 = vmatpush2.msra.mxu0 0.0
        %2429 = vmatprep.subr.mxu0 0.0
        %2430 = vmatpush2.msra.mxu0 0.0
        %2431 = vmatprep.subr.mxu0 0.0
        %2432 = vmatpush2.msra.mxu0 0.0
        %2433 = vmatprep.subr.mxu0 0.0
        %2434 = vmatpush2.msra.mxu0 0.0
        %2435 = vmatprep.subr.mxu0 0.0
        %2436 = vmatpush2.msra.mxu0 0.0
        %2437 = vmatprep.mubr.f32.mxu0 0.0
        %2438 = vmatmul.mubr.f32.gmra.mxu0 %v2362
        %v2439 = vpop.f32.mrf.mxu0
        %v2440 = vadd.f32 %v2343, %v2439
        %v2441 = vpop.f32.mrf.mxu0
        %2442 = vmatprep.mubr.f32.mxu0 0.0
        %2443 = vmatmul.mubr.f32.gmra.mxu0 %v2365
        %v2444 = vpop.f32.mrf.mxu0
        %v2445 = vadd.f32 %v2348, %v2444
        %v2446 = vpop.f32.mrf.mxu0
        %2447 = vmatprep.mubr.f32.mxu0 0.0
        %2448 = vmatmul.mubr.f32.gmra.mxu0 %v2368
        %v2449 = vpop.f32.mrf.mxu0
        %v2450 = vadd.f32 %v2353, %v2449
        %v2451 = vpop.f32.mrf.mxu0
        %2452 = vmatprep.mubr.f32.mxu0 0.0
        %2453 = vmatmul.mubr.f32.gmra.mxu0 %v2371
        %v2454 = vpop.f32.mrf.mxu0
        %v2455 = vadd.f32 %v2358, %v2454
        %v2456 = vpop.f32.mrf.mxu0
        %2457 = vdwg.mxu0
        %s2458 = scalar_lea.vmem [#allocation6], 704
        %v2459 = vld [vmem:[%s2458] sm:$0xff]
        %v2460 = vld [vmem:[%s2458 + $0x8] sm:$0xff]
        %v2461 = vld [vmem:[%s2458 + $0x10] sm:$0xff]
        %v2462 = vld [vmem:[%s2458 + $0x18] sm:$0xff]
        %v2463 = vld [vmem:[%s2458 + $0x20] sm:$0xff]
        %v2464 = vld [vmem:[%s2458 + $0x28] sm:$0xff]
        %v2465 = vld [vmem:[%s2458 + $0x30] sm:$0xff]
        %v2466 = vld [vmem:[%s2458 + $0x38] sm:$0xff]
        %v2468 = vsel %vm431, %v2148, 0
        %v2471 = vsel %vm431, %v2153, 0
        %v2474 = vsel %vm431, %v2158, 0
        %v2477 = vsel %vm431, %v2163, 0
        %2479 = vmatprep.subr.mxu0 0.0
        %2480 = vmatpush1.msra.mxu0 0.0
        %2481 = vmatprep.subr.mxu0 0.0
        %2482 = vmatpush1.msra.mxu0 0.0
        %2483 = vmatprep.subr.mxu0 0.0
        %2484 = vmatpush1.msra.mxu0 0.0
        %2485 = vmatprep.subr.mxu0 0.0
        %2486 = vmatpush1.msra.mxu0 0.0
        %2487 = vmatprep.subr.mxu0 0.0
        %2488 = vmatpush1.msra.mxu0 0.0
        %2489 = vmatprep.subr.mxu0 0.0
        %2490 = vmatpush1.msra.mxu0 0.0
        %2491 = vmatprep.subr.mxu0 0.0
        %2492 = vmatpush1.msra.mxu0 0.0
        %2493 = vmatprep.subr.mxu0 0.0
        %2494 = vmatpush1.msra.mxu0 0.0
        %2495 = vmatprep.subr.mxu0 0.0
        %2496 = vmatpush1.msra.mxu0 %v2466
        %2497 = vmatprep.subr.mxu0 0.0
        %2498 = vmatpush1.msra.mxu0 %v2465
        %2499 = vmatprep.subr.mxu0 0.0
        %2500 = vmatpush1.msra.mxu0 %v2464
        %2501 = vmatprep.subr.mxu0 0.0
        %2502 = vmatpush1.msra.mxu0 %v2463
        %2503 = vmatprep.subr.mxu0 0.0
        %2504 = vmatpush1.msra.mxu0 %v2462
        %2505 = vmatprep.subr.mxu0 0.0
        %2506 = vmatpush1.msra.mxu0 %v2461
        %2507 = vmatprep.subr.mxu0 0.0
        %2508 = vmatpush1.msra.mxu0 %v2460
        %2509 = vmatprep.subr.mxu0 0.0
        %2510 = vmatpush1.msra.mxu0 %v2459
        %2511 = vmatprep.subr.mxu0 0.0
        %2512 = vmatpush2.msra.mxu0 0.0
        %2513 = vmatprep.subr.mxu0 0.0
        %2514 = vmatpush2.msra.mxu0 0.0
        %2515 = vmatprep.subr.mxu0 0.0
        %2516 = vmatpush2.msra.mxu0 0.0
        %2517 = vmatprep.subr.mxu0 0.0
        %2518 = vmatpush2.msra.mxu0 0.0
        %2519 = vmatprep.subr.mxu0 0.0
        %2520 = vmatpush2.msra.mxu0 0.0
        %2521 = vmatprep.subr.mxu0 0.0
        %2522 = vmatpush2.msra.mxu0 0.0
        %2523 = vmatprep.subr.mxu0 0.0
        %2524 = vmatpush2.msra.mxu0 0.0
        %2525 = vmatprep.subr.mxu0 0.0
        %2526 = vmatpush2.msra.mxu0 0.0
        %2527 = vmatprep.subr.mxu0 0.0
        %2528 = vmatpush2.msra.mxu0 0.0
        %2529 = vmatprep.subr.mxu0 0.0
        %2530 = vmatpush2.msra.mxu0 0.0
        %2531 = vmatprep.subr.mxu0 0.0
        %2532 = vmatpush2.msra.mxu0 0.0
        %2533 = vmatprep.subr.mxu0 0.0
        %2534 = vmatpush2.msra.mxu0 0.0
        %2535 = vmatprep.subr.mxu0 0.0
        %2536 = vmatpush2.msra.mxu0 0.0
        %2537 = vmatprep.subr.mxu0 0.0
        %2538 = vmatpush2.msra.mxu0 0.0
        %2539 = vmatprep.subr.mxu0 0.0
        %2540 = vmatpush2.msra.mxu0 0.0
        %2541 = vmatprep.subr.mxu0 0.0
        %2542 = vmatpush2.msra.mxu0 0.0
        %2543 = vmatprep.mubr.f32.mxu0 0.0
        %2544 = vmatmul.mubr.f32.gmra.mxu0 %v2468
        %v2545 = vpop.f32.mrf.mxu0
        %v2546 = vadd.f32 0.0, %v2545
        %v2547 = vpop.f32.mrf.mxu0
        %2548 = vmatprep.mubr.f32.mxu0 0.0
        %2549 = vmatmul.mubr.f32.gmra.mxu0 %v2471
        %v2550 = vpop.f32.mrf.mxu0
        %v2551 = vadd.f32 0.0, %v2550
        %v2552 = vpop.f32.mrf.mxu0
        %2553 = vmatprep.mubr.f32.mxu0 0.0
        %2554 = vmatmul.mubr.f32.gmra.mxu0 %v2474
        %v2555 = vpop.f32.mrf.mxu0
        %v2556 = vadd.f32 0.0, %v2555
        %v2557 = vpop.f32.mrf.mxu0
        %2558 = vmatprep.mubr.f32.mxu0 0.0
        %2559 = vmatmul.mubr.f32.gmra.mxu0 %v2477
        %v2560 = vpop.f32.mrf.mxu0
        %v2561 = vadd.f32 0.0, %v2560
        %v2562 = vpop.f32.mrf.mxu0
        %2563 = vdwg.mxu0
        %v2564 = vadd.f32 %v2440, %v2546
        %v2565 = vadd.f32 %v2445, %v2551
        %v2566 = vadd.f32 %v2450, %v2556
        %v2567 = vadd.f32 %v2455, %v2561
        %s2568 = scalar_lea.vmem [#allocation6], 768
        %v2569 = vld [vmem:[%s2568] sm:$0xff]
        %v2570 = vld [vmem:[%s2568 + $0x8] sm:$0xff]
        %v2571 = vld [vmem:[%s2568 + $0x10] sm:$0xff]
        %v2572 = vld [vmem:[%s2568 + $0x18] sm:$0xff]
        %v2573 = vld [vmem:[%s2568 + $0x20] sm:$0xff]
        %v2574 = vld [vmem:[%s2568 + $0x28] sm:$0xff]
        %v2575 = vld [vmem:[%s2568 + $0x30] sm:$0xff]
        %v2576 = vld [vmem:[%s2568 + $0x38] sm:$0xff]
        %v2578 = vsel %vm431, %v2168, 0
        %v2581 = vsel %vm431, %v2173, 0
        %v2584 = vsel %vm431, %v2178, 0
        %v2587 = vsel %vm431, %v2183, 0
        %2589 = vmatprep.subr.mxu0 0.0
        %2590 = vmatpush1.msra.mxu0 0.0
        %2591 = vmatprep.subr.mxu0 0.0
        %2592 = vmatpush1.msra.mxu0 0.0
        %2593 = vmatprep.subr.mxu0 0.0
        %2594 = vmatpush1.msra.mxu0 0.0
        %2595 = vmatprep.subr.mxu0 0.0
        %2596 = vmatpush1.msra.mxu0 0.0
        %2597 = vmatprep.subr.mxu0 0.0
        %2598 = vmatpush1.msra.mxu0 0.0
        %2599 = vmatprep.subr.mxu0 0.0
        %2600 = vmatpush1.msra.mxu0 0.0
        %2601 = vmatprep.subr.mxu0 0.0
        %2602 = vmatpush1.msra.mxu0 0.0
        %2603 = vmatprep.subr.mxu0 0.0
        %2604 = vmatpush1.msra.mxu0 0.0
        %2605 = vmatprep.subr.mxu0 0.0
        %2606 = vmatpush1.msra.mxu0 %v2576
        %2607 = vmatprep.subr.mxu0 0.0
        %2608 = vmatpush1.msra.mxu0 %v2575
        %2609 = vmatprep.subr.mxu0 0.0
        %2610 = vmatpush1.msra.mxu0 %v2574
        %2611 = vmatprep.subr.mxu0 0.0
        %2612 = vmatpush1.msra.mxu0 %v2573
        %2613 = vmatprep.subr.mxu0 0.0
        %2614 = vmatpush1.msra.mxu0 %v2572
        %2615 = vmatprep.subr.mxu0 0.0
        %2616 = vmatpush1.msra.mxu0 %v2571
        %2617 = vmatprep.subr.mxu0 0.0
        %2618 = vmatpush1.msra.mxu0 %v2570
        %2619 = vmatprep.subr.mxu0 0.0
        %2620 = vmatpush1.msra.mxu0 %v2569
        %2621 = vmatprep.subr.mxu0 0.0
        %2622 = vmatpush2.msra.mxu0 0.0
        %2623 = vmatprep.subr.mxu0 0.0
        %2624 = vmatpush2.msra.mxu0 0.0
        %2625 = vmatprep.subr.mxu0 0.0
        %2626 = vmatpush2.msra.mxu0 0.0
        %2627 = vmatprep.subr.mxu0 0.0
        %2628 = vmatpush2.msra.mxu0 0.0
        %2629 = vmatprep.subr.mxu0 0.0
        %2630 = vmatpush2.msra.mxu0 0.0
        %2631 = vmatprep.subr.mxu0 0.0
        %2632 = vmatpush2.msra.mxu0 0.0
        %2633 = vmatprep.subr.mxu0 0.0
        %2634 = vmatpush2.msra.mxu0 0.0
        %2635 = vmatprep.subr.mxu0 0.0
        %2636 = vmatpush2.msra.mxu0 0.0
        %2637 = vmatprep.subr.mxu0 0.0
        %2638 = vmatpush2.msra.mxu0 0.0
        %2639 = vmatprep.subr.mxu0 0.0
        %2640 = vmatpush2.msra.mxu0 0.0
        %2641 = vmatprep.subr.mxu0 0.0
        %2642 = vmatpush2.msra.mxu0 0.0
        %2643 = vmatprep.subr.mxu0 0.0
        %2644 = vmatpush2.msra.mxu0 0.0
        %2645 = vmatprep.subr.mxu0 0.0
        %2646 = vmatpush2.msra.mxu0 0.0
        %2647 = vmatprep.subr.mxu0 0.0
        %2648 = vmatpush2.msra.mxu0 0.0
        %2649 = vmatprep.subr.mxu0 0.0
        %2650 = vmatpush2.msra.mxu0 0.0
        %2651 = vmatprep.subr.mxu0 0.0
        %2652 = vmatpush2.msra.mxu0 0.0
        %2653 = vmatprep.mubr.f32.mxu0 0.0
        %2654 = vmatmul.mubr.f32.gmra.mxu0 %v2578
        %v2655 = vpop.f32.mrf.mxu0
        %v2656 = vadd.f32 0.0, %v2655
        %v2657 = vpop.f32.mrf.mxu0
        %2658 = vmatprep.mubr.f32.mxu0 0.0
        %2659 = vmatmul.mubr.f32.gmra.mxu0 %v2581
        %v2660 = vpop.f32.mrf.mxu0
        %v2661 = vadd.f32 0.0, %v2660
        %v2662 = vpop.f32.mrf.mxu0
        %2663 = vmatprep.mubr.f32.mxu0 0.0
        %2664 = vmatmul.mubr.f32.gmra.mxu0 %v2584
        %v2665 = vpop.f32.mrf.mxu0
        %v2666 = vadd.f32 0.0, %v2665
        %v2667 = vpop.f32.mrf.mxu0
        %2668 = vmatprep.mubr.f32.mxu0 0.0
        %2669 = vmatmul.mubr.f32.gmra.mxu0 %v2587
        %v2670 = vpop.f32.mrf.mxu0
        %v2671 = vadd.f32 0.0, %v2670
        %v2672 = vpop.f32.mrf.mxu0
        %2673 = vdwg.mxu0
        %v2674 = vadd.f32 %v2564, %v2656
        %v2675 = vadd.f32 %v2565, %v2661
        %v2676 = vadd.f32 %v2566, %v2666
        %v2677 = vadd.f32 %v2567, %v2671
        %s2678 = scalar_lea.vmem [#allocation6], 832
        %v2679 = vld [vmem:[%s2678] sm:$0xff]
        %v2680 = vld [vmem:[%s2678 + $0x8] sm:$0xff]
        %v2681 = vld [vmem:[%s2678 + $0x10] sm:$0xff]
        %v2682 = vld [vmem:[%s2678 + $0x18] sm:$0xff]
        %v2683 = vld [vmem:[%s2678 + $0x20] sm:$0xff]
        %v2684 = vld [vmem:[%s2678 + $0x28] sm:$0xff]
        %v2685 = vld [vmem:[%s2678 + $0x30] sm:$0xff]
        %v2686 = vld [vmem:[%s2678 + $0x38] sm:$0xff]
        %v2688 = vsel %vm431, %v2188, 0
        %v2691 = vsel %vm431, %v2193, 0
        %v2694 = vsel %vm431, %v2198, 0
        %v2697 = vsel %vm431, %v2203, 0
        %2699 = vmatprep.subr.mxu0 0.0
        %2700 = vmatpush1.msra.mxu0 0.0
        %2701 = vmatprep.subr.mxu0 0.0
        %2702 = vmatpush1.msra.mxu0 0.0
        %2703 = vmatprep.subr.mxu0 0.0
        %2704 = vmatpush1.msra.mxu0 0.0
        %2705 = vmatprep.subr.mxu0 0.0
        %2706 = vmatpush1.msra.mxu0 0.0
        %2707 = vmatprep.subr.mxu0 0.0
        %2708 = vmatpush1.msra.mxu0 0.0
        %2709 = vmatprep.subr.mxu0 0.0
        %2710 = vmatpush1.msra.mxu0 0.0
        %2711 = vmatprep.subr.mxu0 0.0
        %2712 = vmatpush1.msra.mxu0 0.0
        %2713 = vmatprep.subr.mxu0 0.0
        %2714 = vmatpush1.msra.mxu0 0.0
        %2715 = vmatprep.subr.mxu0 0.0
        %2716 = vmatpush1.msra.mxu0 %v2686
        %2717 = vmatprep.subr.mxu0 0.0
        %2718 = vmatpush1.msra.mxu0 %v2685
        %2719 = vmatprep.subr.mxu0 0.0
        %2720 = vmatpush1.msra.mxu0 %v2684
        %2721 = vmatprep.subr.mxu0 0.0
        %2722 = vmatpush1.msra.mxu0 %v2683
        %2723 = vmatprep.subr.mxu0 0.0
        %2724 = vmatpush1.msra.mxu0 %v2682
        %2725 = vmatprep.subr.mxu0 0.0
        %2726 = vmatpush1.msra.mxu0 %v2681
        %2727 = vmatprep.subr.mxu0 0.0
        %2728 = vmatpush1.msra.mxu0 %v2680
        %2729 = vmatprep.subr.mxu0 0.0
        %2730 = vmatpush1.msra.mxu0 %v2679
        %2731 = vmatprep.subr.mxu0 0.0
        %2732 = vmatpush2.msra.mxu0 0.0
        %2733 = vmatprep.subr.mxu0 0.0
        %2734 = vmatpush2.msra.mxu0 0.0
        %2735 = vmatprep.subr.mxu0 0.0
        %2736 = vmatpush2.msra.mxu0 0.0
        %2737 = vmatprep.subr.mxu0 0.0
        %2738 = vmatpush2.msra.mxu0 0.0
        %2739 = vmatprep.subr.mxu0 0.0
        %2740 = vmatpush2.msra.mxu0 0.0
        %2741 = vmatprep.subr.mxu0 0.0
        %2742 = vmatpush2.msra.mxu0 0.0
        %2743 = vmatprep.subr.mxu0 0.0
        %2744 = vmatpush2.msra.mxu0 0.0
        %2745 = vmatprep.subr.mxu0 0.0
        %2746 = vmatpush2.msra.mxu0 0.0
        %2747 = vmatprep.subr.mxu0 0.0
        %2748 = vmatpush2.msra.mxu0 0.0
        %2749 = vmatprep.subr.mxu0 0.0
        %2750 = vmatpush2.msra.mxu0 0.0
        %2751 = vmatprep.subr.mxu0 0.0
        %2752 = vmatpush2.msra.mxu0 0.0
        %2753 = vmatprep.subr.mxu0 0.0
        %2754 = vmatpush2.msra.mxu0 0.0
        %2755 = vmatprep.subr.mxu0 0.0
        %2756 = vmatpush2.msra.mxu0 0.0
        %2757 = vmatprep.subr.mxu0 0.0
        %2758 = vmatpush2.msra.mxu0 0.0
        %2759 = vmatprep.subr.mxu0 0.0
        %2760 = vmatpush2.msra.mxu0 0.0
        %2761 = vmatprep.subr.mxu0 0.0
        %2762 = vmatpush2.msra.mxu0 0.0
        %2763 = vmatprep.mubr.f32.mxu0 0.0
        %2764 = vmatmul.mubr.f32.gmra.mxu0 %v2688
        %v2765 = vpop.f32.mrf.mxu0
        %v2766 = vadd.f32 0.0, %v2765
        %v2767 = vpop.f32.mrf.mxu0
        %2768 = vmatprep.mubr.f32.mxu0 0.0
        %2769 = vmatmul.mubr.f32.gmra.mxu0 %v2691
        %v2770 = vpop.f32.mrf.mxu0
        %v2771 = vadd.f32 0.0, %v2770
        %v2772 = vpop.f32.mrf.mxu0
        %2773 = vmatprep.mubr.f32.mxu0 0.0
        %2774 = vmatmul.mubr.f32.gmra.mxu0 %v2694
        %v2775 = vpop.f32.mrf.mxu0
        %v2776 = vadd.f32 0.0, %v2775
        %v2777 = vpop.f32.mrf.mxu0
        %2778 = vmatprep.mubr.f32.mxu0 0.0
        %2779 = vmatmul.mubr.f32.gmra.mxu0 %v2697
        %v2780 = vpop.f32.mrf.mxu0
        %v2781 = vadd.f32 0.0, %v2780
        %v2782 = vpop.f32.mrf.mxu0
        %2783 = vdwg.mxu0
        %v2784 = vadd.f32 %v2674, %v2766
        %v2785 = vadd.f32 %v2675, %v2771
        %v2786 = vadd.f32 %v2676, %v2776
        %v2787 = vadd.f32 %v2677, %v2781
        %s2788 = scalar_lea.vmem [#allocation6], 896
        %v2789 = vld [vmem:[%s2788] sm:$0xff]
        %v2790 = vld [vmem:[%s2788 + $0x8] sm:$0xff]
        %v2791 = vld [vmem:[%s2788 + $0x10] sm:$0xff]
        %v2792 = vld [vmem:[%s2788 + $0x18] sm:$0xff]
        %v2793 = vld [vmem:[%s2788 + $0x20] sm:$0xff]
        %v2794 = vld [vmem:[%s2788 + $0x28] sm:$0xff]
        %v2795 = vld [vmem:[%s2788 + $0x30] sm:$0xff]
        %v2796 = vld [vmem:[%s2788 + $0x38] sm:$0xff]
        %v2798 = vsel %vm431, %v2208, 0
        %v2801 = vsel %vm431, %v2213, 0
        %v2804 = vsel %vm431, %v2218, 0
        %v2807 = vsel %vm431, %v2223, 0
        %2809 = vmatprep.subr.mxu0 0.0
        %2810 = vmatpush1.msra.mxu0 0.0
        %2811 = vmatprep.subr.mxu0 0.0
        %2812 = vmatpush1.msra.mxu0 0.0
        %2813 = vmatprep.subr.mxu0 0.0
        %2814 = vmatpush1.msra.mxu0 0.0
        %2815 = vmatprep.subr.mxu0 0.0
        %2816 = vmatpush1.msra.mxu0 0.0
        %2817 = vmatprep.subr.mxu0 0.0
        %2818 = vmatpush1.msra.mxu0 0.0
        %2819 = vmatprep.subr.mxu0 0.0
        %2820 = vmatpush1.msra.mxu0 0.0
        %2821 = vmatprep.subr.mxu0 0.0
        %2822 = vmatpush1.msra.mxu0 0.0
        %2823 = vmatprep.subr.mxu0 0.0
        %2824 = vmatpush1.msra.mxu0 0.0
        %2825 = vmatprep.subr.mxu0 0.0
        %2826 = vmatpush1.msra.mxu0 %v2796
        %2827 = vmatprep.subr.mxu0 0.0
        %2828 = vmatpush1.msra.mxu0 %v2795
        %2829 = vmatprep.subr.mxu0 0.0
        %2830 = vmatpush1.msra.mxu0 %v2794
        %2831 = vmatprep.subr.mxu0 0.0
        %2832 = vmatpush1.msra.mxu0 %v2793
        %2833 = vmatprep.subr.mxu0 0.0
        %2834 = vmatpush1.msra.mxu0 %v2792
        %2835 = vmatprep.subr.mxu0 0.0
        %2836 = vmatpush1.msra.mxu0 %v2791
        %2837 = vmatprep.subr.mxu0 0.0
        %2838 = vmatpush1.msra.mxu0 %v2790
        %2839 = vmatprep.subr.mxu0 0.0
        %2840 = vmatpush1.msra.mxu0 %v2789
        %2841 = vmatprep.subr.mxu0 0.0
        %2842 = vmatpush2.msra.mxu0 0.0
        %2843 = vmatprep.subr.mxu0 0.0
        %2844 = vmatpush2.msra.mxu0 0.0
        %2845 = vmatprep.subr.mxu0 0.0
        %2846 = vmatpush2.msra.mxu0 0.0
        %2847 = vmatprep.subr.mxu0 0.0
        %2848 = vmatpush2.msra.mxu0 0.0
        %2849 = vmatprep.subr.mxu0 0.0
        %2850 = vmatpush2.msra.mxu0 0.0
        %2851 = vmatprep.subr.mxu0 0.0
        %2852 = vmatpush2.msra.mxu0 0.0
        %2853 = vmatprep.subr.mxu0 0.0
        %2854 = vmatpush2.msra.mxu0 0.0
        %2855 = vmatprep.subr.mxu0 0.0
        %2856 = vmatpush2.msra.mxu0 0.0
        %2857 = vmatprep.subr.mxu0 0.0
        %2858 = vmatpush2.msra.mxu0 0.0
        %2859 = vmatprep.subr.mxu0 0.0
        %2860 = vmatpush2.msra.mxu0 0.0
        %2861 = vmatprep.subr.mxu0 0.0
        %2862 = vmatpush2.msra.mxu0 0.0
        %2863 = vmatprep.subr.mxu0 0.0
        %2864 = vmatpush2.msra.mxu0 0.0
        %2865 = vmatprep.subr.mxu0 0.0
        %2866 = vmatpush2.msra.mxu0 0.0
        %2867 = vmatprep.subr.mxu0 0.0
        %2868 = vmatpush2.msra.mxu0 0.0
        %2869 = vmatprep.subr.mxu0 0.0
        %2870 = vmatpush2.msra.mxu0 0.0
        %2871 = vmatprep.subr.mxu0 0.0
        %2872 = vmatpush2.msra.mxu0 0.0
        %2873 = vmatprep.mubr.f32.mxu0 0.0
        %2874 = vmatmul.mubr.f32.gmra.mxu0 %v2798
        %v2875 = vpop.f32.mrf.mxu0
        %v2876 = vadd.f32 0.0, %v2875
        %v2877 = vpop.f32.mrf.mxu0
        %2878 = vmatprep.mubr.f32.mxu0 0.0
        %2879 = vmatmul.mubr.f32.gmra.mxu0 %v2801
        %v2880 = vpop.f32.mrf.mxu0
        %v2881 = vadd.f32 0.0, %v2880
        %v2882 = vpop.f32.mrf.mxu0
        %2883 = vmatprep.mubr.f32.mxu0 0.0
        %2884 = vmatmul.mubr.f32.gmra.mxu0 %v2804
        %v2885 = vpop.f32.mrf.mxu0
        %v2886 = vadd.f32 0.0, %v2885
        %v2887 = vpop.f32.mrf.mxu0
        %2888 = vmatprep.mubr.f32.mxu0 0.0
        %2889 = vmatmul.mubr.f32.gmra.mxu0 %v2807
        %v2890 = vpop.f32.mrf.mxu0
        %v2891 = vadd.f32 0.0, %v2890
        %v2892 = vpop.f32.mrf.mxu0
        %2893 = vdwg.mxu0
        %v2894 = vadd.f32 %v2784, %v2876
        %v2895 = vadd.f32 %v2785, %v2881
        %v2896 = vadd.f32 %v2786, %v2886
        %v2897 = vadd.f32 %v2787, %v2891
        %s2898 = scalar_lea.vmem [#allocation6], 960
        %v2899 = vld [vmem:[%s2898] sm:$0xff]
        %v2900 = vld [vmem:[%s2898 + $0x8] sm:$0xff]
        %v2901 = vld [vmem:[%s2898 + $0x10] sm:$0xff]
        %v2902 = vld [vmem:[%s2898 + $0x18] sm:$0xff]
        %v2903 = vld [vmem:[%s2898 + $0x20] sm:$0xff]
        %v2904 = vld [vmem:[%s2898 + $0x28] sm:$0xff]
        %v2905 = vld [vmem:[%s2898 + $0x30] sm:$0xff]
        %v2906 = vld [vmem:[%s2898 + $0x38] sm:$0xff]
        %v2908 = vsel %vm431, %v2228, 0
        %v2911 = vsel %vm431, %v2233, 0
        %v2914 = vsel %vm431, %v2238, 0
        %v2917 = vsel %vm431, %v2243, 0
        %2919 = vmatprep.subr.mxu0 0.0
        %2920 = vmatpush1.msra.mxu0 0.0
        %2921 = vmatprep.subr.mxu0 0.0
        %2922 = vmatpush1.msra.mxu0 0.0
        %2923 = vmatprep.subr.mxu0 0.0
        %2924 = vmatpush1.msra.mxu0 0.0
        %2925 = vmatprep.subr.mxu0 0.0
        %2926 = vmatpush1.msra.mxu0 0.0
        %2927 = vmatprep.subr.mxu0 0.0
        %2928 = vmatpush1.msra.mxu0 0.0
        %2929 = vmatprep.subr.mxu0 0.0
        %2930 = vmatpush1.msra.mxu0 0.0
        %2931 = vmatprep.subr.mxu0 0.0
        %2932 = vmatpush1.msra.mxu0 0.0
        %2933 = vmatprep.subr.mxu0 0.0
        %2934 = vmatpush1.msra.mxu0 0.0
        %2935 = vmatprep.subr.mxu0 0.0
        %2936 = vmatpush1.msra.mxu0 %v2906
        %2937 = vmatprep.subr.mxu0 0.0
        %2938 = vmatpush1.msra.mxu0 %v2905
        %2939 = vmatprep.subr.mxu0 0.0
        %2940 = vmatpush1.msra.mxu0 %v2904
        %2941 = vmatprep.subr.mxu0 0.0
        %2942 = vmatpush1.msra.mxu0 %v2903
        %2943 = vmatprep.subr.mxu0 0.0
        %2944 = vmatpush1.msra.mxu0 %v2902
        %2945 = vmatprep.subr.mxu0 0.0
        %2946 = vmatpush1.msra.mxu0 %v2901
        %2947 = vmatprep.subr.mxu0 0.0
        %2948 = vmatpush1.msra.mxu0 %v2900
        %2949 = vmatprep.subr.mxu0 0.0
        %2950 = vmatpush1.msra.mxu0 %v2899
        %2951 = vmatprep.subr.mxu0 0.0
        %2952 = vmatpush2.msra.mxu0 0.0
        %2953 = vmatprep.subr.mxu0 0.0
        %2954 = vmatpush2.msra.mxu0 0.0
        %2955 = vmatprep.subr.mxu0 0.0
        %2956 = vmatpush2.msra.mxu0 0.0
        %2957 = vmatprep.subr.mxu0 0.0
        %2958 = vmatpush2.msra.mxu0 0.0
        %2959 = vmatprep.subr.mxu0 0.0
        %2960 = vmatpush2.msra.mxu0 0.0
        %2961 = vmatprep.subr.mxu0 0.0
        %2962 = vmatpush2.msra.mxu0 0.0
        %2963 = vmatprep.subr.mxu0 0.0
        %2964 = vmatpush2.msra.mxu0 0.0
        %2965 = vmatprep.subr.mxu0 0.0
        %2966 = vmatpush2.msra.mxu0 0.0
        %2967 = vmatprep.subr.mxu0 0.0
        %2968 = vmatpush2.msra.mxu0 0.0
        %2969 = vmatprep.subr.mxu0 0.0
        %2970 = vmatpush2.msra.mxu0 0.0
        %2971 = vmatprep.subr.mxu0 0.0
        %2972 = vmatpush2.msra.mxu0 0.0
        %2973 = vmatprep.subr.mxu0 0.0
        %2974 = vmatpush2.msra.mxu0 0.0
        %2975 = vmatprep.subr.mxu0 0.0
        %2976 = vmatpush2.msra.mxu0 0.0
        %2977 = vmatprep.subr.mxu0 0.0
        %2978 = vmatpush2.msra.mxu0 0.0
        %2979 = vmatprep.subr.mxu0 0.0
        %2980 = vmatpush2.msra.mxu0 0.0
        %2981 = vmatprep.subr.mxu0 0.0
        %2982 = vmatpush2.msra.mxu0 0.0
        %2983 = vmatprep.mubr.f32.mxu0 0.0
        %2984 = vmatmul.mubr.f32.gmra.mxu0 %v2908
        %v2985 = vpop.f32.mrf.mxu0
        %v2986 = vadd.f32 0.0, %v2985
        %v2987 = vpop.f32.mrf.mxu0
        %2988 = vmatprep.mubr.f32.mxu0 0.0
        %2989 = vmatmul.mubr.f32.gmra.mxu0 %v2911
        %v2990 = vpop.f32.mrf.mxu0
        %v2991 = vadd.f32 0.0, %v2990
        %v2992 = vpop.f32.mrf.mxu0
        %2993 = vmatprep.mubr.f32.mxu0 0.0
        %2994 = vmatmul.mubr.f32.gmra.mxu0 %v2914
        %v2995 = vpop.f32.mrf.mxu0
        %v2996 = vadd.f32 0.0, %v2995
        %v2997 = vpop.f32.mrf.mxu0
        %2998 = vmatprep.mubr.f32.mxu0 0.0
        %2999 = vmatmul.mubr.f32.gmra.mxu0 %v2917
        %v3000 = vpop.f32.mrf.mxu0
        %v3001 = vadd.f32 0.0, %v3000
        %v3002 = vpop.f32.mrf.mxu0
        %3003 = vdwg.mxu0
        %v3004 = vadd.f32 %v2894, %v2986
        %v3005 = vadd.f32 %v2895, %v2991
        %v3006 = vadd.f32 %v2896, %v2996
        %v3007 = vadd.f32 %v2897, %v3001
        %s3008 = scalar_lea.vmem %s4, 96
        %v3009 = vld [vmem:[%s3008] sm:$0xff]
        %v3010 = vld [vmem:[%s3008 + $0x8] sm:$0xff]
        %v3011 = vld [vmem:[%s3008 + $0x10] sm:$0xff]
        %v3012 = vld [vmem:[%s3008 + $0x18] sm:$0xff]
        %3014 = vset.pattern.permute.xlu0 0
        %3015 = vperm.xlu0 %3014, %v3009
        %v3016 = vpop.permute.xlu0 %3015
        %3019 = vset.pattern.permute.xlu0 0
        %3020 = vperm.xlu0 %3019, %v3010
        %v3021 = vpop.permute.xlu0 %3020
        %3024 = vset.pattern.permute.xlu0 0
        %3025 = vperm.xlu0 %3024, %v3011
        %v3026 = vpop.permute.xlu0 %3025
        %3029 = vset.pattern.permute.xlu0 0
        %3030 = vperm.xlu0 %3029, %v3012
        %v3031 = vpop.permute.xlu0 %3030
        %v3033 = vadd.f32 %v3004, %v3016
        %v3034 = vadd.f32 %v3005, %v3021
        %v3035 = vadd.f32 %v3006, %v3026
        %v3036 = vadd.f32 %v3007, %v3031
        %v3037 = vmul.f32 %v3033, 0.5
        %v3038 = vmul.f32 %v3034, 0.5
        %v3039 = vmul.f32 %v3035, 0.5
        %v3040 = vmul.f32 %v3036, 0.5
        %v3041 = vmul.f32 %v3033, 0.70710677
        %v3042 = vmul.f32 %v3034, 0.70710677
        %v3043 = vmul.f32 %v3035, 0.70710677
        %v3044 = vmul.f32 %v3036, 0.70710677
        %v3045 = verf.f32.pop %v3041
        %v3046 = verf.f32.pop %v3042
        %v3047 = verf.f32.pop %v3043
        %v3048 = verf.f32.pop %v3044
        %v3049 = vadd.f32 %v3045, 1.0
        %v3050 = vadd.f32 %v3046, 1.0
        %v3051 = vadd.f32 %v3047, 1.0
        %v3052 = vadd.f32 %v3048, 1.0
        %v3053 = vmul.f32 %v3037, %v3049
        %v3054 = vmul.f32 %v3038, %v3050
        %v3055 = vmul.f32 %v3039, %v3051
        %v3056 = vmul.f32 %v3040, %v3052
        %v3057 = vld [vmem:[%s3 + $0x200] sm:$0xff]
        %v3058 = vld [vmem:[%s3 + $0x208] sm:$0xff]
        %v3059 = vld [vmem:[%s3 + $0x210] sm:$0xff]
        %v3060 = vld [vmem:[%s3 + $0x218] sm:$0xff]
        %v3061 = vld [vmem:[%s3 + $0x220] sm:$0xff]
        %v3062 = vld [vmem:[%s3 + $0x228] sm:$0xff]
        %v3063 = vld [vmem:[%s3 + $0x230] sm:$0xff]
        %v3064 = vld [vmem:[%s3 + $0x238] sm:$0xff]
        %v3065 = vld [vmem:[%s3 + $0x240] sm:$0xff]
        %v3066 = vld [vmem:[%s3 + $0x248] sm:$0xff]
        %v3067 = vld [vmem:[%s3 + $0x250] sm:$0xff]
        %v3068 = vld [vmem:[%s3 + $0x258] sm:$0xff]
        %v3069 = vld [vmem:[%s3 + $0x260] sm:$0xff]
        %v3070 = vld [vmem:[%s3 + $0x268] sm:$0xff]
        %v3071 = vld [vmem:[%s3 + $0x270] sm:$0xff]
        %v3072 = vld [vmem:[%s3 + $0x278] sm:$0xff]
        %v3073 = vld [vmem:[%s3 + $0x280] sm:$0xff]
        %v3074 = vld [vmem:[%s3 + $0x288] sm:$0xff]
        %v3075 = vld [vmem:[%s3 + $0x290] sm:$0xff]
        %v3076 = vld [vmem:[%s3 + $0x298] sm:$0xff]
        %v3077 = vld [vmem:[%s3 + $0x2a0] sm:$0xff]
        %v3078 = vld [vmem:[%s3 + $0x2a8] sm:$0xff]
        %v3079 = vld [vmem:[%s3 + $0x2b0] sm:$0xff]
        %v3080 = vld [vmem:[%s3 + $0x2b8] sm:$0xff]
        %v3081 = vld [vmem:[%s3 + $0x2c0] sm:$0xff]
        %v3082 = vld [vmem:[%s3 + $0x2c8] sm:$0xff]
        %v3083 = vld [vmem:[%s3 + $0x2d0] sm:$0xff]
        %v3084 = vld [vmem:[%s3 + $0x2d8] sm:$0xff]
        %v3085 = vld [vmem:[%s3 + $0x2e0] sm:$0xff]
        %v3086 = vld [vmem:[%s3 + $0x2e8] sm:$0xff]
        %v3087 = vld [vmem:[%s3 + $0x2f0] sm:$0xff]
        %v3088 = vld [vmem:[%s3 + $0x2f8] sm:$0xff]
        %v3089 = vld [vmem:[%s3 + $0x300] sm:$0xff]
        %v3090 = vld [vmem:[%s3 + $0x308] sm:$0xff]
        %v3091 = vld [vmem:[%s3 + $0x310] sm:$0xff]
        %v3092 = vld [vmem:[%s3 + $0x318] sm:$0xff]
        %v3093 = vld [vmem:[%s3 + $0x320] sm:$0xff]
        %v3094 = vld [vmem:[%s3 + $0x328] sm:$0xff]
        %v3095 = vld [vmem:[%s3 + $0x330] sm:$0xff]
        %v3096 = vld [vmem:[%s3 + $0x338] sm:$0xff]
        %v3097 = vld [vmem:[%s3 + $0x340] sm:$0xff]
        %v3098 = vld [vmem:[%s3 + $0x348] sm:$0xff]
        %v3099 = vld [vmem:[%s3 + $0x350] sm:$0xff]
        %v3100 = vld [vmem:[%s3 + $0x358] sm:$0xff]
        %v3101 = vld [vmem:[%s3 + $0x360] sm:$0xff]
        %v3102 = vld [vmem:[%s3 + $0x368] sm:$0xff]
        %v3103 = vld [vmem:[%s3 + $0x370] sm:$0xff]
        %v3104 = vld [vmem:[%s3 + $0x378] sm:$0xff]
        %v3105 = vld [vmem:[%s3 + $0x380] sm:$0xff]
        %v3106 = vld [vmem:[%s3 + $0x388] sm:$0xff]
        %v3107 = vld [vmem:[%s3 + $0x390] sm:$0xff]
        %v3108 = vld [vmem:[%s3 + $0x398] sm:$0xff]
        %v3109 = vld [vmem:[%s3 + $0x3a0] sm:$0xff]
        %v3110 = vld [vmem:[%s3 + $0x3a8] sm:$0xff]
        %v3111 = vld [vmem:[%s3 + $0x3b0] sm:$0xff]
        %v3112 = vld [vmem:[%s3 + $0x3b8] sm:$0xff]
        %v3113 = vld [vmem:[%s3 + $0x3c0] sm:$0xff]
        %v3114 = vld [vmem:[%s3 + $0x3c8] sm:$0xff]
        %v3115 = vld [vmem:[%s3 + $0x3d0] sm:$0xff]
        %v3116 = vld [vmem:[%s3 + $0x3d8] sm:$0xff]
        %v3118 = vsel %vm301, %v3057, 0
        %v3121 = vsel %vm301, %v3058, 0
        %v3124 = vsel %vm301, %v3059, 0
        %v3127 = vsel %vm301, %v3060, 0
        %v3130 = vsel %vm301, %v3061, 0
        %v3133 = vsel %vm301, %v3062, 0
        %v3136 = vsel %vm301, %v3063, 0
        %v3139 = vsel %vm301, %v3064, 0
        %v3142 = vsel %vm301, %v3065, 0
        %v3145 = vsel %vm301, %v3066, 0
        %v3148 = vsel %vm301, %v3067, 0
        %v3151 = vsel %vm301, %v3068, 0
        %v3154 = vsel %vm301, %v3069, 0
        %v3157 = vsel %vm301, %v3070, 0
        %v3160 = vsel %vm301, %v3071, 0
        %v3163 = vsel %vm301, %v3072, 0
        %v3166 = vsel %vm301, %v3073, 0
        %v3169 = vsel %vm301, %v3074, 0
        %v3172 = vsel %vm301, %v3075, 0
        %v3175 = vsel %vm301, %v3076, 0
        %v3178 = vsel %vm301, %v3077, 0
        %v3181 = vsel %vm301, %v3078, 0
        %v3184 = vsel %vm301, %v3079, 0
        %v3187 = vsel %vm301, %v3080, 0
        %v3190 = vsel %vm301, %v3081, 0
        %v3193 = vsel %vm301, %v3082, 0
        %v3196 = vsel %vm301, %v3083, 0
        %v3199 = vsel %vm301, %v3084, 0
        %v3202 = vsel %vm301, %v3085, 0
        %v3205 = vsel %vm301, %v3086, 0
        %v3208 = vsel %vm301, %v3087, 0
        %v3211 = vsel %vm301, %v3088, 0
        %v3214 = vsel %vm301, %v3089, 0
        %v3217 = vsel %vm301, %v3090, 0
        %v3220 = vsel %vm301, %v3091, 0
        %v3223 = vsel %vm301, %v3092, 0
        %v3226 = vsel %vm301, %v3093, 0
        %v3229 = vsel %vm301, %v3094, 0
        %v3232 = vsel %vm301, %v3095, 0
        %v3235 = vsel %vm301, %v3096, 0
        %v3238 = vsel %vm301, %v3097, 0
        %v3241 = vsel %vm301, %v3098, 0
        %v3244 = vsel %vm301, %v3099, 0
        %v3247 = vsel %vm301, %v3100, 0
        %v3250 = vsel %vm301, %v3101, 0
        %v3253 = vsel %vm301, %v3102, 0
        %v3256 = vsel %vm301, %v3103, 0
        %v3259 = vsel %vm301, %v3104, 0
        %v3262 = vsel %vm301, %v3105, 0
        %v3265 = vsel %vm301, %v3106, 0
        %v3268 = vsel %vm301, %v3107, 0
        %v3271 = vsel %vm301, %v3108, 0
        %v3274 = vsel %vm301, %v3109, 0
        %v3277 = vsel %vm301, %v3110, 0
        %v3280 = vsel %vm301, %v3111, 0
        %v3283 = vsel %vm301, %v3112, 0
        %v3286 = vsel %vm301, %v3113, 0
        %v3289 = vsel %vm301, %v3114, 0
        %v3292 = vsel %vm301, %v3115, 0
        %v3295 = vsel %vm301, %v3116, 0
        %3297 = vmatprep.subr.mxu0 0.0
        %3298 = vmatpush1.msra.mxu0 0.0
        %3299 = vmatprep.subr.mxu0 0.0
        %3300 = vmatpush1.msra.mxu0 0.0
        %3301 = vmatprep.subr.mxu0 0.0
        %3302 = vmatpush1.msra.mxu0 0.0
        %3303 = vmatprep.subr.mxu0 0.0
        %3304 = vmatpush1.msra.mxu0 0.0
        %3305 = vmatprep.subr.mxu0 0.0
        %3306 = vmatpush1.msra.mxu0 0.0
        %3307 = vmatprep.subr.mxu0 0.0
        %3308 = vmatpush1.msra.mxu0 0.0
        %3309 = vmatprep.subr.mxu0 0.0
        %3310 = vmatpush1.msra.mxu0 0.0
        %3311 = vmatprep.subr.mxu0 0.0
        %3312 = vmatpush1.msra.mxu0 0.0
        %3313 = vmatprep.subr.mxu0 0.0
        %3314 = vmatpush1.msra.mxu0 0.0
        %3315 = vmatprep.subr.mxu0 0.0
        %3316 = vmatpush1.msra.mxu0 0.0
        %3317 = vmatprep.subr.mxu0 0.0
        %3318 = vmatpush1.msra.mxu0 0.0
        %3319 = vmatprep.subr.mxu0 0.0
        %3320 = vmatpush1.msra.mxu0 0.0
        %3321 = vmatprep.subr.mxu0 0.0
        %3322 = vmatpush1.msra.mxu0 %v3056
        %3323 = vmatprep.subr.mxu0 0.0
        %3324 = vmatpush1.msra.mxu0 %v3055
        %3325 = vmatprep.subr.mxu0 0.0
        %3326 = vmatpush1.msra.mxu0 %v3054
        %3327 = vmatprep.subr.mxu0 0.0
        %3328 = vmatpush1.msra.mxu0 %v3053
        %3329 = vmatprep.subr.mxu0 0.0
        %3330 = vmatpush2.msra.mxu0 0.0
        %3331 = vmatprep.subr.mxu0 0.0
        %3332 = vmatpush2.msra.mxu0 0.0
        %3333 = vmatprep.subr.mxu0 0.0
        %3334 = vmatpush2.msra.mxu0 0.0
        %3335 = vmatprep.subr.mxu0 0.0
        %3336 = vmatpush2.msra.mxu0 0.0
        %3337 = vmatprep.subr.mxu0 0.0
        %3338 = vmatpush2.msra.mxu0 0.0
        %3339 = vmatprep.subr.mxu0 0.0
        %3340 = vmatpush2.msra.mxu0 0.0
        %3341 = vmatprep.subr.mxu0 0.0
        %3342 = vmatpush2.msra.mxu0 0.0
        %3343 = vmatprep.subr.mxu0 0.0
        %3344 = vmatpush2.msra.mxu0 0.0
        %3345 = vmatprep.subr.mxu0 0.0
        %3346 = vmatpush2.msra.mxu0 0.0
        %3347 = vmatprep.subr.mxu0 0.0
        %3348 = vmatpush2.msra.mxu0 0.0
        %3349 = vmatprep.subr.mxu0 0.0
        %3350 = vmatpush2.msra.mxu0 0.0
        %3351 = vmatprep.subr.mxu0 0.0
        %3352 = vmatpush2.msra.mxu0 0.0
        %3353 = vmatprep.subr.mxu0 0.0
        %3354 = vmatpush2.msra.mxu0 0.0
        %3355 = vmatprep.subr.mxu0 0.0
        %3356 = vmatpush2.msra.mxu0 0.0
        %3357 = vmatprep.subr.mxu0 0.0
        %3358 = vmatpush2.msra.mxu0 0.0
        %3359 = vmatprep.subr.mxu0 0.0
        %3360 = vmatpush2.msra.mxu0 0.0
        %3361 = vmatprep.mubr.f32.mxu0 0.0
        %3362 = vmatmul.mubr.f32.gmra.mxu0 %v3118
        %v3363 = vpop.f32.mrf.mxu0
        %v3364 = vadd.f32 0.0, %v3363
        %v3365 = vpop.f32.mrf.mxu0
        %3366 = vmatprep.mubr.f32.mxu0 0.0
        %3367 = vmatmul.mubr.f32.gmra.mxu0 %v3121
        %v3368 = vpop.f32.mrf.mxu0
        %v3369 = vadd.f32 0.0, %v3368
        %v3370 = vpop.f32.mrf.mxu0
        %3371 = vmatprep.mubr.f32.mxu0 0.0
        %3372 = vmatmul.mubr.f32.gmra.mxu0 %v3124
        %v3373 = vpop.f32.mrf.mxu0
        %v3374 = vadd.f32 0.0, %v3373
        %v3375 = vpop.f32.mrf.mxu0
        %3376 = vmatprep.mubr.f32.mxu0 0.0
        %3377 = vmatmul.mubr.f32.gmra.mxu0 %v3127
        %v3378 = vpop.f32.mrf.mxu0
        %v3379 = vadd.f32 0.0, %v3378
        %v3380 = vpop.f32.mrf.mxu0
        %3381 = vmatprep.mubr.f32.mxu0 0.0
        %3382 = vmatmul.mubr.f32.gmra.mxu0 %v3130
        %v3383 = vpop.f32.mrf.mxu0
        %v3384 = vadd.f32 0.0, %v3383
        %v3385 = vpop.f32.mrf.mxu0
        %3386 = vmatprep.mubr.f32.mxu0 0.0
        %3387 = vmatmul.mubr.f32.gmra.mxu0 %v3133
        %v3388 = vpop.f32.mrf.mxu0
        %v3389 = vadd.f32 0.0, %v3388
        %v3390 = vpop.f32.mrf.mxu0
        %3391 = vmatprep.mubr.f32.mxu0 0.0
        %3392 = vmatmul.mubr.f32.gmra.mxu0 %v3136
        %v3393 = vpop.f32.mrf.mxu0
        %v3394 = vadd.f32 0.0, %v3393
        %v3395 = vpop.f32.mrf.mxu0
        %3396 = vmatprep.mubr.f32.mxu0 0.0
        %3397 = vmatmul.mubr.f32.gmra.mxu0 %v3139
        %v3398 = vpop.f32.mrf.mxu0
        %v3399 = vadd.f32 0.0, %v3398
        %v3400 = vpop.f32.mrf.mxu0
        %3401 = vmatprep.mubr.f32.mxu0 0.0
        %3402 = vmatmul.mubr.f32.gmra.mxu0 %v3142
        %v3403 = vpop.f32.mrf.mxu0
        %v3404 = vadd.f32 0.0, %v3403
        %v3405 = vpop.f32.mrf.mxu0
        %3406 = vmatprep.mubr.f32.mxu0 0.0
        %3407 = vmatmul.mubr.f32.gmra.mxu0 %v3145
        %v3408 = vpop.f32.mrf.mxu0
        %v3409 = vadd.f32 0.0, %v3408
        %v3410 = vpop.f32.mrf.mxu0
        %3411 = vmatprep.mubr.f32.mxu0 0.0
        %3412 = vmatmul.mubr.f32.gmra.mxu0 %v3148
        %v3413 = vpop.f32.mrf.mxu0
        %v3414 = vadd.f32 0.0, %v3413
        %v3415 = vpop.f32.mrf.mxu0
        %3416 = vmatprep.mubr.f32.mxu0 0.0
        %3417 = vmatmul.mubr.f32.gmra.mxu0 %v3151
        %v3418 = vpop.f32.mrf.mxu0
        %v3419 = vadd.f32 0.0, %v3418
        %v3420 = vpop.f32.mrf.mxu0
        %3421 = vmatprep.mubr.f32.mxu0 0.0
        %3422 = vmatmul.mubr.f32.gmra.mxu0 %v3154
        %v3423 = vpop.f32.mrf.mxu0
        %v3424 = vadd.f32 0.0, %v3423
        %v3425 = vpop.f32.mrf.mxu0
        %3426 = vmatprep.mubr.f32.mxu0 0.0
        %3427 = vmatmul.mubr.f32.gmra.mxu0 %v3157
        %v3428 = vpop.f32.mrf.mxu0
        %v3429 = vadd.f32 0.0, %v3428
        %v3430 = vpop.f32.mrf.mxu0
        %3431 = vmatprep.mubr.f32.mxu0 0.0
        %3432 = vmatmul.mubr.f32.gmra.mxu0 %v3160
        %v3433 = vpop.f32.mrf.mxu0
        %v3434 = vadd.f32 0.0, %v3433
        %v3435 = vpop.f32.mrf.mxu0
        %3436 = vmatprep.mubr.f32.mxu0 0.0
        %3437 = vmatmul.mubr.f32.gmra.mxu0 %v3163
        %v3438 = vpop.f32.mrf.mxu0
        %v3439 = vadd.f32 0.0, %v3438
        %v3440 = vpop.f32.mrf.mxu0
        %3441 = vmatprep.mubr.f32.mxu0 0.0
        %3442 = vmatmul.mubr.f32.gmra.mxu0 %v3166
        %v3443 = vpop.f32.mrf.mxu0
        %v3444 = vadd.f32 0.0, %v3443
        %v3445 = vpop.f32.mrf.mxu0
        %3446 = vmatprep.mubr.f32.mxu0 0.0
        %3447 = vmatmul.mubr.f32.gmra.mxu0 %v3169
        %v3448 = vpop.f32.mrf.mxu0
        %v3449 = vadd.f32 0.0, %v3448
        %v3450 = vpop.f32.mrf.mxu0
        %3451 = vmatprep.mubr.f32.mxu0 0.0
        %3452 = vmatmul.mubr.f32.gmra.mxu0 %v3172
        %v3453 = vpop.f32.mrf.mxu0
        %v3454 = vadd.f32 0.0, %v3453
        %v3455 = vpop.f32.mrf.mxu0
        %3456 = vmatprep.mubr.f32.mxu0 0.0
        %3457 = vmatmul.mubr.f32.gmra.mxu0 %v3175
        %v3458 = vpop.f32.mrf.mxu0
        %v3459 = vadd.f32 0.0, %v3458
        %v3460 = vpop.f32.mrf.mxu0
        %3461 = vmatprep.mubr.f32.mxu0 0.0
        %3462 = vmatmul.mubr.f32.gmra.mxu0 %v3178
        %v3463 = vpop.f32.mrf.mxu0
        %v3464 = vadd.f32 0.0, %v3463
        %v3465 = vpop.f32.mrf.mxu0
        %3466 = vmatprep.mubr.f32.mxu0 0.0
        %3467 = vmatmul.mubr.f32.gmra.mxu0 %v3181
        %v3468 = vpop.f32.mrf.mxu0
        %v3469 = vadd.f32 0.0, %v3468
        %v3470 = vpop.f32.mrf.mxu0
        %3471 = vmatprep.mubr.f32.mxu0 0.0
        %3472 = vmatmul.mubr.f32.gmra.mxu0 %v3184
        %v3473 = vpop.f32.mrf.mxu0
        %v3474 = vadd.f32 0.0, %v3473
        %v3475 = vpop.f32.mrf.mxu0
        %3476 = vmatprep.mubr.f32.mxu0 0.0
        %3477 = vmatmul.mubr.f32.gmra.mxu0 %v3187
        %v3478 = vpop.f32.mrf.mxu0
        %v3479 = vadd.f32 0.0, %v3478
        %v3480 = vpop.f32.mrf.mxu0
        %3481 = vmatprep.mubr.f32.mxu0 0.0
        %3482 = vmatmul.mubr.f32.gmra.mxu0 %v3190
        %v3483 = vpop.f32.mrf.mxu0
        %v3484 = vadd.f32 0.0, %v3483
        %v3485 = vpop.f32.mrf.mxu0
        %3486 = vmatprep.mubr.f32.mxu0 0.0
        %3487 = vmatmul.mubr.f32.gmra.mxu0 %v3193
        %v3488 = vpop.f32.mrf.mxu0
        %v3489 = vadd.f32 0.0, %v3488
        %v3490 = vpop.f32.mrf.mxu0
        %3491 = vmatprep.mubr.f32.mxu0 0.0
        %3492 = vmatmul.mubr.f32.gmra.mxu0 %v3196
        %v3493 = vpop.f32.mrf.mxu0
        %v3494 = vadd.f32 0.0, %v3493
        %v3495 = vpop.f32.mrf.mxu0
        %3496 = vmatprep.mubr.f32.mxu0 0.0
        %3497 = vmatmul.mubr.f32.gmra.mxu0 %v3199
        %v3498 = vpop.f32.mrf.mxu0
        %v3499 = vadd.f32 0.0, %v3498
        %v3500 = vpop.f32.mrf.mxu0
        %3501 = vmatprep.mubr.f32.mxu0 0.0
        %3502 = vmatmul.mubr.f32.gmra.mxu0 %v3202
        %v3503 = vpop.f32.mrf.mxu0
        %v3504 = vadd.f32 0.0, %v3503
        %v3505 = vpop.f32.mrf.mxu0
        %3506 = vmatprep.mubr.f32.mxu0 0.0
        %3507 = vmatmul.mubr.f32.gmra.mxu0 %v3205
        %v3508 = vpop.f32.mrf.mxu0
        %v3509 = vadd.f32 0.0, %v3508
        %v3510 = vpop.f32.mrf.mxu0
        %3511 = vmatprep.mubr.f32.mxu0 0.0
        %3512 = vmatmul.mubr.f32.gmra.mxu0 %v3208
        %v3513 = vpop.f32.mrf.mxu0
        %v3514 = vadd.f32 0.0, %v3513
        %v3515 = vpop.f32.mrf.mxu0
        %3516 = vmatprep.mubr.f32.mxu0 0.0
        %3517 = vmatmul.mubr.f32.gmra.mxu0 %v3211
        %v3518 = vpop.f32.mrf.mxu0
        %v3519 = vadd.f32 0.0, %v3518
        %v3520 = vpop.f32.mrf.mxu0
        %3521 = vmatprep.mubr.f32.mxu0 0.0
        %3522 = vmatmul.mubr.f32.gmra.mxu0 %v3214
        %v3523 = vpop.f32.mrf.mxu0
        %v3524 = vadd.f32 0.0, %v3523
        %v3525 = vpop.f32.mrf.mxu0
        %3526 = vmatprep.mubr.f32.mxu0 0.0
        %3527 = vmatmul.mubr.f32.gmra.mxu0 %v3217
        %v3528 = vpop.f32.mrf.mxu0
        %v3529 = vadd.f32 0.0, %v3528
        %v3530 = vpop.f32.mrf.mxu0
        %3531 = vmatprep.mubr.f32.mxu0 0.0
        %3532 = vmatmul.mubr.f32.gmra.mxu0 %v3220
        %v3533 = vpop.f32.mrf.mxu0
        %v3534 = vadd.f32 0.0, %v3533
        %v3535 = vpop.f32.mrf.mxu0
        %3536 = vmatprep.mubr.f32.mxu0 0.0
        %3537 = vmatmul.mubr.f32.gmra.mxu0 %v3223
        %v3538 = vpop.f32.mrf.mxu0
        %v3539 = vadd.f32 0.0, %v3538
        %v3540 = vpop.f32.mrf.mxu0
        %3541 = vmatprep.mubr.f32.mxu0 0.0
        %3542 = vmatmul.mubr.f32.gmra.mxu0 %v3226
        %v3543 = vpop.f32.mrf.mxu0
        %v3544 = vadd.f32 0.0, %v3543
        %v3545 = vpop.f32.mrf.mxu0
        %3546 = vmatprep.mubr.f32.mxu0 0.0
        %3547 = vmatmul.mubr.f32.gmra.mxu0 %v3229
        %v3548 = vpop.f32.mrf.mxu0
        %v3549 = vadd.f32 0.0, %v3548
        %v3550 = vpop.f32.mrf.mxu0
        %3551 = vmatprep.mubr.f32.mxu0 0.0
        %3552 = vmatmul.mubr.f32.gmra.mxu0 %v3232
        %v3553 = vpop.f32.mrf.mxu0
        %v3554 = vadd.f32 0.0, %v3553
        %v3555 = vpop.f32.mrf.mxu0
        %3556 = vmatprep.mubr.f32.mxu0 0.0
        %3557 = vmatmul.mubr.f32.gmra.mxu0 %v3235
        %v3558 = vpop.f32.mrf.mxu0
        %v3559 = vadd.f32 0.0, %v3558
        %v3560 = vpop.f32.mrf.mxu0
        %3561 = vmatprep.mubr.f32.mxu0 0.0
        %3562 = vmatmul.mubr.f32.gmra.mxu0 %v3238
        %v3563 = vpop.f32.mrf.mxu0
        %v3564 = vadd.f32 0.0, %v3563
        %v3565 = vpop.f32.mrf.mxu0
        %3566 = vmatprep.mubr.f32.mxu0 0.0
        %3567 = vmatmul.mubr.f32.gmra.mxu0 %v3241
        %v3568 = vpop.f32.mrf.mxu0
        %v3569 = vadd.f32 0.0, %v3568
        %v3570 = vpop.f32.mrf.mxu0
        %3571 = vmatprep.mubr.f32.mxu0 0.0
        %3572 = vmatmul.mubr.f32.gmra.mxu0 %v3244
        %v3573 = vpop.f32.mrf.mxu0
        %v3574 = vadd.f32 0.0, %v3573
        %v3575 = vpop.f32.mrf.mxu0
        %3576 = vmatprep.mubr.f32.mxu0 0.0
        %3577 = vmatmul.mubr.f32.gmra.mxu0 %v3247
        %v3578 = vpop.f32.mrf.mxu0
        %v3579 = vadd.f32 0.0, %v3578
        %v3580 = vpop.f32.mrf.mxu0
        %3581 = vmatprep.mubr.f32.mxu0 0.0
        %3582 = vmatmul.mubr.f32.gmra.mxu0 %v3250
        %v3583 = vpop.f32.mrf.mxu0
        %v3584 = vadd.f32 0.0, %v3583
        %v3585 = vpop.f32.mrf.mxu0
        %3586 = vmatprep.mubr.f32.mxu0 0.0
        %3587 = vmatmul.mubr.f32.gmra.mxu0 %v3253
        %v3588 = vpop.f32.mrf.mxu0
        %v3589 = vadd.f32 0.0, %v3588
        %v3590 = vpop.f32.mrf.mxu0
        %3591 = vmatprep.mubr.f32.mxu0 0.0
        %3592 = vmatmul.mubr.f32.gmra.mxu0 %v3256
        %v3593 = vpop.f32.mrf.mxu0
        %v3594 = vadd.f32 0.0, %v3593
        %v3595 = vpop.f32.mrf.mxu0
        %3596 = vmatprep.mubr.f32.mxu0 0.0
        %3597 = vmatmul.mubr.f32.gmra.mxu0 %v3259
        %v3598 = vpop.f32.mrf.mxu0
        %v3599 = vadd.f32 0.0, %v3598
        %v3600 = vpop.f32.mrf.mxu0
        %3601 = vmatprep.mubr.f32.mxu0 0.0
        %3602 = vmatmul.mubr.f32.gmra.mxu0 %v3262
        %v3603 = vpop.f32.mrf.mxu0
        %v3604 = vadd.f32 0.0, %v3603
        %v3605 = vpop.f32.mrf.mxu0
        %3606 = vmatprep.mubr.f32.mxu0 0.0
        %3607 = vmatmul.mubr.f32.gmra.mxu0 %v3265
        %v3608 = vpop.f32.mrf.mxu0
        %v3609 = vadd.f32 0.0, %v3608
        %v3610 = vpop.f32.mrf.mxu0
        %3611 = vmatprep.mubr.f32.mxu0 0.0
        %3612 = vmatmul.mubr.f32.gmra.mxu0 %v3268
        %v3613 = vpop.f32.mrf.mxu0
        %v3614 = vadd.f32 0.0, %v3613
        %v3615 = vpop.f32.mrf.mxu0
        %3616 = vmatprep.mubr.f32.mxu0 0.0
        %3617 = vmatmul.mubr.f32.gmra.mxu0 %v3271
        %v3618 = vpop.f32.mrf.mxu0
        %v3619 = vadd.f32 0.0, %v3618
        %v3620 = vpop.f32.mrf.mxu0
        %3621 = vmatprep.mubr.f32.mxu0 0.0
        %3622 = vmatmul.mubr.f32.gmra.mxu0 %v3274
        %v3623 = vpop.f32.mrf.mxu0
        %v3624 = vadd.f32 0.0, %v3623
        %v3625 = vpop.f32.mrf.mxu0
        %3626 = vmatprep.mubr.f32.mxu0 0.0
        %3627 = vmatmul.mubr.f32.gmra.mxu0 %v3277
        %v3628 = vpop.f32.mrf.mxu0
        %v3629 = vadd.f32 0.0, %v3628
        %v3630 = vpop.f32.mrf.mxu0
        %3631 = vmatprep.mubr.f32.mxu0 0.0
        %3632 = vmatmul.mubr.f32.gmra.mxu0 %v3280
        %v3633 = vpop.f32.mrf.mxu0
        %v3634 = vadd.f32 0.0, %v3633
        %v3635 = vpop.f32.mrf.mxu0
        %3636 = vmatprep.mubr.f32.mxu0 0.0
        %3637 = vmatmul.mubr.f32.gmra.mxu0 %v3283
        %v3638 = vpop.f32.mrf.mxu0
        %v3639 = vadd.f32 0.0, %v3638
        %v3640 = vpop.f32.mrf.mxu0
        %3641 = vmatprep.mubr.f32.mxu0 0.0
        %3642 = vmatmul.mubr.f32.gmra.mxu0 %v3286
        %v3643 = vpop.f32.mrf.mxu0
        %v3644 = vadd.f32 0.0, %v3643
        %v3645 = vpop.f32.mrf.mxu0
        %3646 = vmatprep.mubr.f32.mxu0 0.0
        %3647 = vmatmul.mubr.f32.gmra.mxu0 %v3289
        %v3648 = vpop.f32.mrf.mxu0
        %v3649 = vadd.f32 0.0, %v3648
        %v3650 = vpop.f32.mrf.mxu0
        %3651 = vmatprep.mubr.f32.mxu0 0.0
        %3652 = vmatmul.mubr.f32.gmra.mxu0 %v3292
        %v3653 = vpop.f32.mrf.mxu0
        %v3654 = vadd.f32 0.0, %v3653
        %v3655 = vpop.f32.mrf.mxu0
        %3656 = vmatprep.mubr.f32.mxu0 0.0
        %3657 = vmatmul.mubr.f32.gmra.mxu0 %v3295
        %v3658 = vpop.f32.mrf.mxu0
        %v3659 = vadd.f32 0.0, %v3658
        %v3660 = vpop.f32.mrf.mxu0
        %3661 = vdwg.mxu0
        %s3662 = scalar_lea.vmem [#allocation6], 1024
        %v3663 = vld [vmem:[%s3662] sm:$0xff]
        %v3664 = vld [vmem:[%s3662 + $0x8] sm:$0xff]
        %v3665 = vld [vmem:[%s3662 + $0x10] sm:$0xff]
        %v3666 = vld [vmem:[%s3662 + $0x18] sm:$0xff]
        %v3667 = vld [vmem:[%s3662 + $0x20] sm:$0xff]
        %v3668 = vld [vmem:[%s3662 + $0x28] sm:$0xff]
        %v3669 = vld [vmem:[%s3662 + $0x30] sm:$0xff]
        %v3670 = vld [vmem:[%s3662 + $0x38] sm:$0xff]
        %s3671 = scalar_lea.vmem [#allocation6], 1088
        %v3672 = vld [vmem:[%s3671] sm:$0xff]
        %v3673 = vld [vmem:[%s3671 + $0x8] sm:$0xff]
        %v3674 = vld [vmem:[%s3671 + $0x10] sm:$0xff]
        %v3675 = vld [vmem:[%s3671 + $0x18] sm:$0xff]
        %v3676 = vld [vmem:[%s3671 + $0x20] sm:$0xff]
        %v3677 = vld [vmem:[%s3671 + $0x28] sm:$0xff]
        %v3678 = vld [vmem:[%s3671 + $0x30] sm:$0xff]
        %v3679 = vld [vmem:[%s3671 + $0x38] sm:$0xff]
        %v3681 = vsel %vm431, %v3384, 0
        %v3684 = vsel %vm431, %v3389, 0
        %v3687 = vsel %vm431, %v3394, 0
        %v3690 = vsel %vm431, %v3399, 0
        %3692 = vmatprep.subr.mxu0 0.0
        %3693 = vmatpush1.msra.mxu0 0.0
        %3694 = vmatprep.subr.mxu0 0.0
        %3695 = vmatpush1.msra.mxu0 0.0
        %3696 = vmatprep.subr.mxu0 0.0
        %3697 = vmatpush1.msra.mxu0 0.0
        %3698 = vmatprep.subr.mxu0 0.0
        %3699 = vmatpush1.msra.mxu0 0.0
        %3700 = vmatprep.subr.mxu0 0.0
        %3701 = vmatpush1.msra.mxu0 0.0
        %3702 = vmatprep.subr.mxu0 0.0
        %3703 = vmatpush1.msra.mxu0 0.0
        %3704 = vmatprep.subr.mxu0 0.0
        %3705 = vmatpush1.msra.mxu0 0.0
        %3706 = vmatprep.subr.mxu0 0.0
        %3707 = vmatpush1.msra.mxu0 0.0
        %3708 = vmatprep.subr.mxu0 0.0
        %3709 = vmatpush1.msra.mxu0 %v3679
        %3710 = vmatprep.subr.mxu0 0.0
        %3711 = vmatpush1.msra.mxu0 %v3678
        %3712 = vmatprep.subr.mxu0 0.0
        %3713 = vmatpush1.msra.mxu0 %v3677
        %3714 = vmatprep.subr.mxu0 0.0
        %3715 = vmatpush1.msra.mxu0 %v3676
        %3716 = vmatprep.subr.mxu0 0.0
        %3717 = vmatpush1.msra.mxu0 %v3675
        %3718 = vmatprep.subr.mxu0 0.0
        %3719 = vmatpush1.msra.mxu0 %v3674
        %3720 = vmatprep.subr.mxu0 0.0
        %3721 = vmatpush1.msra.mxu0 %v3673
        %3722 = vmatprep.subr.mxu0 0.0
        %3723 = vmatpush1.msra.mxu0 %v3672
        %3724 = vmatprep.subr.mxu0 0.0
        %3725 = vmatpush2.msra.mxu0 0.0
        %3726 = vmatprep.subr.mxu0 0.0
        %3727 = vmatpush2.msra.mxu0 0.0
        %3728 = vmatprep.subr.mxu0 0.0
        %3729 = vmatpush2.msra.mxu0 0.0
        %3730 = vmatprep.subr.mxu0 0.0
        %3731 = vmatpush2.msra.mxu0 0.0
        %3732 = vmatprep.subr.mxu0 0.0
        %3733 = vmatpush2.msra.mxu0 0.0
        %3734 = vmatprep.subr.mxu0 0.0
        %3735 = vmatpush2.msra.mxu0 0.0
        %3736 = vmatprep.subr.mxu0 0.0
        %3737 = vmatpush2.msra.mxu0 0.0
        %3738 = vmatprep.subr.mxu0 0.0
        %3739 = vmatpush2.msra.mxu0 0.0
        %3740 = vmatprep.subr.mxu0 0.0
        %3741 = vmatpush2.msra.mxu0 0.0
        %3742 = vmatprep.subr.mxu0 0.0
        %3743 = vmatpush2.msra.mxu0 0.0
        %3744 = vmatprep.subr.mxu0 0.0
        %3745 = vmatpush2.msra.mxu0 0.0
        %3746 = vmatprep.subr.mxu0 0.0
        %3747 = vmatpush2.msra.mxu0 0.0
        %3748 = vmatprep.subr.mxu0 0.0
        %3749 = vmatpush2.msra.mxu0 0.0
        %3750 = vmatprep.subr.mxu0 0.0
        %3751 = vmatpush2.msra.mxu0 0.0
        %3752 = vmatprep.subr.mxu0 0.0
        %3753 = vmatpush2.msra.mxu0 0.0
        %3754 = vmatprep.subr.mxu0 0.0
        %3755 = vmatpush2.msra.mxu0 0.0
        %3756 = vmatprep.mubr.f32.mxu0 0.0
        %3757 = vmatmul.mubr.f32.gmra.mxu0 %v3681
        %v3758 = vpop.f32.mrf.mxu0
        %v3759 = vadd.f32 0.0, %v3758
        %v3760 = vpop.f32.mrf.mxu0
        %3761 = vmatprep.mubr.f32.mxu0 0.0
        %3762 = vmatmul.mubr.f32.gmra.mxu0 %v3684
        %v3763 = vpop.f32.mrf.mxu0
        %v3764 = vadd.f32 0.0, %v3763
        %v3765 = vpop.f32.mrf.mxu0
        %3766 = vmatprep.mubr.f32.mxu0 0.0
        %3767 = vmatmul.mubr.f32.gmra.mxu0 %v3687
        %v3768 = vpop.f32.mrf.mxu0
        %v3769 = vadd.f32 0.0, %v3768
        %v3770 = vpop.f32.mrf.mxu0
        %3771 = vmatprep.mubr.f32.mxu0 0.0
        %3772 = vmatmul.mubr.f32.gmra.mxu0 %v3690
        %v3773 = vpop.f32.mrf.mxu0
        %v3774 = vadd.f32 0.0, %v3773
        %v3775 = vpop.f32.mrf.mxu0
        %3776 = vdwg.mxu0
        %v3778 = vsel %vm431, %v3364, 0
        %v3781 = vsel %vm431, %v3369, 0
        %v3784 = vsel %vm431, %v3374, 0
        %v3787 = vsel %vm431, %v3379, 0
        %3789 = vmatprep.subr.mxu0 0.0
        %3790 = vmatpush1.msra.mxu0 0.0
        %3791 = vmatprep.subr.mxu0 0.0
        %3792 = vmatpush1.msra.mxu0 0.0
        %3793 = vmatprep.subr.mxu0 0.0
        %3794 = vmatpush1.msra.mxu0 0.0
        %3795 = vmatprep.subr.mxu0 0.0
        %3796 = vmatpush1.msra.mxu0 0.0
        %3797 = vmatprep.subr.mxu0 0.0
        %3798 = vmatpush1.msra.mxu0 0.0
        %3799 = vmatprep.subr.mxu0 0.0
        %3800 = vmatpush1.msra.mxu0 0.0
        %3801 = vmatprep.subr.mxu0 0.0
        %3802 = vmatpush1.msra.mxu0 0.0
        %3803 = vmatprep.subr.mxu0 0.0
        %3804 = vmatpush1.msra.mxu0 0.0
        %3805 = vmatprep.subr.mxu0 0.0
        %3806 = vmatpush1.msra.mxu0 %v3670
        %3807 = vmatprep.subr.mxu0 0.0
        %3808 = vmatpush1.msra.mxu0 %v3669
        %3809 = vmatprep.subr.mxu0 0.0
        %3810 = vmatpush1.msra.mxu0 %v3668
        %3811 = vmatprep.subr.mxu0 0.0
        %3812 = vmatpush1.msra.mxu0 %v3667
        %3813 = vmatprep.subr.mxu0 0.0
        %3814 = vmatpush1.msra.mxu0 %v3666
        %3815 = vmatprep.subr.mxu0 0.0
        %3816 = vmatpush1.msra.mxu0 %v3665
        %3817 = vmatprep.subr.mxu0 0.0
        %3818 = vmatpush1.msra.mxu0 %v3664
        %3819 = vmatprep.subr.mxu0 0.0
        %3820 = vmatpush1.msra.mxu0 %v3663
        %3821 = vmatprep.subr.mxu0 0.0
        %3822 = vmatpush2.msra.mxu0 0.0
        %3823 = vmatprep.subr.mxu0 0.0
        %3824 = vmatpush2.msra.mxu0 0.0
        %3825 = vmatprep.subr.mxu0 0.0
        %3826 = vmatpush2.msra.mxu0 0.0
        %3827 = vmatprep.subr.mxu0 0.0
        %3828 = vmatpush2.msra.mxu0 0.0
        %3829 = vmatprep.subr.mxu0 0.0
        %3830 = vmatpush2.msra.mxu0 0.0
        %3831 = vmatprep.subr.mxu0 0.0
        %3832 = vmatpush2.msra.mxu0 0.0
        %3833 = vmatprep.subr.mxu0 0.0
        %3834 = vmatpush2.msra.mxu0 0.0
        %3835 = vmatprep.subr.mxu0 0.0
        %3836 = vmatpush2.msra.mxu0 0.0
        %3837 = vmatprep.subr.mxu0 0.0
        %3838 = vmatpush2.msra.mxu0 0.0
        %3839 = vmatprep.subr.mxu0 0.0
        %3840 = vmatpush2.msra.mxu0 0.0
        %3841 = vmatprep.subr.mxu0 0.0
        %3842 = vmatpush2.msra.mxu0 0.0
        %3843 = vmatprep.subr.mxu0 0.0
        %3844 = vmatpush2.msra.mxu0 0.0
        %3845 = vmatprep.subr.mxu0 0.0
        %3846 = vmatpush2.msra.mxu0 0.0
        %3847 = vmatprep.subr.mxu0 0.0
        %3848 = vmatpush2.msra.mxu0 0.0
        %3849 = vmatprep.subr.mxu0 0.0
        %3850 = vmatpush2.msra.mxu0 0.0
        %3851 = vmatprep.subr.mxu0 0.0
        %3852 = vmatpush2.msra.mxu0 0.0
        %3853 = vmatprep.mubr.f32.mxu0 0.0
        %3854 = vmatmul.mubr.f32.gmra.mxu0 %v3778
        %v3855 = vpop.f32.mrf.mxu0
        %v3856 = vadd.f32 %v3759, %v3855
        %v3857 = vpop.f32.mrf.mxu0
        %3858 = vmatprep.mubr.f32.mxu0 0.0
        %3859 = vmatmul.mubr.f32.gmra.mxu0 %v3781
        %v3860 = vpop.f32.mrf.mxu0
        %v3861 = vadd.f32 %v3764, %v3860
        %v3862 = vpop.f32.mrf.mxu0
        %3863 = vmatprep.mubr.f32.mxu0 0.0
        %3864 = vmatmul.mubr.f32.gmra.mxu0 %v3784
        %v3865 = vpop.f32.mrf.mxu0
        %v3866 = vadd.f32 %v3769, %v3865
        %v3867 = vpop.f32.mrf.mxu0
        %3868 = vmatprep.mubr.f32.mxu0 0.0
        %3869 = vmatmul.mubr.f32.gmra.mxu0 %v3787
        %v3870 = vpop.f32.mrf.mxu0
        %v3871 = vadd.f32 %v3774, %v3870
        %v3872 = vpop.f32.mrf.mxu0
        %3873 = vdwg.mxu0
        %s3874 = scalar_lea.vmem [#allocation6], 1152
        %v3875 = vld [vmem:[%s3874] sm:$0xff]
        %v3876 = vld [vmem:[%s3874 + $0x8] sm:$0xff]
        %v3877 = vld [vmem:[%s3874 + $0x10] sm:$0xff]
        %v3878 = vld [vmem:[%s3874 + $0x18] sm:$0xff]
        %v3879 = vld [vmem:[%s3874 + $0x20] sm:$0xff]
        %v3880 = vld [vmem:[%s3874 + $0x28] sm:$0xff]
        %v3881 = vld [vmem:[%s3874 + $0x30] sm:$0xff]
        %v3882 = vld [vmem:[%s3874 + $0x38] sm:$0xff]
        %v3884 = vsel %vm431, %v3404, 0
        %v3887 = vsel %vm431, %v3409, 0
        %v3890 = vsel %vm431, %v3414, 0
        %v3893 = vsel %vm431, %v3419, 0
        %3895 = vmatprep.subr.mxu0 0.0
        %3896 = vmatpush1.msra.mxu0 0.0
        %3897 = vmatprep.subr.mxu0 0.0
        %3898 = vmatpush1.msra.mxu0 0.0
        %3899 = vmatprep.subr.mxu0 0.0
        %3900 = vmatpush1.msra.mxu0 0.0
        %3901 = vmatprep.subr.mxu0 0.0
        %3902 = vmatpush1.msra.mxu0 0.0
        %3903 = vmatprep.subr.mxu0 0.0
        %3904 = vmatpush1.msra.mxu0 0.0
        %3905 = vmatprep.subr.mxu0 0.0
        %3906 = vmatpush1.msra.mxu0 0.0
        %3907 = vmatprep.subr.mxu0 0.0
        %3908 = vmatpush1.msra.mxu0 0.0
        %3909 = vmatprep.subr.mxu0 0.0
        %3910 = vmatpush1.msra.mxu0 0.0
        %3911 = vmatprep.subr.mxu0 0.0
        %3912 = vmatpush1.msra.mxu0 %v3882
        %3913 = vmatprep.subr.mxu0 0.0
        %3914 = vmatpush1.msra.mxu0 %v3881
        %3915 = vmatprep.subr.mxu0 0.0
        %3916 = vmatpush1.msra.mxu0 %v3880
        %3917 = vmatprep.subr.mxu0 0.0
        %3918 = vmatpush1.msra.mxu0 %v3879
        %3919 = vmatprep.subr.mxu0 0.0
        %3920 = vmatpush1.msra.mxu0 %v3878
        %3921 = vmatprep.subr.mxu0 0.0
        %3922 = vmatpush1.msra.mxu0 %v3877
        %3923 = vmatprep.subr.mxu0 0.0
        %3924 = vmatpush1.msra.mxu0 %v3876
        %3925 = vmatprep.subr.mxu0 0.0
        %3926 = vmatpush1.msra.mxu0 %v3875
        %3927 = vmatprep.subr.mxu0 0.0
        %3928 = vmatpush2.msra.mxu0 0.0
        %3929 = vmatprep.subr.mxu0 0.0
        %3930 = vmatpush2.msra.mxu0 0.0
        %3931 = vmatprep.subr.mxu0 0.0
        %3932 = vmatpush2.msra.mxu0 0.0
        %3933 = vmatprep.subr.mxu0 0.0
        %3934 = vmatpush2.msra.mxu0 0.0
        %3935 = vmatprep.subr.mxu0 0.0
        %3936 = vmatpush2.msra.mxu0 0.0
        %3937 = vmatprep.subr.mxu0 0.0
        %3938 = vmatpush2.msra.mxu0 0.0
        %3939 = vmatprep.subr.mxu0 0.0
        %3940 = vmatpush2.msra.mxu0 0.0
        %3941 = vmatprep.subr.mxu0 0.0
        %3942 = vmatpush2.msra.mxu0 0.0
        %3943 = vmatprep.subr.mxu0 0.0
        %3944 = vmatpush2.msra.mxu0 0.0
        %3945 = vmatprep.subr.mxu0 0.0
        %3946 = vmatpush2.msra.mxu0 0.0
        %3947 = vmatprep.subr.mxu0 0.0
        %3948 = vmatpush2.msra.mxu0 0.0
        %3949 = vmatprep.subr.mxu0 0.0
        %3950 = vmatpush2.msra.mxu0 0.0
        %3951 = vmatprep.subr.mxu0 0.0
        %3952 = vmatpush2.msra.mxu0 0.0
        %3953 = vmatprep.subr.mxu0 0.0
        %3954 = vmatpush2.msra.mxu0 0.0
        %3955 = vmatprep.subr.mxu0 0.0
        %3956 = vmatpush2.msra.mxu0 0.0
        %3957 = vmatprep.subr.mxu0 0.0
        %3958 = vmatpush2.msra.mxu0 0.0
        %3959 = vmatprep.mubr.f32.mxu0 0.0
        %3960 = vmatmul.mubr.f32.gmra.mxu0 %v3884
        %v3961 = vpop.f32.mrf.mxu0
        %v3962 = vadd.f32 0.0, %v3961
        %v3963 = vpop.f32.mrf.mxu0
        %3964 = vmatprep.mubr.f32.mxu0 0.0
        %3965 = vmatmul.mubr.f32.gmra.mxu0 %v3887
        %v3966 = vpop.f32.mrf.mxu0
        %v3967 = vadd.f32 0.0, %v3966
        %v3968 = vpop.f32.mrf.mxu0
        %3969 = vmatprep.mubr.f32.mxu0 0.0
        %3970 = vmatmul.mubr.f32.gmra.mxu0 %v3890
        %v3971 = vpop.f32.mrf.mxu0
        %v3972 = vadd.f32 0.0, %v3971
        %v3973 = vpop.f32.mrf.mxu0
        %3974 = vmatprep.mubr.f32.mxu0 0.0
        %3975 = vmatmul.mubr.f32.gmra.mxu0 %v3893
        %v3976 = vpop.f32.mrf.mxu0
        %v3977 = vadd.f32 0.0, %v3976
        %v3978 = vpop.f32.mrf.mxu0
        %3979 = vdwg.mxu0
        %v3980 = vadd.f32 %v3856, %v3962
        %v3981 = vadd.f32 %v3861, %v3967
        %v3982 = vadd.f32 %v3866, %v3972
        %v3983 = vadd.f32 %v3871, %v3977
        %s3984 = scalar_lea.vmem [#allocation6], 1216
        %v3985 = vld [vmem:[%s3984] sm:$0xff]
        %v3986 = vld [vmem:[%s3984 + $0x8] sm:$0xff]
        %v3987 = vld [vmem:[%s3984 + $0x10] sm:$0xff]
        %v3988 = vld [vmem:[%s3984 + $0x18] sm:$0xff]
        %v3989 = vld [vmem:[%s3984 + $0x20] sm:$0xff]
        %v3990 = vld [vmem:[%s3984 + $0x28] sm:$0xff]
        %v3991 = vld [vmem:[%s3984 + $0x30] sm:$0xff]
        %v3992 = vld [vmem:[%s3984 + $0x38] sm:$0xff]
        %v3994 = vsel %vm431, %v3424, 0
        %v3997 = vsel %vm431, %v3429, 0
        %v4000 = vsel %vm431, %v3434, 0
        %v4003 = vsel %vm431, %v3439, 0
        %4005 = vmatprep.subr.mxu0 0.0
        %4006 = vmatpush1.msra.mxu0 0.0
        %4007 = vmatprep.subr.mxu0 0.0
        %4008 = vmatpush1.msra.mxu0 0.0
        %4009 = vmatprep.subr.mxu0 0.0
        %4010 = vmatpush1.msra.mxu0 0.0
        %4011 = vmatprep.subr.mxu0 0.0
        %4012 = vmatpush1.msra.mxu0 0.0
        %4013 = vmatprep.subr.mxu0 0.0
        %4014 = vmatpush1.msra.mxu0 0.0
        %4015 = vmatprep.subr.mxu0 0.0
        %4016 = vmatpush1.msra.mxu0 0.0
        %4017 = vmatprep.subr.mxu0 0.0
        %4018 = vmatpush1.msra.mxu0 0.0
        %4019 = vmatprep.subr.mxu0 0.0
        %4020 = vmatpush1.msra.mxu0 0.0
        %4021 = vmatprep.subr.mxu0 0.0
        %4022 = vmatpush1.msra.mxu0 %v3992
        %4023 = vmatprep.subr.mxu0 0.0
        %4024 = vmatpush1.msra.mxu0 %v3991
        %4025 = vmatprep.subr.mxu0 0.0
        %4026 = vmatpush1.msra.mxu0 %v3990
        %4027 = vmatprep.subr.mxu0 0.0
        %4028 = vmatpush1.msra.mxu0 %v3989
        %4029 = vmatprep.subr.mxu0 0.0
        %4030 = vmatpush1.msra.mxu0 %v3988
        %4031 = vmatprep.subr.mxu0 0.0
        %4032 = vmatpush1.msra.mxu0 %v3987
        %4033 = vmatprep.subr.mxu0 0.0
        %4034 = vmatpush1.msra.mxu0 %v3986
        %4035 = vmatprep.subr.mxu0 0.0
        %4036 = vmatpush1.msra.mxu0 %v3985
        %4037 = vmatprep.subr.mxu0 0.0
        %4038 = vmatpush2.msra.mxu0 0.0
        %4039 = vmatprep.subr.mxu0 0.0
        %4040 = vmatpush2.msra.mxu0 0.0
        %4041 = vmatprep.subr.mxu0 0.0
        %4042 = vmatpush2.msra.mxu0 0.0
        %4043 = vmatprep.subr.mxu0 0.0
        %4044 = vmatpush2.msra.mxu0 0.0
        %4045 = vmatprep.subr.mxu0 0.0
        %4046 = vmatpush2.msra.mxu0 0.0
        %4047 = vmatprep.subr.mxu0 0.0
        %4048 = vmatpush2.msra.mxu0 0.0
        %4049 = vmatprep.subr.mxu0 0.0
        %4050 = vmatpush2.msra.mxu0 0.0
        %4051 = vmatprep.subr.mxu0 0.0
        %4052 = vmatpush2.msra.mxu0 0.0
        %4053 = vmatprep.subr.mxu0 0.0
        %4054 = vmatpush2.msra.mxu0 0.0
        %4055 = vmatprep.subr.mxu0 0.0
        %4056 = vmatpush2.msra.mxu0 0.0
        %4057 = vmatprep.subr.mxu0 0.0
        %4058 = vmatpush2.msra.mxu0 0.0
        %4059 = vmatprep.subr.mxu0 0.0
        %4060 = vmatpush2.msra.mxu0 0.0
        %4061 = vmatprep.subr.mxu0 0.0
        %4062 = vmatpush2.msra.mxu0 0.0
        %4063 = vmatprep.subr.mxu0 0.0
        %4064 = vmatpush2.msra.mxu0 0.0
        %4065 = vmatprep.subr.mxu0 0.0
        %4066 = vmatpush2.msra.mxu0 0.0
        %4067 = vmatprep.subr.mxu0 0.0
        %4068 = vmatpush2.msra.mxu0 0.0
        %4069 = vmatprep.mubr.f32.mxu0 0.0
        %4070 = vmatmul.mubr.f32.gmra.mxu0 %v3994
        %v4071 = vpop.f32.mrf.mxu0
        %v4072 = vadd.f32 0.0, %v4071
        %v4073 = vpop.f32.mrf.mxu0
        %4074 = vmatprep.mubr.f32.mxu0 0.0
        %4075 = vmatmul.mubr.f32.gmra.mxu0 %v3997
        %v4076 = vpop.f32.mrf.mxu0
        %v4077 = vadd.f32 0.0, %v4076
        %v4078 = vpop.f32.mrf.mxu0
        %4079 = vmatprep.mubr.f32.mxu0 0.0
        %4080 = vmatmul.mubr.f32.gmra.mxu0 %v4000
        %v4081 = vpop.f32.mrf.mxu0
        %v4082 = vadd.f32 0.0, %v4081
        %v4083 = vpop.f32.mrf.mxu0
        %4084 = vmatprep.mubr.f32.mxu0 0.0
        %4085 = vmatmul.mubr.f32.gmra.mxu0 %v4003
        %v4086 = vpop.f32.mrf.mxu0
        %v4087 = vadd.f32 0.0, %v4086
        %v4088 = vpop.f32.mrf.mxu0
        %4089 = vdwg.mxu0
        %v4090 = vadd.f32 %v3980, %v4072
        %v4091 = vadd.f32 %v3981, %v4077
        %v4092 = vadd.f32 %v3982, %v4082
        %v4093 = vadd.f32 %v3983, %v4087
        %s4094 = scalar_lea.vmem [#allocation6], 1280
        %v4095 = vld [vmem:[%s4094] sm:$0xff]
        %v4096 = vld [vmem:[%s4094 + $0x8] sm:$0xff]
        %v4097 = vld [vmem:[%s4094 + $0x10] sm:$0xff]
        %v4098 = vld [vmem:[%s4094 + $0x18] sm:$0xff]
        %v4099 = vld [vmem:[%s4094 + $0x20] sm:$0xff]
        %v4100 = vld [vmem:[%s4094 + $0x28] sm:$0xff]
        %v4101 = vld [vmem:[%s4094 + $0x30] sm:$0xff]
        %v4102 = vld [vmem:[%s4094 + $0x38] sm:$0xff]
        %v4104 = vsel %vm431, %v3444, 0
        %v4107 = vsel %vm431, %v3449, 0
        %v4110 = vsel %vm431, %v3454, 0
        %v4113 = vsel %vm431, %v3459, 0
        %4115 = vmatprep.subr.mxu0 0.0
        %4116 = vmatpush1.msra.mxu0 0.0
        %4117 = vmatprep.subr.mxu0 0.0
        %4118 = vmatpush1.msra.mxu0 0.0
        %4119 = vmatprep.subr.mxu0 0.0
        %4120 = vmatpush1.msra.mxu0 0.0
        %4121 = vmatprep.subr.mxu0 0.0
        %4122 = vmatpush1.msra.mxu0 0.0
        %4123 = vmatprep.subr.mxu0 0.0
        %4124 = vmatpush1.msra.mxu0 0.0
        %4125 = vmatprep.subr.mxu0 0.0
        %4126 = vmatpush1.msra.mxu0 0.0
        %4127 = vmatprep.subr.mxu0 0.0
        %4128 = vmatpush1.msra.mxu0 0.0
        %4129 = vmatprep.subr.mxu0 0.0
        %4130 = vmatpush1.msra.mxu0 0.0
        %4131 = vmatprep.subr.mxu0 0.0
        %4132 = vmatpush1.msra.mxu0 %v4102
        %4133 = vmatprep.subr.mxu0 0.0
        %4134 = vmatpush1.msra.mxu0 %v4101
        %4135 = vmatprep.subr.mxu0 0.0
        %4136 = vmatpush1.msra.mxu0 %v4100
        %4137 = vmatprep.subr.mxu0 0.0
        %4138 = vmatpush1.msra.mxu0 %v4099
        %4139 = vmatprep.subr.mxu0 0.0
        %4140 = vmatpush1.msra.mxu0 %v4098
        %4141 = vmatprep.subr.mxu0 0.0
        %4142 = vmatpush1.msra.mxu0 %v4097
        %4143 = vmatprep.subr.mxu0 0.0
        %4144 = vmatpush1.msra.mxu0 %v4096
        %4145 = vmatprep.subr.mxu0 0.0
        %4146 = vmatpush1.msra.mxu0 %v4095
        %4147 = vmatprep.subr.mxu0 0.0
        %4148 = vmatpush2.msra.mxu0 0.0
        %4149 = vmatprep.subr.mxu0 0.0
        %4150 = vmatpush2.msra.mxu0 0.0
        %4151 = vmatprep.subr.mxu0 0.0
        %4152 = vmatpush2.msra.mxu0 0.0
        %4153 = vmatprep.subr.mxu0 0.0
        %4154 = vmatpush2.msra.mxu0 0.0
        %4155 = vmatprep.subr.mxu0 0.0
        %4156 = vmatpush2.msra.mxu0 0.0
        %4157 = vmatprep.subr.mxu0 0.0
        %4158 = vmatpush2.msra.mxu0 0.0
        %4159 = vmatprep.subr.mxu0 0.0
        %4160 = vmatpush2.msra.mxu0 0.0
        %4161 = vmatprep.subr.mxu0 0.0
        %4162 = vmatpush2.msra.mxu0 0.0
        %4163 = vmatprep.subr.mxu0 0.0
        %4164 = vmatpush2.msra.mxu0 0.0
        %4165 = vmatprep.subr.mxu0 0.0
        %4166 = vmatpush2.msra.mxu0 0.0
        %4167 = vmatprep.subr.mxu0 0.0
        %4168 = vmatpush2.msra.mxu0 0.0
        %4169 = vmatprep.subr.mxu0 0.0
        %4170 = vmatpush2.msra.mxu0 0.0
        %4171 = vmatprep.subr.mxu0 0.0
        %4172 = vmatpush2.msra.mxu0 0.0
        %4173 = vmatprep.subr.mxu0 0.0
        %4174 = vmatpush2.msra.mxu0 0.0
        %4175 = vmatprep.subr.mxu0 0.0
        %4176 = vmatpush2.msra.mxu0 0.0
        %4177 = vmatprep.subr.mxu0 0.0
        %4178 = vmatpush2.msra.mxu0 0.0
        %4179 = vmatprep.mubr.f32.mxu0 0.0
        %4180 = vmatmul.mubr.f32.gmra.mxu0 %v4104
        %v4181 = vpop.f32.mrf.mxu0
        %v4182 = vadd.f32 0.0, %v4181
        %v4183 = vpop.f32.mrf.mxu0
        %4184 = vmatprep.mubr.f32.mxu0 0.0
        %4185 = vmatmul.mubr.f32.gmra.mxu0 %v4107
        %v4186 = vpop.f32.mrf.mxu0
        %v4187 = vadd.f32 0.0, %v4186
        %v4188 = vpop.f32.mrf.mxu0
        %4189 = vmatprep.mubr.f32.mxu0 0.0
        %4190 = vmatmul.mubr.f32.gmra.mxu0 %v4110
        %v4191 = vpop.f32.mrf.mxu0
        %v4192 = vadd.f32 0.0, %v4191
        %v4193 = vpop.f32.mrf.mxu0
        %4194 = vmatprep.mubr.f32.mxu0 0.0
        %4195 = vmatmul.mubr.f32.gmra.mxu0 %v4113
        %v4196 = vpop.f32.mrf.mxu0
        %v4197 = vadd.f32 0.0, %v4196
        %v4198 = vpop.f32.mrf.mxu0
        %4199 = vdwg.mxu0
        %v4200 = vadd.f32 %v4090, %v4182
        %v4201 = vadd.f32 %v4091, %v4187
        %v4202 = vadd.f32 %v4092, %v4192
        %v4203 = vadd.f32 %v4093, %v4197
        %s4204 = scalar_lea.vmem [#allocation6], 1344
        %v4205 = vld [vmem:[%s4204] sm:$0xff]
        %v4206 = vld [vmem:[%s4204 + $0x8] sm:$0xff]
        %v4207 = vld [vmem:[%s4204 + $0x10] sm:$0xff]
        %v4208 = vld [vmem:[%s4204 + $0x18] sm:$0xff]
        %v4209 = vld [vmem:[%s4204 + $0x20] sm:$0xff]
        %v4210 = vld [vmem:[%s4204 + $0x28] sm:$0xff]
        %v4211 = vld [vmem:[%s4204 + $0x30] sm:$0xff]
        %v4212 = vld [vmem:[%s4204 + $0x38] sm:$0xff]
        %v4214 = vsel %vm431, %v3464, 0
        %v4217 = vsel %vm431, %v3469, 0
        %v4220 = vsel %vm431, %v3474, 0
        %v4223 = vsel %vm431, %v3479, 0
        %4225 = vmatprep.subr.mxu0 0.0
        %4226 = vmatpush1.msra.mxu0 0.0
        %4227 = vmatprep.subr.mxu0 0.0
        %4228 = vmatpush1.msra.mxu0 0.0
        %4229 = vmatprep.subr.mxu0 0.0
        %4230 = vmatpush1.msra.mxu0 0.0
        %4231 = vmatprep.subr.mxu0 0.0
        %4232 = vmatpush1.msra.mxu0 0.0
        %4233 = vmatprep.subr.mxu0 0.0
        %4234 = vmatpush1.msra.mxu0 0.0
        %4235 = vmatprep.subr.mxu0 0.0
        %4236 = vmatpush1.msra.mxu0 0.0
        %4237 = vmatprep.subr.mxu0 0.0
        %4238 = vmatpush1.msra.mxu0 0.0
        %4239 = vmatprep.subr.mxu0 0.0
        %4240 = vmatpush1.msra.mxu0 0.0
        %4241 = vmatprep.subr.mxu0 0.0
        %4242 = vmatpush1.msra.mxu0 %v4212
        %4243 = vmatprep.subr.mxu0 0.0
        %4244 = vmatpush1.msra.mxu0 %v4211
        %4245 = vmatprep.subr.mxu0 0.0
        %4246 = vmatpush1.msra.mxu0 %v4210
        %4247 = vmatprep.subr.mxu0 0.0
        %4248 = vmatpush1.msra.mxu0 %v4209
        %4249 = vmatprep.subr.mxu0 0.0
        %4250 = vmatpush1.msra.mxu0 %v4208
        %4251 = vmatprep.subr.mxu0 0.0
        %4252 = vmatpush1.msra.mxu0 %v4207
        %4253 = vmatprep.subr.mxu0 0.0
        %4254 = vmatpush1.msra.mxu0 %v4206
        %4255 = vmatprep.subr.mxu0 0.0
        %4256 = vmatpush1.msra.mxu0 %v4205
        %4257 = vmatprep.subr.mxu0 0.0
        %4258 = vmatpush2.msra.mxu0 0.0
        %4259 = vmatprep.subr.mxu0 0.0
        %4260 = vmatpush2.msra.mxu0 0.0
        %4261 = vmatprep.subr.mxu0 0.0
        %4262 = vmatpush2.msra.mxu0 0.0
        %4263 = vmatprep.subr.mxu0 0.0
        %4264 = vmatpush2.msra.mxu0 0.0
        %4265 = vmatprep.subr.mxu0 0.0
        %4266 = vmatpush2.msra.mxu0 0.0
        %4267 = vmatprep.subr.mxu0 0.0
        %4268 = vmatpush2.msra.mxu0 0.0
        %4269 = vmatprep.subr.mxu0 0.0
        %4270 = vmatpush2.msra.mxu0 0.0
        %4271 = vmatprep.subr.mxu0 0.0
        %4272 = vmatpush2.msra.mxu0 0.0
        %4273 = vmatprep.subr.mxu0 0.0
        %4274 = vmatpush2.msra.mxu0 0.0
        %4275 = vmatprep.subr.mxu0 0.0
        %4276 = vmatpush2.msra.mxu0 0.0
        %4277 = vmatprep.subr.mxu0 0.0
        %4278 = vmatpush2.msra.mxu0 0.0
        %4279 = vmatprep.subr.mxu0 0.0
        %4280 = vmatpush2.msra.mxu0 0.0
        %4281 = vmatprep.subr.mxu0 0.0
        %4282 = vmatpush2.msra.mxu0 0.0
        %4283 = vmatprep.subr.mxu0 0.0
        %4284 = vmatpush2.msra.mxu0 0.0
        %4285 = vmatprep.subr.mxu0 0.0
        %4286 = vmatpush2.msra.mxu0 0.0
        %4287 = vmatprep.subr.mxu0 0.0
        %4288 = vmatpush2.msra.mxu0 0.0
        %4289 = vmatprep.mubr.f32.mxu0 0.0
        %4290 = vmatmul.mubr.f32.gmra.mxu0 %v4214
        %v4291 = vpop.f32.mrf.mxu0
        %v4292 = vadd.f32 0.0, %v4291
        %v4293 = vpop.f32.mrf.mxu0
        %4294 = vmatprep.mubr.f32.mxu0 0.0
        %4295 = vmatmul.mubr.f32.gmra.mxu0 %v4217
        %v4296 = vpop.f32.mrf.mxu0
        %v4297 = vadd.f32 0.0, %v4296
        %v4298 = vpop.f32.mrf.mxu0
        %4299 = vmatprep.mubr.f32.mxu0 0.0
        %4300 = vmatmul.mubr.f32.gmra.mxu0 %v4220
        %v4301 = vpop.f32.mrf.mxu0
        %v4302 = vadd.f32 0.0, %v4301
        %v4303 = vpop.f32.mrf.mxu0
        %4304 = vmatprep.mubr.f32.mxu0 0.0
        %4305 = vmatmul.mubr.f32.gmra.mxu0 %v4223
        %v4306 = vpop.f32.mrf.mxu0
        %v4307 = vadd.f32 0.0, %v4306
        %v4308 = vpop.f32.mrf.mxu0
        %4309 = vdwg.mxu0
        %v4310 = vadd.f32 %v4200, %v4292
        %v4311 = vadd.f32 %v4201, %v4297
        %v4312 = vadd.f32 %v4202, %v4302
        %v4313 = vadd.f32 %v4203, %v4307
        %s4314 = scalar_lea.vmem [#allocation6], 1408
        %v4315 = vld [vmem:[%s4314] sm:$0xff]
        %v4316 = vld [vmem:[%s4314 + $0x8] sm:$0xff]
        %v4317 = vld [vmem:[%s4314 + $0x10] sm:$0xff]
        %v4318 = vld [vmem:[%s4314 + $0x18] sm:$0xff]
        %v4319 = vld [vmem:[%s4314 + $0x20] sm:$0xff]
        %v4320 = vld [vmem:[%s4314 + $0x28] sm:$0xff]
        %v4321 = vld [vmem:[%s4314 + $0x30] sm:$0xff]
        %v4322 = vld [vmem:[%s4314 + $0x38] sm:$0xff]
        %v4324 = vsel %vm431, %v3484, 0
        %v4327 = vsel %vm431, %v3489, 0
        %v4330 = vsel %vm431, %v3494, 0
        %v4333 = vsel %vm431, %v3499, 0
        %4335 = vmatprep.subr.mxu0 0.0
        %4336 = vmatpush1.msra.mxu0 0.0
        %4337 = vmatprep.subr.mxu0 0.0
        %4338 = vmatpush1.msra.mxu0 0.0
        %4339 = vmatprep.subr.mxu0 0.0
        %4340 = vmatpush1.msra.mxu0 0.0
        %4341 = vmatprep.subr.mxu0 0.0
        %4342 = vmatpush1.msra.mxu0 0.0
        %4343 = vmatprep.subr.mxu0 0.0
        %4344 = vmatpush1.msra.mxu0 0.0
        %4345 = vmatprep.subr.mxu0 0.0
        %4346 = vmatpush1.msra.mxu0 0.0
        %4347 = vmatprep.subr.mxu0 0.0
        %4348 = vmatpush1.msra.mxu0 0.0
        %4349 = vmatprep.subr.mxu0 0.0
        %4350 = vmatpush1.msra.mxu0 0.0
        %4351 = vmatprep.subr.mxu0 0.0
        %4352 = vmatpush1.msra.mxu0 %v4322
        %4353 = vmatprep.subr.mxu0 0.0
        %4354 = vmatpush1.msra.mxu0 %v4321
        %4355 = vmatprep.subr.mxu0 0.0
        %4356 = vmatpush1.msra.mxu0 %v4320
        %4357 = vmatprep.subr.mxu0 0.0
        %4358 = vmatpush1.msra.mxu0 %v4319
        %4359 = vmatprep.subr.mxu0 0.0
        %4360 = vmatpush1.msra.mxu0 %v4318
        %4361 = vmatprep.subr.mxu0 0.0
        %4362 = vmatpush1.msra.mxu0 %v4317
        %4363 = vmatprep.subr.mxu0 0.0
        %4364 = vmatpush1.msra.mxu0 %v4316
        %4365 = vmatprep.subr.mxu0 0.0
        %4366 = vmatpush1.msra.mxu0 %v4315
        %4367 = vmatprep.subr.mxu0 0.0
        %4368 = vmatpush2.msra.mxu0 0.0
        %4369 = vmatprep.subr.mxu0 0.0
        %4370 = vmatpush2.msra.mxu0 0.0
        %4371 = vmatprep.subr.mxu0 0.0
        %4372 = vmatpush2.msra.mxu0 0.0
        %4373 = vmatprep.subr.mxu0 0.0
        %4374 = vmatpush2.msra.mxu0 0.0
        %4375 = vmatprep.subr.mxu0 0.0
        %4376 = vmatpush2.msra.mxu0 0.0
        %4377 = vmatprep.subr.mxu0 0.0
        %4378 = vmatpush2.msra.mxu0 0.0
        %4379 = vmatprep.subr.mxu0 0.0
        %4380 = vmatpush2.msra.mxu0 0.0
        %4381 = vmatprep.subr.mxu0 0.0
        %4382 = vmatpush2.msra.mxu0 0.0
        %4383 = vmatprep.subr.mxu0 0.0
        %4384 = vmatpush2.msra.mxu0 0.0
        %4385 = vmatprep.subr.mxu0 0.0
        %4386 = vmatpush2.msra.mxu0 0.0
        %4387 = vmatprep.subr.mxu0 0.0
        %4388 = vmatpush2.msra.mxu0 0.0
        %4389 = vmatprep.subr.mxu0 0.0
        %4390 = vmatpush2.msra.mxu0 0.0
        %4391 = vmatprep.subr.mxu0 0.0
        %4392 = vmatpush2.msra.mxu0 0.0
        %4393 = vmatprep.subr.mxu0 0.0
        %4394 = vmatpush2.msra.mxu0 0.0
        %4395 = vmatprep.subr.mxu0 0.0
        %4396 = vmatpush2.msra.mxu0 0.0
        %4397 = vmatprep.subr.mxu0 0.0
        %4398 = vmatpush2.msra.mxu0 0.0
        %4399 = vmatprep.mubr.f32.mxu0 0.0
        %4400 = vmatmul.mubr.f32.gmra.mxu0 %v4324
        %v4401 = vpop.f32.mrf.mxu0
        %v4402 = vadd.f32 0.0, %v4401
        %v4403 = vpop.f32.mrf.mxu0
        %4404 = vmatprep.mubr.f32.mxu0 0.0
        %4405 = vmatmul.mubr.f32.gmra.mxu0 %v4327
        %v4406 = vpop.f32.mrf.mxu0
        %v4407 = vadd.f32 0.0, %v4406
        %v4408 = vpop.f32.mrf.mxu0
        %4409 = vmatprep.mubr.f32.mxu0 0.0
        %4410 = vmatmul.mubr.f32.gmra.mxu0 %v4330
        %v4411 = vpop.f32.mrf.mxu0
        %v4412 = vadd.f32 0.0, %v4411
        %v4413 = vpop.f32.mrf.mxu0
        %4414 = vmatprep.mubr.f32.mxu0 0.0
        %4415 = vmatmul.mubr.f32.gmra.mxu0 %v4333
        %v4416 = vpop.f32.mrf.mxu0
        %v4417 = vadd.f32 0.0, %v4416
        %v4418 = vpop.f32.mrf.mxu0
        %4419 = vdwg.mxu0
        %v4420 = vadd.f32 %v4310, %v4402
        %v4421 = vadd.f32 %v4311, %v4407
        %v4422 = vadd.f32 %v4312, %v4412
        %v4423 = vadd.f32 %v4313, %v4417
        %s4424 = scalar_lea.vmem [#allocation6], 1472
        %v4425 = vld [vmem:[%s4424] sm:$0xff]
        %v4426 = vld [vmem:[%s4424 + $0x8] sm:$0xff]
        %v4427 = vld [vmem:[%s4424 + $0x10] sm:$0xff]
        %v4428 = vld [vmem:[%s4424 + $0x18] sm:$0xff]
        %v4429 = vld [vmem:[%s4424 + $0x20] sm:$0xff]
        %v4430 = vld [vmem:[%s4424 + $0x28] sm:$0xff]
        %v4431 = vld [vmem:[%s4424 + $0x30] sm:$0xff]
        %v4432 = vld [vmem:[%s4424 + $0x38] sm:$0xff]
        %v4434 = vsel %vm431, %v3504, 0
        %v4437 = vsel %vm431, %v3509, 0
        %v4440 = vsel %vm431, %v3514, 0
        %v4443 = vsel %vm431, %v3519, 0
        %4445 = vmatprep.subr.mxu0 0.0
        %4446 = vmatpush1.msra.mxu0 0.0
        %4447 = vmatprep.subr.mxu0 0.0
        %4448 = vmatpush1.msra.mxu0 0.0
        %4449 = vmatprep.subr.mxu0 0.0
        %4450 = vmatpush1.msra.mxu0 0.0
        %4451 = vmatprep.subr.mxu0 0.0
        %4452 = vmatpush1.msra.mxu0 0.0
        %4453 = vmatprep.subr.mxu0 0.0
        %4454 = vmatpush1.msra.mxu0 0.0
        %4455 = vmatprep.subr.mxu0 0.0
        %4456 = vmatpush1.msra.mxu0 0.0
        %4457 = vmatprep.subr.mxu0 0.0
        %4458 = vmatpush1.msra.mxu0 0.0
        %4459 = vmatprep.subr.mxu0 0.0
        %4460 = vmatpush1.msra.mxu0 0.0
        %4461 = vmatprep.subr.mxu0 0.0
        %4462 = vmatpush1.msra.mxu0 %v4432
        %4463 = vmatprep.subr.mxu0 0.0
        %4464 = vmatpush1.msra.mxu0 %v4431
        %4465 = vmatprep.subr.mxu0 0.0
        %4466 = vmatpush1.msra.mxu0 %v4430
        %4467 = vmatprep.subr.mxu0 0.0
        %4468 = vmatpush1.msra.mxu0 %v4429
        %4469 = vmatprep.subr.mxu0 0.0
        %4470 = vmatpush1.msra.mxu0 %v4428
        %4471 = vmatprep.subr.mxu0 0.0
        %4472 = vmatpush1.msra.mxu0 %v4427
        %4473 = vmatprep.subr.mxu0 0.0
        %4474 = vmatpush1.msra.mxu0 %v4426
        %4475 = vmatprep.subr.mxu0 0.0
        %4476 = vmatpush1.msra.mxu0 %v4425
        %4477 = vmatprep.subr.mxu0 0.0
        %4478 = vmatpush2.msra.mxu0 0.0
        %4479 = vmatprep.subr.mxu0 0.0
        %4480 = vmatpush2.msra.mxu0 0.0
        %4481 = vmatprep.subr.mxu0 0.0
        %4482 = vmatpush2.msra.mxu0 0.0
        %4483 = vmatprep.subr.mxu0 0.0
        %4484 = vmatpush2.msra.mxu0 0.0
        %4485 = vmatprep.subr.mxu0 0.0
        %4486 = vmatpush2.msra.mxu0 0.0
        %4487 = vmatprep.subr.mxu0 0.0
        %4488 = vmatpush2.msra.mxu0 0.0
        %4489 = vmatprep.subr.mxu0 0.0
        %4490 = vmatpush2.msra.mxu0 0.0
        %4491 = vmatprep.subr.mxu0 0.0
        %4492 = vmatpush2.msra.mxu0 0.0
        %4493 = vmatprep.subr.mxu0 0.0
        %4494 = vmatpush2.msra.mxu0 0.0
        %4495 = vmatprep.subr.mxu0 0.0
        %4496 = vmatpush2.msra.mxu0 0.0
        %4497 = vmatprep.subr.mxu0 0.0
        %4498 = vmatpush2.msra.mxu0 0.0
        %4499 = vmatprep.subr.mxu0 0.0
        %4500 = vmatpush2.msra.mxu0 0.0
        %4501 = vmatprep.subr.mxu0 0.0
        %4502 = vmatpush2.msra.mxu0 0.0
        %4503 = vmatprep.subr.mxu0 0.0
        %4504 = vmatpush2.msra.mxu0 0.0
        %4505 = vmatprep.subr.mxu0 0.0
        %4506 = vmatpush2.msra.mxu0 0.0
        %4507 = vmatprep.subr.mxu0 0.0
        %4508 = vmatpush2.msra.mxu0 0.0
        %4509 = vmatprep.mubr.f32.mxu0 0.0
        %4510 = vmatmul.mubr.f32.gmra.mxu0 %v4434
        %v4511 = vpop.f32.mrf.mxu0
        %v4512 = vadd.f32 0.0, %v4511
        %v4513 = vpop.f32.mrf.mxu0
        %4514 = vmatprep.mubr.f32.mxu0 0.0
        %4515 = vmatmul.mubr.f32.gmra.mxu0 %v4437
        %v4516 = vpop.f32.mrf.mxu0
        %v4517 = vadd.f32 0.0, %v4516
        %v4518 = vpop.f32.mrf.mxu0
        %4519 = vmatprep.mubr.f32.mxu0 0.0
        %4520 = vmatmul.mubr.f32.gmra.mxu0 %v4440
        %v4521 = vpop.f32.mrf.mxu0
        %v4522 = vadd.f32 0.0, %v4521
        %v4523 = vpop.f32.mrf.mxu0
        %4524 = vmatprep.mubr.f32.mxu0 0.0
        %4525 = vmatmul.mubr.f32.gmra.mxu0 %v4443
        %v4526 = vpop.f32.mrf.mxu0
        %v4527 = vadd.f32 0.0, %v4526
        %v4528 = vpop.f32.mrf.mxu0
        %4529 = vdwg.mxu0
        %v4530 = vadd.f32 %v4420, %v4512
        %v4531 = vadd.f32 %v4421, %v4517
        %v4532 = vadd.f32 %v4422, %v4522
        %v4533 = vadd.f32 %v4423, %v4527
        %s4534 = scalar_lea.vmem [#allocation6], 1536
        %v4535 = vld [vmem:[%s4534] sm:$0xff]
        %v4536 = vld [vmem:[%s4534 + $0x8] sm:$0xff]
        %v4537 = vld [vmem:[%s4534 + $0x10] sm:$0xff]
        %v4538 = vld [vmem:[%s4534 + $0x18] sm:$0xff]
        %v4539 = vld [vmem:[%s4534 + $0x20] sm:$0xff]
        %v4540 = vld [vmem:[%s4534 + $0x28] sm:$0xff]
        %v4541 = vld [vmem:[%s4534 + $0x30] sm:$0xff]
        %v4542 = vld [vmem:[%s4534 + $0x38] sm:$0xff]
        %v4544 = vsel %vm431, %v3524, 0
        %v4547 = vsel %vm431, %v3529, 0
        %v4550 = vsel %vm431, %v3534, 0
        %v4553 = vsel %vm431, %v3539, 0
        %4555 = vmatprep.subr.mxu0 0.0
        %4556 = vmatpush1.msra.mxu0 0.0
        %4557 = vmatprep.subr.mxu0 0.0
        %4558 = vmatpush1.msra.mxu0 0.0
        %4559 = vmatprep.subr.mxu0 0.0
        %4560 = vmatpush1.msra.mxu0 0.0
        %4561 = vmatprep.subr.mxu0 0.0
        %4562 = vmatpush1.msra.mxu0 0.0
        %4563 = vmatprep.subr.mxu0 0.0
        %4564 = vmatpush1.msra.mxu0 0.0
        %4565 = vmatprep.subr.mxu0 0.0
        %4566 = vmatpush1.msra.mxu0 0.0
        %4567 = vmatprep.subr.mxu0 0.0
        %4568 = vmatpush1.msra.mxu0 0.0
        %4569 = vmatprep.subr.mxu0 0.0
        %4570 = vmatpush1.msra.mxu0 0.0
        %4571 = vmatprep.subr.mxu0 0.0
        %4572 = vmatpush1.msra.mxu0 %v4542
        %4573 = vmatprep.subr.mxu0 0.0
        %4574 = vmatpush1.msra.mxu0 %v4541
        %4575 = vmatprep.subr.mxu0 0.0
        %4576 = vmatpush1.msra.mxu0 %v4540
        %4577 = vmatprep.subr.mxu0 0.0
        %4578 = vmatpush1.msra.mxu0 %v4539
        %4579 = vmatprep.subr.mxu0 0.0
        %4580 = vmatpush1.msra.mxu0 %v4538
        %4581 = vmatprep.subr.mxu0 0.0
        %4582 = vmatpush1.msra.mxu0 %v4537
        %4583 = vmatprep.subr.mxu0 0.0
        %4584 = vmatpush1.msra.mxu0 %v4536
        %4585 = vmatprep.subr.mxu0 0.0
        %4586 = vmatpush1.msra.mxu0 %v4535
        %4587 = vmatprep.subr.mxu0 0.0
        %4588 = vmatpush2.msra.mxu0 0.0
        %4589 = vmatprep.subr.mxu0 0.0
        %4590 = vmatpush2.msra.mxu0 0.0
        %4591 = vmatprep.subr.mxu0 0.0
        %4592 = vmatpush2.msra.mxu0 0.0
        %4593 = vmatprep.subr.mxu0 0.0
        %4594 = vmatpush2.msra.mxu0 0.0
        %4595 = vmatprep.subr.mxu0 0.0
        %4596 = vmatpush2.msra.mxu0 0.0
        %4597 = vmatprep.subr.mxu0 0.0
        %4598 = vmatpush2.msra.mxu0 0.0
        %4599 = vmatprep.subr.mxu0 0.0
        %4600 = vmatpush2.msra.mxu0 0.0
        %4601 = vmatprep.subr.mxu0 0.0
        %4602 = vmatpush2.msra.mxu0 0.0
        %4603 = vmatprep.subr.mxu0 0.0
        %4604 = vmatpush2.msra.mxu0 0.0
        %4605 = vmatprep.subr.mxu0 0.0
        %4606 = vmatpush2.msra.mxu0 0.0
        %4607 = vmatprep.subr.mxu0 0.0
        %4608 = vmatpush2.msra.mxu0 0.0
        %4609 = vmatprep.subr.mxu0 0.0
        %4610 = vmatpush2.msra.mxu0 0.0
        %4611 = vmatprep.subr.mxu0 0.0
        %4612 = vmatpush2.msra.mxu0 0.0
        %4613 = vmatprep.subr.mxu0 0.0
        %4614 = vmatpush2.msra.mxu0 0.0
        %4615 = vmatprep.subr.mxu0 0.0
        %4616 = vmatpush2.msra.mxu0 0.0
        %4617 = vmatprep.subr.mxu0 0.0
        %4618 = vmatpush2.msra.mxu0 0.0
        %4619 = vmatprep.mubr.f32.mxu0 0.0
        %4620 = vmatmul.mubr.f32.gmra.mxu0 %v4544
        %v4621 = vpop.f32.mrf.mxu0
        %v4622 = vadd.f32 0.0, %v4621
        %v4623 = vpop.f32.mrf.mxu0
        %4624 = vmatprep.mubr.f32.mxu0 0.0
        %4625 = vmatmul.mubr.f32.gmra.mxu0 %v4547
        %v4626 = vpop.f32.mrf.mxu0
        %v4627 = vadd.f32 0.0, %v4626
        %v4628 = vpop.f32.mrf.mxu0
        %4629 = vmatprep.mubr.f32.mxu0 0.0
        %4630 = vmatmul.mubr.f32.gmra.mxu0 %v4550
        %v4631 = vpop.f32.mrf.mxu0
        %v4632 = vadd.f32 0.0, %v4631
        %v4633 = vpop.f32.mrf.mxu0
        %4634 = vmatprep.mubr.f32.mxu0 0.0
        %4635 = vmatmul.mubr.f32.gmra.mxu0 %v4553
        %v4636 = vpop.f32.mrf.mxu0
        %v4637 = vadd.f32 0.0, %v4636
        %v4638 = vpop.f32.mrf.mxu0
        %4639 = vdwg.mxu0
        %v4640 = vadd.f32 %v4530, %v4622
        %v4641 = vadd.f32 %v4531, %v4627
        %v4642 = vadd.f32 %v4532, %v4632
        %v4643 = vadd.f32 %v4533, %v4637
        %s4644 = scalar_lea.vmem [#allocation6], 1600
        %v4645 = vld [vmem:[%s4644] sm:$0xff]
        %v4646 = vld [vmem:[%s4644 + $0x8] sm:$0xff]
        %v4647 = vld [vmem:[%s4644 + $0x10] sm:$0xff]
        %v4648 = vld [vmem:[%s4644 + $0x18] sm:$0xff]
        %v4649 = vld [vmem:[%s4644 + $0x20] sm:$0xff]
        %v4650 = vld [vmem:[%s4644 + $0x28] sm:$0xff]
        %v4651 = vld [vmem:[%s4644 + $0x30] sm:$0xff]
        %v4652 = vld [vmem:[%s4644 + $0x38] sm:$0xff]
        %v4654 = vsel %vm431, %v3544, 0
        %v4657 = vsel %vm431, %v3549, 0
        %v4660 = vsel %vm431, %v3554, 0
        %v4663 = vsel %vm431, %v3559, 0
        %4665 = vmatprep.subr.mxu0 0.0
        %4666 = vmatpush1.msra.mxu0 0.0
        %4667 = vmatprep.subr.mxu0 0.0
        %4668 = vmatpush1.msra.mxu0 0.0
        %4669 = vmatprep.subr.mxu0 0.0
        %4670 = vmatpush1.msra.mxu0 0.0
        %4671 = vmatprep.subr.mxu0 0.0
        %4672 = vmatpush1.msra.mxu0 0.0
        %4673 = vmatprep.subr.mxu0 0.0
        %4674 = vmatpush1.msra.mxu0 0.0
        %4675 = vmatprep.subr.mxu0 0.0
        %4676 = vmatpush1.msra.mxu0 0.0
        %4677 = vmatprep.subr.mxu0 0.0
        %4678 = vmatpush1.msra.mxu0 0.0
        %4679 = vmatprep.subr.mxu0 0.0
        %4680 = vmatpush1.msra.mxu0 0.0
        %4681 = vmatprep.subr.mxu0 0.0
        %4682 = vmatpush1.msra.mxu0 %v4652
        %4683 = vmatprep.subr.mxu0 0.0
        %4684 = vmatpush1.msra.mxu0 %v4651
        %4685 = vmatprep.subr.mxu0 0.0
        %4686 = vmatpush1.msra.mxu0 %v4650
        %4687 = vmatprep.subr.mxu0 0.0
        %4688 = vmatpush1.msra.mxu0 %v4649
        %4689 = vmatprep.subr.mxu0 0.0
        %4690 = vmatpush1.msra.mxu0 %v4648
        %4691 = vmatprep.subr.mxu0 0.0
        %4692 = vmatpush1.msra.mxu0 %v4647
        %4693 = vmatprep.subr.mxu0 0.0
        %4694 = vmatpush1.msra.mxu0 %v4646
        %4695 = vmatprep.subr.mxu0 0.0
        %4696 = vmatpush1.msra.mxu0 %v4645
        %4697 = vmatprep.subr.mxu0 0.0
        %4698 = vmatpush2.msra.mxu0 0.0
        %4699 = vmatprep.subr.mxu0 0.0
        %4700 = vmatpush2.msra.mxu0 0.0
        %4701 = vmatprep.subr.mxu0 0.0
        %4702 = vmatpush2.msra.mxu0 0.0
        %4703 = vmatprep.subr.mxu0 0.0
        %4704 = vmatpush2.msra.mxu0 0.0
        %4705 = vmatprep.subr.mxu0 0.0
        %4706 = vmatpush2.msra.mxu0 0.0
        %4707 = vmatprep.subr.mxu0 0.0
        %4708 = vmatpush2.msra.mxu0 0.0
        %4709 = vmatprep.subr.mxu0 0.0
        %4710 = vmatpush2.msra.mxu0 0.0
        %4711 = vmatprep.subr.mxu0 0.0
        %4712 = vmatpush2.msra.mxu0 0.0
        %4713 = vmatprep.subr.mxu0 0.0
        %4714 = vmatpush2.msra.mxu0 0.0
        %4715 = vmatprep.subr.mxu0 0.0
        %4716 = vmatpush2.msra.mxu0 0.0
        %4717 = vmatprep.subr.mxu0 0.0
        %4718 = vmatpush2.msra.mxu0 0.0
        %4719 = vmatprep.subr.mxu0 0.0
        %4720 = vmatpush2.msra.mxu0 0.0
        %4721 = vmatprep.subr.mxu0 0.0
        %4722 = vmatpush2.msra.mxu0 0.0
        %4723 = vmatprep.subr.mxu0 0.0
        %4724 = vmatpush2.msra.mxu0 0.0
        %4725 = vmatprep.subr.mxu0 0.0
        %4726 = vmatpush2.msra.mxu0 0.0
        %4727 = vmatprep.subr.mxu0 0.0
        %4728 = vmatpush2.msra.mxu0 0.0
        %4729 = vmatprep.mubr.f32.mxu0 0.0
        %4730 = vmatmul.mubr.f32.gmra.mxu0 %v4654
        %v4731 = vpop.f32.mrf.mxu0
        %v4732 = vadd.f32 0.0, %v4731
        %v4733 = vpop.f32.mrf.mxu0
        %4734 = vmatprep.mubr.f32.mxu0 0.0
        %4735 = vmatmul.mubr.f32.gmra.mxu0 %v4657
        %v4736 = vpop.f32.mrf.mxu0
        %v4737 = vadd.f32 0.0, %v4736
        %v4738 = vpop.f32.mrf.mxu0
        %4739 = vmatprep.mubr.f32.mxu0 0.0
        %4740 = vmatmul.mubr.f32.gmra.mxu0 %v4660
        %v4741 = vpop.f32.mrf.mxu0
        %v4742 = vadd.f32 0.0, %v4741
        %v4743 = vpop.f32.mrf.mxu0
        %4744 = vmatprep.mubr.f32.mxu0 0.0
        %4745 = vmatmul.mubr.f32.gmra.mxu0 %v4663
        %v4746 = vpop.f32.mrf.mxu0
        %v4747 = vadd.f32 0.0, %v4746
        %v4748 = vpop.f32.mrf.mxu0
        %4749 = vdwg.mxu0
        %v4750 = vadd.f32 %v4640, %v4732
        %v4751 = vadd.f32 %v4641, %v4737
        %v4752 = vadd.f32 %v4642, %v4742
        %v4753 = vadd.f32 %v4643, %v4747
        %s4754 = scalar_lea.vmem [#allocation6], 1664
        %v4755 = vld [vmem:[%s4754] sm:$0xff]
        %v4756 = vld [vmem:[%s4754 + $0x8] sm:$0xff]
        %v4757 = vld [vmem:[%s4754 + $0x10] sm:$0xff]
        %v4758 = vld [vmem:[%s4754 + $0x18] sm:$0xff]
        %v4759 = vld [vmem:[%s4754 + $0x20] sm:$0xff]
        %v4760 = vld [vmem:[%s4754 + $0x28] sm:$0xff]
        %v4761 = vld [vmem:[%s4754 + $0x30] sm:$0xff]
        %v4762 = vld [vmem:[%s4754 + $0x38] sm:$0xff]
        %v4764 = vsel %vm431, %v3564, 0
        %v4767 = vsel %vm431, %v3569, 0
        %v4770 = vsel %vm431, %v3574, 0
        %v4773 = vsel %vm431, %v3579, 0
        %4775 = vmatprep.subr.mxu0 0.0
        %4776 = vmatpush1.msra.mxu0 0.0
        %4777 = vmatprep.subr.mxu0 0.0
        %4778 = vmatpush1.msra.mxu0 0.0
        %4779 = vmatprep.subr.mxu0 0.0
        %4780 = vmatpush1.msra.mxu0 0.0
        %4781 = vmatprep.subr.mxu0 0.0
        %4782 = vmatpush1.msra.mxu0 0.0
        %4783 = vmatprep.subr.mxu0 0.0
        %4784 = vmatpush1.msra.mxu0 0.0
        %4785 = vmatprep.subr.mxu0 0.0
        %4786 = vmatpush1.msra.mxu0 0.0
        %4787 = vmatprep.subr.mxu0 0.0
        %4788 = vmatpush1.msra.mxu0 0.0
        %4789 = vmatprep.subr.mxu0 0.0
        %4790 = vmatpush1.msra.mxu0 0.0
        %4791 = vmatprep.subr.mxu0 0.0
        %4792 = vmatpush1.msra.mxu0 %v4762
        %4793 = vmatprep.subr.mxu0 0.0
        %4794 = vmatpush1.msra.mxu0 %v4761
        %4795 = vmatprep.subr.mxu0 0.0
        %4796 = vmatpush1.msra.mxu0 %v4760
        %4797 = vmatprep.subr.mxu0 0.0
        %4798 = vmatpush1.msra.mxu0 %v4759
        %4799 = vmatprep.subr.mxu0 0.0
        %4800 = vmatpush1.msra.mxu0 %v4758
        %4801 = vmatprep.subr.mxu0 0.0
        %4802 = vmatpush1.msra.mxu0 %v4757
        %4803 = vmatprep.subr.mxu0 0.0
        %4804 = vmatpush1.msra.mxu0 %v4756
        %4805 = vmatprep.subr.mxu0 0.0
        %4806 = vmatpush1.msra.mxu0 %v4755
        %4807 = vmatprep.subr.mxu0 0.0
        %4808 = vmatpush2.msra.mxu0 0.0
        %4809 = vmatprep.subr.mxu0 0.0
        %4810 = vmatpush2.msra.mxu0 0.0
        %4811 = vmatprep.subr.mxu0 0.0
        %4812 = vmatpush2.msra.mxu0 0.0
        %4813 = vmatprep.subr.mxu0 0.0
        %4814 = vmatpush2.msra.mxu0 0.0
        %4815 = vmatprep.subr.mxu0 0.0
        %4816 = vmatpush2.msra.mxu0 0.0
        %4817 = vmatprep.subr.mxu0 0.0
        %4818 = vmatpush2.msra.mxu0 0.0
        %4819 = vmatprep.subr.mxu0 0.0
        %4820 = vmatpush2.msra.mxu0 0.0
        %4821 = vmatprep.subr.mxu0 0.0
        %4822 = vmatpush2.msra.mxu0 0.0
        %4823 = vmatprep.subr.mxu0 0.0
        %4824 = vmatpush2.msra.mxu0 0.0
        %4825 = vmatprep.subr.mxu0 0.0
        %4826 = vmatpush2.msra.mxu0 0.0
        %4827 = vmatprep.subr.mxu0 0.0
        %4828 = vmatpush2.msra.mxu0 0.0
        %4829 = vmatprep.subr.mxu0 0.0
        %4830 = vmatpush2.msra.mxu0 0.0
        %4831 = vmatprep.subr.mxu0 0.0
        %4832 = vmatpush2.msra.mxu0 0.0
        %4833 = vmatprep.subr.mxu0 0.0
        %4834 = vmatpush2.msra.mxu0 0.0
        %4835 = vmatprep.subr.mxu0 0.0
        %4836 = vmatpush2.msra.mxu0 0.0
        %4837 = vmatprep.subr.mxu0 0.0
        %4838 = vmatpush2.msra.mxu0 0.0
        %4839 = vmatprep.mubr.f32.mxu0 0.0
        %4840 = vmatmul.mubr.f32.gmra.mxu0 %v4764
        %v4841 = vpop.f32.mrf.mxu0
        %v4842 = vadd.f32 0.0, %v4841
        %v4843 = vpop.f32.mrf.mxu0
        %4844 = vmatprep.mubr.f32.mxu0 0.0
        %4845 = vmatmul.mubr.f32.gmra.mxu0 %v4767
        %v4846 = vpop.f32.mrf.mxu0
        %v4847 = vadd.f32 0.0, %v4846
        %v4848 = vpop.f32.mrf.mxu0
        %4849 = vmatprep.mubr.f32.mxu0 0.0
        %4850 = vmatmul.mubr.f32.gmra.mxu0 %v4770
        %v4851 = vpop.f32.mrf.mxu0
        %v4852 = vadd.f32 0.0, %v4851
        %v4853 = vpop.f32.mrf.mxu0
        %4854 = vmatprep.mubr.f32.mxu0 0.0
        %4855 = vmatmul.mubr.f32.gmra.mxu0 %v4773
        %v4856 = vpop.f32.mrf.mxu0
        %v4857 = vadd.f32 0.0, %v4856
        %v4858 = vpop.f32.mrf.mxu0
        %4859 = vdwg.mxu0
        %v4860 = vadd.f32 %v4750, %v4842
        %v4861 = vadd.f32 %v4751, %v4847
        %v4862 = vadd.f32 %v4752, %v4852
        %v4863 = vadd.f32 %v4753, %v4857
        %s4864 = scalar_lea.vmem [#allocation6], 1728
        %v4865 = vld [vmem:[%s4864] sm:$0xff]
        %v4866 = vld [vmem:[%s4864 + $0x8] sm:$0xff]
        %v4867 = vld [vmem:[%s4864 + $0x10] sm:$0xff]
        %v4868 = vld [vmem:[%s4864 + $0x18] sm:$0xff]
        %v4869 = vld [vmem:[%s4864 + $0x20] sm:$0xff]
        %v4870 = vld [vmem:[%s4864 + $0x28] sm:$0xff]
        %v4871 = vld [vmem:[%s4864 + $0x30] sm:$0xff]
        %v4872 = vld [vmem:[%s4864 + $0x38] sm:$0xff]
        %v4874 = vsel %vm431, %v3584, 0
        %v4877 = vsel %vm431, %v3589, 0
        %v4880 = vsel %vm431, %v3594, 0
        %v4883 = vsel %vm431, %v3599, 0
        %4885 = vmatprep.subr.mxu0 0.0
        %4886 = vmatpush1.msra.mxu0 0.0
        %4887 = vmatprep.subr.mxu0 0.0
        %4888 = vmatpush1.msra.mxu0 0.0
        %4889 = vmatprep.subr.mxu0 0.0
        %4890 = vmatpush1.msra.mxu0 0.0
        %4891 = vmatprep.subr.mxu0 0.0
        %4892 = vmatpush1.msra.mxu0 0.0
        %4893 = vmatprep.subr.mxu0 0.0
        %4894 = vmatpush1.msra.mxu0 0.0
        %4895 = vmatprep.subr.mxu0 0.0
        %4896 = vmatpush1.msra.mxu0 0.0
        %4897 = vmatprep.subr.mxu0 0.0
        %4898 = vmatpush1.msra.mxu0 0.0
        %4899 = vmatprep.subr.mxu0 0.0
        %4900 = vmatpush1.msra.mxu0 0.0
        %4901 = vmatprep.subr.mxu0 0.0
        %4902 = vmatpush1.msra.mxu0 %v4872
        %4903 = vmatprep.subr.mxu0 0.0
        %4904 = vmatpush1.msra.mxu0 %v4871
        %4905 = vmatprep.subr.mxu0 0.0
        %4906 = vmatpush1.msra.mxu0 %v4870
        %4907 = vmatprep.subr.mxu0 0.0
        %4908 = vmatpush1.msra.mxu0 %v4869
        %4909 = vmatprep.subr.mxu0 0.0
        %4910 = vmatpush1.msra.mxu0 %v4868
        %4911 = vmatprep.subr.mxu0 0.0
        %4912 = vmatpush1.msra.mxu0 %v4867
        %4913 = vmatprep.subr.mxu0 0.0
        %4914 = vmatpush1.msra.mxu0 %v4866
        %4915 = vmatprep.subr.mxu0 0.0
        %4916 = vmatpush1.msra.mxu0 %v4865
        %4917 = vmatprep.subr.mxu0 0.0
        %4918 = vmatpush2.msra.mxu0 0.0
        %4919 = vmatprep.subr.mxu0 0.0
        %4920 = vmatpush2.msra.mxu0 0.0
        %4921 = vmatprep.subr.mxu0 0.0
        %4922 = vmatpush2.msra.mxu0 0.0
        %4923 = vmatprep.subr.mxu0 0.0
        %4924 = vmatpush2.msra.mxu0 0.0
        %4925 = vmatprep.subr.mxu0 0.0
        %4926 = vmatpush2.msra.mxu0 0.0
        %4927 = vmatprep.subr.mxu0 0.0
        %4928 = vmatpush2.msra.mxu0 0.0
        %4929 = vmatprep.subr.mxu0 0.0
        %4930 = vmatpush2.msra.mxu0 0.0
        %4931 = vmatprep.subr.mxu0 0.0
        %4932 = vmatpush2.msra.mxu0 0.0
        %4933 = vmatprep.subr.mxu0 0.0
        %4934 = vmatpush2.msra.mxu0 0.0
        %4935 = vmatprep.subr.mxu0 0.0
        %4936 = vmatpush2.msra.mxu0 0.0
        %4937 = vmatprep.subr.mxu0 0.0
        %4938 = vmatpush2.msra.mxu0 0.0
        %4939 = vmatprep.subr.mxu0 0.0
        %4940 = vmatpush2.msra.mxu0 0.0
        %4941 = vmatprep.subr.mxu0 0.0
        %4942 = vmatpush2.msra.mxu0 0.0
        %4943 = vmatprep.subr.mxu0 0.0
        %4944 = vmatpush2.msra.mxu0 0.0
        %4945 = vmatprep.subr.mxu0 0.0
        %4946 = vmatpush2.msra.mxu0 0.0
        %4947 = vmatprep.subr.mxu0 0.0
        %4948 = vmatpush2.msra.mxu0 0.0
        %4949 = vmatprep.mubr.f32.mxu0 0.0
        %4950 = vmatmul.mubr.f32.gmra.mxu0 %v4874
        %v4951 = vpop.f32.mrf.mxu0
        %v4952 = vadd.f32 0.0, %v4951
        %v4953 = vpop.f32.mrf.mxu0
        %4954 = vmatprep.mubr.f32.mxu0 0.0
        %4955 = vmatmul.mubr.f32.gmra.mxu0 %v4877
        %v4956 = vpop.f32.mrf.mxu0
        %v4957 = vadd.f32 0.0, %v4956
        %v4958 = vpop.f32.mrf.mxu0
        %4959 = vmatprep.mubr.f32.mxu0 0.0
        %4960 = vmatmul.mubr.f32.gmra.mxu0 %v4880
        %v4961 = vpop.f32.mrf.mxu0
        %v4962 = vadd.f32 0.0, %v4961
        %v4963 = vpop.f32.mrf.mxu0
        %4964 = vmatprep.mubr.f32.mxu0 0.0
        %4965 = vmatmul.mubr.f32.gmra.mxu0 %v4883
        %v4966 = vpop.f32.mrf.mxu0
        %v4967 = vadd.f32 0.0, %v4966
        %v4968 = vpop.f32.mrf.mxu0
        %4969 = vdwg.mxu0
        %v4970 = vadd.f32 %v4860, %v4952
        %v4971 = vadd.f32 %v4861, %v4957
        %v4972 = vadd.f32 %v4862, %v4962
        %v4973 = vadd.f32 %v4863, %v4967
        %s4974 = scalar_lea.vmem [#allocation6], 1792
        %v4975 = vld [vmem:[%s4974] sm:$0xff]
        %v4976 = vld [vmem:[%s4974 + $0x8] sm:$0xff]
        %v4977 = vld [vmem:[%s4974 + $0x10] sm:$0xff]
        %v4978 = vld [vmem:[%s4974 + $0x18] sm:$0xff]
        %v4979 = vld [vmem:[%s4974 + $0x20] sm:$0xff]
        %v4980 = vld [vmem:[%s4974 + $0x28] sm:$0xff]
        %v4981 = vld [vmem:[%s4974 + $0x30] sm:$0xff]
        %v4982 = vld [vmem:[%s4974 + $0x38] sm:$0xff]
        %v4984 = vsel %vm431, %v3604, 0
        %v4987 = vsel %vm431, %v3609, 0
        %v4990 = vsel %vm431, %v3614, 0
        %v4993 = vsel %vm431, %v3619, 0
        %4995 = vmatprep.subr.mxu0 0.0
        %4996 = vmatpush1.msra.mxu0 0.0
        %4997 = vmatprep.subr.mxu0 0.0
        %4998 = vmatpush1.msra.mxu0 0.0
        %4999 = vmatprep.subr.mxu0 0.0
        %5000 = vmatpush1.msra.mxu0 0.0
        %5001 = vmatprep.subr.mxu0 0.0
        %5002 = vmatpush1.msra.mxu0 0.0
        %5003 = vmatprep.subr.mxu0 0.0
        %5004 = vmatpush1.msra.mxu0 0.0
        %5005 = vmatprep.subr.mxu0 0.0
        %5006 = vmatpush1.msra.mxu0 0.0
        %5007 = vmatprep.subr.mxu0 0.0
        %5008 = vmatpush1.msra.mxu0 0.0
        %5009 = vmatprep.subr.mxu0 0.0
        %5010 = vmatpush1.msra.mxu0 0.0
        %5011 = vmatprep.subr.mxu0 0.0
        %5012 = vmatpush1.msra.mxu0 %v4982
        %5013 = vmatprep.subr.mxu0 0.0
        %5014 = vmatpush1.msra.mxu0 %v4981
        %5015 = vmatprep.subr.mxu0 0.0
        %5016 = vmatpush1.msra.mxu0 %v4980
        %5017 = vmatprep.subr.mxu0 0.0
        %5018 = vmatpush1.msra.mxu0 %v4979
        %5019 = vmatprep.subr.mxu0 0.0
        %5020 = vmatpush1.msra.mxu0 %v4978
        %5021 = vmatprep.subr.mxu0 0.0
        %5022 = vmatpush1.msra.mxu0 %v4977
        %5023 = vmatprep.subr.mxu0 0.0
        %5024 = vmatpush1.msra.mxu0 %v4976
        %5025 = vmatprep.subr.mxu0 0.0
        %5026 = vmatpush1.msra.mxu0 %v4975
        %5027 = vmatprep.subr.mxu0 0.0
        %5028 = vmatpush2.msra.mxu0 0.0
        %5029 = vmatprep.subr.mxu0 0.0
        %5030 = vmatpush2.msra.mxu0 0.0
        %5031 = vmatprep.subr.mxu0 0.0
        %5032 = vmatpush2.msra.mxu0 0.0
        %5033 = vmatprep.subr.mxu0 0.0
        %5034 = vmatpush2.msra.mxu0 0.0
        %5035 = vmatprep.subr.mxu0 0.0
        %5036 = vmatpush2.msra.mxu0 0.0
        %5037 = vmatprep.subr.mxu0 0.0
        %5038 = vmatpush2.msra.mxu0 0.0
        %5039 = vmatprep.subr.mxu0 0.0
        %5040 = vmatpush2.msra.mxu0 0.0
        %5041 = vmatprep.subr.mxu0 0.0
        %5042 = vmatpush2.msra.mxu0 0.0
        %5043 = vmatprep.subr.mxu0 0.0
        %5044 = vmatpush2.msra.mxu0 0.0
        %5045 = vmatprep.subr.mxu0 0.0
        %5046 = vmatpush2.msra.mxu0 0.0
        %5047 = vmatprep.subr.mxu0 0.0
        %5048 = vmatpush2.msra.mxu0 0.0
        %5049 = vmatprep.subr.mxu0 0.0
        %5050 = vmatpush2.msra.mxu0 0.0
        %5051 = vmatprep.subr.mxu0 0.0
        %5052 = vmatpush2.msra.mxu0 0.0
        %5053 = vmatprep.subr.mxu0 0.0
        %5054 = vmatpush2.msra.mxu0 0.0
        %5055 = vmatprep.subr.mxu0 0.0
        %5056 = vmatpush2.msra.mxu0 0.0
        %5057 = vmatprep.subr.mxu0 0.0
        %5058 = vmatpush2.msra.mxu0 0.0
        %5059 = vmatprep.mubr.f32.mxu0 0.0
        %5060 = vmatmul.mubr.f32.gmra.mxu0 %v4984
        %v5061 = vpop.f32.mrf.mxu0
        %v5062 = vadd.f32 0.0, %v5061
        %v5063 = vpop.f32.mrf.mxu0
        %5064 = vmatprep.mubr.f32.mxu0 0.0
        %5065 = vmatmul.mubr.f32.gmra.mxu0 %v4987
        %v5066 = vpop.f32.mrf.mxu0
        %v5067 = vadd.f32 0.0, %v5066
        %v5068 = vpop.f32.mrf.mxu0
        %5069 = vmatprep.mubr.f32.mxu0 0.0
        %5070 = vmatmul.mubr.f32.gmra.mxu0 %v4990
        %v5071 = vpop.f32.mrf.mxu0
        %v5072 = vadd.f32 0.0, %v5071
        %v5073 = vpop.f32.mrf.mxu0
        %5074 = vmatprep.mubr.f32.mxu0 0.0
        %5075 = vmatmul.mubr.f32.gmra.mxu0 %v4993
        %v5076 = vpop.f32.mrf.mxu0
        %v5077 = vadd.f32 0.0, %v5076
        %v5078 = vpop.f32.mrf.mxu0
        %5079 = vdwg.mxu0
        %v5080 = vadd.f32 %v4970, %v5062
        %v5081 = vadd.f32 %v4971, %v5067
        %v5082 = vadd.f32 %v4972, %v5072
        %v5083 = vadd.f32 %v4973, %v5077
        %s5084 = scalar_lea.vmem [#allocation6], 1856
        %v5085 = vld [vmem:[%s5084] sm:$0xff]
        %v5086 = vld [vmem:[%s5084 + $0x8] sm:$0xff]
        %v5087 = vld [vmem:[%s5084 + $0x10] sm:$0xff]
        %v5088 = vld [vmem:[%s5084 + $0x18] sm:$0xff]
        %v5089 = vld [vmem:[%s5084 + $0x20] sm:$0xff]
        %v5090 = vld [vmem:[%s5084 + $0x28] sm:$0xff]
        %v5091 = vld [vmem:[%s5084 + $0x30] sm:$0xff]
        %v5092 = vld [vmem:[%s5084 + $0x38] sm:$0xff]
        %v5094 = vsel %vm431, %v3624, 0
        %v5097 = vsel %vm431, %v3629, 0
        %v5100 = vsel %vm431, %v3634, 0
        %v5103 = vsel %vm431, %v3639, 0
        %5105 = vmatprep.subr.mxu0 0.0
        %5106 = vmatpush1.msra.mxu0 0.0
        %5107 = vmatprep.subr.mxu0 0.0
        %5108 = vmatpush1.msra.mxu0 0.0
        %5109 = vmatprep.subr.mxu0 0.0
        %5110 = vmatpush1.msra.mxu0 0.0
        %5111 = vmatprep.subr.mxu0 0.0
        %5112 = vmatpush1.msra.mxu0 0.0
        %5113 = vmatprep.subr.mxu0 0.0
        %5114 = vmatpush1.msra.mxu0 0.0
        %5115 = vmatprep.subr.mxu0 0.0
        %5116 = vmatpush1.msra.mxu0 0.0
        %5117 = vmatprep.subr.mxu0 0.0
        %5118 = vmatpush1.msra.mxu0 0.0
        %5119 = vmatprep.subr.mxu0 0.0
        %5120 = vmatpush1.msra.mxu0 0.0
        %5121 = vmatprep.subr.mxu0 0.0
        %5122 = vmatpush1.msra.mxu0 %v5092
        %5123 = vmatprep.subr.mxu0 0.0
        %5124 = vmatpush1.msra.mxu0 %v5091
        %5125 = vmatprep.subr.mxu0 0.0
        %5126 = vmatpush1.msra.mxu0 %v5090
        %5127 = vmatprep.subr.mxu0 0.0
        %5128 = vmatpush1.msra.mxu0 %v5089
        %5129 = vmatprep.subr.mxu0 0.0
        %5130 = vmatpush1.msra.mxu0 %v5088
        %5131 = vmatprep.subr.mxu0 0.0
        %5132 = vmatpush1.msra.mxu0 %v5087
        %5133 = vmatprep.subr.mxu0 0.0
        %5134 = vmatpush1.msra.mxu0 %v5086
        %5135 = vmatprep.subr.mxu0 0.0
        %5136 = vmatpush1.msra.mxu0 %v5085
        %5137 = vmatprep.subr.mxu0 0.0
        %5138 = vmatpush2.msra.mxu0 0.0
        %5139 = vmatprep.subr.mxu0 0.0
        %5140 = vmatpush2.msra.mxu0 0.0
        %5141 = vmatprep.subr.mxu0 0.0
        %5142 = vmatpush2.msra.mxu0 0.0
        %5143 = vmatprep.subr.mxu0 0.0
        %5144 = vmatpush2.msra.mxu0 0.0
        %5145 = vmatprep.subr.mxu0 0.0
        %5146 = vmatpush2.msra.mxu0 0.0
        %5147 = vmatprep.subr.mxu0 0.0
        %5148 = vmatpush2.msra.mxu0 0.0
        %5149 = vmatprep.subr.mxu0 0.0
        %5150 = vmatpush2.msra.mxu0 0.0
        %5151 = vmatprep.subr.mxu0 0.0
        %5152 = vmatpush2.msra.mxu0 0.0
        %5153 = vmatprep.subr.mxu0 0.0
        %5154 = vmatpush2.msra.mxu0 0.0
        %5155 = vmatprep.subr.mxu0 0.0
        %5156 = vmatpush2.msra.mxu0 0.0
        %5157 = vmatprep.subr.mxu0 0.0
        %5158 = vmatpush2.msra.mxu0 0.0
        %5159 = vmatprep.subr.mxu0 0.0
        %5160 = vmatpush2.msra.mxu0 0.0
        %5161 = vmatprep.subr.mxu0 0.0
        %5162 = vmatpush2.msra.mxu0 0.0
        %5163 = vmatprep.subr.mxu0 0.0
        %5164 = vmatpush2.msra.mxu0 0.0
        %5165 = vmatprep.subr.mxu0 0.0
        %5166 = vmatpush2.msra.mxu0 0.0
        %5167 = vmatprep.subr.mxu0 0.0
        %5168 = vmatpush2.msra.mxu0 0.0
        %5169 = vmatprep.mubr.f32.mxu0 0.0
        %5170 = vmatmul.mubr.f32.gmra.mxu0 %v5094
        %v5171 = vpop.f32.mrf.mxu0
        %v5172 = vadd.f32 0.0, %v5171
        %v5173 = vpop.f32.mrf.mxu0
        %5174 = vmatprep.mubr.f32.mxu0 0.0
        %5175 = vmatmul.mubr.f32.gmra.mxu0 %v5097
        %v5176 = vpop.f32.mrf.mxu0
        %v5177 = vadd.f32 0.0, %v5176
        %v5178 = vpop.f32.mrf.mxu0
        %5179 = vmatprep.mubr.f32.mxu0 0.0
        %5180 = vmatmul.mubr.f32.gmra.mxu0 %v5100
        %v5181 = vpop.f32.mrf.mxu0
        %v5182 = vadd.f32 0.0, %v5181
        %v5183 = vpop.f32.mrf.mxu0
        %5184 = vmatprep.mubr.f32.mxu0 0.0
        %5185 = vmatmul.mubr.f32.gmra.mxu0 %v5103
        %v5186 = vpop.f32.mrf.mxu0
        %v5187 = vadd.f32 0.0, %v5186
        %v5188 = vpop.f32.mrf.mxu0
        %5189 = vdwg.mxu0
        %v5190 = vadd.f32 %v5080, %v5172
        %v5191 = vadd.f32 %v5081, %v5177
        %v5192 = vadd.f32 %v5082, %v5182
        %v5193 = vadd.f32 %v5083, %v5187
        %s5194 = scalar_lea.vmem [#allocation6], 1920
        %v5195 = vld [vmem:[%s5194] sm:$0xff]
        %v5196 = vld [vmem:[%s5194 + $0x8] sm:$0xff]
        %v5197 = vld [vmem:[%s5194 + $0x10] sm:$0xff]
        %v5198 = vld [vmem:[%s5194 + $0x18] sm:$0xff]
        %v5199 = vld [vmem:[%s5194 + $0x20] sm:$0xff]
        %v5200 = vld [vmem:[%s5194 + $0x28] sm:$0xff]
        %v5201 = vld [vmem:[%s5194 + $0x30] sm:$0xff]
        %v5202 = vld [vmem:[%s5194 + $0x38] sm:$0xff]
        %v5204 = vsel %vm431, %v3644, 0
        %v5207 = vsel %vm431, %v3649, 0
        %v5210 = vsel %vm431, %v3654, 0
        %v5213 = vsel %vm431, %v3659, 0
        %5215 = vmatprep.subr.mxu0 0.0
        %5216 = vmatpush1.msra.mxu0 0.0
        %5217 = vmatprep.subr.mxu0 0.0
        %5218 = vmatpush1.msra.mxu0 0.0
        %5219 = vmatprep.subr.mxu0 0.0
        %5220 = vmatpush1.msra.mxu0 0.0
        %5221 = vmatprep.subr.mxu0 0.0
        %5222 = vmatpush1.msra.mxu0 0.0
        %5223 = vmatprep.subr.mxu0 0.0
        %5224 = vmatpush1.msra.mxu0 0.0
        %5225 = vmatprep.subr.mxu0 0.0
        %5226 = vmatpush1.msra.mxu0 0.0
        %5227 = vmatprep.subr.mxu0 0.0
        %5228 = vmatpush1.msra.mxu0 0.0
        %5229 = vmatprep.subr.mxu0 0.0
        %5230 = vmatpush1.msra.mxu0 0.0
        %5231 = vmatprep.subr.mxu0 0.0
        %5232 = vmatpush1.msra.mxu0 %v5202
        %5233 = vmatprep.subr.mxu0 0.0
        %5234 = vmatpush1.msra.mxu0 %v5201
        %5235 = vmatprep.subr.mxu0 0.0
        %5236 = vmatpush1.msra.mxu0 %v5200
        %5237 = vmatprep.subr.mxu0 0.0
        %5238 = vmatpush1.msra.mxu0 %v5199
        %5239 = vmatprep.subr.mxu0 0.0
        %5240 = vmatpush1.msra.mxu0 %v5198
        %5241 = vmatprep.subr.mxu0 0.0
        %5242 = vmatpush1.msra.mxu0 %v5197
        %5243 = vmatprep.subr.mxu0 0.0
        %5244 = vmatpush1.msra.mxu0 %v5196
        %5245 = vmatprep.subr.mxu0 0.0
        %5246 = vmatpush1.msra.mxu0 %v5195
        %5247 = vmatprep.subr.mxu0 0.0
        %5248 = vmatpush2.msra.mxu0 0.0
        %5249 = vmatprep.subr.mxu0 0.0
        %5250 = vmatpush2.msra.mxu0 0.0
        %5251 = vmatprep.subr.mxu0 0.0
        %5252 = vmatpush2.msra.mxu0 0.0
        %5253 = vmatprep.subr.mxu0 0.0
        %5254 = vmatpush2.msra.mxu0 0.0
        %5255 = vmatprep.subr.mxu0 0.0
        %5256 = vmatpush2.msra.mxu0 0.0
        %5257 = vmatprep.subr.mxu0 0.0
        %5258 = vmatpush2.msra.mxu0 0.0
        %5259 = vmatprep.subr.mxu0 0.0
        %5260 = vmatpush2.msra.mxu0 0.0
        %5261 = vmatprep.subr.mxu0 0.0
        %5262 = vmatpush2.msra.mxu0 0.0
        %5263 = vmatprep.subr.mxu0 0.0
        %5264 = vmatpush2.msra.mxu0 0.0
        %5265 = vmatprep.subr.mxu0 0.0
        %5266 = vmatpush2.msra.mxu0 0.0
        %5267 = vmatprep.subr.mxu0 0.0
        %5268 = vmatpush2.msra.mxu0 0.0
        %5269 = vmatprep.subr.mxu0 0.0
        %5270 = vmatpush2.msra.mxu0 0.0
        %5271 = vmatprep.subr.mxu0 0.0
        %5272 = vmatpush2.msra.mxu0 0.0
        %5273 = vmatprep.subr.mxu0 0.0
        %5274 = vmatpush2.msra.mxu0 0.0
        %5275 = vmatprep.subr.mxu0 0.0
        %5276 = vmatpush2.msra.mxu0 0.0
        %5277 = vmatprep.subr.mxu0 0.0
        %5278 = vmatpush2.msra.mxu0 0.0
        %5279 = vmatprep.mubr.f32.mxu0 0.0
        %5280 = vmatmul.mubr.f32.gmra.mxu0 %v5204
        %v5281 = vpop.f32.mrf.mxu0
        %v5282 = vadd.f32 0.0, %v5281
        %v5283 = vpop.f32.mrf.mxu0
        %5284 = vmatprep.mubr.f32.mxu0 0.0
        %5285 = vmatmul.mubr.f32.gmra.mxu0 %v5207
        %v5286 = vpop.f32.mrf.mxu0
        %v5287 = vadd.f32 0.0, %v5286
        %v5288 = vpop.f32.mrf.mxu0
        %5289 = vmatprep.mubr.f32.mxu0 0.0
        %5290 = vmatmul.mubr.f32.gmra.mxu0 %v5210
        %v5291 = vpop.f32.mrf.mxu0
        %v5292 = vadd.f32 0.0, %v5291
        %v5293 = vpop.f32.mrf.mxu0
        %5294 = vmatprep.mubr.f32.mxu0 0.0
        %5295 = vmatmul.mubr.f32.gmra.mxu0 %v5213
        %v5296 = vpop.f32.mrf.mxu0
        %v5297 = vadd.f32 0.0, %v5296
        %v5298 = vpop.f32.mrf.mxu0
        %5299 = vdwg.mxu0
        %v5300 = vadd.f32 %v5190, %v5282
        %v5301 = vadd.f32 %v5191, %v5287
        %v5302 = vadd.f32 %v5192, %v5292
        %v5303 = vadd.f32 %v5193, %v5297
        %s5304 = scalar_lea.vmem %s4, 128
        %v5305 = vld [vmem:[%s5304] sm:$0xff]
        %v5306 = vld [vmem:[%s5304 + $0x8] sm:$0xff]
        %v5307 = vld [vmem:[%s5304 + $0x10] sm:$0xff]
        %v5308 = vld [vmem:[%s5304 + $0x18] sm:$0xff]
        %5310 = vset.pattern.permute.xlu0 0
        %5311 = vperm.xlu0 %5310, %v5305
        %v5312 = vpop.permute.xlu0 %5311
        %5315 = vset.pattern.permute.xlu0 0
        %5316 = vperm.xlu0 %5315, %v5306
        %v5317 = vpop.permute.xlu0 %5316
        %5320 = vset.pattern.permute.xlu0 0
        %5321 = vperm.xlu0 %5320, %v5307
        %v5322 = vpop.permute.xlu0 %5321
        %5325 = vset.pattern.permute.xlu0 0
        %5326 = vperm.xlu0 %5325, %v5308
        %v5327 = vpop.permute.xlu0 %5326
        %v5329 = vadd.f32 %v5300, %v5312
        %v5330 = vadd.f32 %v5301, %v5317
        %v5331 = vadd.f32 %v5302, %v5322
        %v5332 = vadd.f32 %v5303, %v5327
        %v5333 = vmul.f32 %v5329, 0.5
        %v5334 = vmul.f32 %v5330, 0.5
        %v5335 = vmul.f32 %v5331, 0.5
        %v5336 = vmul.f32 %v5332, 0.5
        %v5337 = vmul.f32 %v5329, 0.70710677
        %v5338 = vmul.f32 %v5330, 0.70710677
        %v5339 = vmul.f32 %v5331, 0.70710677
        %v5340 = vmul.f32 %v5332, 0.70710677
        %v5341 = verf.f32.pop %v5337
        %v5342 = verf.f32.pop %v5338
        %v5343 = verf.f32.pop %v5339
        %v5344 = verf.f32.pop %v5340
        %v5345 = vadd.f32 %v5341, 1.0
        %v5346 = vadd.f32 %v5342, 1.0
        %v5347 = vadd.f32 %v5343, 1.0
        %v5348 = vadd.f32 %v5344, 1.0
        %v5349 = vmul.f32 %v5333, %v5345
        %v5350 = vmul.f32 %v5334, %v5346
        %v5351 = vmul.f32 %v5335, %v5347
        %v5352 = vmul.f32 %v5336, %v5348
        %v5353 = vld [vmem:[%s3 + $0x3e0] sm:$0xff]
        %v5354 = vld [vmem:[%s3 + $0x3e8] sm:$0xff]
        %v5355 = vld [vmem:[%s3 + $0x3f0] sm:$0xff]
        %v5356 = vld [vmem:[%s3 + $0x3f8] sm:$0xff]
        %v5357 = vld [vmem:[%s3 + $0x400] sm:$0xff]
        %v5358 = vld [vmem:[%s3 + $0x408] sm:$0xff]
        %v5359 = vld [vmem:[%s3 + $0x410] sm:$0xff]
        %v5360 = vld [vmem:[%s3 + $0x418] sm:$0xff]
        %v5361 = vld [vmem:[%s3 + $0x420] sm:$0xff]
        %v5362 = vld [vmem:[%s3 + $0x428] sm:$0xff]
        %v5363 = vld [vmem:[%s3 + $0x430] sm:$0xff]
        %v5364 = vld [vmem:[%s3 + $0x438] sm:$0xff]
        %v5365 = vld [vmem:[%s3 + $0x440] sm:$0xff]
        %v5366 = vld [vmem:[%s3 + $0x448] sm:$0xff]
        %v5367 = vld [vmem:[%s3 + $0x450] sm:$0xff]
        %v5368 = vld [vmem:[%s3 + $0x458] sm:$0xff]
        %v5369 = vld [vmem:[%s3 + $0x460] sm:$0xff]
        %v5370 = vld [vmem:[%s3 + $0x468] sm:$0xff]
        %v5371 = vld [vmem:[%s3 + $0x470] sm:$0xff]
        %v5372 = vld [vmem:[%s3 + $0x478] sm:$0xff]
        %v5373 = vld [vmem:[%s3 + $0x480] sm:$0xff]
        %v5374 = vld [vmem:[%s3 + $0x488] sm:$0xff]
        %v5375 = vld [vmem:[%s3 + $0x490] sm:$0xff]
        %v5376 = vld [vmem:[%s3 + $0x498] sm:$0xff]
        %v5377 = vld [vmem:[%s3 + $0x4a0] sm:$0xff]
        %v5378 = vld [vmem:[%s3 + $0x4a8] sm:$0xff]
        %v5379 = vld [vmem:[%s3 + $0x4b0] sm:$0xff]
        %v5380 = vld [vmem:[%s3 + $0x4b8] sm:$0xff]
        %v5381 = vld [vmem:[%s3 + $0x4c0] sm:$0xff]
        %v5382 = vld [vmem:[%s3 + $0x4c8] sm:$0xff]
        %v5383 = vld [vmem:[%s3 + $0x4d0] sm:$0xff]
        %v5384 = vld [vmem:[%s3 + $0x4d8] sm:$0xff]
        %v5385 = vld [vmem:[%s3 + $0x4e0] sm:$0xff]
        %v5386 = vld [vmem:[%s3 + $0x4e8] sm:$0xff]
        %v5387 = vld [vmem:[%s3 + $0x4f0] sm:$0xff]
        %v5388 = vld [vmem:[%s3 + $0x4f8] sm:$0xff]
        %v5389 = vld [vmem:[%s3 + $0x500] sm:$0xff]
        %v5390 = vld [vmem:[%s3 + $0x508] sm:$0xff]
        %v5391 = vld [vmem:[%s3 + $0x510] sm:$0xff]
        %v5392 = vld [vmem:[%s3 + $0x518] sm:$0xff]
        %v5393 = vld [vmem:[%s3 + $0x520] sm:$0xff]
        %v5394 = vld [vmem:[%s3 + $0x528] sm:$0xff]
        %v5395 = vld [vmem:[%s3 + $0x530] sm:$0xff]
        %v5396 = vld [vmem:[%s3 + $0x538] sm:$0xff]
        %v5397 = vld [vmem:[%s3 + $0x540] sm:$0xff]
        %v5398 = vld [vmem:[%s3 + $0x548] sm:$0xff]
        %v5399 = vld [vmem:[%s3 + $0x550] sm:$0xff]
        %v5400 = vld [vmem:[%s3 + $0x558] sm:$0xff]
        %v5401 = vld [vmem:[%s3 + $0x560] sm:$0xff]
        %v5402 = vld [vmem:[%s3 + $0x568] sm:$0xff]
        %v5403 = vld [vmem:[%s3 + $0x570] sm:$0xff]
        %v5404 = vld [vmem:[%s3 + $0x578] sm:$0xff]
        %v5405 = vld [vmem:[%s3 + $0x580] sm:$0xff]
        %v5406 = vld [vmem:[%s3 + $0x588] sm:$0xff]
        %v5407 = vld [vmem:[%s3 + $0x590] sm:$0xff]
        %v5408 = vld [vmem:[%s3 + $0x598] sm:$0xff]
        %v5409 = vld [vmem:[%s3 + $0x5a0] sm:$0xff]
        %v5410 = vld [vmem:[%s3 + $0x5a8] sm:$0xff]
        %v5411 = vld [vmem:[%s3 + $0x5b0] sm:$0xff]
        %v5412 = vld [vmem:[%s3 + $0x5b8] sm:$0xff]
        %v5414 = vsel %vm301, %v5353, 0
        %v5417 = vsel %vm301, %v5354, 0
        %v5420 = vsel %vm301, %v5355, 0
        %v5423 = vsel %vm301, %v5356, 0
        %v5426 = vsel %vm301, %v5357, 0
        %v5429 = vsel %vm301, %v5358, 0
        %v5432 = vsel %vm301, %v5359, 0
        %v5435 = vsel %vm301, %v5360, 0
        %v5438 = vsel %vm301, %v5361, 0
        %v5441 = vsel %vm301, %v5362, 0
        %v5444 = vsel %vm301, %v5363, 0
        %v5447 = vsel %vm301, %v5364, 0
        %v5450 = vsel %vm301, %v5365, 0
        %v5453 = vsel %vm301, %v5366, 0
        %v5456 = vsel %vm301, %v5367, 0
        %v5459 = vsel %vm301, %v5368, 0
        %v5462 = vsel %vm301, %v5369, 0
        %v5465 = vsel %vm301, %v5370, 0
        %v5468 = vsel %vm301, %v5371, 0
        %v5471 = vsel %vm301, %v5372, 0
        %v5474 = vsel %vm301, %v5373, 0
        %v5477 = vsel %vm301, %v5374, 0
        %v5480 = vsel %vm301, %v5375, 0
        %v5483 = vsel %vm301, %v5376, 0
        %v5486 = vsel %vm301, %v5377, 0
        %v5489 = vsel %vm301, %v5378, 0
        %v5492 = vsel %vm301, %v5379, 0
        %v5495 = vsel %vm301, %v5380, 0
        %v5498 = vsel %vm301, %v5381, 0
        %v5501 = vsel %vm301, %v5382, 0
        %v5504 = vsel %vm301, %v5383, 0
        %v5507 = vsel %vm301, %v5384, 0
        %v5510 = vsel %vm301, %v5385, 0
        %v5513 = vsel %vm301, %v5386, 0
        %v5516 = vsel %vm301, %v5387, 0
        %v5519 = vsel %vm301, %v5388, 0
        %v5522 = vsel %vm301, %v5389, 0
        %v5525 = vsel %vm301, %v5390, 0
        %v5528 = vsel %vm301, %v5391, 0
        %v5531 = vsel %vm301, %v5392, 0
        %v5534 = vsel %vm301, %v5393, 0
        %v5537 = vsel %vm301, %v5394, 0
        %v5540 = vsel %vm301, %v5395, 0
        %v5543 = vsel %vm301, %v5396, 0
        %v5546 = vsel %vm301, %v5397, 0
        %v5549 = vsel %vm301, %v5398, 0
        %v5552 = vsel %vm301, %v5399, 0
        %v5555 = vsel %vm301, %v5400, 0
        %v5558 = vsel %vm301, %v5401, 0
        %v5561 = vsel %vm301, %v5402, 0
        %v5564 = vsel %vm301, %v5403, 0
        %v5567 = vsel %vm301, %v5404, 0
        %v5570 = vsel %vm301, %v5405, 0
        %v5573 = vsel %vm301, %v5406, 0
        %v5576 = vsel %vm301, %v5407, 0
        %v5579 = vsel %vm301, %v5408, 0
        %v5582 = vsel %vm301, %v5409, 0
        %v5585 = vsel %vm301, %v5410, 0
        %v5588 = vsel %vm301, %v5411, 0
        %v5591 = vsel %vm301, %v5412, 0
        %5593 = vmatprep.subr.mxu0 0.0
        %5594 = vmatpush1.msra.mxu0 0.0
        %5595 = vmatprep.subr.mxu0 0.0
        %5596 = vmatpush1.msra.mxu0 0.0
        %5597 = vmatprep.subr.mxu0 0.0
        %5598 = vmatpush1.msra.mxu0 0.0
        %5599 = vmatprep.subr.mxu0 0.0
        %5600 = vmatpush1.msra.mxu0 0.0
        %5601 = vmatprep.subr.mxu0 0.0
        %5602 = vmatpush1.msra.mxu0 0.0
        %5603 = vmatprep.subr.mxu0 0.0
        %5604 = vmatpush1.msra.mxu0 0.0
        %5605 = vmatprep.subr.mxu0 0.0
        %5606 = vmatpush1.msra.mxu0 0.0
        %5607 = vmatprep.subr.mxu0 0.0
        %5608 = vmatpush1.msra.mxu0 0.0
        %5609 = vmatprep.subr.mxu0 0.0
        %5610 = vmatpush1.msra.mxu0 0.0
        %5611 = vmatprep.subr.mxu0 0.0
        %5612 = vmatpush1.msra.mxu0 0.0
        %5613 = vmatprep.subr.mxu0 0.0
        %5614 = vmatpush1.msra.mxu0 0.0
        %5615 = vmatprep.subr.mxu0 0.0
        %5616 = vmatpush1.msra.mxu0 0.0
        %5617 = vmatprep.subr.mxu0 0.0
        %5618 = vmatpush1.msra.mxu0 %v5352
        %5619 = vmatprep.subr.mxu0 0.0
        %5620 = vmatpush1.msra.mxu0 %v5351
        %5621 = vmatprep.subr.mxu0 0.0
        %5622 = vmatpush1.msra.mxu0 %v5350
        %5623 = vmatprep.subr.mxu0 0.0
        %5624 = vmatpush1.msra.mxu0 %v5349
        %5625 = vmatprep.subr.mxu0 0.0
        %5626 = vmatpush2.msra.mxu0 0.0
        %5627 = vmatprep.subr.mxu0 0.0
        %5628 = vmatpush2.msra.mxu0 0.0
        %5629 = vmatprep.subr.mxu0 0.0
        %5630 = vmatpush2.msra.mxu0 0.0
        %5631 = vmatprep.subr.mxu0 0.0
        %5632 = vmatpush2.msra.mxu0 0.0
        %5633 = vmatprep.subr.mxu0 0.0
        %5634 = vmatpush2.msra.mxu0 0.0
        %5635 = vmatprep.subr.mxu0 0.0
        %5636 = vmatpush2.msra.mxu0 0.0
        %5637 = vmatprep.subr.mxu0 0.0
        %5638 = vmatpush2.msra.mxu0 0.0
        %5639 = vmatprep.subr.mxu0 0.0
        %5640 = vmatpush2.msra.mxu0 0.0
        %5641 = vmatprep.subr.mxu0 0.0
        %5642 = vmatpush2.msra.mxu0 0.0
        %5643 = vmatprep.subr.mxu0 0.0
        %5644 = vmatpush2.msra.mxu0 0.0
        %5645 = vmatprep.subr.mxu0 0.0
        %5646 = vmatpush2.msra.mxu0 0.0
        %5647 = vmatprep.subr.mxu0 0.0
        %5648 = vmatpush2.msra.mxu0 0.0
        %5649 = vmatprep.subr.mxu0 0.0
        %5650 = vmatpush2.msra.mxu0 0.0
        %5651 = vmatprep.subr.mxu0 0.0
        %5652 = vmatpush2.msra.mxu0 0.0
        %5653 = vmatprep.subr.mxu0 0.0
        %5654 = vmatpush2.msra.mxu0 0.0
        %5655 = vmatprep.subr.mxu0 0.0
        %5656 = vmatpush2.msra.mxu0 0.0
        %5657 = vmatprep.mubr.f32.mxu0 0.0
        %5658 = vmatmul.mubr.f32.gmra.mxu0 %v5414
        %v5659 = vpop.f32.mrf.mxu0
        %v5660 = vadd.f32 0.0, %v5659
        %v5661 = vpop.f32.mrf.mxu0
        %5662 = vmatprep.mubr.f32.mxu0 0.0
        %5663 = vmatmul.mubr.f32.gmra.mxu0 %v5417
        %v5664 = vpop.f32.mrf.mxu0
        %v5665 = vadd.f32 0.0, %v5664
        %v5666 = vpop.f32.mrf.mxu0
        %5667 = vmatprep.mubr.f32.mxu0 0.0
        %5668 = vmatmul.mubr.f32.gmra.mxu0 %v5420
        %v5669 = vpop.f32.mrf.mxu0
        %v5670 = vadd.f32 0.0, %v5669
        %v5671 = vpop.f32.mrf.mxu0
        %5672 = vmatprep.mubr.f32.mxu0 0.0
        %5673 = vmatmul.mubr.f32.gmra.mxu0 %v5423
        %v5674 = vpop.f32.mrf.mxu0
        %v5675 = vadd.f32 0.0, %v5674
        %v5676 = vpop.f32.mrf.mxu0
        %5677 = vmatprep.mubr.f32.mxu0 0.0
        %5678 = vmatmul.mubr.f32.gmra.mxu0 %v5426
        %v5679 = vpop.f32.mrf.mxu0
        %v5680 = vadd.f32 0.0, %v5679
        %v5681 = vpop.f32.mrf.mxu0
        %5682 = vmatprep.mubr.f32.mxu0 0.0
        %5683 = vmatmul.mubr.f32.gmra.mxu0 %v5429
        %v5684 = vpop.f32.mrf.mxu0
        %v5685 = vadd.f32 0.0, %v5684
        %v5686 = vpop.f32.mrf.mxu0
        %5687 = vmatprep.mubr.f32.mxu0 0.0
        %5688 = vmatmul.mubr.f32.gmra.mxu0 %v5432
        %v5689 = vpop.f32.mrf.mxu0
        %v5690 = vadd.f32 0.0, %v5689
        %v5691 = vpop.f32.mrf.mxu0
        %5692 = vmatprep.mubr.f32.mxu0 0.0
        %5693 = vmatmul.mubr.f32.gmra.mxu0 %v5435
        %v5694 = vpop.f32.mrf.mxu0
        %v5695 = vadd.f32 0.0, %v5694
        %v5696 = vpop.f32.mrf.mxu0
        %5697 = vmatprep.mubr.f32.mxu0 0.0
        %5698 = vmatmul.mubr.f32.gmra.mxu0 %v5438
        %v5699 = vpop.f32.mrf.mxu0
        %v5700 = vadd.f32 0.0, %v5699
        %v5701 = vpop.f32.mrf.mxu0
        %5702 = vmatprep.mubr.f32.mxu0 0.0
        %5703 = vmatmul.mubr.f32.gmra.mxu0 %v5441
        %v5704 = vpop.f32.mrf.mxu0
        %v5705 = vadd.f32 0.0, %v5704
        %v5706 = vpop.f32.mrf.mxu0
        %5707 = vmatprep.mubr.f32.mxu0 0.0
        %5708 = vmatmul.mubr.f32.gmra.mxu0 %v5444
        %v5709 = vpop.f32.mrf.mxu0
        %v5710 = vadd.f32 0.0, %v5709
        %v5711 = vpop.f32.mrf.mxu0
        %5712 = vmatprep.mubr.f32.mxu0 0.0
        %5713 = vmatmul.mubr.f32.gmra.mxu0 %v5447
        %v5714 = vpop.f32.mrf.mxu0
        %v5715 = vadd.f32 0.0, %v5714
        %v5716 = vpop.f32.mrf.mxu0
        %5717 = vmatprep.mubr.f32.mxu0 0.0
        %5718 = vmatmul.mubr.f32.gmra.mxu0 %v5450
        %v5719 = vpop.f32.mrf.mxu0
        %v5720 = vadd.f32 0.0, %v5719
        %v5721 = vpop.f32.mrf.mxu0
        %5722 = vmatprep.mubr.f32.mxu0 0.0
        %5723 = vmatmul.mubr.f32.gmra.mxu0 %v5453
        %v5724 = vpop.f32.mrf.mxu0
        %v5725 = vadd.f32 0.0, %v5724
        %v5726 = vpop.f32.mrf.mxu0
        %5727 = vmatprep.mubr.f32.mxu0 0.0
        %5728 = vmatmul.mubr.f32.gmra.mxu0 %v5456
        %v5729 = vpop.f32.mrf.mxu0
        %v5730 = vadd.f32 0.0, %v5729
        %v5731 = vpop.f32.mrf.mxu0
        %5732 = vmatprep.mubr.f32.mxu0 0.0
        %5733 = vmatmul.mubr.f32.gmra.mxu0 %v5459
        %v5734 = vpop.f32.mrf.mxu0
        %v5735 = vadd.f32 0.0, %v5734
        %v5736 = vpop.f32.mrf.mxu0
        %5737 = vmatprep.mubr.f32.mxu0 0.0
        %5738 = vmatmul.mubr.f32.gmra.mxu0 %v5462
        %v5739 = vpop.f32.mrf.mxu0
        %v5740 = vadd.f32 0.0, %v5739
        %v5741 = vpop.f32.mrf.mxu0
        %5742 = vmatprep.mubr.f32.mxu0 0.0
        %5743 = vmatmul.mubr.f32.gmra.mxu0 %v5465
        %v5744 = vpop.f32.mrf.mxu0
        %v5745 = vadd.f32 0.0, %v5744
        %v5746 = vpop.f32.mrf.mxu0
        %5747 = vmatprep.mubr.f32.mxu0 0.0
        %5748 = vmatmul.mubr.f32.gmra.mxu0 %v5468
        %v5749 = vpop.f32.mrf.mxu0
        %v5750 = vadd.f32 0.0, %v5749
        %v5751 = vpop.f32.mrf.mxu0
        %5752 = vmatprep.mubr.f32.mxu0 0.0
        %5753 = vmatmul.mubr.f32.gmra.mxu0 %v5471
        %v5754 = vpop.f32.mrf.mxu0
        %v5755 = vadd.f32 0.0, %v5754
        %v5756 = vpop.f32.mrf.mxu0
        %5757 = vmatprep.mubr.f32.mxu0 0.0
        %5758 = vmatmul.mubr.f32.gmra.mxu0 %v5474
        %v5759 = vpop.f32.mrf.mxu0
        %v5760 = vadd.f32 0.0, %v5759
        %v5761 = vpop.f32.mrf.mxu0
        %5762 = vmatprep.mubr.f32.mxu0 0.0
        %5763 = vmatmul.mubr.f32.gmra.mxu0 %v5477
        %v5764 = vpop.f32.mrf.mxu0
        %v5765 = vadd.f32 0.0, %v5764
        %v5766 = vpop.f32.mrf.mxu0
        %5767 = vmatprep.mubr.f32.mxu0 0.0
        %5768 = vmatmul.mubr.f32.gmra.mxu0 %v5480
        %v5769 = vpop.f32.mrf.mxu0
        %v5770 = vadd.f32 0.0, %v5769
        %v5771 = vpop.f32.mrf.mxu0
        %5772 = vmatprep.mubr.f32.mxu0 0.0
        %5773 = vmatmul.mubr.f32.gmra.mxu0 %v5483
        %v5774 = vpop.f32.mrf.mxu0
        %v5775 = vadd.f32 0.0, %v5774
        %v5776 = vpop.f32.mrf.mxu0
        %5777 = vmatprep.mubr.f32.mxu0 0.0
        %5778 = vmatmul.mubr.f32.gmra.mxu0 %v5486
        %v5779 = vpop.f32.mrf.mxu0
        %v5780 = vadd.f32 0.0, %v5779
        %v5781 = vpop.f32.mrf.mxu0
        %5782 = vmatprep.mubr.f32.mxu0 0.0
        %5783 = vmatmul.mubr.f32.gmra.mxu0 %v5489
        %v5784 = vpop.f32.mrf.mxu0
        %v5785 = vadd.f32 0.0, %v5784
        %v5786 = vpop.f32.mrf.mxu0
        %5787 = vmatprep.mubr.f32.mxu0 0.0
        %5788 = vmatmul.mubr.f32.gmra.mxu0 %v5492
        %v5789 = vpop.f32.mrf.mxu0
        %v5790 = vadd.f32 0.0, %v5789
        %v5791 = vpop.f32.mrf.mxu0
        %5792 = vmatprep.mubr.f32.mxu0 0.0
        %5793 = vmatmul.mubr.f32.gmra.mxu0 %v5495
        %v5794 = vpop.f32.mrf.mxu0
        %v5795 = vadd.f32 0.0, %v5794
        %v5796 = vpop.f32.mrf.mxu0
        %5797 = vmatprep.mubr.f32.mxu0 0.0
        %5798 = vmatmul.mubr.f32.gmra.mxu0 %v5498
        %v5799 = vpop.f32.mrf.mxu0
        %v5800 = vadd.f32 0.0, %v5799
        %v5801 = vpop.f32.mrf.mxu0
        %5802 = vmatprep.mubr.f32.mxu0 0.0
        %5803 = vmatmul.mubr.f32.gmra.mxu0 %v5501
        %v5804 = vpop.f32.mrf.mxu0
        %v5805 = vadd.f32 0.0, %v5804
        %v5806 = vpop.f32.mrf.mxu0
        %5807 = vmatprep.mubr.f32.mxu0 0.0
        %5808 = vmatmul.mubr.f32.gmra.mxu0 %v5504
        %v5809 = vpop.f32.mrf.mxu0
        %v5810 = vadd.f32 0.0, %v5809
        %v5811 = vpop.f32.mrf.mxu0
        %5812 = vmatprep.mubr.f32.mxu0 0.0
        %5813 = vmatmul.mubr.f32.gmra.mxu0 %v5507
        %v5814 = vpop.f32.mrf.mxu0
        %v5815 = vadd.f32 0.0, %v5814
        %v5816 = vpop.f32.mrf.mxu0
        %5817 = vmatprep.mubr.f32.mxu0 0.0
        %5818 = vmatmul.mubr.f32.gmra.mxu0 %v5510
        %v5819 = vpop.f32.mrf.mxu0
        %v5820 = vadd.f32 0.0, %v5819
        %v5821 = vpop.f32.mrf.mxu0
        %5822 = vmatprep.mubr.f32.mxu0 0.0
        %5823 = vmatmul.mubr.f32.gmra.mxu0 %v5513
        %v5824 = vpop.f32.mrf.mxu0
        %v5825 = vadd.f32 0.0, %v5824
        %v5826 = vpop.f32.mrf.mxu0
        %5827 = vmatprep.mubr.f32.mxu0 0.0
        %5828 = vmatmul.mubr.f32.gmra.mxu0 %v5516
        %v5829 = vpop.f32.mrf.mxu0
        %v5830 = vadd.f32 0.0, %v5829
        %v5831 = vpop.f32.mrf.mxu0
        %5832 = vmatprep.mubr.f32.mxu0 0.0
        %5833 = vmatmul.mubr.f32.gmra.mxu0 %v5519
        %v5834 = vpop.f32.mrf.mxu0
        %v5835 = vadd.f32 0.0, %v5834
        %v5836 = vpop.f32.mrf.mxu0
        %5837 = vmatprep.mubr.f32.mxu0 0.0
        %5838 = vmatmul.mubr.f32.gmra.mxu0 %v5522
        %v5839 = vpop.f32.mrf.mxu0
        %v5840 = vadd.f32 0.0, %v5839
        %v5841 = vpop.f32.mrf.mxu0
        %5842 = vmatprep.mubr.f32.mxu0 0.0
        %5843 = vmatmul.mubr.f32.gmra.mxu0 %v5525
        %v5844 = vpop.f32.mrf.mxu0
        %v5845 = vadd.f32 0.0, %v5844
        %v5846 = vpop.f32.mrf.mxu0
        %5847 = vmatprep.mubr.f32.mxu0 0.0
        %5848 = vmatmul.mubr.f32.gmra.mxu0 %v5528
        %v5849 = vpop.f32.mrf.mxu0
        %v5850 = vadd.f32 0.0, %v5849
        %v5851 = vpop.f32.mrf.mxu0
        %5852 = vmatprep.mubr.f32.mxu0 0.0
        %5853 = vmatmul.mubr.f32.gmra.mxu0 %v5531
        %v5854 = vpop.f32.mrf.mxu0
        %v5855 = vadd.f32 0.0, %v5854
        %v5856 = vpop.f32.mrf.mxu0
        %5857 = vmatprep.mubr.f32.mxu0 0.0
        %5858 = vmatmul.mubr.f32.gmra.mxu0 %v5534
        %v5859 = vpop.f32.mrf.mxu0
        %v5860 = vadd.f32 0.0, %v5859
        %v5861 = vpop.f32.mrf.mxu0
        %5862 = vmatprep.mubr.f32.mxu0 0.0
        %5863 = vmatmul.mubr.f32.gmra.mxu0 %v5537
        %v5864 = vpop.f32.mrf.mxu0
        %v5865 = vadd.f32 0.0, %v5864
        %v5866 = vpop.f32.mrf.mxu0
        %5867 = vmatprep.mubr.f32.mxu0 0.0
        %5868 = vmatmul.mubr.f32.gmra.mxu0 %v5540
        %v5869 = vpop.f32.mrf.mxu0
        %v5870 = vadd.f32 0.0, %v5869
        %v5871 = vpop.f32.mrf.mxu0
        %5872 = vmatprep.mubr.f32.mxu0 0.0
        %5873 = vmatmul.mubr.f32.gmra.mxu0 %v5543
        %v5874 = vpop.f32.mrf.mxu0
        %v5875 = vadd.f32 0.0, %v5874
        %v5876 = vpop.f32.mrf.mxu0
        %5877 = vmatprep.mubr.f32.mxu0 0.0
        %5878 = vmatmul.mubr.f32.gmra.mxu0 %v5546
        %v5879 = vpop.f32.mrf.mxu0
        %v5880 = vadd.f32 0.0, %v5879
        %v5881 = vpop.f32.mrf.mxu0
        %5882 = vmatprep.mubr.f32.mxu0 0.0
        %5883 = vmatmul.mubr.f32.gmra.mxu0 %v5549
        %v5884 = vpop.f32.mrf.mxu0
        %v5885 = vadd.f32 0.0, %v5884
        %v5886 = vpop.f32.mrf.mxu0
        %5887 = vmatprep.mubr.f32.mxu0 0.0
        %5888 = vmatmul.mubr.f32.gmra.mxu0 %v5552
        %v5889 = vpop.f32.mrf.mxu0
        %v5890 = vadd.f32 0.0, %v5889
        %v5891 = vpop.f32.mrf.mxu0
        %5892 = vmatprep.mubr.f32.mxu0 0.0
        %5893 = vmatmul.mubr.f32.gmra.mxu0 %v5555
        %v5894 = vpop.f32.mrf.mxu0
        %v5895 = vadd.f32 0.0, %v5894
        %v5896 = vpop.f32.mrf.mxu0
        %5897 = vmatprep.mubr.f32.mxu0 0.0
        %5898 = vmatmul.mubr.f32.gmra.mxu0 %v5558
        %v5899 = vpop.f32.mrf.mxu0
        %v5900 = vadd.f32 0.0, %v5899
        %v5901 = vpop.f32.mrf.mxu0
        %5902 = vmatprep.mubr.f32.mxu0 0.0
        %5903 = vmatmul.mubr.f32.gmra.mxu0 %v5561
        %v5904 = vpop.f32.mrf.mxu0
        %v5905 = vadd.f32 0.0, %v5904
        %v5906 = vpop.f32.mrf.mxu0
        %5907 = vmatprep.mubr.f32.mxu0 0.0
        %5908 = vmatmul.mubr.f32.gmra.mxu0 %v5564
        %v5909 = vpop.f32.mrf.mxu0
        %v5910 = vadd.f32 0.0, %v5909
        %v5911 = vpop.f32.mrf.mxu0
        %5912 = vmatprep.mubr.f32.mxu0 0.0
        %5913 = vmatmul.mubr.f32.gmra.mxu0 %v5567
        %v5914 = vpop.f32.mrf.mxu0
        %v5915 = vadd.f32 0.0, %v5914
        %v5916 = vpop.f32.mrf.mxu0
        %5917 = vmatprep.mubr.f32.mxu0 0.0
        %5918 = vmatmul.mubr.f32.gmra.mxu0 %v5570
        %v5919 = vpop.f32.mrf.mxu0
        %v5920 = vadd.f32 0.0, %v5919
        %v5921 = vpop.f32.mrf.mxu0
        %5922 = vmatprep.mubr.f32.mxu0 0.0
        %5923 = vmatmul.mubr.f32.gmra.mxu0 %v5573
        %v5924 = vpop.f32.mrf.mxu0
        %v5925 = vadd.f32 0.0, %v5924
        %v5926 = vpop.f32.mrf.mxu0
        %5927 = vmatprep.mubr.f32.mxu0 0.0
        %5928 = vmatmul.mubr.f32.gmra.mxu0 %v5576
        %v5929 = vpop.f32.mrf.mxu0
        %v5930 = vadd.f32 0.0, %v5929
        %v5931 = vpop.f32.mrf.mxu0
        %5932 = vmatprep.mubr.f32.mxu0 0.0
        %5933 = vmatmul.mubr.f32.gmra.mxu0 %v5579
        %v5934 = vpop.f32.mrf.mxu0
        %v5935 = vadd.f32 0.0, %v5934
        %v5936 = vpop.f32.mrf.mxu0
        %5937 = vmatprep.mubr.f32.mxu0 0.0
        %5938 = vmatmul.mubr.f32.gmra.mxu0 %v5582
        %v5939 = vpop.f32.mrf.mxu0
        %v5940 = vadd.f32 0.0, %v5939
        %v5941 = vpop.f32.mrf.mxu0
        %5942 = vmatprep.mubr.f32.mxu0 0.0
        %5943 = vmatmul.mubr.f32.gmra.mxu0 %v5585
        %v5944 = vpop.f32.mrf.mxu0
        %v5945 = vadd.f32 0.0, %v5944
        %v5946 = vpop.f32.mrf.mxu0
        %5947 = vmatprep.mubr.f32.mxu0 0.0
        %5948 = vmatmul.mubr.f32.gmra.mxu0 %v5588
        %v5949 = vpop.f32.mrf.mxu0
        %v5950 = vadd.f32 0.0, %v5949
        %v5951 = vpop.f32.mrf.mxu0
        %5952 = vmatprep.mubr.f32.mxu0 0.0
        %5953 = vmatmul.mubr.f32.gmra.mxu0 %v5591
        %v5954 = vpop.f32.mrf.mxu0
        %v5955 = vadd.f32 0.0, %v5954
        %v5956 = vpop.f32.mrf.mxu0
        %5957 = vdwg.mxu0
        %s5958 = scalar_lea.vmem [#allocation6], 1984
        %v5959 = vld [vmem:[%s5958] sm:$0xff]
        %v5960 = vld [vmem:[%s5958 + $0x8] sm:$0xff]
        %v5961 = vld [vmem:[%s5958 + $0x10] sm:$0xff]
        %v5962 = vld [vmem:[%s5958 + $0x18] sm:$0xff]
        %v5963 = vld [vmem:[%s5958 + $0x20] sm:$0xff]
        %v5964 = vld [vmem:[%s5958 + $0x28] sm:$0xff]
        %v5965 = vld [vmem:[%s5958 + $0x30] sm:$0xff]
        %v5966 = vld [vmem:[%s5958 + $0x38] sm:$0xff]
        %s5967 = scalar_lea.vmem [#allocation6], 2048
        %v5968 = vld [vmem:[%s5967] sm:$0xff]
        %v5969 = vld [vmem:[%s5967 + $0x8] sm:$0xff]
        %v5970 = vld [vmem:[%s5967 + $0x10] sm:$0xff]
        %v5971 = vld [vmem:[%s5967 + $0x18] sm:$0xff]
        %v5972 = vld [vmem:[%s5967 + $0x20] sm:$0xff]
        %v5973 = vld [vmem:[%s5967 + $0x28] sm:$0xff]
        %v5974 = vld [vmem:[%s5967 + $0x30] sm:$0xff]
        %v5975 = vld [vmem:[%s5967 + $0x38] sm:$0xff]
        %v5977 = vsel %vm431, %v5680, 0
        %v5980 = vsel %vm431, %v5685, 0
        %v5983 = vsel %vm431, %v5690, 0
        %v5986 = vsel %vm431, %v5695, 0
        %5988 = vmatprep.subr.mxu0 0.0
        %5989 = vmatpush1.msra.mxu0 0.0
        %5990 = vmatprep.subr.mxu0 0.0
        %5991 = vmatpush1.msra.mxu0 0.0
        %5992 = vmatprep.subr.mxu0 0.0
        %5993 = vmatpush1.msra.mxu0 0.0
        %5994 = vmatprep.subr.mxu0 0.0
        %5995 = vmatpush1.msra.mxu0 0.0
        %5996 = vmatprep.subr.mxu0 0.0
        %5997 = vmatpush1.msra.mxu0 0.0
        %5998 = vmatprep.subr.mxu0 0.0
        %5999 = vmatpush1.msra.mxu0 0.0
        %6000 = vmatprep.subr.mxu0 0.0
        %6001 = vmatpush1.msra.mxu0 0.0
        %6002 = vmatprep.subr.mxu0 0.0
        %6003 = vmatpush1.msra.mxu0 0.0
        %6004 = vmatprep.subr.mxu0 0.0
        %6005 = vmatpush1.msra.mxu0 %v5975
        %6006 = vmatprep.subr.mxu0 0.0
        %6007 = vmatpush1.msra.mxu0 %v5974
        %6008 = vmatprep.subr.mxu0 0.0
        %6009 = vmatpush1.msra.mxu0 %v5973
        %6010 = vmatprep.subr.mxu0 0.0
        %6011 = vmatpush1.msra.mxu0 %v5972
        %6012 = vmatprep.subr.mxu0 0.0
        %6013 = vmatpush1.msra.mxu0 %v5971
        %6014 = vmatprep.subr.mxu0 0.0
        %6015 = vmatpush1.msra.mxu0 %v5970
        %6016 = vmatprep.subr.mxu0 0.0
        %6017 = vmatpush1.msra.mxu0 %v5969
        %6018 = vmatprep.subr.mxu0 0.0
        %6019 = vmatpush1.msra.mxu0 %v5968
        %6020 = vmatprep.subr.mxu0 0.0
        %6021 = vmatpush2.msra.mxu0 0.0
        %6022 = vmatprep.subr.mxu0 0.0
        %6023 = vmatpush2.msra.mxu0 0.0
        %6024 = vmatprep.subr.mxu0 0.0
        %6025 = vmatpush2.msra.mxu0 0.0
        %6026 = vmatprep.subr.mxu0 0.0
        %6027 = vmatpush2.msra.mxu0 0.0
        %6028 = vmatprep.subr.mxu0 0.0
        %6029 = vmatpush2.msra.mxu0 0.0
        %6030 = vmatprep.subr.mxu0 0.0
        %6031 = vmatpush2.msra.mxu0 0.0
        %6032 = vmatprep.subr.mxu0 0.0
        %6033 = vmatpush2.msra.mxu0 0.0
        %6034 = vmatprep.subr.mxu0 0.0
        %6035 = vmatpush2.msra.mxu0 0.0
        %6036 = vmatprep.subr.mxu0 0.0
        %6037 = vmatpush2.msra.mxu0 0.0
        %6038 = vmatprep.subr.mxu0 0.0
        %6039 = vmatpush2.msra.mxu0 0.0
        %6040 = vmatprep.subr.mxu0 0.0
        %6041 = vmatpush2.msra.mxu0 0.0
        %6042 = vmatprep.subr.mxu0 0.0
        %6043 = vmatpush2.msra.mxu0 0.0
        %6044 = vmatprep.subr.mxu0 0.0
        %6045 = vmatpush2.msra.mxu0 0.0
        %6046 = vmatprep.subr.mxu0 0.0
        %6047 = vmatpush2.msra.mxu0 0.0
        %6048 = vmatprep.subr.mxu0 0.0
        %6049 = vmatpush2.msra.mxu0 0.0
        %6050 = vmatprep.subr.mxu0 0.0
        %6051 = vmatpush2.msra.mxu0 0.0
        %6052 = vmatprep.mubr.f32.mxu0 0.0
        %6053 = vmatmul.mubr.f32.gmra.mxu0 %v5977
        %v6054 = vpop.f32.mrf.mxu0
        %v6055 = vadd.f32 0.0, %v6054
        %v6056 = vpop.f32.mrf.mxu0
        %6057 = vmatprep.mubr.f32.mxu0 0.0
        %6058 = vmatmul.mubr.f32.gmra.mxu0 %v5980
        %v6059 = vpop.f32.mrf.mxu0
        %v6060 = vadd.f32 0.0, %v6059
        %v6061 = vpop.f32.mrf.mxu0
        %6062 = vmatprep.mubr.f32.mxu0 0.0
        %6063 = vmatmul.mubr.f32.gmra.mxu0 %v5983
        %v6064 = vpop.f32.mrf.mxu0
        %v6065 = vpop.f32.mrf.mxu0
        %6066 = vmatprep.mubr.f32.mxu0 0.0
        %6067 = vmatmul.mubr.f32.gmra.mxu0 %v5986
        %v6068 = vpop.f32.mrf.mxu0
        %v6069 = vpop.f32.mrf.mxu0
        %6070 = vdwg.mxu0
        %v6072 = vsel %vm431, %v5660, 0
        %v6075 = vsel %vm431, %v5665, 0
        %v6078 = vsel %vm431, %v5670, 0
        %v6081 = vsel %vm431, %v5675, 0
        %6083 = vmatprep.subr.mxu0 0.0
        %6084 = vmatpush1.msra.mxu0 0.0
        %6085 = vmatprep.subr.mxu0 0.0
        %6086 = vmatpush1.msra.mxu0 0.0
        %6087 = vmatprep.subr.mxu0 0.0
        %6088 = vmatpush1.msra.mxu0 0.0
        %6089 = vmatprep.subr.mxu0 0.0
        %6090 = vmatpush1.msra.mxu0 0.0
        %6091 = vmatprep.subr.mxu0 0.0
        %6092 = vmatpush1.msra.mxu0 0.0
        %6093 = vmatprep.subr.mxu0 0.0
        %6094 = vmatpush1.msra.mxu0 0.0
        %6095 = vmatprep.subr.mxu0 0.0
        %6096 = vmatpush1.msra.mxu0 0.0
        %6097 = vmatprep.subr.mxu0 0.0
        %6098 = vmatpush1.msra.mxu0 0.0
        %6099 = vmatprep.subr.mxu0 0.0
        %6100 = vmatpush1.msra.mxu0 %v5966
        %6101 = vmatprep.subr.mxu0 0.0
        %6102 = vmatpush1.msra.mxu0 %v5965
        %6103 = vmatprep.subr.mxu0 0.0
        %6104 = vmatpush1.msra.mxu0 %v5964
        %6105 = vmatprep.subr.mxu0 0.0
        %6106 = vmatpush1.msra.mxu0 %v5963
        %6107 = vmatprep.subr.mxu0 0.0
        %6108 = vmatpush1.msra.mxu0 %v5962
        %6109 = vmatprep.subr.mxu0 0.0
        %6110 = vmatpush1.msra.mxu0 %v5961
        %6111 = vmatprep.subr.mxu0 0.0
        %6112 = vmatpush1.msra.mxu0 %v5960
        %6113 = vmatprep.subr.mxu0 0.0
        %6114 = vmatpush1.msra.mxu0 %v5959
        %6115 = vmatprep.subr.mxu0 0.0
        %6116 = vmatpush2.msra.mxu0 0.0
        %6117 = vmatprep.subr.mxu0 0.0
        %6118 = vmatpush2.msra.mxu0 0.0
        %6119 = vmatprep.subr.mxu0 0.0
        %6120 = vmatpush2.msra.mxu0 0.0
        %6121 = vmatprep.subr.mxu0 0.0
        %6122 = vmatpush2.msra.mxu0 0.0
        %6123 = vmatprep.subr.mxu0 0.0
        %6124 = vmatpush2.msra.mxu0 0.0
        %6125 = vmatprep.subr.mxu0 0.0
        %6126 = vmatpush2.msra.mxu0 0.0
        %6127 = vmatprep.subr.mxu0 0.0
        %6128 = vmatpush2.msra.mxu0 0.0
        %6129 = vmatprep.subr.mxu0 0.0
        %6130 = vmatpush2.msra.mxu0 0.0
        %6131 = vmatprep.subr.mxu0 0.0
        %6132 = vmatpush2.msra.mxu0 0.0
        %6133 = vmatprep.subr.mxu0 0.0
        %6134 = vmatpush2.msra.mxu0 0.0
        %6135 = vmatprep.subr.mxu0 0.0
        %6136 = vmatpush2.msra.mxu0 0.0
        %6137 = vmatprep.subr.mxu0 0.0
        %6138 = vmatpush2.msra.mxu0 0.0
        %6139 = vmatprep.subr.mxu0 0.0
        %6140 = vmatpush2.msra.mxu0 0.0
        %6141 = vmatprep.subr.mxu0 0.0
        %6142 = vmatpush2.msra.mxu0 0.0
        %6143 = vmatprep.subr.mxu0 0.0
        %6144 = vmatpush2.msra.mxu0 0.0
        %6145 = vmatprep.subr.mxu0 0.0
        %6146 = vmatpush2.msra.mxu0 0.0
        %6147 = vmatprep.mubr.f32.mxu0 0.0
        %6148 = vmatmul.mubr.f32.gmra.mxu0 %v6072
        %v6149 = vpop.f32.mrf.mxu0
        %v6150 = vadd.f32 %v6055, %v6149
        %v6151 = vpop.f32.mrf.mxu0
        %6152 = vmatprep.mubr.f32.mxu0 0.0
        %6153 = vmatmul.mubr.f32.gmra.mxu0 %v6075
        %v6154 = vpop.f32.mrf.mxu0
        %v6155 = vadd.f32 %v6060, %v6154
        %v6156 = vpop.f32.mrf.mxu0
        %6157 = vmatprep.mubr.f32.mxu0 0.0
        %6158 = vmatmul.mubr.f32.gmra.mxu0 %v6078
        %v6159 = vpop.f32.mrf.mxu0
        %v6160 = vpop.f32.mrf.mxu0
        %6161 = vmatprep.mubr.f32.mxu0 0.0
        %6162 = vmatmul.mubr.f32.gmra.mxu0 %v6081
        %v6163 = vpop.f32.mrf.mxu0
        %v6164 = vpop.f32.mrf.mxu0
        %6165 = vdwg.mxu0
        %s6166 = scalar_lea.vmem [#allocation6], 2112
        %v6167 = vld [vmem:[%s6166] sm:$0xff]
        %v6168 = vld [vmem:[%s6166 + $0x8] sm:$0xff]
        %v6169 = vld [vmem:[%s6166 + $0x10] sm:$0xff]
        %v6170 = vld [vmem:[%s6166 + $0x18] sm:$0xff]
        %v6171 = vld [vmem:[%s6166 + $0x20] sm:$0xff]
        %v6172 = vld [vmem:[%s6166 + $0x28] sm:$0xff]
        %v6173 = vld [vmem:[%s6166 + $0x30] sm:$0xff]
        %v6174 = vld [vmem:[%s6166 + $0x38] sm:$0xff]
        %v6176 = vsel %vm431, %v5700, 0
        %v6179 = vsel %vm431, %v5705, 0
        %v6182 = vsel %vm431, %v5710, 0
        %v6185 = vsel %vm431, %v5715, 0
        %6187 = vmatprep.subr.mxu0 0.0
        %6188 = vmatpush1.msra.mxu0 0.0
        %6189 = vmatprep.subr.mxu0 0.0
        %6190 = vmatpush1.msra.mxu0 0.0
        %6191 = vmatprep.subr.mxu0 0.0
        %6192 = vmatpush1.msra.mxu0 0.0
        %6193 = vmatprep.subr.mxu0 0.0
        %6194 = vmatpush1.msra.mxu0 0.0
        %6195 = vmatprep.subr.mxu0 0.0
        %6196 = vmatpush1.msra.mxu0 0.0
        %6197 = vmatprep.subr.mxu0 0.0
        %6198 = vmatpush1.msra.mxu0 0.0
        %6199 = vmatprep.subr.mxu0 0.0
        %6200 = vmatpush1.msra.mxu0 0.0
        %6201 = vmatprep.subr.mxu0 0.0
        %6202 = vmatpush1.msra.mxu0 0.0
        %6203 = vmatprep.subr.mxu0 0.0
        %6204 = vmatpush1.msra.mxu0 %v6174
        %6205 = vmatprep.subr.mxu0 0.0
        %6206 = vmatpush1.msra.mxu0 %v6173
        %6207 = vmatprep.subr.mxu0 0.0
        %6208 = vmatpush1.msra.mxu0 %v6172
        %6209 = vmatprep.subr.mxu0 0.0
        %6210 = vmatpush1.msra.mxu0 %v6171
        %6211 = vmatprep.subr.mxu0 0.0
        %6212 = vmatpush1.msra.mxu0 %v6170
        %6213 = vmatprep.subr.mxu0 0.0
        %6214 = vmatpush1.msra.mxu0 %v6169
        %6215 = vmatprep.subr.mxu0 0.0
        %6216 = vmatpush1.msra.mxu0 %v6168
        %6217 = vmatprep.subr.mxu0 0.0
        %6218 = vmatpush1.msra.mxu0 %v6167
        %6219 = vmatprep.subr.mxu0 0.0
        %6220 = vmatpush2.msra.mxu0 0.0
        %6221 = vmatprep.subr.mxu0 0.0
        %6222 = vmatpush2.msra.mxu0 0.0
        %6223 = vmatprep.subr.mxu0 0.0
        %6224 = vmatpush2.msra.mxu0 0.0
        %6225 = vmatprep.subr.mxu0 0.0
        %6226 = vmatpush2.msra.mxu0 0.0
        %6227 = vmatprep.subr.mxu0 0.0
        %6228 = vmatpush2.msra.mxu0 0.0
        %6229 = vmatprep.subr.mxu0 0.0
        %6230 = vmatpush2.msra.mxu0 0.0
        %6231 = vmatprep.subr.mxu0 0.0
        %6232 = vmatpush2.msra.mxu0 0.0
        %6233 = vmatprep.subr.mxu0 0.0
        %6234 = vmatpush2.msra.mxu0 0.0
        %6235 = vmatprep.subr.mxu0 0.0
        %6236 = vmatpush2.msra.mxu0 0.0
        %6237 = vmatprep.subr.mxu0 0.0
        %6238 = vmatpush2.msra.mxu0 0.0
        %6239 = vmatprep.subr.mxu0 0.0
        %6240 = vmatpush2.msra.mxu0 0.0
        %6241 = vmatprep.subr.mxu0 0.0
        %6242 = vmatpush2.msra.mxu0 0.0
        %6243 = vmatprep.subr.mxu0 0.0
        %6244 = vmatpush2.msra.mxu0 0.0
        %6245 = vmatprep.subr.mxu0 0.0
        %6246 = vmatpush2.msra.mxu0 0.0
        %6247 = vmatprep.subr.mxu0 0.0
        %6248 = vmatpush2.msra.mxu0 0.0
        %6249 = vmatprep.subr.mxu0 0.0
        %6250 = vmatpush2.msra.mxu0 0.0
        %6251 = vmatprep.mubr.f32.mxu0 0.0
        %6252 = vmatmul.mubr.f32.gmra.mxu0 %v6176
        %v6253 = vpop.f32.mrf.mxu0
        %v6254 = vadd.f32 0.0, %v6253
        %v6255 = vpop.f32.mrf.mxu0
        %6256 = vmatprep.mubr.f32.mxu0 0.0
        %6257 = vmatmul.mubr.f32.gmra.mxu0 %v6179
        %v6258 = vpop.f32.mrf.mxu0
        %v6259 = vadd.f32 0.0, %v6258
        %v6260 = vpop.f32.mrf.mxu0
        %6261 = vmatprep.mubr.f32.mxu0 0.0
        %6262 = vmatmul.mubr.f32.gmra.mxu0 %v6182
        %v6263 = vpop.f32.mrf.mxu0
        %v6264 = vpop.f32.mrf.mxu0
        %6265 = vmatprep.mubr.f32.mxu0 0.0
        %6266 = vmatmul.mubr.f32.gmra.mxu0 %v6185
        %v6267 = vpop.f32.mrf.mxu0
        %v6268 = vpop.f32.mrf.mxu0
        %6269 = vdwg.mxu0
        %v6270 = vadd.f32 %v6150, %v6254
        %v6271 = vadd.f32 %v6155, %v6259
        %s6272 = scalar_lea.vmem [#allocation6], 2176
        %v6273 = vld [vmem:[%s6272] sm:$0xff]
        %v6274 = vld [vmem:[%s6272 + $0x8] sm:$0xff]
        %v6275 = vld [vmem:[%s6272 + $0x10] sm:$0xff]
        %v6276 = vld [vmem:[%s6272 + $0x18] sm:$0xff]
        %v6277 = vld [vmem:[%s6272 + $0x20] sm:$0xff]
        %v6278 = vld [vmem:[%s6272 + $0x28] sm:$0xff]
        %v6279 = vld [vmem:[%s6272 + $0x30] sm:$0xff]
        %v6280 = vld [vmem:[%s6272 + $0x38] sm:$0xff]
        %v6282 = vsel %vm431, %v5720, 0
        %v6285 = vsel %vm431, %v5725, 0
        %v6288 = vsel %vm431, %v5730, 0
        %v6291 = vsel %vm431, %v5735, 0
        %6293 = vmatprep.subr.mxu0 0.0
        %6294 = vmatpush1.msra.mxu0 0.0
        %6295 = vmatprep.subr.mxu0 0.0
        %6296 = vmatpush1.msra.mxu0 0.0
        %6297 = vmatprep.subr.mxu0 0.0
        %6298 = vmatpush1.msra.mxu0 0.0
        %6299 = vmatprep.subr.mxu0 0.0
        %6300 = vmatpush1.msra.mxu0 0.0
        %6301 = vmatprep.subr.mxu0 0.0
        %6302 = vmatpush1.msra.mxu0 0.0
        %6303 = vmatprep.subr.mxu0 0.0
        %6304 = vmatpush1.msra.mxu0 0.0
        %6305 = vmatprep.subr.mxu0 0.0
        %6306 = vmatpush1.msra.mxu0 0.0
        %6307 = vmatprep.subr.mxu0 0.0
        %6308 = vmatpush1.msra.mxu0 0.0
        %6309 = vmatprep.subr.mxu0 0.0
        %6310 = vmatpush1.msra.mxu0 %v6280
        %6311 = vmatprep.subr.mxu0 0.0
        %6312 = vmatpush1.msra.mxu0 %v6279
        %6313 = vmatprep.subr.mxu0 0.0
        %6314 = vmatpush1.msra.mxu0 %v6278
        %6315 = vmatprep.subr.mxu0 0.0
        %6316 = vmatpush1.msra.mxu0 %v6277
        %6317 = vmatprep.subr.mxu0 0.0
        %6318 = vmatpush1.msra.mxu0 %v6276
        %6319 = vmatprep.subr.mxu0 0.0
        %6320 = vmatpush1.msra.mxu0 %v6275
        %6321 = vmatprep.subr.mxu0 0.0
        %6322 = vmatpush1.msra.mxu0 %v6274
        %6323 = vmatprep.subr.mxu0 0.0
        %6324 = vmatpush1.msra.mxu0 %v6273
        %6325 = vmatprep.subr.mxu0 0.0
        %6326 = vmatpush2.msra.mxu0 0.0
        %6327 = vmatprep.subr.mxu0 0.0
        %6328 = vmatpush2.msra.mxu0 0.0
        %6329 = vmatprep.subr.mxu0 0.0
        %6330 = vmatpush2.msra.mxu0 0.0
        %6331 = vmatprep.subr.mxu0 0.0
        %6332 = vmatpush2.msra.mxu0 0.0
        %6333 = vmatprep.subr.mxu0 0.0
        %6334 = vmatpush2.msra.mxu0 0.0
        %6335 = vmatprep.subr.mxu0 0.0
        %6336 = vmatpush2.msra.mxu0 0.0
        %6337 = vmatprep.subr.mxu0 0.0
        %6338 = vmatpush2.msra.mxu0 0.0
        %6339 = vmatprep.subr.mxu0 0.0
        %6340 = vmatpush2.msra.mxu0 0.0
        %6341 = vmatprep.subr.mxu0 0.0
        %6342 = vmatpush2.msra.mxu0 0.0
        %6343 = vmatprep.subr.mxu0 0.0
        %6344 = vmatpush2.msra.mxu0 0.0
        %6345 = vmatprep.subr.mxu0 0.0
        %6346 = vmatpush2.msra.mxu0 0.0
        %6347 = vmatprep.subr.mxu0 0.0
        %6348 = vmatpush2.msra.mxu0 0.0
        %6349 = vmatprep.subr.mxu0 0.0
        %6350 = vmatpush2.msra.mxu0 0.0
        %6351 = vmatprep.subr.mxu0 0.0
        %6352 = vmatpush2.msra.mxu0 0.0
        %6353 = vmatprep.subr.mxu0 0.0
        %6354 = vmatpush2.msra.mxu0 0.0
        %6355 = vmatprep.subr.mxu0 0.0
        %6356 = vmatpush2.msra.mxu0 0.0
        %6357 = vmatprep.mubr.f32.mxu0 0.0
        %6358 = vmatmul.mubr.f32.gmra.mxu0 %v6282
        %v6359 = vpop.f32.mrf.mxu0
        %v6360 = vadd.f32 0.0, %v6359
        %v6361 = vpop.f32.mrf.mxu0
        %6362 = vmatprep.mubr.f32.mxu0 0.0
        %6363 = vmatmul.mubr.f32.gmra.mxu0 %v6285
        %v6364 = vpop.f32.mrf.mxu0
        %v6365 = vadd.f32 0.0, %v6364
        %v6366 = vpop.f32.mrf.mxu0
        %6367 = vmatprep.mubr.f32.mxu0 0.0
        %6368 = vmatmul.mubr.f32.gmra.mxu0 %v6288
        %v6369 = vpop.f32.mrf.mxu0
        %v6370 = vpop.f32.mrf.mxu0
        %6371 = vmatprep.mubr.f32.mxu0 0.0
        %6372 = vmatmul.mubr.f32.gmra.mxu0 %v6291
        %v6373 = vpop.f32.mrf.mxu0
        %v6374 = vpop.f32.mrf.mxu0
        %6375 = vdwg.mxu0
        %v6376 = vadd.f32 %v6270, %v6360
        %v6377 = vadd.f32 %v6271, %v6365
        %s6378 = scalar_lea.vmem [#allocation6], 2240
        %v6379 = vld [vmem:[%s6378] sm:$0xff]
        %v6380 = vld [vmem:[%s6378 + $0x8] sm:$0xff]
        %v6381 = vld [vmem:[%s6378 + $0x10] sm:$0xff]
        %v6382 = vld [vmem:[%s6378 + $0x18] sm:$0xff]
        %v6383 = vld [vmem:[%s6378 + $0x20] sm:$0xff]
        %v6384 = vld [vmem:[%s6378 + $0x28] sm:$0xff]
        %v6385 = vld [vmem:[%s6378 + $0x30] sm:$0xff]
        %v6386 = vld [vmem:[%s6378 + $0x38] sm:$0xff]
        %v6388 = vsel %vm431, %v5740, 0
        %v6391 = vsel %vm431, %v5745, 0
        %v6394 = vsel %vm431, %v5750, 0
        %v6397 = vsel %vm431, %v5755, 0
        %6399 = vmatprep.subr.mxu0 0.0
        %6400 = vmatpush1.msra.mxu0 0.0
        %6401 = vmatprep.subr.mxu0 0.0
        %6402 = vmatpush1.msra.mxu0 0.0
        %6403 = vmatprep.subr.mxu0 0.0
        %6404 = vmatpush1.msra.mxu0 0.0
        %6405 = vmatprep.subr.mxu0 0.0
        %6406 = vmatpush1.msra.mxu0 0.0
        %6407 = vmatprep.subr.mxu0 0.0
        %6408 = vmatpush1.msra.mxu0 0.0
        %6409 = vmatprep.subr.mxu0 0.0
        %6410 = vmatpush1.msra.mxu0 0.0
        %6411 = vmatprep.subr.mxu0 0.0
        %6412 = vmatpush1.msra.mxu0 0.0
        %6413 = vmatprep.subr.mxu0 0.0
        %6414 = vmatpush1.msra.mxu0 0.0
        %6415 = vmatprep.subr.mxu0 0.0
        %6416 = vmatpush1.msra.mxu0 %v6386
        %6417 = vmatprep.subr.mxu0 0.0
        %6418 = vmatpush1.msra.mxu0 %v6385
        %6419 = vmatprep.subr.mxu0 0.0
        %6420 = vmatpush1.msra.mxu0 %v6384
        %6421 = vmatprep.subr.mxu0 0.0
        %6422 = vmatpush1.msra.mxu0 %v6383
        %6423 = vmatprep.subr.mxu0 0.0
        %6424 = vmatpush1.msra.mxu0 %v6382
        %6425 = vmatprep.subr.mxu0 0.0
        %6426 = vmatpush1.msra.mxu0 %v6381
        %6427 = vmatprep.subr.mxu0 0.0
        %6428 = vmatpush1.msra.mxu0 %v6380
        %6429 = vmatprep.subr.mxu0 0.0
        %6430 = vmatpush1.msra.mxu0 %v6379
        %6431 = vmatprep.subr.mxu0 0.0
        %6432 = vmatpush2.msra.mxu0 0.0
        %6433 = vmatprep.subr.mxu0 0.0
        %6434 = vmatpush2.msra.mxu0 0.0
        %6435 = vmatprep.subr.mxu0 0.0
        %6436 = vmatpush2.msra.mxu0 0.0
        %6437 = vmatprep.subr.mxu0 0.0
        %6438 = vmatpush2.msra.mxu0 0.0
        %6439 = vmatprep.subr.mxu0 0.0
        %6440 = vmatpush2.msra.mxu0 0.0
        %6441 = vmatprep.subr.mxu0 0.0
        %6442 = vmatpush2.msra.mxu0 0.0
        %6443 = vmatprep.subr.mxu0 0.0
        %6444 = vmatpush2.msra.mxu0 0.0
        %6445 = vmatprep.subr.mxu0 0.0
        %6446 = vmatpush2.msra.mxu0 0.0
        %6447 = vmatprep.subr.mxu0 0.0
        %6448 = vmatpush2.msra.mxu0 0.0
        %6449 = vmatprep.subr.mxu0 0.0
        %6450 = vmatpush2.msra.mxu0 0.0
        %6451 = vmatprep.subr.mxu0 0.0
        %6452 = vmatpush2.msra.mxu0 0.0
        %6453 = vmatprep.subr.mxu0 0.0
        %6454 = vmatpush2.msra.mxu0 0.0
        %6455 = vmatprep.subr.mxu0 0.0
        %6456 = vmatpush2.msra.mxu0 0.0
        %6457 = vmatprep.subr.mxu0 0.0
        %6458 = vmatpush2.msra.mxu0 0.0
        %6459 = vmatprep.subr.mxu0 0.0
        %6460 = vmatpush2.msra.mxu0 0.0
        %6461 = vmatprep.subr.mxu0 0.0
        %6462 = vmatpush2.msra.mxu0 0.0
        %6463 = vmatprep.mubr.f32.mxu0 0.0
        %6464 = vmatmul.mubr.f32.gmra.mxu0 %v6388
        %v6465 = vpop.f32.mrf.mxu0
        %v6466 = vadd.f32 0.0, %v6465
        %v6467 = vpop.f32.mrf.mxu0
        %6468 = vmatprep.mubr.f32.mxu0 0.0
        %6469 = vmatmul.mubr.f32.gmra.mxu0 %v6391
        %v6470 = vpop.f32.mrf.mxu0
        %v6471 = vadd.f32 0.0, %v6470
        %v6472 = vpop.f32.mrf.mxu0
        %6473 = vmatprep.mubr.f32.mxu0 0.0
        %6474 = vmatmul.mubr.f32.gmra.mxu0 %v6394
        %v6475 = vpop.f32.mrf.mxu0
        %v6476 = vpop.f32.mrf.mxu0
        %6477 = vmatprep.mubr.f32.mxu0 0.0
        %6478 = vmatmul.mubr.f32.gmra.mxu0 %v6397
        %v6479 = vpop.f32.mrf.mxu0
        %v6480 = vpop.f32.mrf.mxu0
        %6481 = vdwg.mxu0
        %v6482 = vadd.f32 %v6376, %v6466
        %v6483 = vadd.f32 %v6377, %v6471
        %s6484 = scalar_lea.vmem [#allocation6], 2304
        %v6485 = vld [vmem:[%s6484] sm:$0xff]
        %v6486 = vld [vmem:[%s6484 + $0x8] sm:$0xff]
        %v6487 = vld [vmem:[%s6484 + $0x10] sm:$0xff]
        %v6488 = vld [vmem:[%s6484 + $0x18] sm:$0xff]
        %v6489 = vld [vmem:[%s6484 + $0x20] sm:$0xff]
        %v6490 = vld [vmem:[%s6484 + $0x28] sm:$0xff]
        %v6491 = vld [vmem:[%s6484 + $0x30] sm:$0xff]
        %v6492 = vld [vmem:[%s6484 + $0x38] sm:$0xff]
        %v6494 = vsel %vm431, %v5760, 0
        %v6497 = vsel %vm431, %v5765, 0
        %v6500 = vsel %vm431, %v5770, 0
        %v6503 = vsel %vm431, %v5775, 0
        %6505 = vmatprep.subr.mxu0 0.0
        %6506 = vmatpush1.msra.mxu0 0.0
        %6507 = vmatprep.subr.mxu0 0.0
        %6508 = vmatpush1.msra.mxu0 0.0
        %6509 = vmatprep.subr.mxu0 0.0
        %6510 = vmatpush1.msra.mxu0 0.0
        %6511 = vmatprep.subr.mxu0 0.0
        %6512 = vmatpush1.msra.mxu0 0.0
        %6513 = vmatprep.subr.mxu0 0.0
        %6514 = vmatpush1.msra.mxu0 0.0
        %6515 = vmatprep.subr.mxu0 0.0
        %6516 = vmatpush1.msra.mxu0 0.0
        %6517 = vmatprep.subr.mxu0 0.0
        %6518 = vmatpush1.msra.mxu0 0.0
        %6519 = vmatprep.subr.mxu0 0.0
        %6520 = vmatpush1.msra.mxu0 0.0
        %6521 = vmatprep.subr.mxu0 0.0
        %6522 = vmatpush1.msra.mxu0 %v6492
        %6523 = vmatprep.subr.mxu0 0.0
        %6524 = vmatpush1.msra.mxu0 %v6491
        %6525 = vmatprep.subr.mxu0 0.0
        %6526 = vmatpush1.msra.mxu0 %v6490
        %6527 = vmatprep.subr.mxu0 0.0
        %6528 = vmatpush1.msra.mxu0 %v6489
        %6529 = vmatprep.subr.mxu0 0.0
        %6530 = vmatpush1.msra.mxu0 %v6488
        %6531 = vmatprep.subr.mxu0 0.0
        %6532 = vmatpush1.msra.mxu0 %v6487
        %6533 = vmatprep.subr.mxu0 0.0
        %6534 = vmatpush1.msra.mxu0 %v6486
        %6535 = vmatprep.subr.mxu0 0.0
        %6536 = vmatpush1.msra.mxu0 %v6485
        %6537 = vmatprep.subr.mxu0 0.0
        %6538 = vmatpush2.msra.mxu0 0.0
        %6539 = vmatprep.subr.mxu0 0.0
        %6540 = vmatpush2.msra.mxu0 0.0
        %6541 = vmatprep.subr.mxu0 0.0
        %6542 = vmatpush2.msra.mxu0 0.0
        %6543 = vmatprep.subr.mxu0 0.0
        %6544 = vmatpush2.msra.mxu0 0.0
        %6545 = vmatprep.subr.mxu0 0.0
        %6546 = vmatpush2.msra.mxu0 0.0
        %6547 = vmatprep.subr.mxu0 0.0
        %6548 = vmatpush2.msra.mxu0 0.0
        %6549 = vmatprep.subr.mxu0 0.0
        %6550 = vmatpush2.msra.mxu0 0.0
        %6551 = vmatprep.subr.mxu0 0.0
        %6552 = vmatpush2.msra.mxu0 0.0
        %6553 = vmatprep.subr.mxu0 0.0
        %6554 = vmatpush2.msra.mxu0 0.0
        %6555 = vmatprep.subr.mxu0 0.0
        %6556 = vmatpush2.msra.mxu0 0.0
        %6557 = vmatprep.subr.mxu0 0.0
        %6558 = vmatpush2.msra.mxu0 0.0
        %6559 = vmatprep.subr.mxu0 0.0
        %6560 = vmatpush2.msra.mxu0 0.0
        %6561 = vmatprep.subr.mxu0 0.0
        %6562 = vmatpush2.msra.mxu0 0.0
        %6563 = vmatprep.subr.mxu0 0.0
        %6564 = vmatpush2.msra.mxu0 0.0
        %6565 = vmatprep.subr.mxu0 0.0
        %6566 = vmatpush2.msra.mxu0 0.0
        %6567 = vmatprep.subr.mxu0 0.0
        %6568 = vmatpush2.msra.mxu0 0.0
        %6569 = vmatprep.mubr.f32.mxu0 0.0
        %6570 = vmatmul.mubr.f32.gmra.mxu0 %v6494
        %v6571 = vpop.f32.mrf.mxu0
        %v6572 = vadd.f32 0.0, %v6571
        %v6573 = vpop.f32.mrf.mxu0
        %6574 = vmatprep.mubr.f32.mxu0 0.0
        %6575 = vmatmul.mubr.f32.gmra.mxu0 %v6497
        %v6576 = vpop.f32.mrf.mxu0
        %v6577 = vadd.f32 0.0, %v6576
        %v6578 = vpop.f32.mrf.mxu0
        %6579 = vmatprep.mubr.f32.mxu0 0.0
        %6580 = vmatmul.mubr.f32.gmra.mxu0 %v6500
        %v6581 = vpop.f32.mrf.mxu0
        %v6582 = vpop.f32.mrf.mxu0
        %6583 = vmatprep.mubr.f32.mxu0 0.0
        %6584 = vmatmul.mubr.f32.gmra.mxu0 %v6503
        %v6585 = vpop.f32.mrf.mxu0
        %v6586 = vpop.f32.mrf.mxu0
        %6587 = vdwg.mxu0
        %v6588 = vadd.f32 %v6482, %v6572
        %v6589 = vadd.f32 %v6483, %v6577
        %s6590 = scalar_lea.vmem [#allocation6], 2368
        %v6591 = vld [vmem:[%s6590] sm:$0xff]
        %v6592 = vld [vmem:[%s6590 + $0x8] sm:$0xff]
        %v6593 = vld [vmem:[%s6590 + $0x10] sm:$0xff]
        %v6594 = vld [vmem:[%s6590 + $0x18] sm:$0xff]
        %v6595 = vld [vmem:[%s6590 + $0x20] sm:$0xff]
        %v6596 = vld [vmem:[%s6590 + $0x28] sm:$0xff]
        %v6597 = vld [vmem:[%s6590 + $0x30] sm:$0xff]
        %v6598 = vld [vmem:[%s6590 + $0x38] sm:$0xff]
        %v6600 = vsel %vm431, %v5780, 0
        %v6603 = vsel %vm431, %v5785, 0
        %v6606 = vsel %vm431, %v5790, 0
        %v6609 = vsel %vm431, %v5795, 0
        %6611 = vmatprep.subr.mxu0 0.0
        %6612 = vmatpush1.msra.mxu0 0.0
        %6613 = vmatprep.subr.mxu0 0.0
        %6614 = vmatpush1.msra.mxu0 0.0
        %6615 = vmatprep.subr.mxu0 0.0
        %6616 = vmatpush1.msra.mxu0 0.0
        %6617 = vmatprep.subr.mxu0 0.0
        %6618 = vmatpush1.msra.mxu0 0.0
        %6619 = vmatprep.subr.mxu0 0.0
        %6620 = vmatpush1.msra.mxu0 0.0
        %6621 = vmatprep.subr.mxu0 0.0
        %6622 = vmatpush1.msra.mxu0 0.0
        %6623 = vmatprep.subr.mxu0 0.0
        %6624 = vmatpush1.msra.mxu0 0.0
        %6625 = vmatprep.subr.mxu0 0.0
        %6626 = vmatpush1.msra.mxu0 0.0
        %6627 = vmatprep.subr.mxu0 0.0
        %6628 = vmatpush1.msra.mxu0 %v6598
        %6629 = vmatprep.subr.mxu0 0.0
        %6630 = vmatpush1.msra.mxu0 %v6597
        %6631 = vmatprep.subr.mxu0 0.0
        %6632 = vmatpush1.msra.mxu0 %v6596
        %6633 = vmatprep.subr.mxu0 0.0
        %6634 = vmatpush1.msra.mxu0 %v6595
        %6635 = vmatprep.subr.mxu0 0.0
        %6636 = vmatpush1.msra.mxu0 %v6594
        %6637 = vmatprep.subr.mxu0 0.0
        %6638 = vmatpush1.msra.mxu0 %v6593
        %6639 = vmatprep.subr.mxu0 0.0
        %6640 = vmatpush1.msra.mxu0 %v6592
        %6641 = vmatprep.subr.mxu0 0.0
        %6642 = vmatpush1.msra.mxu0 %v6591
        %6643 = vmatprep.subr.mxu0 0.0
        %6644 = vmatpush2.msra.mxu0 0.0
        %6645 = vmatprep.subr.mxu0 0.0
        %6646 = vmatpush2.msra.mxu0 0.0
        %6647 = vmatprep.subr.mxu0 0.0
        %6648 = vmatpush2.msra.mxu0 0.0
        %6649 = vmatprep.subr.mxu0 0.0
        %6650 = vmatpush2.msra.mxu0 0.0
        %6651 = vmatprep.subr.mxu0 0.0
        %6652 = vmatpush2.msra.mxu0 0.0
        %6653 = vmatprep.subr.mxu0 0.0
        %6654 = vmatpush2.msra.mxu0 0.0
        %6655 = vmatprep.subr.mxu0 0.0
        %6656 = vmatpush2.msra.mxu0 0.0
        %6657 = vmatprep.subr.mxu0 0.0
        %6658 = vmatpush2.msra.mxu0 0.0
        %6659 = vmatprep.subr.mxu0 0.0
        %6660 = vmatpush2.msra.mxu0 0.0
        %6661 = vmatprep.subr.mxu0 0.0
        %6662 = vmatpush2.msra.mxu0 0.0
        %6663 = vmatprep.subr.mxu0 0.0
        %6664 = vmatpush2.msra.mxu0 0.0
        %6665 = vmatprep.subr.mxu0 0.0
        %6666 = vmatpush2.msra.mxu0 0.0
        %6667 = vmatprep.subr.mxu0 0.0
        %6668 = vmatpush2.msra.mxu0 0.0
        %6669 = vmatprep.subr.mxu0 0.0
        %6670 = vmatpush2.msra.mxu0 0.0
        %6671 = vmatprep.subr.mxu0 0.0
        %6672 = vmatpush2.msra.mxu0 0.0
        %6673 = vmatprep.subr.mxu0 0.0
        %6674 = vmatpush2.msra.mxu0 0.0
        %6675 = vmatprep.mubr.f32.mxu0 0.0
        %6676 = vmatmul.mubr.f32.gmra.mxu0 %v6600
        %v6677 = vpop.f32.mrf.mxu0
        %v6678 = vadd.f32 0.0, %v6677
        %v6679 = vpop.f32.mrf.mxu0
        %6680 = vmatprep.mubr.f32.mxu0 0.0
        %6681 = vmatmul.mubr.f32.gmra.mxu0 %v6603
        %v6682 = vpop.f32.mrf.mxu0
        %v6683 = vadd.f32 0.0, %v6682
        %v6684 = vpop.f32.mrf.mxu0
        %6685 = vmatprep.mubr.f32.mxu0 0.0
        %6686 = vmatmul.mubr.f32.gmra.mxu0 %v6606
        %v6687 = vpop.f32.mrf.mxu0
        %v6688 = vpop.f32.mrf.mxu0
        %6689 = vmatprep.mubr.f32.mxu0 0.0
        %6690 = vmatmul.mubr.f32.gmra.mxu0 %v6609
        %v6691 = vpop.f32.mrf.mxu0
        %v6692 = vpop.f32.mrf.mxu0
        %6693 = vdwg.mxu0
        %v6694 = vadd.f32 %v6588, %v6678
        %v6695 = vadd.f32 %v6589, %v6683
        %s6696 = scalar_lea.vmem [#allocation6], 2432
        %v6697 = vld [vmem:[%s6696] sm:$0xff]
        %v6698 = vld [vmem:[%s6696 + $0x8] sm:$0xff]
        %v6699 = vld [vmem:[%s6696 + $0x10] sm:$0xff]
        %v6700 = vld [vmem:[%s6696 + $0x18] sm:$0xff]
        %v6701 = vld [vmem:[%s6696 + $0x20] sm:$0xff]
        %v6702 = vld [vmem:[%s6696 + $0x28] sm:$0xff]
        %v6703 = vld [vmem:[%s6696 + $0x30] sm:$0xff]
        %v6704 = vld [vmem:[%s6696 + $0x38] sm:$0xff]
        %v6706 = vsel %vm431, %v5800, 0
        %v6709 = vsel %vm431, %v5805, 0
        %v6712 = vsel %vm431, %v5810, 0
        %v6715 = vsel %vm431, %v5815, 0
        %6717 = vmatprep.subr.mxu0 0.0
        %6718 = vmatpush1.msra.mxu0 0.0
        %6719 = vmatprep.subr.mxu0 0.0
        %6720 = vmatpush1.msra.mxu0 0.0
        %6721 = vmatprep.subr.mxu0 0.0
        %6722 = vmatpush1.msra.mxu0 0.0
        %6723 = vmatprep.subr.mxu0 0.0
        %6724 = vmatpush1.msra.mxu0 0.0
        %6725 = vmatprep.subr.mxu0 0.0
        %6726 = vmatpush1.msra.mxu0 0.0
        %6727 = vmatprep.subr.mxu0 0.0
        %6728 = vmatpush1.msra.mxu0 0.0
        %6729 = vmatprep.subr.mxu0 0.0
        %6730 = vmatpush1.msra.mxu0 0.0
        %6731 = vmatprep.subr.mxu0 0.0
        %6732 = vmatpush1.msra.mxu0 0.0
        %6733 = vmatprep.subr.mxu0 0.0
        %6734 = vmatpush1.msra.mxu0 %v6704
        %6735 = vmatprep.subr.mxu0 0.0
        %6736 = vmatpush1.msra.mxu0 %v6703
        %6737 = vmatprep.subr.mxu0 0.0
        %6738 = vmatpush1.msra.mxu0 %v6702
        %6739 = vmatprep.subr.mxu0 0.0
        %6740 = vmatpush1.msra.mxu0 %v6701
        %6741 = vmatprep.subr.mxu0 0.0
        %6742 = vmatpush1.msra.mxu0 %v6700
        %6743 = vmatprep.subr.mxu0 0.0
        %6744 = vmatpush1.msra.mxu0 %v6699
        %6745 = vmatprep.subr.mxu0 0.0
        %6746 = vmatpush1.msra.mxu0 %v6698
        %6747 = vmatprep.subr.mxu0 0.0
        %6748 = vmatpush1.msra.mxu0 %v6697
        %6749 = vmatprep.subr.mxu0 0.0
        %6750 = vmatpush2.msra.mxu0 0.0
        %6751 = vmatprep.subr.mxu0 0.0
        %6752 = vmatpush2.msra.mxu0 0.0
        %6753 = vmatprep.subr.mxu0 0.0
        %6754 = vmatpush2.msra.mxu0 0.0
        %6755 = vmatprep.subr.mxu0 0.0
        %6756 = vmatpush2.msra.mxu0 0.0
        %6757 = vmatprep.subr.mxu0 0.0
        %6758 = vmatpush2.msra.mxu0 0.0
        %6759 = vmatprep.subr.mxu0 0.0
        %6760 = vmatpush2.msra.mxu0 0.0
        %6761 = vmatprep.subr.mxu0 0.0
        %6762 = vmatpush2.msra.mxu0 0.0
        %6763 = vmatprep.subr.mxu0 0.0
        %6764 = vmatpush2.msra.mxu0 0.0
        %6765 = vmatprep.subr.mxu0 0.0
        %6766 = vmatpush2.msra.mxu0 0.0
        %6767 = vmatprep.subr.mxu0 0.0
        %6768 = vmatpush2.msra.mxu0 0.0
        %6769 = vmatprep.subr.mxu0 0.0
        %6770 = vmatpush2.msra.mxu0 0.0
        %6771 = vmatprep.subr.mxu0 0.0
        %6772 = vmatpush2.msra.mxu0 0.0
        %6773 = vmatprep.subr.mxu0 0.0
        %6774 = vmatpush2.msra.mxu0 0.0
        %6775 = vmatprep.subr.mxu0 0.0
        %6776 = vmatpush2.msra.mxu0 0.0
        %6777 = vmatprep.subr.mxu0 0.0
        %6778 = vmatpush2.msra.mxu0 0.0
        %6779 = vmatprep.subr.mxu0 0.0
        %6780 = vmatpush2.msra.mxu0 0.0
        %6781 = vmatprep.mubr.f32.mxu0 0.0
        %6782 = vmatmul.mubr.f32.gmra.mxu0 %v6706
        %v6783 = vpop.f32.mrf.mxu0
        %v6784 = vadd.f32 0.0, %v6783
        %v6785 = vpop.f32.mrf.mxu0
        %6786 = vmatprep.mubr.f32.mxu0 0.0
        %6787 = vmatmul.mubr.f32.gmra.mxu0 %v6709
        %v6788 = vpop.f32.mrf.mxu0
        %v6789 = vadd.f32 0.0, %v6788
        %v6790 = vpop.f32.mrf.mxu0
        %6791 = vmatprep.mubr.f32.mxu0 0.0
        %6792 = vmatmul.mubr.f32.gmra.mxu0 %v6712
        %v6793 = vpop.f32.mrf.mxu0
        %v6794 = vpop.f32.mrf.mxu0
        %6795 = vmatprep.mubr.f32.mxu0 0.0
        %6796 = vmatmul.mubr.f32.gmra.mxu0 %v6715
        %v6797 = vpop.f32.mrf.mxu0
        %v6798 = vpop.f32.mrf.mxu0
        %6799 = vdwg.mxu0
        %v6800 = vadd.f32 %v6694, %v6784
        %v6801 = vadd.f32 %v6695, %v6789
        %s6802 = scalar_lea.vmem [#allocation6], 2496
        %v6803 = vld [vmem:[%s6802] sm:$0xff]
        %v6804 = vld [vmem:[%s6802 + $0x8] sm:$0xff]
        %v6805 = vld [vmem:[%s6802 + $0x10] sm:$0xff]
        %v6806 = vld [vmem:[%s6802 + $0x18] sm:$0xff]
        %v6807 = vld [vmem:[%s6802 + $0x20] sm:$0xff]
        %v6808 = vld [vmem:[%s6802 + $0x28] sm:$0xff]
        %v6809 = vld [vmem:[%s6802 + $0x30] sm:$0xff]
        %v6810 = vld [vmem:[%s6802 + $0x38] sm:$0xff]
        %v6812 = vsel %vm431, %v5820, 0
        %v6815 = vsel %vm431, %v5825, 0
        %v6818 = vsel %vm431, %v5830, 0
        %v6821 = vsel %vm431, %v5835, 0
        %6823 = vmatprep.subr.mxu0 0.0
        %6824 = vmatpush1.msra.mxu0 0.0
        %6825 = vmatprep.subr.mxu0 0.0
        %6826 = vmatpush1.msra.mxu0 0.0
        %6827 = vmatprep.subr.mxu0 0.0
        %6828 = vmatpush1.msra.mxu0 0.0
        %6829 = vmatprep.subr.mxu0 0.0
        %6830 = vmatpush1.msra.mxu0 0.0
        %6831 = vmatprep.subr.mxu0 0.0
        %6832 = vmatpush1.msra.mxu0 0.0
        %6833 = vmatprep.subr.mxu0 0.0
        %6834 = vmatpush1.msra.mxu0 0.0
        %6835 = vmatprep.subr.mxu0 0.0
        %6836 = vmatpush1.msra.mxu0 0.0
        %6837 = vmatprep.subr.mxu0 0.0
        %6838 = vmatpush1.msra.mxu0 0.0
        %6839 = vmatprep.subr.mxu0 0.0
        %6840 = vmatpush1.msra.mxu0 %v6810
        %6841 = vmatprep.subr.mxu0 0.0
        %6842 = vmatpush1.msra.mxu0 %v6809
        %6843 = vmatprep.subr.mxu0 0.0
        %6844 = vmatpush1.msra.mxu0 %v6808
        %6845 = vmatprep.subr.mxu0 0.0
        %6846 = vmatpush1.msra.mxu0 %v6807
        %6847 = vmatprep.subr.mxu0 0.0
        %6848 = vmatpush1.msra.mxu0 %v6806
        %6849 = vmatprep.subr.mxu0 0.0
        %6850 = vmatpush1.msra.mxu0 %v6805
        %6851 = vmatprep.subr.mxu0 0.0
        %6852 = vmatpush1.msra.mxu0 %v6804
        %6853 = vmatprep.subr.mxu0 0.0
        %6854 = vmatpush1.msra.mxu0 %v6803
        %6855 = vmatprep.subr.mxu0 0.0
        %6856 = vmatpush2.msra.mxu0 0.0
        %6857 = vmatprep.subr.mxu0 0.0
        %6858 = vmatpush2.msra.mxu0 0.0
        %6859 = vmatprep.subr.mxu0 0.0
        %6860 = vmatpush2.msra.mxu0 0.0
        %6861 = vmatprep.subr.mxu0 0.0
        %6862 = vmatpush2.msra.mxu0 0.0
        %6863 = vmatprep.subr.mxu0 0.0
        %6864 = vmatpush2.msra.mxu0 0.0
        %6865 = vmatprep.subr.mxu0 0.0
        %6866 = vmatpush2.msra.mxu0 0.0
        %6867 = vmatprep.subr.mxu0 0.0
        %6868 = vmatpush2.msra.mxu0 0.0
        %6869 = vmatprep.subr.mxu0 0.0
        %6870 = vmatpush2.msra.mxu0 0.0
        %6871 = vmatprep.subr.mxu0 0.0
        %6872 = vmatpush2.msra.mxu0 0.0
        %6873 = vmatprep.subr.mxu0 0.0
        %6874 = vmatpush2.msra.mxu0 0.0
        %6875 = vmatprep.subr.mxu0 0.0
        %6876 = vmatpush2.msra.mxu0 0.0
        %6877 = vmatprep.subr.mxu0 0.0
        %6878 = vmatpush2.msra.mxu0 0.0
        %6879 = vmatprep.subr.mxu0 0.0
        %6880 = vmatpush2.msra.mxu0 0.0
        %6881 = vmatprep.subr.mxu0 0.0
        %6882 = vmatpush2.msra.mxu0 0.0
        %6883 = vmatprep.subr.mxu0 0.0
        %6884 = vmatpush2.msra.mxu0 0.0
        %6885 = vmatprep.subr.mxu0 0.0
        %6886 = vmatpush2.msra.mxu0 0.0
        %6887 = vmatprep.mubr.f32.mxu0 0.0
        %6888 = vmatmul.mubr.f32.gmra.mxu0 %v6812
        %v6889 = vpop.f32.mrf.mxu0
        %v6890 = vadd.f32 0.0, %v6889
        %v6891 = vpop.f32.mrf.mxu0
        %6892 = vmatprep.mubr.f32.mxu0 0.0
        %6893 = vmatmul.mubr.f32.gmra.mxu0 %v6815
        %v6894 = vpop.f32.mrf.mxu0
        %v6895 = vadd.f32 0.0, %v6894
        %v6896 = vpop.f32.mrf.mxu0
        %6897 = vmatprep.mubr.f32.mxu0 0.0
        %6898 = vmatmul.mubr.f32.gmra.mxu0 %v6818
        %v6899 = vpop.f32.mrf.mxu0
        %v6900 = vpop.f32.mrf.mxu0
        %6901 = vmatprep.mubr.f32.mxu0 0.0
        %6902 = vmatmul.mubr.f32.gmra.mxu0 %v6821
        %v6903 = vpop.f32.mrf.mxu0
        %v6904 = vpop.f32.mrf.mxu0
        %6905 = vdwg.mxu0
        %v6906 = vadd.f32 %v6800, %v6890
        %v6907 = vadd.f32 %v6801, %v6895
        %s6908 = scalar_lea.vmem [#allocation6], 2560
        %v6909 = vld [vmem:[%s6908] sm:$0xff]
        %v6910 = vld [vmem:[%s6908 + $0x8] sm:$0xff]
        %v6911 = vld [vmem:[%s6908 + $0x10] sm:$0xff]
        %v6912 = vld [vmem:[%s6908 + $0x18] sm:$0xff]
        %v6913 = vld [vmem:[%s6908 + $0x20] sm:$0xff]
        %v6914 = vld [vmem:[%s6908 + $0x28] sm:$0xff]
        %v6915 = vld [vmem:[%s6908 + $0x30] sm:$0xff]
        %v6916 = vld [vmem:[%s6908 + $0x38] sm:$0xff]
        %v6918 = vsel %vm431, %v5840, 0
        %v6921 = vsel %vm431, %v5845, 0
        %v6924 = vsel %vm431, %v5850, 0
        %v6927 = vsel %vm431, %v5855, 0
        %6929 = vmatprep.subr.mxu0 0.0
        %6930 = vmatpush1.msra.mxu0 0.0
        %6931 = vmatprep.subr.mxu0 0.0
        %6932 = vmatpush1.msra.mxu0 0.0
        %6933 = vmatprep.subr.mxu0 0.0
        %6934 = vmatpush1.msra.mxu0 0.0
        %6935 = vmatprep.subr.mxu0 0.0
        %6936 = vmatpush1.msra.mxu0 0.0
        %6937 = vmatprep.subr.mxu0 0.0
        %6938 = vmatpush1.msra.mxu0 0.0
        %6939 = vmatprep.subr.mxu0 0.0
        %6940 = vmatpush1.msra.mxu0 0.0
        %6941 = vmatprep.subr.mxu0 0.0
        %6942 = vmatpush1.msra.mxu0 0.0
        %6943 = vmatprep.subr.mxu0 0.0
        %6944 = vmatpush1.msra.mxu0 0.0
        %6945 = vmatprep.subr.mxu0 0.0
        %6946 = vmatpush1.msra.mxu0 %v6916
        %6947 = vmatprep.subr.mxu0 0.0
        %6948 = vmatpush1.msra.mxu0 %v6915
        %6949 = vmatprep.subr.mxu0 0.0
        %6950 = vmatpush1.msra.mxu0 %v6914
        %6951 = vmatprep.subr.mxu0 0.0
        %6952 = vmatpush1.msra.mxu0 %v6913
        %6953 = vmatprep.subr.mxu0 0.0
        %6954 = vmatpush1.msra.mxu0 %v6912
        %6955 = vmatprep.subr.mxu0 0.0
        %6956 = vmatpush1.msra.mxu0 %v6911
        %6957 = vmatprep.subr.mxu0 0.0
        %6958 = vmatpush1.msra.mxu0 %v6910
        %6959 = vmatprep.subr.mxu0 0.0
        %6960 = vmatpush1.msra.mxu0 %v6909
        %6961 = vmatprep.subr.mxu0 0.0
        %6962 = vmatpush2.msra.mxu0 0.0
        %6963 = vmatprep.subr.mxu0 0.0
        %6964 = vmatpush2.msra.mxu0 0.0
        %6965 = vmatprep.subr.mxu0 0.0
        %6966 = vmatpush2.msra.mxu0 0.0
        %6967 = vmatprep.subr.mxu0 0.0
        %6968 = vmatpush2.msra.mxu0 0.0
        %6969 = vmatprep.subr.mxu0 0.0
        %6970 = vmatpush2.msra.mxu0 0.0
        %6971 = vmatprep.subr.mxu0 0.0
        %6972 = vmatpush2.msra.mxu0 0.0
        %6973 = vmatprep.subr.mxu0 0.0
        %6974 = vmatpush2.msra.mxu0 0.0
        %6975 = vmatprep.subr.mxu0 0.0
        %6976 = vmatpush2.msra.mxu0 0.0
        %6977 = vmatprep.subr.mxu0 0.0
        %6978 = vmatpush2.msra.mxu0 0.0
        %6979 = vmatprep.subr.mxu0 0.0
        %6980 = vmatpush2.msra.mxu0 0.0
        %6981 = vmatprep.subr.mxu0 0.0
        %6982 = vmatpush2.msra.mxu0 0.0
        %6983 = vmatprep.subr.mxu0 0.0
        %6984 = vmatpush2.msra.mxu0 0.0
        %6985 = vmatprep.subr.mxu0 0.0
        %6986 = vmatpush2.msra.mxu0 0.0
        %6987 = vmatprep.subr.mxu0 0.0
        %6988 = vmatpush2.msra.mxu0 0.0
        %6989 = vmatprep.subr.mxu0 0.0
        %6990 = vmatpush2.msra.mxu0 0.0
        %6991 = vmatprep.subr.mxu0 0.0
        %6992 = vmatpush2.msra.mxu0 0.0
        %6993 = vmatprep.mubr.f32.mxu0 0.0
        %6994 = vmatmul.mubr.f32.gmra.mxu0 %v6918
        %v6995 = vpop.f32.mrf.mxu0
        %v6996 = vadd.f32 0.0, %v6995
        %v6997 = vpop.f32.mrf.mxu0
        %6998 = vmatprep.mubr.f32.mxu0 0.0
        %6999 = vmatmul.mubr.f32.gmra.mxu0 %v6921
        %v7000 = vpop.f32.mrf.mxu0
        %v7001 = vadd.f32 0.0, %v7000
        %v7002 = vpop.f32.mrf.mxu0
        %7003 = vmatprep.mubr.f32.mxu0 0.0
        %7004 = vmatmul.mubr.f32.gmra.mxu0 %v6924
        %v7005 = vpop.f32.mrf.mxu0
        %v7006 = vpop.f32.mrf.mxu0
        %7007 = vmatprep.mubr.f32.mxu0 0.0
        %7008 = vmatmul.mubr.f32.gmra.mxu0 %v6927
        %v7009 = vpop.f32.mrf.mxu0
        %v7010 = vpop.f32.mrf.mxu0
        %7011 = vdwg.mxu0
        %v7012 = vadd.f32 %v6906, %v6996
        %v7013 = vadd.f32 %v6907, %v7001
        %s7014 = scalar_lea.vmem [#allocation6], 2624
        %v7015 = vld [vmem:[%s7014] sm:$0xff]
        %v7016 = vld [vmem:[%s7014 + $0x8] sm:$0xff]
        %v7017 = vld [vmem:[%s7014 + $0x10] sm:$0xff]
        %v7018 = vld [vmem:[%s7014 + $0x18] sm:$0xff]
        %v7019 = vld [vmem:[%s7014 + $0x20] sm:$0xff]
        %v7020 = vld [vmem:[%s7014 + $0x28] sm:$0xff]
        %v7021 = vld [vmem:[%s7014 + $0x30] sm:$0xff]
        %v7022 = vld [vmem:[%s7014 + $0x38] sm:$0xff]
        %v7024 = vsel %vm431, %v5860, 0
        %v7027 = vsel %vm431, %v5865, 0
        %v7030 = vsel %vm431, %v5870, 0
        %v7033 = vsel %vm431, %v5875, 0
        %7035 = vmatprep.subr.mxu0 0.0
        %7036 = vmatpush1.msra.mxu0 0.0
        %7037 = vmatprep.subr.mxu0 0.0
        %7038 = vmatpush1.msra.mxu0 0.0
        %7039 = vmatprep.subr.mxu0 0.0
        %7040 = vmatpush1.msra.mxu0 0.0
        %7041 = vmatprep.subr.mxu0 0.0
        %7042 = vmatpush1.msra.mxu0 0.0
        %7043 = vmatprep.subr.mxu0 0.0
        %7044 = vmatpush1.msra.mxu0 0.0
        %7045 = vmatprep.subr.mxu0 0.0
        %7046 = vmatpush1.msra.mxu0 0.0
        %7047 = vmatprep.subr.mxu0 0.0
        %7048 = vmatpush1.msra.mxu0 0.0
        %7049 = vmatprep.subr.mxu0 0.0
        %7050 = vmatpush1.msra.mxu0 0.0
        %7051 = vmatprep.subr.mxu0 0.0
        %7052 = vmatpush1.msra.mxu0 %v7022
        %7053 = vmatprep.subr.mxu0 0.0
        %7054 = vmatpush1.msra.mxu0 %v7021
        %7055 = vmatprep.subr.mxu0 0.0
        %7056 = vmatpush1.msra.mxu0 %v7020
        %7057 = vmatprep.subr.mxu0 0.0
        %7058 = vmatpush1.msra.mxu0 %v7019
        %7059 = vmatprep.subr.mxu0 0.0
        %7060 = vmatpush1.msra.mxu0 %v7018
        %7061 = vmatprep.subr.mxu0 0.0
        %7062 = vmatpush1.msra.mxu0 %v7017
        %7063 = vmatprep.subr.mxu0 0.0
        %7064 = vmatpush1.msra.mxu0 %v7016
        %7065 = vmatprep.subr.mxu0 0.0
        %7066 = vmatpush1.msra.mxu0 %v7015
        %7067 = vmatprep.subr.mxu0 0.0
        %7068 = vmatpush2.msra.mxu0 0.0
        %7069 = vmatprep.subr.mxu0 0.0
        %7070 = vmatpush2.msra.mxu0 0.0
        %7071 = vmatprep.subr.mxu0 0.0
        %7072 = vmatpush2.msra.mxu0 0.0
        %7073 = vmatprep.subr.mxu0 0.0
        %7074 = vmatpush2.msra.mxu0 0.0
        %7075 = vmatprep.subr.mxu0 0.0
        %7076 = vmatpush2.msra.mxu0 0.0
        %7077 = vmatprep.subr.mxu0 0.0
        %7078 = vmatpush2.msra.mxu0 0.0
        %7079 = vmatprep.subr.mxu0 0.0
        %7080 = vmatpush2.msra.mxu0 0.0
        %7081 = vmatprep.subr.mxu0 0.0
        %7082 = vmatpush2.msra.mxu0 0.0
        %7083 = vmatprep.subr.mxu0 0.0
        %7084 = vmatpush2.msra.mxu0 0.0
        %7085 = vmatprep.subr.mxu0 0.0
        %7086 = vmatpush2.msra.mxu0 0.0
        %7087 = vmatprep.subr.mxu0 0.0
        %7088 = vmatpush2.msra.mxu0 0.0
        %7089 = vmatprep.subr.mxu0 0.0
        %7090 = vmatpush2.msra.mxu0 0.0
        %7091 = vmatprep.subr.mxu0 0.0
        %7092 = vmatpush2.msra.mxu0 0.0
        %7093 = vmatprep.subr.mxu0 0.0
        %7094 = vmatpush2.msra.mxu0 0.0
        %7095 = vmatprep.subr.mxu0 0.0
        %7096 = vmatpush2.msra.mxu0 0.0
        %7097 = vmatprep.subr.mxu0 0.0
        %7098 = vmatpush2.msra.mxu0 0.0
        %7099 = vmatprep.mubr.f32.mxu0 0.0
        %7100 = vmatmul.mubr.f32.gmra.mxu0 %v7024
        %v7101 = vpop.f32.mrf.mxu0
        %v7102 = vadd.f32 0.0, %v7101
        %v7103 = vpop.f32.mrf.mxu0
        %7104 = vmatprep.mubr.f32.mxu0 0.0
        %7105 = vmatmul.mubr.f32.gmra.mxu0 %v7027
        %v7106 = vpop.f32.mrf.mxu0
        %v7107 = vadd.f32 0.0, %v7106
        %v7108 = vpop.f32.mrf.mxu0
        %7109 = vmatprep.mubr.f32.mxu0 0.0
        %7110 = vmatmul.mubr.f32.gmra.mxu0 %v7030
        %v7111 = vpop.f32.mrf.mxu0
        %v7112 = vpop.f32.mrf.mxu0
        %7113 = vmatprep.mubr.f32.mxu0 0.0
        %7114 = vmatmul.mubr.f32.gmra.mxu0 %v7033
        %v7115 = vpop.f32.mrf.mxu0
        %v7116 = vpop.f32.mrf.mxu0
        %7117 = vdwg.mxu0
        %v7118 = vadd.f32 %v7012, %v7102
        %v7119 = vadd.f32 %v7013, %v7107
        %s7120 = scalar_lea.vmem [#allocation6], 2688
        %v7121 = vld [vmem:[%s7120] sm:$0xff]
        %v7122 = vld [vmem:[%s7120 + $0x8] sm:$0xff]
        %v7123 = vld [vmem:[%s7120 + $0x10] sm:$0xff]
        %v7124 = vld [vmem:[%s7120 + $0x18] sm:$0xff]
        %v7125 = vld [vmem:[%s7120 + $0x20] sm:$0xff]
        %v7126 = vld [vmem:[%s7120 + $0x28] sm:$0xff]
        %v7127 = vld [vmem:[%s7120 + $0x30] sm:$0xff]
        %v7128 = vld [vmem:[%s7120 + $0x38] sm:$0xff]
        %v7130 = vsel %vm431, %v5880, 0
        %v7133 = vsel %vm431, %v5885, 0
        %v7136 = vsel %vm431, %v5890, 0
        %v7139 = vsel %vm431, %v5895, 0
        %7141 = vmatprep.subr.mxu0 0.0
        %7142 = vmatpush1.msra.mxu0 0.0
        %7143 = vmatprep.subr.mxu0 0.0
        %7144 = vmatpush1.msra.mxu0 0.0
        %7145 = vmatprep.subr.mxu0 0.0
        %7146 = vmatpush1.msra.mxu0 0.0
        %7147 = vmatprep.subr.mxu0 0.0
        %7148 = vmatpush1.msra.mxu0 0.0
        %7149 = vmatprep.subr.mxu0 0.0
        %7150 = vmatpush1.msra.mxu0 0.0
        %7151 = vmatprep.subr.mxu0 0.0
        %7152 = vmatpush1.msra.mxu0 0.0
        %7153 = vmatprep.subr.mxu0 0.0
        %7154 = vmatpush1.msra.mxu0 0.0
        %7155 = vmatprep.subr.mxu0 0.0
        %7156 = vmatpush1.msra.mxu0 0.0
        %7157 = vmatprep.subr.mxu0 0.0
        %7158 = vmatpush1.msra.mxu0 %v7128
        %7159 = vmatprep.subr.mxu0 0.0
        %7160 = vmatpush1.msra.mxu0 %v7127
        %7161 = vmatprep.subr.mxu0 0.0
        %7162 = vmatpush1.msra.mxu0 %v7126
        %7163 = vmatprep.subr.mxu0 0.0
        %7164 = vmatpush1.msra.mxu0 %v7125
        %7165 = vmatprep.subr.mxu0 0.0
        %7166 = vmatpush1.msra.mxu0 %v7124
        %7167 = vmatprep.subr.mxu0 0.0
        %7168 = vmatpush1.msra.mxu0 %v7123
        %7169 = vmatprep.subr.mxu0 0.0
        %7170 = vmatpush1.msra.mxu0 %v7122
        %7171 = vmatprep.subr.mxu0 0.0
        %7172 = vmatpush1.msra.mxu0 %v7121
        %7173 = vmatprep.subr.mxu0 0.0
        %7174 = vmatpush2.msra.mxu0 0.0
        %7175 = vmatprep.subr.mxu0 0.0
        %7176 = vmatpush2.msra.mxu0 0.0
        %7177 = vmatprep.subr.mxu0 0.0
        %7178 = vmatpush2.msra.mxu0 0.0
        %7179 = vmatprep.subr.mxu0 0.0
        %7180 = vmatpush2.msra.mxu0 0.0
        %7181 = vmatprep.subr.mxu0 0.0
        %7182 = vmatpush2.msra.mxu0 0.0
        %7183 = vmatprep.subr.mxu0 0.0
        %7184 = vmatpush2.msra.mxu0 0.0
        %7185 = vmatprep.subr.mxu0 0.0
        %7186 = vmatpush2.msra.mxu0 0.0
        %7187 = vmatprep.subr.mxu0 0.0
        %7188 = vmatpush2.msra.mxu0 0.0
        %7189 = vmatprep.subr.mxu0 0.0
        %7190 = vmatpush2.msra.mxu0 0.0
        %7191 = vmatprep.subr.mxu0 0.0
        %7192 = vmatpush2.msra.mxu0 0.0
        %7193 = vmatprep.subr.mxu0 0.0
        %7194 = vmatpush2.msra.mxu0 0.0
        %7195 = vmatprep.subr.mxu0 0.0
        %7196 = vmatpush2.msra.mxu0 0.0
        %7197 = vmatprep.subr.mxu0 0.0
        %7198 = vmatpush2.msra.mxu0 0.0
        %7199 = vmatprep.subr.mxu0 0.0
        %7200 = vmatpush2.msra.mxu0 0.0
        %7201 = vmatprep.subr.mxu0 0.0
        %7202 = vmatpush2.msra.mxu0 0.0
        %7203 = vmatprep.subr.mxu0 0.0
        %7204 = vmatpush2.msra.mxu0 0.0
        %7205 = vmatprep.mubr.f32.mxu0 0.0
        %7206 = vmatmul.mubr.f32.gmra.mxu0 %v7130
        %v7207 = vpop.f32.mrf.mxu0
        %v7208 = vadd.f32 0.0, %v7207
        %v7209 = vpop.f32.mrf.mxu0
        %7210 = vmatprep.mubr.f32.mxu0 0.0
        %7211 = vmatmul.mubr.f32.gmra.mxu0 %v7133
        %v7212 = vpop.f32.mrf.mxu0
        %v7213 = vadd.f32 0.0, %v7212
        %v7214 = vpop.f32.mrf.mxu0
        %7215 = vmatprep.mubr.f32.mxu0 0.0
        %7216 = vmatmul.mubr.f32.gmra.mxu0 %v7136
        %v7217 = vpop.f32.mrf.mxu0
        %v7218 = vpop.f32.mrf.mxu0
        %7219 = vmatprep.mubr.f32.mxu0 0.0
        %7220 = vmatmul.mubr.f32.gmra.mxu0 %v7139
        %v7221 = vpop.f32.mrf.mxu0
        %v7222 = vpop.f32.mrf.mxu0
        %7223 = vdwg.mxu0
        %v7224 = vadd.f32 %v7118, %v7208
        %v7225 = vadd.f32 %v7119, %v7213
        %s7226 = scalar_lea.vmem [#allocation6], 2752
        %v7227 = vld [vmem:[%s7226] sm:$0xff]
        %v7228 = vld [vmem:[%s7226 + $0x8] sm:$0xff]
        %v7229 = vld [vmem:[%s7226 + $0x10] sm:$0xff]
        %v7230 = vld [vmem:[%s7226 + $0x18] sm:$0xff]
        %v7231 = vld [vmem:[%s7226 + $0x20] sm:$0xff]
        %v7232 = vld [vmem:[%s7226 + $0x28] sm:$0xff]
        %v7233 = vld [vmem:[%s7226 + $0x30] sm:$0xff]
        %v7234 = vld [vmem:[%s7226 + $0x38] sm:$0xff]
        %v7236 = vsel %vm431, %v5900, 0
        %v7239 = vsel %vm431, %v5905, 0
        %v7242 = vsel %vm431, %v5910, 0
        %v7245 = vsel %vm431, %v5915, 0
        %7247 = vmatprep.subr.mxu0 0.0
        %7248 = vmatpush1.msra.mxu0 0.0
        %7249 = vmatprep.subr.mxu0 0.0
        %7250 = vmatpush1.msra.mxu0 0.0
        %7251 = vmatprep.subr.mxu0 0.0
        %7252 = vmatpush1.msra.mxu0 0.0
        %7253 = vmatprep.subr.mxu0 0.0
        %7254 = vmatpush1.msra.mxu0 0.0
        %7255 = vmatprep.subr.mxu0 0.0
        %7256 = vmatpush1.msra.mxu0 0.0
        %7257 = vmatprep.subr.mxu0 0.0
        %7258 = vmatpush1.msra.mxu0 0.0
        %7259 = vmatprep.subr.mxu0 0.0
        %7260 = vmatpush1.msra.mxu0 0.0
        %7261 = vmatprep.subr.mxu0 0.0
        %7262 = vmatpush1.msra.mxu0 0.0
        %7263 = vmatprep.subr.mxu0 0.0
        %7264 = vmatpush1.msra.mxu0 %v7234
        %7265 = vmatprep.subr.mxu0 0.0
        %7266 = vmatpush1.msra.mxu0 %v7233
        %7267 = vmatprep.subr.mxu0 0.0
        %7268 = vmatpush1.msra.mxu0 %v7232
        %7269 = vmatprep.subr.mxu0 0.0
        %7270 = vmatpush1.msra.mxu0 %v7231
        %7271 = vmatprep.subr.mxu0 0.0
        %7272 = vmatpush1.msra.mxu0 %v7230
        %7273 = vmatprep.subr.mxu0 0.0
        %7274 = vmatpush1.msra.mxu0 %v7229
        %7275 = vmatprep.subr.mxu0 0.0
        %7276 = vmatpush1.msra.mxu0 %v7228
        %7277 = vmatprep.subr.mxu0 0.0
        %7278 = vmatpush1.msra.mxu0 %v7227
        %7279 = vmatprep.subr.mxu0 0.0
        %7280 = vmatpush2.msra.mxu0 0.0
        %7281 = vmatprep.subr.mxu0 0.0
        %7282 = vmatpush2.msra.mxu0 0.0
        %7283 = vmatprep.subr.mxu0 0.0
        %7284 = vmatpush2.msra.mxu0 0.0
        %7285 = vmatprep.subr.mxu0 0.0
        %7286 = vmatpush2.msra.mxu0 0.0
        %7287 = vmatprep.subr.mxu0 0.0
        %7288 = vmatpush2.msra.mxu0 0.0
        %7289 = vmatprep.subr.mxu0 0.0
        %7290 = vmatpush2.msra.mxu0 0.0
        %7291 = vmatprep.subr.mxu0 0.0
        %7292 = vmatpush2.msra.mxu0 0.0
        %7293 = vmatprep.subr.mxu0 0.0
        %7294 = vmatpush2.msra.mxu0 0.0
        %7295 = vmatprep.subr.mxu0 0.0
        %7296 = vmatpush2.msra.mxu0 0.0
        %7297 = vmatprep.subr.mxu0 0.0
        %7298 = vmatpush2.msra.mxu0 0.0
        %7299 = vmatprep.subr.mxu0 0.0
        %7300 = vmatpush2.msra.mxu0 0.0
        %7301 = vmatprep.subr.mxu0 0.0
        %7302 = vmatpush2.msra.mxu0 0.0
        %7303 = vmatprep.subr.mxu0 0.0
        %7304 = vmatpush2.msra.mxu0 0.0
        %7305 = vmatprep.subr.mxu0 0.0
        %7306 = vmatpush2.msra.mxu0 0.0
        %7307 = vmatprep.subr.mxu0 0.0
        %7308 = vmatpush2.msra.mxu0 0.0
        %7309 = vmatprep.subr.mxu0 0.0
        %7310 = vmatpush2.msra.mxu0 0.0
        %7311 = vmatprep.mubr.f32.mxu0 0.0
        %7312 = vmatmul.mubr.f32.gmra.mxu0 %v7236
        %v7313 = vpop.f32.mrf.mxu0
        %v7314 = vadd.f32 0.0, %v7313
        %v7315 = vpop.f32.mrf.mxu0
        %7316 = vmatprep.mubr.f32.mxu0 0.0
        %7317 = vmatmul.mubr.f32.gmra.mxu0 %v7239
        %v7318 = vpop.f32.mrf.mxu0
        %v7319 = vadd.f32 0.0, %v7318
        %v7320 = vpop.f32.mrf.mxu0
        %7321 = vmatprep.mubr.f32.mxu0 0.0
        %7322 = vmatmul.mubr.f32.gmra.mxu0 %v7242
        %v7323 = vpop.f32.mrf.mxu0
        %v7324 = vpop.f32.mrf.mxu0
        %7325 = vmatprep.mubr.f32.mxu0 0.0
        %7326 = vmatmul.mubr.f32.gmra.mxu0 %v7245
        %v7327 = vpop.f32.mrf.mxu0
        %v7328 = vpop.f32.mrf.mxu0
        %7329 = vdwg.mxu0
        %v7330 = vadd.f32 %v7224, %v7314
        %v7331 = vadd.f32 %v7225, %v7319
        %s7332 = scalar_lea.vmem [#allocation6], 2816
        %v7333 = vld [vmem:[%s7332] sm:$0xff]
        %v7334 = vld [vmem:[%s7332 + $0x8] sm:$0xff]
        %v7335 = vld [vmem:[%s7332 + $0x10] sm:$0xff]
        %v7336 = vld [vmem:[%s7332 + $0x18] sm:$0xff]
        %v7337 = vld [vmem:[%s7332 + $0x20] sm:$0xff]
        %v7338 = vld [vmem:[%s7332 + $0x28] sm:$0xff]
        %v7339 = vld [vmem:[%s7332 + $0x30] sm:$0xff]
        %v7340 = vld [vmem:[%s7332 + $0x38] sm:$0xff]
        %v7342 = vsel %vm431, %v5920, 0
        %v7345 = vsel %vm431, %v5925, 0
        %v7348 = vsel %vm431, %v5930, 0
        %v7351 = vsel %vm431, %v5935, 0
        %7353 = vmatprep.subr.mxu0 0.0
        %7354 = vmatpush1.msra.mxu0 0.0
        %7355 = vmatprep.subr.mxu0 0.0
        %7356 = vmatpush1.msra.mxu0 0.0
        %7357 = vmatprep.subr.mxu0 0.0
        %7358 = vmatpush1.msra.mxu0 0.0
        %7359 = vmatprep.subr.mxu0 0.0
        %7360 = vmatpush1.msra.mxu0 0.0
        %7361 = vmatprep.subr.mxu0 0.0
        %7362 = vmatpush1.msra.mxu0 0.0
        %7363 = vmatprep.subr.mxu0 0.0
        %7364 = vmatpush1.msra.mxu0 0.0
        %7365 = vmatprep.subr.mxu0 0.0
        %7366 = vmatpush1.msra.mxu0 0.0
        %7367 = vmatprep.subr.mxu0 0.0
        %7368 = vmatpush1.msra.mxu0 0.0
        %7369 = vmatprep.subr.mxu0 0.0
        %7370 = vmatpush1.msra.mxu0 %v7340
        %7371 = vmatprep.subr.mxu0 0.0
        %7372 = vmatpush1.msra.mxu0 %v7339
        %7373 = vmatprep.subr.mxu0 0.0
        %7374 = vmatpush1.msra.mxu0 %v7338
        %7375 = vmatprep.subr.mxu0 0.0
        %7376 = vmatpush1.msra.mxu0 %v7337
        %7377 = vmatprep.subr.mxu0 0.0
        %7378 = vmatpush1.msra.mxu0 %v7336
        %7379 = vmatprep.subr.mxu0 0.0
        %7380 = vmatpush1.msra.mxu0 %v7335
        %7381 = vmatprep.subr.mxu0 0.0
        %7382 = vmatpush1.msra.mxu0 %v7334
        %7383 = vmatprep.subr.mxu0 0.0
        %7384 = vmatpush1.msra.mxu0 %v7333
        %7385 = vmatprep.subr.mxu0 0.0
        %7386 = vmatpush2.msra.mxu0 0.0
        %7387 = vmatprep.subr.mxu0 0.0
        %7388 = vmatpush2.msra.mxu0 0.0
        %7389 = vmatprep.subr.mxu0 0.0
        %7390 = vmatpush2.msra.mxu0 0.0
        %7391 = vmatprep.subr.mxu0 0.0
        %7392 = vmatpush2.msra.mxu0 0.0
        %7393 = vmatprep.subr.mxu0 0.0
        %7394 = vmatpush2.msra.mxu0 0.0
        %7395 = vmatprep.subr.mxu0 0.0
        %7396 = vmatpush2.msra.mxu0 0.0
        %7397 = vmatprep.subr.mxu0 0.0
        %7398 = vmatpush2.msra.mxu0 0.0
        %7399 = vmatprep.subr.mxu0 0.0
        %7400 = vmatpush2.msra.mxu0 0.0
        %7401 = vmatprep.subr.mxu0 0.0
        %7402 = vmatpush2.msra.mxu0 0.0
        %7403 = vmatprep.subr.mxu0 0.0
        %7404 = vmatpush2.msra.mxu0 0.0
        %7405 = vmatprep.subr.mxu0 0.0
        %7406 = vmatpush2.msra.mxu0 0.0
        %7407 = vmatprep.subr.mxu0 0.0
        %7408 = vmatpush2.msra.mxu0 0.0
        %7409 = vmatprep.subr.mxu0 0.0
        %7410 = vmatpush2.msra.mxu0 0.0
        %7411 = vmatprep.subr.mxu0 0.0
        %7412 = vmatpush2.msra.mxu0 0.0
        %7413 = vmatprep.subr.mxu0 0.0
        %7414 = vmatpush2.msra.mxu0 0.0
        %7415 = vmatprep.subr.mxu0 0.0
        %7416 = vmatpush2.msra.mxu0 0.0
        %7417 = vmatprep.mubr.f32.mxu0 0.0
        %7418 = vmatmul.mubr.f32.gmra.mxu0 %v7342
        %v7419 = vpop.f32.mrf.mxu0
        %v7420 = vadd.f32 0.0, %v7419
        %v7421 = vpop.f32.mrf.mxu0
        %7422 = vmatprep.mubr.f32.mxu0 0.0
        %7423 = vmatmul.mubr.f32.gmra.mxu0 %v7345
        %v7424 = vpop.f32.mrf.mxu0
        %v7425 = vadd.f32 0.0, %v7424
        %v7426 = vpop.f32.mrf.mxu0
        %7427 = vmatprep.mubr.f32.mxu0 0.0
        %7428 = vmatmul.mubr.f32.gmra.mxu0 %v7348
        %v7429 = vpop.f32.mrf.mxu0
        %v7430 = vpop.f32.mrf.mxu0
        %7431 = vmatprep.mubr.f32.mxu0 0.0
        %7432 = vmatmul.mubr.f32.gmra.mxu0 %v7351
        %v7433 = vpop.f32.mrf.mxu0
        %v7434 = vpop.f32.mrf.mxu0
        %7435 = vdwg.mxu0
        %v7436 = vadd.f32 %v7330, %v7420
        %v7437 = vadd.f32 %v7331, %v7425
        %s7438 = scalar_lea.vmem [#allocation6], 2880
        %v7439 = vld [vmem:[%s7438] sm:$0xff]
        %v7440 = vld [vmem:[%s7438 + $0x8] sm:$0xff]
        %v7441 = vld [vmem:[%s7438 + $0x10] sm:$0xff]
        %v7442 = vld [vmem:[%s7438 + $0x18] sm:$0xff]
        %v7443 = vld [vmem:[%s7438 + $0x20] sm:$0xff]
        %v7444 = vld [vmem:[%s7438 + $0x28] sm:$0xff]
        %v7445 = vld [vmem:[%s7438 + $0x30] sm:$0xff]
        %v7446 = vld [vmem:[%s7438 + $0x38] sm:$0xff]
        %v7448 = vsel %vm431, %v5940, 0
        %v7451 = vsel %vm431, %v5945, 0
        %v7454 = vsel %vm431, %v5950, 0
        %v7457 = vsel %vm431, %v5955, 0
        %7459 = vmatprep.subr.mxu0 0.0
        %7460 = vmatpush1.msra.mxu0 0.0
        %7461 = vmatprep.subr.mxu0 0.0
        %7462 = vmatpush1.msra.mxu0 0.0
        %7463 = vmatprep.subr.mxu0 0.0
        %7464 = vmatpush1.msra.mxu0 0.0
        %7465 = vmatprep.subr.mxu0 0.0
        %7466 = vmatpush1.msra.mxu0 0.0
        %7467 = vmatprep.subr.mxu0 0.0
        %7468 = vmatpush1.msra.mxu0 0.0
        %7469 = vmatprep.subr.mxu0 0.0
        %7470 = vmatpush1.msra.mxu0 0.0
        %7471 = vmatprep.subr.mxu0 0.0
        %7472 = vmatpush1.msra.mxu0 0.0
        %7473 = vmatprep.subr.mxu0 0.0
        %7474 = vmatpush1.msra.mxu0 0.0
        %7475 = vmatprep.subr.mxu0 0.0
        %7476 = vmatpush1.msra.mxu0 %v7446
        %7477 = vmatprep.subr.mxu0 0.0
        %7478 = vmatpush1.msra.mxu0 %v7445
        %7479 = vmatprep.subr.mxu0 0.0
        %7480 = vmatpush1.msra.mxu0 %v7444
        %7481 = vmatprep.subr.mxu0 0.0
        %7482 = vmatpush1.msra.mxu0 %v7443
        %7483 = vmatprep.subr.mxu0 0.0
        %7484 = vmatpush1.msra.mxu0 %v7442
        %7485 = vmatprep.subr.mxu0 0.0
        %7486 = vmatpush1.msra.mxu0 %v7441
        %7487 = vmatprep.subr.mxu0 0.0
        %7488 = vmatpush1.msra.mxu0 %v7440
        %7489 = vmatprep.subr.mxu0 0.0
        %7490 = vmatpush1.msra.mxu0 %v7439
        %7491 = vmatprep.subr.mxu0 0.0
        %7492 = vmatpush2.msra.mxu0 0.0
        %7493 = vmatprep.subr.mxu0 0.0
        %7494 = vmatpush2.msra.mxu0 0.0
        %7495 = vmatprep.subr.mxu0 0.0
        %7496 = vmatpush2.msra.mxu0 0.0
        %7497 = vmatprep.subr.mxu0 0.0
        %7498 = vmatpush2.msra.mxu0 0.0
        %7499 = vmatprep.subr.mxu0 0.0
        %7500 = vmatpush2.msra.mxu0 0.0
        %7501 = vmatprep.subr.mxu0 0.0
        %7502 = vmatpush2.msra.mxu0 0.0
        %7503 = vmatprep.subr.mxu0 0.0
        %7504 = vmatpush2.msra.mxu0 0.0
        %7505 = vmatprep.subr.mxu0 0.0
        %7506 = vmatpush2.msra.mxu0 0.0
        %7507 = vmatprep.subr.mxu0 0.0
        %7508 = vmatpush2.msra.mxu0 0.0
        %7509 = vmatprep.subr.mxu0 0.0
        %7510 = vmatpush2.msra.mxu0 0.0
        %7511 = vmatprep.subr.mxu0 0.0
        %7512 = vmatpush2.msra.mxu0 0.0
        %7513 = vmatprep.subr.mxu0 0.0
        %7514 = vmatpush2.msra.mxu0 0.0
        %7515 = vmatprep.subr.mxu0 0.0
        %7516 = vmatpush2.msra.mxu0 0.0
        %7517 = vmatprep.subr.mxu0 0.0
        %7518 = vmatpush2.msra.mxu0 0.0
        %7519 = vmatprep.subr.mxu0 0.0
        %7520 = vmatpush2.msra.mxu0 0.0
        %7521 = vmatprep.subr.mxu0 0.0
        %7522 = vmatpush2.msra.mxu0 0.0
        %7523 = vmatprep.mubr.f32.mxu0 0.0
        %7524 = vmatmul.mubr.f32.gmra.mxu0 %v7448
        %v7525 = vpop.f32.mrf.mxu0
        %v7526 = vadd.f32 0.0, %v7525
        %v7527 = vpop.f32.mrf.mxu0
        %7528 = vmatprep.mubr.f32.mxu0 0.0
        %7529 = vmatmul.mubr.f32.gmra.mxu0 %v7451
        %v7530 = vpop.f32.mrf.mxu0
        %v7531 = vadd.f32 0.0, %v7530
        %v7532 = vpop.f32.mrf.mxu0
        %7533 = vmatprep.mubr.f32.mxu0 0.0
        %7534 = vmatmul.mubr.f32.gmra.mxu0 %v7454
        %v7535 = vpop.f32.mrf.mxu0
        %v7536 = vpop.f32.mrf.mxu0
        %7537 = vmatprep.mubr.f32.mxu0 0.0
        %7538 = vmatmul.mubr.f32.gmra.mxu0 %v7457
        %v7539 = vpop.f32.mrf.mxu0
        %v7540 = vpop.f32.mrf.mxu0
        %7541 = vdwg.mxu0
        %v7542 = vadd.f32 %v7436, %v7526
        %v7543 = vadd.f32 %v7437, %v7531
        %s7544 = scalar_lea.vmem %s4, 160
        %v7545 = vld [vmem:[%s7544] sm:$0xff]
        %v7546 = vld [vmem:[%s7544 + $0x8] sm:$0xff]
        %7548 = vset.pattern.permute.xlu0 0
        %7549 = vperm.xlu0 %7548, %v7545
        %v7550 = vpop.permute.xlu0 %7549
        %7553 = vset.pattern.permute.xlu0 0
        %7554 = vperm.xlu0 %7553, %v7546
        %v7555 = vpop.permute.xlu0 %7554
        %v7557 = vadd.f32 %v7542, %v7550
        %v7558 = vadd.f32 %v7543, %v7555
        %v7559 = vld [vmem:[%s253] sm:$0x1]
        %v7561 = vlaneseq
        %v7562 = vshrl.u32 %v7561, 7
        %v7563 = vsub.s32 0, %v7562
        %v7564 = vrot.slane %v7559, %v7563
        %v7566 = vmul.f32 %v7557, %v7564
        %v7567 = vmul.f32 %v7558, %v7564
        %7568 = vst.msk [vmem:[%s292] sm:$0xff] %vm431, %v7566
        %vm7569 = vcmask 519168
        %7570 = vst.msk [vmem:[%s292 + $0x8] sm:$0xf] %vm7569, %v7567
        %p7571 = scmp.lt.s32.totalorder %s22, 1
        %s7572 = scalar_select %p7571, %s22, 1
        %s7573 = smul.addr %s7572, 2
        %s7574 = smul.addr %s7573, 8
        %s7575 = scalar_lea.vmem %s5, %s7574
        // Predicated region
        $region53: #{tpu_custom_call.1} parent=39 // pred_check
          %p7576 = pneg %p155
        $region54: #{tpu_custom_call.1} parent=39 // pred_check_branch
          %7578 = sbr.rel (%p7576) target = $region56
        $region55: #{tpu_custom_call.1} parent=39 // pred_region
          _
        $region56: #{tpu_custom_call.1} parent=39 // pred_fallthru
          _
      $region40: #{tpu_custom_call.1} parent=5 // pred_fallthru
        _
      %p7579 = scmp.le.s32.totalorder 2, %s17
      // Predicated region
      $region57: #{tpu_custom_call.1} parent=5 // pred_check
        %p7580 = pneg %p7579
      $region58: #{tpu_custom_call.1} parent=5 // pred_check_branch
        %7582 = sbr.rel (%p7580) target = $region60
      $region59: #{tpu_custom_call.1} parent=5 // pred_region
        %s7583 = ssub.s32 %s17, 2
        // Predicated region
        $region61: #{tpu_custom_call.1} parent=59 // pred_check
          %p7584 = pneg %p161
        $region62: #{tpu_custom_call.1} parent=59 // pred_check_branch
          %7586 = sbr.rel (%p7584) target = $region64
        $region63: #{tpu_custom_call.1} parent=59 // pred_region
          %p7587 = scmp.lt.s32.totalorder %s23, 1
          %s7588 = scalar_select %p7587, %s23, 1
          %s7589 = smul.addr %s7588, 2
          %s7590 = smul.addr %s7589, 8
          %s7591 = scalar_lea.vmem %s5, %s7590
        $region64: #{tpu_custom_call.1} parent=59 // pred_fallthru
          _
      $region60: #{tpu_custom_call.1} parent=5 // pred_fallthru
        _
    $region6: #{tpu_custom_call.1} parent=1 // loop_footer
      %s21 = sadd.s32 1, %s17
    $region7: #{tpu_custom_call.1} parent=1 // loop_footer_branch
      %16 = sbr.rel target = $region3
    $region8: #{tpu_custom_call.1} parent=1 // loop_exit
      _
    %7592 = vsyncpa [#allocation3], 1
    %s7593 = scalar_lea.sflag [#allocation3], 1
    %7594 = vsyncpa %s7593, 1
    %7595 = vsyncpa [#allocation5], 1
    %s7596 = scalar_lea.sflag [#allocation5], 1
    %7597 = vsyncpa %s7596, 1

</llo_original>
